<compile_context>
chip_gen: v6e
topology: v6e:2x2x1
jax: 0.10.0
libtpu: 0.0.40
codegen_flags: <defaults>
</compile_context>

<pallas_src>
import functools

import jax
import jax.numpy as jnp
from jax.experimental import pallas as pl
from jax.experimental.pallas import tpu as pltpu

EPS = 1e-5      # InstanceNorm eps
SLOPE = 1e-2    # LeakyReLU negative_slope


def _round_up(a, b):
    return ((a + b - 1) // b) * b


# ---------------- fused Pallas kernel (one grid step per sample) ----------------

def _bottleneck_kernel(x_ref, wf_ref, w2_ref, w3_ref,
                       p1_ref, p2_ref, p3_ref, o_ref, pad_ref, *,
                       H, W, CB, CB_PAD, COUT, pad_rows, eps, slope):
    HW = H * W
    f32 = jnp.float32
    bf16 = x_ref.dtype

    def inorm(y, g, beta):
        # two-pass per-channel stats over H*W (biased var, like InstanceNorm2d).
        # conv biases are omitted upstream: the mean subtraction cancels them.
        mu = jnp.mean(y, axis=0, keepdims=True)
        d = y - mu
        var = jnp.mean(d * d, axis=0, keepdims=True)
        return d * (g * jax.lax.rsqrt(var + eps)) + beta

    def lrelu(y):
        return jnp.where(y >= 0.0, y, slope * y)

    x = x_ref[...]                                                 # (HW, Cin) bf16

    # ---- conv1 (1x1) and skip 1x1 conv fused into a single MXU matmul ----
    # wf columns [0:CB) hold conv1 weights, [CB_PAD:CB_PAD+COUT) the skip weights.
    y01 = jnp.dot(x, wf_ref[...], preferred_element_type=f32)      # (HW, CB_PAD+COUT)
    h1 = lrelu(inorm(y01[:, :CB], p1_ref[0:1, :], p1_ref[1:2, :]))             # (HW, Cb) f32
    r = inorm(y01[:, CB_PAD:CB_PAD + COUT], p3_ref[2:3, :], p3_ref[3:4, :])    # (HW, Cout) f32

    # ---- conv2 (3x3, SAME) via 9 shifted bf16 taps from a padded VMEM plane ----
    # zero only the top/bottom halo rows; the interior is fully overwritten below.
    pad_ref[pl.ds(0, pad_rows), :] = jnp.zeros((pad_rows, CB), bf16)
    pad_ref[pl.ds(pad_rows + HW, pad_rows), :] = jnp.zeros((pad_rows, CB), bf16)
    pad_ref[pl.ds(pad_rows, HW), :] = h1.astype(bf16)

    # TODO(synk): width-pad the scratch (row stride W+2 rounded up) to drop
    # these 6 boundary-column selects at production plane sizes.
    wcol = jax.lax.broadcasted_iota(jnp.int32, (HW, 1), 0) % W     # output column idx
    acc = jnp.zeros((HW, CB), f32)
    for kh in range(3):
        for kw in range(3):
            di, dj = kh - 1, kw - 1
            # tap[p] = h1[p + di*W + dj]   (zero outside the image)
            tap = pad_ref[pl.ds(pad_rows + di * W + dj, HW), :]
            if dj == 1:                                            # mask column wrap
                tap = jnp.where(wcol < W - 1, tap, jnp.zeros_like(tap))
            elif dj == -1:
                tap = jnp.where(wcol >= 1, tap, jnp.zeros_like(tap))
            acc = acc + jnp.dot(tap, w2_ref[kh * 3 + kw],
                                preferred_element_type=f32)
    h2 = lrelu(inorm(acc, p2_ref[0:1, :], p2_ref[1:2, :])).astype(bf16)

    # ---- conv3 (1x1) -> InstanceNorm ----
    y3 = inorm(jnp.dot(h2, w3_ref[...], preferred_element_type=f32),
               p3_ref[0:1, :], p3_ref[1:2, :])

    # ---- residual add -> LeakyReLU, bf16 writeback ----
    o_ref[...] = lrelu(y3 + r).astype(o_ref.dtype)


# ---------------- wrappers ----------------

def residual_bottleneck_forward_nhwc(x_nhwc, p, *, out_dtype=jnp.bfloat16):
    """Core entry point: x_nhwc (N, H, W, Cin) -> (N, H, W, Cout), no transposes."""
    n, h, w, cin = x_nhwc.shape
    cb = p["w1"].shape[0]              # bottleneck planes = out_planes // 4
    cout = p["w3"].shape[0]
    hw = h * w
    pad_rows = _round_up(w + 1, 16)    # halo >= W+1, aligned for bf16 sublane packing
    cb_pad = _round_up(cb, 128)        # 128-lane-aligned conv1 / skip split

    x_bf16 = x_nhwc.reshape(n, hw, cin).astype(jnp.bfloat16)

    # PyTorch OIHW weights -> matmul layouts (bf16 operands, f32 accumulation)
    w1m = jnp.transpose(p["w1"][:, :, 0, 0], (1, 0))                       # (Cin, Cb)
    wsm = jnp.transpose(p["ws"][:, :, 0, 0], (1, 0))                       # (Cin, Cout)
    wf = jnp.zeros((cin, cb_pad + cout), jnp.float32)
    wf = wf.at[:, :cb].set(w1m).at[:, cb_pad:].set(wsm).astype(jnp.bfloat16)
    w2m = jnp.transpose(p["w2"], (2, 3, 1, 0)).reshape(9, cb, cb).astype(jnp.bfloat16)
    w3m = jnp.transpose(p["w3"][:, :, 0, 0], (1, 0)).astype(jnp.bfloat16)  # (Cb, Cout)

    # conv biases before InstanceNorm are exactly cancelled by the mean
    # subtraction -> not passed to the kernel.  f32 norm/affine params only.
    p1 = jnp.stack([p["g1"], p["be1"]]).astype(jnp.float32)                # (2, Cb)
    p2 = jnp.stack([p["g2"], p["be2"]]).astype(jnp.float32)                # (2, Cb)
    p3 = jnp.stack([p["g3"], p["be3"], p["gs"], p["bs"]]).astype(jnp.float32)  # (4, Cout)

    kernel = functools.partial(_bottleneck_kernel, H=h, W=w, CB=cb,
                               CB_PAD=cb_pad, COUT=cout,
                               pad_rows=pad_rows, eps=EPS, slope=SLOPE)

    # VMEM budget derived from the actual per-step blocks (double-buffered
    # in/out, weights, bf16 scratch, f32 intermediates) plus headroom.
    # TODO(synk): on v5e/v6e this could be raised toward ~100 MiB for bigger
    # HW tiles; keep <= ~56 MiB on v7x (64 MiB physical VMEM).
    vmem_bytes = (2 * hw * cin * 2                       # x block, double-buffered bf16
                  + 2 * hw * cout * 2                    # out block, double-buffered bf16
                  + 2 * (cin * (cb_pad + cout) + 9 * cb * cb + cb * cout) * 2
                  + 2 * (2 * cb + 2 * cb + 4 * cout) * 4
                  + (hw + 2 * pad_rows) * cb * 2         # bf16 scratch plane
                  + 4 * hw * (cb_pad + cout) * 4)        # live f32 intermediates slack
    vmem_limit = int(min(max(_round_up(vmem_bytes, 1 << 20) + (8 << 20), 16 << 20),
                         56 << 20))

    out = pl.pallas_call(
        kernel,
        out_shape=jax.ShapeDtypeStruct((n, hw, cout), out_dtype),
        grid=(n,),
        in_specs=[
            pl.BlockSpec((pl.Squeezed(), hw, cin), lambda i: (i, 0, 0)),   # x
            pl.BlockSpec((cin, cb_pad + cout), lambda i: (0, 0)),          # fused conv1+skip W
            pl.BlockSpec((9, cb, cb), lambda i: (0, 0, 0)),                # 3x3 taps
            pl.BlockSpec((cb, cout), lambda i: (0, 0)),                    # conv3 W
            pl.BlockSpec((2, cb), lambda i: (0, 0)),                       # g1, be1
            pl.BlockSpec((2, cb), lambda i: (0, 0)),                       # g2, be2
            pl.BlockSpec((4, cout), lambda i: (0, 0)),                     # g3, be3, gs, bs
        ],
        out_specs=pl.BlockSpec((pl.Squeezed(), hw, cout), lambda i: (i, 0, 0)),
        scratch_shapes=[pltpu.VMEM((hw + 2 * pad_rows, cb), jnp.bfloat16)],
        compiler_params=pltpu.CompilerParams(
            dimension_semantics=("parallel",),
            vmem_limit_bytes=vmem_limit,
        ),
    )(x_bf16, wf, w2m, w3m, p1, p2, p3)

    return out.reshape(n, h, w, cout)


def residual_bottleneck_forward(x_nchw, p):
    """NCHW adapter for parity with the PyTorch module (demo/testing only).

    TODO(synk): in a full network keep activations NHWC end-to-end; these two
    transposes are HBM round-trips that roughly double the op's HBM traffic.
    """
    x_nhwc = jnp.transpose(x_nchw, (0, 2, 3, 1))
    out = residual_bottleneck_forward_nhwc(x_nhwc, p)
    return jnp.transpose(out, (0, 3, 1, 2))


# ---------------- pure-JAX reference (semantics check) ----------------

def reference_forward(x, p):
    def conv(v, w, b, pad):
        y = jax.lax.conv_general_dilated(
            v, w, window_strides=(1, 1), padding=[(pad, pad), (pad, pad)],
            dimension_numbers=("NCHW", "OIHW", "NCHW"))
        if b is not None:
            y = y + b[None, :, None, None]
        return y

    def inorm(v, g, b):
        mu = jnp.mean(v, axis=(2, 3), keepdims=True)
        var = jnp.mean((v - mu) ** 2, axis=(2, 3), keepdims=True)
        return ((v - mu) * jax.lax.rsqrt(var + EPS) * g[None, :, None, None]
                + b[None, :, None, None])

    lrelu = lambda v: jnp.where(v >= 0, v, SLOPE * v)

    out = lrelu(inorm(conv(x, p["w1"], p["b1"], 0), p["g1"], p["be1"]))
    out = lrelu(inorm(conv(out, p["w2"], p["b2"], 1), p["g2"], p["be2"]))
    out = inorm(conv(out, p["w3"], p["b3"], 0), p["g3"], p["be3"])
    res = inorm(conv(x, p["ws"], None, 0), p["gs"], p["bs"])
    return lrelu(out + res)


if __name__ == "__main__":
    import numpy as np

    N, Cin, Cout, H, W = 2, 4, 8, 16, 16
    Cb = Cout // 4
    KH = KW = 3
    # TODO(synk): stride != 1 (strided conv1 + strided 1x1 skip) and the
    # identity-skip case (in_planes == out_planes) are not exercised here; this
    # instance uses stride=None and in_planes != out_planes (downsample skip).

    ks = jax.random.split(jax.random.PRNGKey(0), 16)
    x = jax.random.normal(ks[0], (N, Cin, H, W), jnp.float32)
    params = {
        "w1": 0.1 * jax.random.normal(ks[1], (Cb, Cin, 1, 1), jnp.float32),
        "b1": 0.1 * jax.random.normal(ks[2], (Cb,), jnp.float32),
        "g1": 1.0 + 0.1 * jax.random.normal(ks[3], (Cb,), jnp.float32),
        "be1": 0.1 * jax.random.normal(ks[4], (Cb,), jnp.float32),
        "w2": 0.1 * jax.random.normal(ks[5], (Cb, Cb, KH, KW), jnp.float32),
        "b2": 0.1 * jax.random.normal(ks[6], (Cb,), jnp.float32),
        "g2": 1.0 + 0.1 * jax.random.normal(ks[7], (Cb,), jnp.float32),
        "be2": 0.1 * jax.random.normal(ks[8], (Cb,), jnp.float32),
        "w3": 0.1 * jax.random.normal(ks[9], (Cout, Cb, 1, 1), jnp.float32),
        "b3": 0.1 * jax.random.normal(ks[10], (Cout,), jnp.float32),
        "g3": 1.0 + 0.1 * jax.random.normal(ks[11], (Cout,), jnp.float32),
        "be3": 0.1 * jax.random.normal(ks[12], (Cout,), jnp.float32),
        "ws": 0.1 * jax.random.normal(ks[13], (Cout, Cin, 1, 1), jnp.float32),
        "gs": 1.0 + 0.1 * jax.random.normal(ks[14], (Cout,), jnp.float32),
        "bs": 0.1 * jax.random.normal(ks[15], (Cout,), jnp.float32),
    }

    out = jax.block_until_ready(residual_bottleneck_forward(x, params))
    ref = jax.block_until_ready(reference_forward(x, params))

    assert out.shape == (N, Cout, H, W), out.shape
    # bf16 matmul operands + bf16 output (f32 accumulation) vs f32 reference
    out_f32 = np.asarray(jnp.asarray(out, jnp.float32))
    np.testing.assert_allclose(out_f32, np.asarray(ref), atol=5e-2, rtol=5e-2)
    print("KERNEL_OK")
</pallas_src>

<mosaic_0001>
module attributes {stable_mosaic.version = 11 : i64} {
  func.func @_bottleneck_kernel(%arg0: i32, %arg1: memref<1x256x4xbf16, #tpu.memory_space<vmem>>, %arg2: memref<4x136xbf16, #tpu.memory_space<vmem>>, %arg3: memref<9x2x2xbf16, #tpu.memory_space<vmem>>, %arg4: memref<2x8xbf16, #tpu.memory_space<vmem>>, %arg5: memref<2x2xf32, #tpu.memory_space<vmem>>, %arg6: memref<2x2xf32, #tpu.memory_space<vmem>>, %arg7: memref<4x8xf32, #tpu.memory_space<vmem>>, %arg8: memref<1x256x8xbf16, #tpu.memory_space<vmem>>, %arg9: memref<320x2xbf16, #tpu.memory_space<vmem>>) attributes {dimension_semantics = [#tpu.dimension_semantics<parallel>], iteration_bounds = array<i64: 2>, scalar_prefetch = 0 : i64, scratch_operands = 1 : i64, tpu.core_type = #tpu.core_type<tc>, window_params = [{transform_indices = @transform_0, window_bounds = array<i64: 1, 256, 4>}, {pipeline_mode = #tpu.pipeline_mode<synchronous>, transform_indices = @transform_1, window_bounds = array<i64: 4, 136>}, {pipeline_mode = #tpu.pipeline_mode<synchronous>, transform_indices = @transform_2, window_bounds = array<i64: 9, 2, 2>}, {pipeline_mode = #tpu.pipeline_mode<synchronous>, transform_indices = @transform_3, window_bounds = array<i64: 2, 8>}, {pipeline_mode = #tpu.pipeline_mode<synchronous>, transform_indices = @transform_4, window_bounds = array<i64: 2, 2>}, {pipeline_mode = #tpu.pipeline_mode<synchronous>, transform_indices = @transform_5, window_bounds = array<i64: 2, 2>}, {pipeline_mode = #tpu.pipeline_mode<synchronous>, transform_indices = @transform_6, window_bounds = array<i64: 4, 8>}, {transform_indices = @transform_7, window_bounds = array<i64: 1, 256, 8>}]} {
    %c0 = arith.constant 0 : index
    %c0_0 = arith.constant 0 : index
    %c0_1 = arith.constant 0 : index
    %0 = vector.load %arg1[%c0, %c0_0, %c0_1] : memref<1x256x4xbf16, #tpu.memory_space<vmem>>, vector<1x256x4xbf16>
    %1 = vector.shape_cast %0 : vector<1x256x4xbf16> to vector<256x4xbf16>
    %c0_2 = arith.constant 0 : index
    %c0_3 = arith.constant 0 : index
    %2 = vector.load %arg2[%c0_2, %c0_3] : memref<4x136xbf16, #tpu.memory_space<vmem>>, vector<4x136xbf16>
    %cst = arith.constant dense<0.000000e+00> : vector<256x136xf32>
    %3 = tpu.matmul %1, %2, %cst {dimension_numbers = #tpu.dot_dimension_numbers<[1], [0], [0], [1], [0, 0, 1, 1], [], []>} : vector<256x4xbf16>, vector<4x136xbf16>, vector<256x136xf32> -> vector<256x136xf32>
    %4 = vector.extract_strided_slice %3 {offsets = [0, 0], sizes = [256, 2], strides = [1, 1]} : vector<256x136xf32> to vector<256x2xf32>
    %c0_4 = arith.constant 0 : index
    %c0_5 = arith.constant 0 : index
    %5 = vector.load %arg5[%c0_4, %c0_5] : memref<2x2xf32, #tpu.memory_space<vmem>>, vector<1x2xf32>
    %c1 = arith.constant 1 : index
    %c0_6 = arith.constant 0 : index
    %6 = vector.load %arg5[%c1, %c0_6] : memref<2x2xf32, #tpu.memory_space<vmem>>, vector<1x2xf32>
    %cst_7 = arith.constant dense<0.000000e+00> : vector<2xf32>
    %7 = vector.multi_reduction <add>, %4, %cst_7 [0] : vector<256x2xf32> to vector<2xf32>
    %8 = vector.shape_cast %7 : vector<2xf32> to vector<1x2xf32>
    %cst_8 = arith.constant 2.560000e+02 : f32
    %9 = vector.broadcast %cst_8 : f32 to vector<1x2xf32>
    %10 = arith.divf %8, %9 : vector<1x2xf32>
    %11 = vector.broadcast %10 : vector<1x2xf32> to vector<256x2xf32>
    %12 = arith.subf %4, %11 : vector<256x2xf32>
    %13 = arith.mulf %12, %12 : vector<256x2xf32>
    %cst_9 = arith.constant dense<0.000000e+00> : vector<2xf32>
    %14 = vector.multi_reduction <add>, %13, %cst_9 [0] : vector<256x2xf32> to vector<2xf32>
    %15 = vector.shape_cast %14 : vector<2xf32> to vector<1x2xf32>
    %cst_10 = arith.constant 2.560000e+02 : f32
    %16 = vector.broadcast %cst_10 : f32 to vector<1x2xf32>
    %17 = arith.divf %15, %16 : vector<1x2xf32>
    %cst_11 = arith.constant 9.99999974E-6 : f32
    %18 = vector.broadcast %cst_11 : f32 to vector<1x2xf32>
    %19 = arith.addf %17, %18 : vector<1x2xf32>
    %20 = math.rsqrt %19 : vector<1x2xf32>
    %21 = arith.mulf %5, %20 : vector<1x2xf32>
    %22 = vector.broadcast %21 : vector<1x2xf32> to vector<256x2xf32>
    %23 = arith.mulf %12, %22 : vector<256x2xf32>
    %24 = vector.broadcast %6 : vector<1x2xf32> to vector<256x2xf32>
    %25 = arith.addf %23, %24 : vector<256x2xf32>
    %cst_12 = arith.constant 0.000000e+00 : f32
    %26 = vector.broadcast %cst_12 : f32 to vector<256x2xf32>
    %27 = arith.cmpf oge, %25, %26 : vector<256x2xf32>
    %cst_13 = arith.constant 0.00999999977 : f32
    %28 = vector.broadcast %cst_13 : f32 to vector<256x2xf32>
    %29 = arith.mulf %28, %25 : vector<256x2xf32>
    %30 = arith.select %27, %25, %29 : vector<256x2xi1>, vector<256x2xf32>
    %31 = vector.extract_strided_slice %3 {offsets = [0, 128], sizes = [256, 8], strides = [1, 1]} : vector<256x136xf32> to vector<256x8xf32>
    %c2 = arith.constant 2 : index
    %c0_14 = arith.constant 0 : index
    %32 = vector.load %arg7[%c2, %c0_14] : memref<4x8xf32, #tpu.memory_space<vmem>>, vector<1x8xf32>
    %c3 = arith.constant 3 : index
    %c0_15 = arith.constant 0 : index
    %33 = vector.load %arg7[%c3, %c0_15] : memref<4x8xf32, #tpu.memory_space<vmem>>, vector<1x8xf32>
    %cst_16 = arith.constant dense<0.000000e+00> : vector<8xf32>
    %34 = vector.multi_reduction <add>, %31, %cst_16 [0] : vector<256x8xf32> to vector<8xf32>
    %35 = vector.shape_cast %34 : vector<8xf32> to vector<1x8xf32>
    %cst_17 = arith.constant 2.560000e+02 : f32
    %36 = vector.broadcast %cst_17 : f32 to vector<1x8xf32>
    %37 = arith.divf %35, %36 : vector<1x8xf32>
    %38 = vector.broadcast %37 : vector<1x8xf32> to vector<256x8xf32>
    %39 = arith.subf %31, %38 : vector<256x8xf32>
    %40 = arith.mulf %39, %39 : vector<256x8xf32>
    %cst_18 = arith.constant dense<0.000000e+00> : vector<8xf32>
    %41 = vector.multi_reduction <add>, %40, %cst_18 [0] : vector<256x8xf32> to vector<8xf32>
    %42 = vector.shape_cast %41 : vector<8xf32> to vector<1x8xf32>
    %cst_19 = arith.constant 2.560000e+02 : f32
    %43 = vector.broadcast %cst_19 : f32 to vector<1x8xf32>
    %44 = arith.divf %42, %43 : vector<1x8xf32>
    %cst_20 = arith.constant 9.99999974E-6 : f32
    %45 = vector.broadcast %cst_20 : f32 to vector<1x8xf32>
    %46 = arith.addf %44, %45 : vector<1x8xf32>
    %47 = math.rsqrt %46 : vector<1x8xf32>
    %48 = arith.mulf %32, %47 : vector<1x8xf32>
    %49 = vector.broadcast %48 : vector<1x8xf32> to vector<256x8xf32>
    %50 = arith.mulf %39, %49 : vector<256x8xf32>
    %51 = vector.broadcast %33 : vector<1x8xf32> to vector<256x8xf32>
    %52 = arith.addf %50, %51 : vector<256x8xf32>
    %cst_21 = arith.constant 0.000000e+00 : bf16
    %53 = vector.broadcast %cst_21 : bf16 to vector<32x2xbf16>
    %c0_22 = arith.constant 0 : index
    %c0_23 = arith.constant 0 : index
    %54 = vector.load %arg9[%c0_22, %c0_23] : memref<320x2xbf16, #tpu.memory_space<vmem>>, vector<32x2xbf16>
    tpu.vector_store %arg9[%c0_22, %c0_23], %53 {strides = array<i32>} : memref<320x2xbf16, #tpu.memory_space<vmem>>, vector<32x2xbf16>,
    %cst_24 = arith.constant 0.000000e+00 : bf16
    %55 = vector.broadcast %cst_24 : bf16 to vector<32x2xbf16>
    %c288 = arith.constant 288 : index
    %c0_25 = arith.constant 0 : index
    %56 = vector.load %arg9[%c288, %c0_25] : memref<320x2xbf16, #tpu.memory_space<vmem>>, vector<32x2xbf16>
    tpu.vector_store %arg9[%c288, %c0_25], %55 {strides = array<i32>} : memref<320x2xbf16, #tpu.memory_space<vmem>>, vector<32x2xbf16>,
    %57 = arith.truncf %30 : vector<256x2xf32> to vector<256x2xbf16>
    %c32 = arith.constant 32 : index
    %c0_26 = arith.constant 0 : index
    %58 = vector.load %arg9[%c32, %c0_26] : memref<320x2xbf16, #tpu.memory_space<vmem>>, vector<256x2xbf16>
    tpu.vector_store %arg9[%c32, %c0_26], %57 {strides = array<i32>} : memref<320x2xbf16, #tpu.memory_space<vmem>>, vector<256x2xbf16>,
    %59 = tpu.iota {dimensions = array<i32: 0>} : vector<256x1xi32>
    %c16_i32 = arith.constant 16 : i32
    %c0_i32 = arith.constant 0 : i32
    %60 = arith.cmpi eq, %c16_i32, %c0_i32 : i32
    %c1_i32 = arith.constant 1 : i32
    %61 = arith.select %60, %c1_i32, %c16_i32 : i32
    %62 = vector.broadcast %61 : i32 to vector<256x1xi32>
    %63 = arith.remsi %59, %62 : vector<256x1xi32>
    %c0_i32_27 = arith.constant 0 : i32
    %64 = vector.broadcast %c0_i32_27 : i32 to vector<256x1xi32>
    %65 = arith.cmpi ne, %63, %64 : vector<256x1xi32>
    %c0_i32_28 = arith.constant 0 : i32
    %66 = vector.broadcast %c0_i32_28 : i32 to vector<256x1xi32>
    %67 = arith.cmpi slt, %63, %66 : vector<256x1xi32>
    %c0_i32_29 = arith.constant 0 : i32
    %68 = arith.cmpi slt, %61, %c0_i32_29 : i32
    %69 = vector.broadcast %68 : i1 to vector<256x1xi1>
    %70 = vector.broadcast %69 : vector<256x1xi1> to vector<256x1xi1>
    %71 = arith.xori %67, %70 : vector<256x1xi1>
    %72 = arith.andi %71, %65 : vector<256x1xi1>
    %73 = vector.broadcast %61 : i32 to vector<256x1xi32>
    %74 = arith.addi %63, %73 : vector<256x1xi32>
    %75 = arith.select %72, %74, %63 : vector<256x1xi1>, vector<256x1xi32>
    %cst_30 = arith.constant 0.000000e+00 : f32
    %76 = vector.broadcast %cst_30 : f32 to vector<256x2xf32>
    %c15 = arith.constant 15 : index
    %c0_31 = arith.constant 0 : index
    %77 = vector.load %arg9[%c15, %c0_31] : memref<320x2xbf16, #tpu.memory_space<vmem>>, vector<256x2xbf16>
    %c1_i32_32 = arith.constant 1 : i32
    %78 = vector.broadcast %c1_i32_32 : i32 to vector<256x1xi32>
    %79 = arith.cmpi sge, %75, %78 : vector<256x1xi32>
    %cst_33 = arith.constant 0.000000e+00 : bf16
    %80 = vector.broadcast %cst_33 : bf16 to vector<256x2xbf16>
    %81 = vector.shape_cast %79 : vector<256x1xi1> to vector<256x1xi1>
    %82 = vector.broadcast %81 : vector<256x1xi1> to vector<256x2xi1>
    %83 = arith.select %82, %77, %80 : vector<256x2xi1>, vector<256x2xbf16>
    %c0_34 = arith.constant 0 : index
    %c0_35 = arith.constant 0 : index
    %c0_36 = arith.constant 0 : index
    %84 = vector.load %arg3[%c0_34, %c0_35, %c0_36] : memref<9x2x2xbf16, #tpu.memory_space<vmem>>, vector<1x2x2xbf16>
    %85 = vector.shape_cast %84 : vector<1x2x2xbf16> to vector<2x2xbf16>
    %cst_37 = arith.constant dense<0.000000e+00> : vector<256x2xf32>
    %86 = tpu.matmul %83, %85, %cst_37 {dimension_numbers = #tpu.dot_dimension_numbers<[1], [0], [0], [1], [0, 0, 1, 1], [], []>} : vector<256x2xbf16>, vector<2x2xbf16>, vector<256x2xf32> -> vector<256x2xf32>
    %87 = arith.addf %76, %86 : vector<256x2xf32>
    %c16 = arith.constant 16 : index
    %c0_38 = arith.constant 0 : index
    %88 = vector.load %arg9[%c16, %c0_38] : memref<320x2xbf16, #tpu.memory_space<vmem>>, vector<256x2xbf16>
    %c1_39 = arith.constant 1 : index
    %c0_40 = arith.constant 0 : index
    %c0_41 = arith.constant 0 : index
    %89 = vector.load %arg3[%c1_39, %c0_40, %c0_41] : memref<9x2x2xbf16, #tpu.memory_space<vmem>>, vector<1x2x2xbf16>
    %90 = vector.shape_cast %89 : vector<1x2x2xbf16> to vector<2x2xbf16>
    %cst_42 = arith.constant dense<0.000000e+00> : vector<256x2xf32>
    %91 = tpu.matmul %88, %90, %cst_42 {dimension_numbers = #tpu.dot_dimension_numbers<[1], [0], [0], [1], [0, 0, 1, 1], [], []>} : vector<256x2xbf16>, vector<2x2xbf16>, vector<256x2xf32> -> vector<256x2xf32>
    %92 = arith.addf %87, %91 : vector<256x2xf32>
    %c17 = arith.constant 17 : index
    %c0_43 = arith.constant 0 : index
    %93 = vector.load %arg9[%c17, %c0_43] : memref<320x2xbf16, #tpu.memory_space<vmem>>, vector<256x2xbf16>
    %c15_i32 = arith.constant 15 : i32
    %94 = vector.broadcast %c15_i32 : i32 to vector<256x1xi32>
    %95 = arith.cmpi slt, %75, %94 : vector<256x1xi32>
    %cst_44 = arith.constant 0.000000e+00 : bf16
    %96 = vector.broadcast %cst_44 : bf16 to vector<256x2xbf16>
    %97 = vector.shape_cast %95 : vector<256x1xi1> to vector<256x1xi1>
    %98 = vector.broadcast %97 : vector<256x1xi1> to vector<256x2xi1>
    %99 = arith.select %98, %93, %96 : vector<256x2xi1>, vector<256x2xbf16>
    %c2_45 = arith.constant 2 : index
    %c0_46 = arith.constant 0 : index
    %c0_47 = arith.constant 0 : index
    %100 = vector.load %arg3[%c2_45, %c0_46, %c0_47] : memref<9x2x2xbf16, #tpu.memory_space<vmem>>, vector<1x2x2xbf16>
    %101 = vector.shape_cast %100 : vector<1x2x2xbf16> to vector<2x2xbf16>
    %cst_48 = arith.constant dense<0.000000e+00> : vector<256x2xf32>
    %102 = tpu.matmul %99, %101, %cst_48 {dimension_numbers = #tpu.dot_dimension_numbers<[1], [0], [0], [1], [0, 0, 1, 1], [], []>} : vector<256x2xbf16>, vector<2x2xbf16>, vector<256x2xf32> -> vector<256x2xf32>
    %103 = arith.addf %92, %102 : vector<256x2xf32>
    %c31 = arith.constant 31 : index
    %c0_49 = arith.constant 0 : index
    %104 = vector.load %arg9[%c31, %c0_49] : memref<320x2xbf16, #tpu.memory_space<vmem>>, vector<256x2xbf16>
    %c1_i32_50 = arith.constant 1 : i32
    %105 = vector.broadcast %c1_i32_50 : i32 to vector<256x1xi32>
    %106 = arith.cmpi sge, %75, %105 : vector<256x1xi32>
    %cst_51 = arith.constant 0.000000e+00 : bf16
    %107 = vector.broadcast %cst_51 : bf16 to vector<256x2xbf16>
    %108 = vector.shape_cast %106 : vector<256x1xi1> to vector<256x1xi1>
    %109 = vector.broadcast %108 : vector<256x1xi1> to vector<256x2xi1>
    %110 = arith.select %109, %104, %107 : vector<256x2xi1>, vector<256x2xbf16>
    %c3_52 = arith.constant 3 : index
    %c0_53 = arith.constant 0 : index
    %c0_54 = arith.constant 0 : index
    %111 = vector.load %arg3[%c3_52, %c0_53, %c0_54] : memref<9x2x2xbf16, #tpu.memory_space<vmem>>, vector<1x2x2xbf16>
    %112 = vector.shape_cast %111 : vector<1x2x2xbf16> to vector<2x2xbf16>
    %cst_55 = arith.constant dense<0.000000e+00> : vector<256x2xf32>
    %113 = tpu.matmul %110, %112, %cst_55 {dimension_numbers = #tpu.dot_dimension_numbers<[1], [0], [0], [1], [0, 0, 1, 1], [], []>} : vector<256x2xbf16>, vector<2x2xbf16>, vector<256x2xf32> -> vector<256x2xf32>
    %114 = arith.addf %103, %113 : vector<256x2xf32>
    %c32_56 = arith.constant 32 : index
    %c0_57 = arith.constant 0 : index
    %115 = vector.load %arg9[%c32_56, %c0_57] : memref<320x2xbf16, #tpu.memory_space<vmem>>, vector<256x2xbf16>
    %c4 = arith.constant 4 : index
    %c0_58 = arith.constant 0 : index
    %c0_59 = arith.constant 0 : index
    %116 = vector.load %arg3[%c4, %c0_58, %c0_59] : memref<9x2x2xbf16, #tpu.memory_space<vmem>>, vector<1x2x2xbf16>
    %117 = vector.shape_cast %116 : vector<1x2x2xbf16> to vector<2x2xbf16>
    %cst_60 = arith.constant dense<0.000000e+00> : vector<256x2xf32>
    %118 = tpu.matmul %115, %117, %cst_60 {dimension_numbers = #tpu.dot_dimension_numbers<[1], [0], [0], [1], [0, 0, 1, 1], [], []>} : vector<256x2xbf16>, vector<2x2xbf16>, vector<256x2xf32> -> vector<256x2xf32>
    %119 = arith.addf %114, %118 : vector<256x2xf32>
    %c33 = arith.constant 33 : index
    %c0_61 = arith.constant 0 : index
    %120 = vector.load %arg9[%c33, %c0_61] : memref<320x2xbf16, #tpu.memory_space<vmem>>, vector<256x2xbf16>
    %c15_i32_62 = arith.constant 15 : i32
    %121 = vector.broadcast %c15_i32_62 : i32 to vector<256x1xi32>
    %122 = arith.cmpi slt, %75, %121 : vector<256x1xi32>
    %cst_63 = arith.constant 0.000000e+00 : bf16
    %123 = vector.broadcast %cst_63 : bf16 to vector<256x2xbf16>
    %124 = vector.shape_cast %122 : vector<256x1xi1> to vector<256x1xi1>
    %125 = vector.broadcast %124 : vector<256x1xi1> to vector<256x2xi1>
    %126 = arith.select %125, %120, %123 : vector<256x2xi1>, vector<256x2xbf16>
    %c5 = arith.constant 5 : index
    %c0_64 = arith.constant 0 : index
    %c0_65 = arith.constant 0 : index
    %127 = vector.load %arg3[%c5, %c0_64, %c0_65] : memref<9x2x2xbf16, #tpu.memory_space<vmem>>, vector<1x2x2xbf16>
    %128 = vector.shape_cast %127 : vector<1x2x2xbf16> to vector<2x2xbf16>
    %cst_66 = arith.constant dense<0.000000e+00> : vector<256x2xf32>
    %129 = tpu.matmul %126, %128, %cst_66 {dimension_numbers = #tpu.dot_dimension_numbers<[1], [0], [0], [1], [0, 0, 1, 1], [], []>} : vector<256x2xbf16>, vector<2x2xbf16>, vector<256x2xf32> -> vector<256x2xf32>
    %130 = arith.addf %119, %129 : vector<256x2xf32>
    %c47 = arith.constant 47 : index
    %c0_67 = arith.constant 0 : index
    %131 = vector.load %arg9[%c47, %c0_67] : memref<320x2xbf16, #tpu.memory_space<vmem>>, vector<256x2xbf16>
    %c1_i32_68 = arith.constant 1 : i32
    %132 = vector.broadcast %c1_i32_68 : i32 to vector<256x1xi32>
    %133 = arith.cmpi sge, %75, %132 : vector<256x1xi32>
    %cst_69 = arith.constant 0.000000e+00 : bf16
    %134 = vector.broadcast %cst_69 : bf16 to vector<256x2xbf16>
    %135 = vector.shape_cast %133 : vector<256x1xi1> to vector<256x1xi1>
    %136 = vector.broadcast %135 : vector<256x1xi1> to vector<256x2xi1>
    %137 = arith.select %136, %131, %134 : vector<256x2xi1>, vector<256x2xbf16>
    %c6 = arith.constant 6 : index
    %c0_70 = arith.constant 0 : index
    %c0_71 = arith.constant 0 : index
    %138 = vector.load %arg3[%c6, %c0_70, %c0_71] : memref<9x2x2xbf16, #tpu.memory_space<vmem>>, vector<1x2x2xbf16>
    %139 = vector.shape_cast %138 : vector<1x2x2xbf16> to vector<2x2xbf16>
    %cst_72 = arith.constant dense<0.000000e+00> : vector<256x2xf32>
    %140 = tpu.matmul %137, %139, %cst_72 {dimension_numbers = #tpu.dot_dimension_numbers<[1], [0], [0], [1], [0, 0, 1, 1], [], []>} : vector<256x2xbf16>, vector<2x2xbf16>, vector<256x2xf32> -> vector<256x2xf32>
    %141 = arith.addf %130, %140 : vector<256x2xf32>
    %c48 = arith.constant 48 : index
    %c0_73 = arith.constant 0 : index
    %142 = vector.load %arg9[%c48, %c0_73] : memref<320x2xbf16, #tpu.memory_space<vmem>>, vector<256x2xbf16>
    %c7 = arith.constant 7 : index
    %c0_74 = arith.constant 0 : index
    %c0_75 = arith.constant 0 : index
    %143 = vector.load %arg3[%c7, %c0_74, %c0_75] : memref<9x2x2xbf16, #tpu.memory_space<vmem>>, vector<1x2x2xbf16>
    %144 = vector.shape_cast %143 : vector<1x2x2xbf16> to vector<2x2xbf16>
    %cst_76 = arith.constant dense<0.000000e+00> : vector<256x2xf32>
    %145 = tpu.matmul %142, %144, %cst_76 {dimension_numbers = #tpu.dot_dimension_numbers<[1], [0], [0], [1], [0, 0, 1, 1], [], []>} : vector<256x2xbf16>, vector<2x2xbf16>, vector<256x2xf32> -> vector<256x2xf32>
    %146 = arith.addf %141, %145 : vector<256x2xf32>
    %c49 = arith.constant 49 : index
    %c0_77 = arith.constant 0 : index
    %147 = vector.load %arg9[%c49, %c0_77] : memref<320x2xbf16, #tpu.memory_space<vmem>>, vector<256x2xbf16>
    %c15_i32_78 = arith.constant 15 : i32
    %148 = vector.broadcast %c15_i32_78 : i32 to vector<256x1xi32>
    %149 = arith.cmpi slt, %75, %148 : vector<256x1xi32>
    %cst_79 = arith.constant 0.000000e+00 : bf16
    %150 = vector.broadcast %cst_79 : bf16 to vector<256x2xbf16>
    %151 = vector.shape_cast %149 : vector<256x1xi1> to vector<256x1xi1>
    %152 = vector.broadcast %151 : vector<256x1xi1> to vector<256x2xi1>
    %153 = arith.select %152, %147, %150 : vector<256x2xi1>, vector<256x2xbf16>
    %c8 = arith.constant 8 : index
    %c0_80 = arith.constant 0 : index
    %c0_81 = arith.constant 0 : index
    %154 = vector.load %arg3[%c8, %c0_80, %c0_81] : memref<9x2x2xbf16, #tpu.memory_space<vmem>>, vector<1x2x2xbf16>
    %155 = vector.shape_cast %154 : vector<1x2x2xbf16> to vector<2x2xbf16>
    %cst_82 = arith.constant dense<0.000000e+00> : vector<256x2xf32>
    %156 = tpu.matmul %153, %155, %cst_82 {dimension_numbers = #tpu.dot_dimension_numbers<[1], [0], [0], [1], [0, 0, 1, 1], [], []>} : vector<256x2xbf16>, vector<2x2xbf16>, vector<256x2xf32> -> vector<256x2xf32>
    %157 = arith.addf %146, %156 : vector<256x2xf32>
    %c0_83 = arith.constant 0 : index
    %c0_84 = arith.constant 0 : index
    %158 = vector.load %arg6[%c0_83, %c0_84] : memref<2x2xf32, #tpu.memory_space<vmem>>, vector<1x2xf32>
    %c1_85 = arith.constant 1 : index
    %c0_86 = arith.constant 0 : index
    %159 = vector.load %arg6[%c1_85, %c0_86] : memref<2x2xf32, #tpu.memory_space<vmem>>, vector<1x2xf32>
    %cst_87 = arith.constant dense<0.000000e+00> : vector<2xf32>
    %160 = vector.multi_reduction <add>, %157, %cst_87 [0] : vector<256x2xf32> to vector<2xf32>
    %161 = vector.shape_cast %160 : vector<2xf32> to vector<1x2xf32>
    %cst_88 = arith.constant 2.560000e+02 : f32
    %162 = vector.broadcast %cst_88 : f32 to vector<1x2xf32>
    %163 = arith.divf %161, %162 : vector<1x2xf32>
    %164 = vector.broadcast %163 : vector<1x2xf32> to vector<256x2xf32>
    %165 = arith.subf %157, %164 : vector<256x2xf32>
    %166 = arith.mulf %165, %165 : vector<256x2xf32>
    %cst_89 = arith.constant dense<0.000000e+00> : vector<2xf32>
    %167 = vector.multi_reduction <add>, %166, %cst_89 [0] : vector<256x2xf32> to vector<2xf32>
    %168 = vector.shape_cast %167 : vector<2xf32> to vector<1x2xf32>
    %cst_90 = arith.constant 2.560000e+02 : f32
    %169 = vector.broadcast %cst_90 : f32 to vector<1x2xf32>
    %170 = arith.divf %168, %169 : vector<1x2xf32>
    %cst_91 = arith.constant 9.99999974E-6 : f32
    %171 = vector.broadcast %cst_91 : f32 to vector<1x2xf32>
    %172 = arith.addf %170, %171 : vector<1x2xf32>
    %173 = math.rsqrt %172 : vector<1x2xf32>
    %174 = arith.mulf %158, %173 : vector<1x2xf32>
    %175 = vector.broadcast %174 : vector<1x2xf32> to vector<256x2xf32>
    %176 = arith.mulf %165, %175 : vector<256x2xf32>
    %177 = vector.broadcast %159 : vector<1x2xf32> to vector<256x2xf32>
    %178 = arith.addf %176, %177 : vector<256x2xf32>
    %cst_92 = arith.constant 0.000000e+00 : f32
    %179 = vector.broadcast %cst_92 : f32 to vector<256x2xf32>
    %180 = arith.cmpf oge, %178, %179 : vector<256x2xf32>
    %cst_93 = arith.constant 0.00999999977 : f32
    %181 = vector.broadcast %cst_93 : f32 to vector<256x2xf32>
    %182 = arith.mulf %181, %178 : vector<256x2xf32>
    %183 = arith.select %180, %178, %182 : vector<256x2xi1>, vector<256x2xf32>
    %184 = arith.truncf %183 : vector<256x2xf32> to vector<256x2xbf16>
    %c0_94 = arith.constant 0 : index
    %c0_95 = arith.constant 0 : index
    %185 = vector.load %arg4[%c0_94, %c0_95] : memref<2x8xbf16, #tpu.memory_space<vmem>>, vector<2x8xbf16>
    %cst_96 = arith.constant dense<0.000000e+00> : vector<256x8xf32>
    %186 = tpu.matmul %184, %185, %cst_96 {dimension_numbers = #tpu.dot_dimension_numbers<[1], [0], [0], [1], [0, 0, 1, 1], [], []>} : vector<256x2xbf16>, vector<2x8xbf16>, vector<256x8xf32> -> vector<256x8xf32>
    %c0_97 = arith.constant 0 : index
    %c0_98 = arith.constant 0 : index
    %187 = vector.load %arg7[%c0_97, %c0_98] : memref<4x8xf32, #tpu.memory_space<vmem>>, vector<1x8xf32>
    %c1_99 = arith.constant 1 : index
    %c0_100 = arith.constant 0 : index
    %188 = vector.load %arg7[%c1_99, %c0_100] : memref<4x8xf32, #tpu.memory_space<vmem>>, vector<1x8xf32>
    %cst_101 = arith.constant dense<0.000000e+00> : vector<8xf32>
    %189 = vector.multi_reduction <add>, %186, %cst_101 [0] : vector<256x8xf32> to vector<8xf32>
    %190 = vector.shape_cast %189 : vector<8xf32> to vector<1x8xf32>
    %cst_102 = arith.constant 2.560000e+02 : f32
    %191 = vector.broadcast %cst_102 : f32 to vector<1x8xf32>
    %192 = arith.divf %190, %191 : vector<1x8xf32>
    %193 = vector.broadcast %192 : vector<1x8xf32> to vector<256x8xf32>
    %194 = arith.subf %186, %193 : vector<256x8xf32>
    %195 = arith.mulf %194, %194 : vector<256x8xf32>
    %cst_103 = arith.constant dense<0.000000e+00> : vector<8xf32>
    %196 = vector.multi_reduction <add>, %195, %cst_103 [0] : vector<256x8xf32> to vector<8xf32>
    %197 = vector.shape_cast %196 : vector<8xf32> to vector<1x8xf32>
    %cst_104 = arith.constant 2.560000e+02 : f32
    %198 = vector.broadcast %cst_104 : f32 to vector<1x8xf32>
    %199 = arith.divf %197, %198 : vector<1x8xf32>
    %cst_105 = arith.constant 9.99999974E-6 : f32
    %200 = vector.broadcast %cst_105 : f32 to vector<1x8xf32>
    %201 = arith.addf %199, %200 : vector<1x8xf32>
    %202 = math.rsqrt %201 : vector<1x8xf32>
    %203 = arith.mulf %187, %202 : vector<1x8xf32>
    %204 = vector.broadcast %203 : vector<1x8xf32> to vector<256x8xf32>
    %205 = arith.mulf %194, %204 : vector<256x8xf32>
    %206 = vector.broadcast %188 : vector<1x8xf32> to vector<256x8xf32>
    %207 = arith.addf %205, %206 : vector<256x8xf32>
    %208 = arith.addf %207, %52 : vector<256x8xf32>
    %cst_106 = arith.constant 0.000000e+00 : f32
    %209 = vector.broadcast %cst_106 : f32 to vector<256x8xf32>
    %210 = arith.cmpf oge, %208, %209 : vector<256x8xf32>
    %cst_107 = arith.constant 0.00999999977 : f32
    %211 = vector.broadcast %cst_107 : f32 to vector<256x8xf32>
    %212 = arith.mulf %211, %208 : vector<256x8xf32>
    %213 = arith.select %210, %208, %212 : vector<256x8xi1>, vector<256x8xf32>
    %214 = arith.truncf %213 : vector<256x8xf32> to vector<256x8xbf16>
    %c0_108 = arith.constant 0 : index
    %c0_109 = arith.constant 0 : index
    %c0_110 = arith.constant 0 : index
    %215 = vector.load %arg8[%c0_108, %c0_109, %c0_110] : memref<1x256x8xbf16, #tpu.memory_space<vmem>>, vector<1x256x8xbf16>
    %216 = vector.shape_cast %215 : vector<1x256x8xbf16> to vector<256x8xbf16>
    %217 = vector.shape_cast %214 : vector<256x8xbf16> to vector<1x256x8xbf16>
    tpu.vector_store %arg8[%c0_108, %c0_109, %c0_110], %217 {strides = array<i32>} : memref<1x256x8xbf16, #tpu.memory_space<vmem>>, vector<1x256x8xbf16>,
    return
  }
  func.func @transform_0(%arg0: i32) -> (i32, i32, i32) {
    %c0_i32 = arith.constant 0 : i32
    %c0_i32_0 = arith.constant 0 : i32
    %c0_i32_1 = arith.constant 0 : i32
    return %arg0, %c0_i32, %c0_i32_0 : i32, i32, i32
  }
  func.func @transform_1(%arg0: i32) -> (i32, i32) {
    %c0_i32 = arith.constant 0 : i32
    %c0_i32_0 = arith.constant 0 : i32
    %c0_i32_1 = arith.constant 0 : i32
    return %c0_i32, %c0_i32_0 : i32, i32
  }
  func.func @transform_2(%arg0: i32) -> (i32, i32, i32) {
    %c0_i32 = arith.constant 0 : i32
    %c0_i32_0 = arith.constant 0 : i32
    %c0_i32_1 = arith.constant 0 : i32
    %c0_i32_2 = arith.constant 0 : i32
    return %c0_i32, %c0_i32_0, %c0_i32_1 : i32, i32, i32
  }
  func.func @transform_3(%arg0: i32) -> (i32, i32) {
    %c0_i32 = arith.constant 0 : i32
    %c0_i32_0 = arith.constant 0 : i32
    %c0_i32_1 = arith.constant 0 : i32
    return %c0_i32, %c0_i32_0 : i32, i32
  }
  func.func @transform_4(%arg0: i32) -> (i32, i32) {
    %c0_i32 = arith.constant 0 : i32
    %c0_i32_0 = arith.constant 0 : i32
    %c0_i32_1 = arith.constant 0 : i32
    return %c0_i32, %c0_i32_0 : i32, i32
  }
  func.func @transform_5(%arg0: i32) -> (i32, i32) {
    %c0_i32 = arith.constant 0 : i32
    %c0_i32_0 = arith.constant 0 : i32
    %c0_i32_1 = arith.constant 0 : i32
    return %c0_i32, %c0_i32_0 : i32, i32
  }
  func.func @transform_6(%arg0: i32) -> (i32, i32) {
    %c0_i32 = arith.constant 0 : i32
    %c0_i32_0 = arith.constant 0 : i32
    %c0_i32_1 = arith.constant 0 : i32
    return %c0_i32, %c0_i32_0 : i32, i32
  }
  func.func @transform_7(%arg0: i32) -> (i32, i32, i32) {
    %c0_i32 = arith.constant 0 : i32
    %c0_i32_0 = arith.constant 0 : i32
    %c0_i32_1 = arith.constant 0 : i32
    return %arg0, %c0_i32, %c0_i32_0 : i32, i32, i32
  }
}

</mosaic_0001>

<llo_original>
// kernel: tpu_custom_call.1
$region0: #{tpu_custom_call.1}
  #allocation0 [shape = 'u32[]', space=smem, size = 0x4, offset = 0x4, fixed_abs, tag = 'smem constant byte address 0x4 - core index']
  #allocation1 [shape = 'u32[144,128]{1,0:T(1,128)}', space=vmem, size = 0x12000, scoped, tag = 'internal scratch']
  #allocation2 [shape = 'bf16[320,2]{1,0:T(8,128)(2,1)}', space=vmem, size = 0x14000, scoped, tag = 'scratch operand']
  %s0 = inlined_call_operand.vmem [shape: bf16[2,256,4], index: 0, kind: input, shape index: {}]
  %s1 = inlined_call_operand.vmem [shape: bf16[4,136], index: 1, kind: input, shape index: {}]
  %s2 = inlined_call_operand.vmem [shape: bf16[9,2,2], index: 2, kind: input, shape index: {}]
  %s3 = inlined_call_operand.vmem [shape: bf16[2,8], index: 3, kind: input, shape index: {}]
  %s4 = inlined_call_operand.vmem [shape: f32[2,2], index: 4, kind: input, shape index: {}]
  %s5 = inlined_call_operand.vmem [shape: f32[2,2], index: 5, kind: input, shape index: {}]
  %s6 = inlined_call_operand.vmem [shape: f32[4,8], index: 6, kind: input, shape index: {}]
  %s7 = inlined_call_operand.vmem [shape: bf16[2,256,8], index: 7, kind: output, shape index: {}]
  %s8 = sld [smem:[#allocation0]]
  $region61: #{tpu_custom_call.1} parent=0
    _
  %s10 = ssub.s32 1, %s8
  %s11 = scalar_select 0, %s10, %s8
  loop: start=0, step=1, limit=4
  $region2: #{tpu_custom_call.1} parent=0 // loop_pre_header
    _
  $region3: #{tpu_custom_call.1} parent=0 // loop_header
    %s13 = sphi 0, %s17
    %p14 = scmp.ge.s32.totalorder %s13, 4
    %s23 = sphi 0, %s25
    %s26 = sphi 0, %s23
    %s27 = sphi 0, %s26
    %s43 = sphi 0, %s27
    %s47 = sphi 0, %s47
    %s49 = sphi 0, %s47
    %s50 = sphi 0, %s49
    %s64 = sphi 0, %s50
    %s68 = sphi 0, %s68
    %s70 = sphi 0, %s68
    %s71 = sphi 0, %s70
    %s85 = sphi 0, %s71
    %s89 = sphi 0, %s89
    %s91 = sphi 0, %s89
    %s92 = sphi 0, %s91
    %s106 = sphi 0, %s92
    %s110 = sphi 0, %s110
    %s112 = sphi 0, %s110
    %s113 = sphi 0, %s112
    %s127 = sphi 0, %s113
    %s131 = sphi 0, %s131
    %s133 = sphi 0, %s131
    %s134 = sphi 0, %s133
    %s148 = sphi 0, %s134
    %s152 = sphi 0, %s152
    %s154 = sphi 0, %s152
    %s155 = sphi 0, %s154
    %s169 = sphi 0, %s155
    %s175 = sphi 0, %s177
    %s178 = sphi 0, %s175
    %s179 = sphi 0, %s178
    %s195 = sphi 0, %s179
  $region4: #{tpu_custom_call.1} parent=0 // loop_header_branch
    %16 = sbr.rel (%p14) target = $region8
  $region5: #{tpu_custom_call.1} parent=0 // loop_body
    %s18 = ssub.s32 %s13, 1
    %s19 = ssub.s32 %s13, 2
    %s20 = sadd.s32 %s13, 1
    %s21 = ssub.s32 %s13, %s20
    %p22 = scmp.eq.s32.totalorder %s21, 0
    %s24 = sadd.s32 %s23, 1
    %s25 = scalar_select %p22, %s23, %s24
    %p28 = pneg %p22
    %p29 = scmp.eq.s32.totalorder %s13, 1
    %p30 = por %p28, %p29
    %p31 = scmp.ne.s32.totalorder %s23, %s26
    %p32 = scmp.eq.s32.totalorder %s13, 0
    %p33 = por %p31, %p32
    %p34 = scmp.ne.s32.totalorder %s23, %s26
    %p35 = scmp.eq.s32.totalorder %s18, 1
    %p36 = por %p34, %p35
    %p37 = scmp.ne.s32.totalorder %s26, %s27
    %p38 = scmp.eq.s32.totalorder %s18, 0
    %p39 = por %p37, %p38
    %p40 = scmp.ne.s32.totalorder %s26, %s27
    %p41 = scmp.eq.s32.totalorder %s19, 1
    %p42 = por %p40, %p41
    %p44 = scmp.ne.s32.totalorder %s27, %s43
    %p45 = scmp.eq.s32.totalorder %s19, 0
    %p46 = por %p44, %p45
    %s48 = sadd.s32 %s47, 1
    %p51 = scmp.eq.s32.totalorder %s13, 1
    %p52 = scmp.ne.s32.totalorder %s47, %s49
    %p53 = scmp.eq.s32.totalorder %s13, 0
    %p54 = por %p52, %p53
    %p55 = scmp.ne.s32.totalorder %s47, %s49
    %p56 = scmp.eq.s32.totalorder %s18, 1
    %p57 = por %p55, %p56
    %p58 = scmp.ne.s32.totalorder %s49, %s50
    %p59 = scmp.eq.s32.totalorder %s18, 0
    %p60 = por %p58, %p59
    %p61 = scmp.ne.s32.totalorder %s49, %s50
    %p62 = scmp.eq.s32.totalorder %s19, 1
    %p63 = por %p61, %p62
    %p65 = scmp.ne.s32.totalorder %s50, %s64
    %p66 = scmp.eq.s32.totalorder %s19, 0
    %p67 = por %p65, %p66
    %s69 = sadd.s32 %s68, 1
    %p72 = scmp.eq.s32.totalorder %s13, 1
    %p73 = scmp.ne.s32.totalorder %s68, %s70
    %p74 = scmp.eq.s32.totalorder %s13, 0
    %p75 = por %p73, %p74
    %p76 = scmp.ne.s32.totalorder %s68, %s70
    %p77 = scmp.eq.s32.totalorder %s18, 1
    %p78 = por %p76, %p77
    %p79 = scmp.ne.s32.totalorder %s70, %s71
    %p80 = scmp.eq.s32.totalorder %s18, 0
    %p81 = por %p79, %p80
    %p82 = scmp.ne.s32.totalorder %s70, %s71
    %p83 = scmp.eq.s32.totalorder %s19, 1
    %p84 = por %p82, %p83
    %p86 = scmp.ne.s32.totalorder %s71, %s85
    %p87 = scmp.eq.s32.totalorder %s19, 0
    %p88 = por %p86, %p87
    %s90 = sadd.s32 %s89, 1
    %p93 = scmp.eq.s32.totalorder %s13, 1
    %p94 = scmp.ne.s32.totalorder %s89, %s91
    %p95 = scmp.eq.s32.totalorder %s13, 0
    %p96 = por %p94, %p95
    %p97 = scmp.ne.s32.totalorder %s89, %s91
    %p98 = scmp.eq.s32.totalorder %s18, 1
    %p99 = por %p97, %p98
    %p100 = scmp.ne.s32.totalorder %s91, %s92
    %p101 = scmp.eq.s32.totalorder %s18, 0
    %p102 = por %p100, %p101
    %p103 = scmp.ne.s32.totalorder %s91, %s92
    %p104 = scmp.eq.s32.totalorder %s19, 1
    %p105 = por %p103, %p104
    %p107 = scmp.ne.s32.totalorder %s92, %s106
    %p108 = scmp.eq.s32.totalorder %s19, 0
    %p109 = por %p107, %p108
    %s111 = sadd.s32 %s110, 1
    %p114 = scmp.eq.s32.totalorder %s13, 1
    %p115 = scmp.ne.s32.totalorder %s110, %s112
    %p116 = scmp.eq.s32.totalorder %s13, 0
    %p117 = por %p115, %p116
    %p118 = scmp.ne.s32.totalorder %s110, %s112
    %p119 = scmp.eq.s32.totalorder %s18, 1
    %p120 = por %p118, %p119
    %p121 = scmp.ne.s32.totalorder %s112, %s113
    %p122 = scmp.eq.s32.totalorder %s18, 0
    %p123 = por %p121, %p122
    %p124 = scmp.ne.s32.totalorder %s112, %s113
    %p125 = scmp.eq.s32.totalorder %s19, 1
    %p126 = por %p124, %p125
    %p128 = scmp.ne.s32.totalorder %s113, %s127
    %p129 = scmp.eq.s32.totalorder %s19, 0
    %p130 = por %p128, %p129
    %s132 = sadd.s32 %s131, 1
    %p135 = scmp.eq.s32.totalorder %s13, 1
    %p136 = scmp.ne.s32.totalorder %s131, %s133
    %p137 = scmp.eq.s32.totalorder %s13, 0
    %p138 = por %p136, %p137
    %p139 = scmp.ne.s32.totalorder %s131, %s133
    %p140 = scmp.eq.s32.totalorder %s18, 1
    %p141 = por %p139, %p140
    %p142 = scmp.ne.s32.totalorder %s133, %s134
    %p143 = scmp.eq.s32.totalorder %s18, 0
    %p144 = por %p142, %p143
    %p145 = scmp.ne.s32.totalorder %s133, %s134
    %p146 = scmp.eq.s32.totalorder %s19, 1
    %p147 = por %p145, %p146
    %p149 = scmp.ne.s32.totalorder %s134, %s148
    %p150 = scmp.eq.s32.totalorder %s19, 0
    %p151 = por %p149, %p150
    %s153 = sadd.s32 %s152, 1
    %p156 = scmp.eq.s32.totalorder %s13, 1
    %p157 = scmp.ne.s32.totalorder %s152, %s154
    %p158 = scmp.eq.s32.totalorder %s13, 0
    %p159 = por %p157, %p158
    %p160 = scmp.ne.s32.totalorder %s152, %s154
    %p161 = scmp.eq.s32.totalorder %s18, 1
    %p162 = por %p160, %p161
    %p163 = scmp.ne.s32.totalorder %s154, %s155
    %p164 = scmp.eq.s32.totalorder %s18, 0
    %p165 = por %p163, %p164
    %p166 = scmp.ne.s32.totalorder %s154, %s155
    %p167 = scmp.eq.s32.totalorder %s19, 1
    %p168 = por %p166, %p167
    %p170 = scmp.ne.s32.totalorder %s155, %s169
    %p171 = scmp.eq.s32.totalorder %s19, 0
    %p172 = por %p170, %p171
    %s173 = ssub.s32 %s13, %s20
    %p174 = scmp.eq.s32.totalorder %s173, 0
    %s176 = sadd.s32 %s175, 1
    %s177 = scalar_select %p174, %s175, %s176
    %p180 = pneg %p174
    %p181 = scmp.eq.s32.totalorder %s13, 1
    %p182 = por %p180, %p181
    %p183 = scmp.ne.s32.totalorder %s175, %s178
    %p184 = scmp.eq.s32.totalorder %s13, 0
    %p185 = por %p183, %p184
    %p186 = scmp.ne.s32.totalorder %s175, %s178
    %p187 = scmp.eq.s32.totalorder %s18, 1
    %p188 = por %p186, %p187
    %p189 = scmp.ne.s32.totalorder %s178, %s179
    %p190 = scmp.eq.s32.totalorder %s18, 0
    %p191 = por %p189, %p190
    %p192 = scmp.ne.s32.totalorder %s178, %s179
    %p193 = scmp.eq.s32.totalorder %s19, 1
    %p194 = por %p192, %p193
    %p196 = scmp.ne.s32.totalorder %s179, %s195
    %p197 = scmp.eq.s32.totalorder %s19, 0
    %p198 = por %p196, %p197
    %p199 = scmp.le.s32.totalorder 1, %s13
    %p200 = scmp.lt.s32.totalorder %s13, 3
    %p201 = pnand %p199, %p200
    %p202 = pneg %p201
    // Predicated region
    $region9: #{tpu_custom_call.1} parent=5 // pred_check
      _
    $region10: #{tpu_custom_call.1} parent=5 // pred_check_branch
      %204 = sbr.rel (%p201) target = $region12
    $region11: #{tpu_custom_call.1} parent=5 // pred_region
      %s205 = ssub.s32 %s13, 1
      // Predicated region
      $region13: #{tpu_custom_call.1} parent=11 // pred_check
        %p206 = pneg %p60
      $region14: #{tpu_custom_call.1} parent=11 // pred_check_branch
        %208 = sbr.rel (%p206) target = $region16
      $region15: #{tpu_custom_call.1} parent=11 // pred_region
        _
      $region16: #{tpu_custom_call.1} parent=11 // pred_fallthru
        _
      // Predicated region
      $region17: #{tpu_custom_call.1} parent=11 // pred_check
        %p209 = pneg %p81
      $region18: #{tpu_custom_call.1} parent=11 // pred_check_branch
        %211 = sbr.rel (%p209) target = $region20
      $region19: #{tpu_custom_call.1} parent=11 // pred_region
        _
      $region20: #{tpu_custom_call.1} parent=11 // pred_fallthru
        _
      // Predicated region
      $region21: #{tpu_custom_call.1} parent=11 // pred_check
        %p212 = pneg %p102
      $region22: #{tpu_custom_call.1} parent=11 // pred_check_branch
        %214 = sbr.rel (%p212) target = $region24
      $region23: #{tpu_custom_call.1} parent=11 // pred_region
        _
      $region24: #{tpu_custom_call.1} parent=11 // pred_fallthru
        _
      // Predicated region
      $region25: #{tpu_custom_call.1} parent=11 // pred_check
        %p215 = pneg %p123
      $region26: #{tpu_custom_call.1} parent=11 // pred_check_branch
        %217 = sbr.rel (%p215) target = $region28
      $region27: #{tpu_custom_call.1} parent=11 // pred_region
        _
      $region28: #{tpu_custom_call.1} parent=11 // pred_fallthru
        _
      // Predicated region
      $region29: #{tpu_custom_call.1} parent=11 // pred_check
        %p218 = pneg %p144
      $region30: #{tpu_custom_call.1} parent=11 // pred_check_branch
        %220 = sbr.rel (%p218) target = $region32
      $region31: #{tpu_custom_call.1} parent=11 // pred_region
        _
      $region32: #{tpu_custom_call.1} parent=11 // pred_fallthru
        _
      // Predicated region
      $region33: #{tpu_custom_call.1} parent=11 // pred_check
        %p221 = pneg %p165
      $region34: #{tpu_custom_call.1} parent=11 // pred_check_branch
        %223 = sbr.rel (%p221) target = $region36
      $region35: #{tpu_custom_call.1} parent=11 // pred_region
        _
      $region36: #{tpu_custom_call.1} parent=11 // pred_fallthru
        _
    $region12: #{tpu_custom_call.1} parent=5 // pred_fallthru
      _
    %p224 = scmp.lt.s32.totalorder %s13, 2
    // Predicated region
    $region37: #{tpu_custom_call.1} parent=5 // pred_check
      %p225 = pneg %p224
    $region38: #{tpu_custom_call.1} parent=5 // pred_check_branch
      %227 = sbr.rel (%p225) target = $region40
    $region39: #{tpu_custom_call.1} parent=5 // pred_region
      // Predicated region
      $region41: #{tpu_custom_call.1} parent=39 // pred_check
        %p228 = pneg %p33
      $region42: #{tpu_custom_call.1} parent=39 // pred_check_branch
        %230 = sbr.rel (%p228) target = $region44
      $region43: #{tpu_custom_call.1} parent=39 // pred_region
        %p231 = scmp.lt.s32.totalorder %s13, 1
        %s232 = scalar_select %p231, %s13, 1
        %s233 = smul.addr %s232, 32
        %s234 = smul.addr %s233, 4
        %s235 = scalar_lea.vmem %s0, %s234
      $region44: #{tpu_custom_call.1} parent=39 // pred_fallthru
        _
    $region40: #{tpu_custom_call.1} parent=5 // pred_fallthru
      _
    %p236 = scmp.le.s32.totalorder 1, %s13
    %p237 = scmp.lt.s32.totalorder %s13, 3
    %p238 = pnand %p236, %p237
    %p239 = pneg %p238
    // Predicated region
    $region45: #{tpu_custom_call.1} parent=5 // pred_check
      _
    $region46: #{tpu_custom_call.1} parent=5 // pred_check_branch
      %241 = sbr.rel (%p238) target = $region48
    $region47: #{tpu_custom_call.1} parent=5 // pred_region
      %s242 = ssub.s32 %s13, 1
      %p243 = scmp.lt.s32.totalorder %s18, 1
      %s244 = scalar_select %p243, %s18, 1
      %s245 = smul.addr %s244, 32
      %s246 = smul.addr %s245, 4
      %s247 = scalar_lea.vmem %s0, %s246
      %p248 = pneg %p39
      %p249 = pneg %p36
      %p250 = pneg %p60
      %p251 = pneg %p57
      %p252 = pneg %p81
      %p253 = pneg %p78
      %p254 = pneg %p102
      %p255 = pneg %p99
      %p256 = pneg %p123
      %p257 = pneg %p120
      %p258 = pneg %p144
      %p259 = pneg %p141
      %p260 = pneg %p165
      %p261 = pneg %p162
      %p262 = pneg %p191
      %p263 = pneg %p188
      %p264 = scmp.lt.s32.totalorder %s18, 1
      %s265 = scalar_select %p264, %s18, 1
      %s266 = smul.addr %s265, 32
      %s267 = smul.addr %s266, 4
      %s268 = scalar_lea.vmem %s7, %s267
      %p269 = scmp.lt.s32.totalorder %s18, 1
      %s270 = scalar_select %p269, %s18, 1
      %s271 = smul.addr %s270, 32
      %s272 = smul.addr %s271, 4
      %s273 = scalar_lea.vmem %s0, %s272
      %p274 = scmp.lt.s32.totalorder %s18, 1
      %s275 = scalar_select %p274, %s18, 1
      %s276 = smul.addr %s275, 32
      %s277 = smul.addr %s276, 4
      %s278 = scalar_lea.vmem %s7, %s277
      %v282 = vld [vmem:[%s273] sm:$0xf]
      %v283 = vld [vmem:[%s273 + $0x4] sm:$0xf]
      %v284 = vld [vmem:[%s273 + $0x8] sm:$0xf]
      %v285 = vld [vmem:[%s273 + $0xc] sm:$0xf]
      %v286 = vld [vmem:[%s273 + $0x10] sm:$0xf]
      %v287 = vld [vmem:[%s273 + $0x14] sm:$0xf]
      %v288 = vld [vmem:[%s273 + $0x18] sm:$0xf]
      %v289 = vld [vmem:[%s273 + $0x1c] sm:$0xf]
      %v290 = vld [vmem:[%s273 + $0x20] sm:$0xf]
      %v291 = vld [vmem:[%s273 + $0x24] sm:$0xf]
      %v292 = vld [vmem:[%s273 + $0x28] sm:$0xf]
      %v293 = vld [vmem:[%s273 + $0x2c] sm:$0xf]
      %v294 = vld [vmem:[%s273 + $0x30] sm:$0xf]
      %v295 = vld [vmem:[%s273 + $0x34] sm:$0xf]
      %v296 = vld [vmem:[%s273 + $0x38] sm:$0xf]
      %v297 = vld [vmem:[%s273 + $0x3c] sm:$0xf]
      %v298 = vld [vmem:[%s273 + $0x40] sm:$0xf]
      %v299 = vld [vmem:[%s273 + $0x44] sm:$0xf]
      %v300 = vld [vmem:[%s273 + $0x48] sm:$0xf]
      %v301 = vld [vmem:[%s273 + $0x4c] sm:$0xf]
      %v302 = vld [vmem:[%s273 + $0x50] sm:$0xf]
      %v303 = vld [vmem:[%s273 + $0x54] sm:$0xf]
      %v304 = vld [vmem:[%s273 + $0x58] sm:$0xf]
      %v305 = vld [vmem:[%s273 + $0x5c] sm:$0xf]
      %v306 = vld [vmem:[%s273 + $0x60] sm:$0xf]
      %v307 = vld [vmem:[%s273 + $0x64] sm:$0xf]
      %v308 = vld [vmem:[%s273 + $0x68] sm:$0xf]
      %v309 = vld [vmem:[%s273 + $0x6c] sm:$0xf]
      %v310 = vld [vmem:[%s273 + $0x70] sm:$0xf]
      %v311 = vld [vmem:[%s273 + $0x74] sm:$0xf]
      %v312 = vld [vmem:[%s273 + $0x78] sm:$0xf]
      %v313 = vld [vmem:[%s273 + $0x7c] sm:$0xf]
      %v314 = vld [vmem:[%s1] sm:$0xf]
      %v347 = vunpack.c.l.b16 %v282
      %v348 = vunpack.c.l.b16 %v283
      %v349 = vunpack.c.l.b16 %v284
      %v350 = vunpack.c.l.b16 %v285
      %v351 = vunpack.c.l.b16 %v286
      %v352 = vunpack.c.l.b16 %v287
      %v353 = vunpack.c.l.b16 %v288
      %v354 = vunpack.c.l.b16 %v289
      %v355 = vunpack.c.l.b16 %v290
      %v356 = vunpack.c.l.b16 %v291
      %v357 = vunpack.c.l.b16 %v292
      %v358 = vunpack.c.l.b16 %v293
      %v359 = vunpack.c.l.b16 %v294
      %v360 = vunpack.c.l.b16 %v295
      %v361 = vunpack.c.l.b16 %v296
      %v362 = vunpack.c.l.b16 %v297
      %v363 = vunpack.c.l.b16 %v298
      %v364 = vunpack.c.l.b16 %v299
      %v365 = vunpack.c.l.b16 %v300
      %v366 = vunpack.c.l.b16 %v301
      %v367 = vunpack.c.l.b16 %v302
      %v368 = vunpack.c.l.b16 %v303
      %v369 = vunpack.c.l.b16 %v304
      %v370 = vunpack.c.l.b16 %v305
      %v371 = vunpack.c.l.b16 %v306
      %v372 = vunpack.c.l.b16 %v307
      %v373 = vunpack.c.l.b16 %v308
      %v374 = vunpack.c.l.b16 %v309
      %v375 = vunpack.c.l.b16 %v310
      %v376 = vunpack.c.l.b16 %v311
      %v377 = vunpack.c.l.b16 %v312
      %v378 = vunpack.c.l.b16 %v313
      %v379 = vpack.c.b16 %v348, %v347
      %v380 = vpack.c.b16 %v350, %v349
      %v381 = vpack.c.b16 %v352, %v351
      %v382 = vpack.c.b16 %v354, %v353
      %v383 = vpack.c.b16 %v356, %v355
      %v384 = vpack.c.b16 %v358, %v357
      %v385 = vpack.c.b16 %v360, %v359
      %v386 = vpack.c.b16 %v362, %v361
      %v387 = vpack.c.b16 %v364, %v363
      %v388 = vpack.c.b16 %v366, %v365
      %v389 = vpack.c.b16 %v368, %v367
      %v390 = vpack.c.b16 %v370, %v369
      %v391 = vpack.c.b16 %v372, %v371
      %v392 = vpack.c.b16 %v374, %v373
      %v393 = vpack.c.b16 %v376, %v375
      %v394 = vpack.c.b16 %v378, %v377
      %v397 = vunpack.c.l.s4 1983009808
      %v398 = vunpack.c.0.s8 %v397
      %v399 = vlaneseq
      %v400 = vshrl.u32 %v399, 7
      %v401 = vsub.s32 %v398, %v400
      %v402 = vrot.slane %v314, %v401
      %v403 = vcombine.high %v402, %v402
      %vm404 = vcmask 31744
      %v406 = vsel %vm404, %v379, 0
      %v409 = vsel %vm404, %v380, 0
      %v412 = vsel %vm404, %v381, 0
      %v415 = vsel %vm404, %v382, 0
      %v418 = vsel %vm404, %v383, 0
      %v421 = vsel %vm404, %v384, 0
      %v424 = vsel %vm404, %v385, 0
      %v427 = vsel %vm404, %v386, 0
      %v430 = vsel %vm404, %v387, 0
      %v433 = vsel %vm404, %v388, 0
      %v436 = vsel %vm404, %v389, 0
      %v439 = vsel %vm404, %v390, 0
      %v442 = vsel %vm404, %v391, 0
      %v445 = vsel %vm404, %v392, 0
      %v448 = vsel %vm404, %v393, 0
      %v451 = vsel %vm404, %v394, 0
      %vm453 = vcmask 1041408
      %v455 = vsel %vm453, %v402, 0
      %v458 = vsel %vm453, %v403, 0
      %460 = vmatprep.subr.bf16.mxu0 0
      %461 = vmatpush1.bf16.msra.mxu0 0
      %462 = vmatprep.subr.bf16.mxu0 0
      %463 = vmatpush1.bf16.msra.mxu0 0
      %464 = vmatprep.subr.bf16.mxu0 0
      %465 = vmatpush1.bf16.msra.mxu0 0
      %466 = vmatprep.subr.bf16.mxu0 0
      %467 = vmatpush1.bf16.msra.mxu0 0
      %468 = vmatprep.subr.bf16.mxu0 0
      %469 = vmatpush1.bf16.msra.mxu0 0
      %470 = vmatprep.subr.bf16.mxu0 0
      %471 = vmatpush1.bf16.msra.mxu0 0
      %472 = vmatprep.subr.bf16.mxu0 0
      %473 = vmatpush1.bf16.msra.mxu0 0
      %474 = vmatprep.subr.bf16.mxu0 %v458
      %475 = vmatpush1.bf16.msra.mxu0 %v455
      %476 = vmatprep.subr.bf16.mxu0 0
      %477 = vmatpush2.bf16.msra.mxu0 0
      %478 = vmatprep.subr.bf16.mxu0 0
      %479 = vmatpush2.bf16.msra.mxu0 0
      %480 = vmatprep.subr.bf16.mxu0 0
      %481 = vmatpush2.bf16.msra.mxu0 0
      %482 = vmatprep.subr.bf16.mxu0 0
      %483 = vmatpush2.bf16.msra.mxu0 0
      %484 = vmatprep.subr.bf16.mxu0 0
      %485 = vmatpush2.bf16.msra.mxu0 0
      %486 = vmatprep.subr.bf16.mxu0 0
      %487 = vmatpush2.bf16.msra.mxu0 0
      %488 = vmatprep.subr.bf16.mxu0 0
      %489 = vmatpush2.bf16.msra.mxu0 0
      %490 = vmatprep.subr.bf16.mxu0 0
      %491 = vmatpush2.bf16.msra.mxu0 0
      %492 = vmatprep.mubr.bf16.mxu0 0
      %493 = vmatmul.mubr.bf16.gmra.mxu0 %v406
      %v494 = vpop.f32.mrf.mxu0
      %v495 = vadd.f32 0.0, %v494
      %v496 = vpop.f32.mrf.mxu0
      %v497 = vadd.f32 0.0, %v496
      %v498 = vpop.f32.mrf.mxu0
      %v499 = vadd.f32 0.0, %v498
      %v500 = vpop.f32.mrf.mxu0
      %v501 = vadd.f32 0.0, %v500
      %502 = vmatprep.mubr.bf16.mxu0 0
      %503 = vmatmul.mubr.bf16.gmra.mxu0 %v409
      %v504 = vpop.f32.mrf.mxu0
      %v505 = vadd.f32 0.0, %v504
      %v506 = vpop.f32.mrf.mxu0
      %v507 = vadd.f32 0.0, %v506
      %v508 = vpop.f32.mrf.mxu0
      %v509 = vadd.f32 0.0, %v508
      %v510 = vpop.f32.mrf.mxu0
      %v511 = vadd.f32 0.0, %v510
      %512 = vmatprep.mubr.bf16.mxu0 0
      %513 = vmatmul.mubr.bf16.gmra.mxu0 %v412
      %v514 = vpop.f32.mrf.mxu0
      %v515 = vadd.f32 0.0, %v514
      %v516 = vpop.f32.mrf.mxu0
      %v517 = vadd.f32 0.0, %v516
      %v518 = vpop.f32.mrf.mxu0
      %v519 = vadd.f32 0.0, %v518
      %v520 = vpop.f32.mrf.mxu0
      %v521 = vadd.f32 0.0, %v520
      %522 = vmatprep.mubr.bf16.mxu0 0
      %523 = vmatmul.mubr.bf16.gmra.mxu0 %v415
      %v524 = vpop.f32.mrf.mxu0
      %v525 = vadd.f32 0.0, %v524
      %v526 = vpop.f32.mrf.mxu0
      %v527 = vadd.f32 0.0, %v526
      %v528 = vpop.f32.mrf.mxu0
      %v529 = vadd.f32 0.0, %v528
      %v530 = vpop.f32.mrf.mxu0
      %v531 = vadd.f32 0.0, %v530
      %532 = vmatprep.mubr.bf16.mxu0 0
      %533 = vmatmul.mubr.bf16.gmra.mxu0 %v418
      %v534 = vpop.f32.mrf.mxu0
      %v535 = vadd.f32 0.0, %v534
      %v536 = vpop.f32.mrf.mxu0
      %v537 = vadd.f32 0.0, %v536
      %v538 = vpop.f32.mrf.mxu0
      %v539 = vadd.f32 0.0, %v538
      %v540 = vpop.f32.mrf.mxu0
      %v541 = vadd.f32 0.0, %v540
      %542 = vmatprep.mubr.bf16.mxu0 0
      %543 = vmatmul.mubr.bf16.gmra.mxu0 %v421
      %v544 = vpop.f32.mrf.mxu0
      %v545 = vadd.f32 0.0, %v544
      %v546 = vpop.f32.mrf.mxu0
      %v547 = vadd.f32 0.0, %v546
      %v548 = vpop.f32.mrf.mxu0
      %v549 = vadd.f32 0.0, %v548
      %v550 = vpop.f32.mrf.mxu0
      %v551 = vadd.f32 0.0, %v550
      %552 = vmatprep.mubr.bf16.mxu0 0
      %553 = vmatmul.mubr.bf16.gmra.mxu0 %v424
      %v554 = vpop.f32.mrf.mxu0
      %v555 = vadd.f32 0.0, %v554
      %v556 = vpop.f32.mrf.mxu0
      %v557 = vadd.f32 0.0, %v556
      %v558 = vpop.f32.mrf.mxu0
      %v559 = vadd.f32 0.0, %v558
      %v560 = vpop.f32.mrf.mxu0
      %v561 = vadd.f32 0.0, %v560
      %562 = vmatprep.mubr.bf16.mxu0 0
      %563 = vmatmul.mubr.bf16.gmra.mxu0 %v427
      %v564 = vpop.f32.mrf.mxu0
      %v565 = vadd.f32 0.0, %v564
      %v566 = vpop.f32.mrf.mxu0
      %v567 = vadd.f32 0.0, %v566
      %v568 = vpop.f32.mrf.mxu0
      %v569 = vadd.f32 0.0, %v568
      %v570 = vpop.f32.mrf.mxu0
      %v571 = vadd.f32 0.0, %v570
      %572 = vmatprep.mubr.bf16.mxu0 0
      %573 = vmatmul.mubr.bf16.gmra.mxu0 %v430
      %v574 = vpop.f32.mrf.mxu0
      %v575 = vadd.f32 0.0, %v574
      %v576 = vpop.f32.mrf.mxu0
      %v577 = vadd.f32 0.0, %v576
      %v578 = vpop.f32.mrf.mxu0
      %v579 = vadd.f32 0.0, %v578
      %v580 = vpop.f32.mrf.mxu0
      %v581 = vadd.f32 0.0, %v580
      %582 = vmatprep.mubr.bf16.mxu0 0
      %583 = vmatmul.mubr.bf16.gmra.mxu0 %v433
      %v584 = vpop.f32.mrf.mxu0
      %v585 = vadd.f32 0.0, %v584
      %v586 = vpop.f32.mrf.mxu0
      %v587 = vadd.f32 0.0, %v586
      %v588 = vpop.f32.mrf.mxu0
      %v589 = vadd.f32 0.0, %v588
      %v590 = vpop.f32.mrf.mxu0
      %v591 = vadd.f32 0.0, %v590
      %592 = vmatprep.mubr.bf16.mxu0 0
      %593 = vmatmul.mubr.bf16.gmra.mxu0 %v436
      %v594 = vpop.f32.mrf.mxu0
      %v595 = vadd.f32 0.0, %v594
      %v596 = vpop.f32.mrf.mxu0
      %v597 = vadd.f32 0.0, %v596
      %v598 = vpop.f32.mrf.mxu0
      %v599 = vadd.f32 0.0, %v598
      %v600 = vpop.f32.mrf.mxu0
      %v601 = vadd.f32 0.0, %v600
      %602 = vmatprep.mubr.bf16.mxu0 0
      %603 = vmatmul.mubr.bf16.gmra.mxu0 %v439
      %v604 = vpop.f32.mrf.mxu0
      %v605 = vadd.f32 0.0, %v604
      %v606 = vpop.f32.mrf.mxu0
      %v607 = vadd.f32 0.0, %v606
      %v608 = vpop.f32.mrf.mxu0
      %v609 = vadd.f32 0.0, %v608
      %v610 = vpop.f32.mrf.mxu0
      %v611 = vadd.f32 0.0, %v610
      %612 = vmatprep.mubr.bf16.mxu0 0
      %613 = vmatmul.mubr.bf16.gmra.mxu0 %v442
      %v614 = vpop.f32.mrf.mxu0
      %v615 = vadd.f32 0.0, %v614
      %v616 = vpop.f32.mrf.mxu0
      %v617 = vadd.f32 0.0, %v616
      %v618 = vpop.f32.mrf.mxu0
      %v619 = vadd.f32 0.0, %v618
      %v620 = vpop.f32.mrf.mxu0
      %v621 = vadd.f32 0.0, %v620
      %622 = vmatprep.mubr.bf16.mxu0 0
      %623 = vmatmul.mubr.bf16.gmra.mxu0 %v445
      %v624 = vpop.f32.mrf.mxu0
      %v625 = vadd.f32 0.0, %v624
      %v626 = vpop.f32.mrf.mxu0
      %v627 = vadd.f32 0.0, %v626
      %v628 = vpop.f32.mrf.mxu0
      %v629 = vadd.f32 0.0, %v628
      %v630 = vpop.f32.mrf.mxu0
      %v631 = vadd.f32 0.0, %v630
      %632 = vmatprep.mubr.bf16.mxu0 0
      %633 = vmatmul.mubr.bf16.gmra.mxu0 %v448
      %v634 = vpop.f32.mrf.mxu0
      %v635 = vadd.f32 0.0, %v634
      %v636 = vpop.f32.mrf.mxu0
      %v637 = vadd.f32 0.0, %v636
      %v638 = vpop.f32.mrf.mxu0
      %v639 = vadd.f32 0.0, %v638
      %v640 = vpop.f32.mrf.mxu0
      %v641 = vadd.f32 0.0, %v640
      %642 = vmatprep.mubr.bf16.mxu0 0
      %643 = vmatmul.mubr.bf16.gmra.mxu0 %v451
      %v644 = vpop.f32.mrf.mxu0
      %v645 = vadd.f32 0.0, %v644
      %v646 = vpop.f32.mrf.mxu0
      %v647 = vadd.f32 0.0, %v646
      %v648 = vpop.f32.mrf.mxu0
      %v649 = vadd.f32 0.0, %v648
      %v650 = vpop.f32.mrf.mxu0
      %v651 = vadd.f32 0.0, %v650
      %652 = vdwg.mxu0
      %v653 = vld [vmem:[%s4] sm:$0x1]
      %v654 = vld [vmem:[%s4 + $0x1] sm:$0x1]
      %vm655 = vcmask 15360
      %v656 = vsel %vm655, %v495, 0.0
      %v657 = vsel %vm655, %v499, 0.0
      %v658 = vadd.f32 %v656, %v657
      %v659 = vsel %vm655, %v505, 0.0
      %v660 = vadd.f32 %v658, %v659
      %v661 = vsel %vm655, %v509, 0.0
      %v662 = vadd.f32 %v660, %v661
      %v663 = vsel %vm655, %v515, 0.0
      %v664 = vadd.f32 %v662, %v663
      %v665 = vsel %vm655, %v519, 0.0
      %v666 = vadd.f32 %v664, %v665
      %v667 = vsel %vm655, %v525, 0.0
      %v668 = vadd.f32 %v666, %v667
      %v669 = vsel %vm655, %v529, 0.0
      %v670 = vadd.f32 %v668, %v669
      %v671 = vsel %vm655, %v535, 0.0
      %v672 = vadd.f32 %v670, %v671
      %v673 = vsel %vm655, %v539, 0.0
      %v674 = vadd.f32 %v672, %v673
      %v675 = vsel %vm655, %v545, 0.0
      %v676 = vadd.f32 %v674, %v675
      %v677 = vsel %vm655, %v549, 0.0
      %v678 = vadd.f32 %v676, %v677
      %v679 = vsel %vm655, %v555, 0.0
      %v680 = vadd.f32 %v678, %v679
      %v681 = vsel %vm655, %v559, 0.0
      %v682 = vadd.f32 %v680, %v681
      %v683 = vsel %vm655, %v565, 0.0
      %v684 = vadd.f32 %v682, %v683
      %v685 = vsel %vm655, %v569, 0.0
      %v686 = vadd.f32 %v684, %v685
      %v687 = vsel %vm655, %v575, 0.0
      %v688 = vadd.f32 %v686, %v687
      %v689 = vsel %vm655, %v579, 0.0
      %v690 = vadd.f32 %v688, %v689
      %v691 = vsel %vm655, %v585, 0.0
      %v692 = vadd.f32 %v690, %v691
      %v693 = vsel %vm655, %v589, 0.0
      %v694 = vadd.f32 %v692, %v693
      %v695 = vsel %vm655, %v595, 0.0
      %v696 = vadd.f32 %v694, %v695
      %v697 = vsel %vm655, %v599, 0.0
      %v698 = vadd.f32 %v696, %v697
      %v699 = vsel %vm655, %v605, 0.0
      %v700 = vadd.f32 %v698, %v699
      %v701 = vsel %vm655, %v609, 0.0
      %v702 = vadd.f32 %v700, %v701
      %v703 = vsel %vm655, %v615, 0.0
      %v704 = vadd.f32 %v702, %v703
      %v705 = vsel %vm655, %v619, 0.0
      %v706 = vadd.f32 %v704, %v705
      %v707 = vsel %vm655, %v625, 0.0
      %v708 = vadd.f32 %v706, %v707
      %v709 = vsel %vm655, %v629, 0.0
      %v710 = vadd.f32 %v708, %v709
      %v711 = vsel %vm655, %v635, 0.0
      %v712 = vadd.f32 %v710, %v711
      %v713 = vsel %vm655, %v639, 0.0
      %v714 = vadd.f32 %v712, %v713
      %v715 = vsel %vm655, %v645, 0.0
      %v716 = vadd.f32 %v714, %v715
      %v717 = vsel %vm655, %v649, 0.0
      %v718 = vadd.f32 %v716, %v717
      %v719 = vrot.slane %v718, 4
      %v720 = vadd.f32 %v718, %v719
      %v721 = vrot.slane %v720, 2
      %v722 = vadd.f32 %v720, %v721
      %v723 = vrot.slane %v722, 1
      %v724 = vadd.f32 %v722, %v723
      %v725 = vrcp.pop 256.0
      %v726 = vmul.f32 %v724, %v725
      %v727 = vsub.f32 %v495, %v726
      %v728 = vsub.f32 %v499, %v726
      %v729 = vsub.f32 %v505, %v726
      %v730 = vsub.f32 %v509, %v726
      %v731 = vsub.f32 %v515, %v726
      %v732 = vsub.f32 %v519, %v726
      %v733 = vsub.f32 %v525, %v726
      %v734 = vsub.f32 %v529, %v726
      %v735 = vsub.f32 %v535, %v726
      %v736 = vsub.f32 %v539, %v726
      %v737 = vsub.f32 %v545, %v726
      %v738 = vsub.f32 %v549, %v726
      %v739 = vsub.f32 %v555, %v726
      %v740 = vsub.f32 %v559, %v726
      %v741 = vsub.f32 %v565, %v726
      %v742 = vsub.f32 %v569, %v726
      %v743 = vsub.f32 %v575, %v726
      %v744 = vsub.f32 %v579, %v726
      %v745 = vsub.f32 %v585, %v726
      %v746 = vsub.f32 %v589, %v726
      %v747 = vsub.f32 %v595, %v726
      %v748 = vsub.f32 %v599, %v726
      %v749 = vsub.f32 %v605, %v726
      %v750 = vsub.f32 %v609, %v726
      %v751 = vsub.f32 %v615, %v726
      %v752 = vsub.f32 %v619, %v726
      %v753 = vsub.f32 %v625, %v726
      %v754 = vsub.f32 %v629, %v726
      %v755 = vsub.f32 %v635, %v726
      %v756 = vsub.f32 %v639, %v726
      %v757 = vsub.f32 %v645, %v726
      %v758 = vsub.f32 %v649, %v726
      %v759 = vmul.f32 %v727, %v727
      %v760 = vmul.f32 %v728, %v728
      %v761 = vmul.f32 %v729, %v729
      %v762 = vmul.f32 %v730, %v730
      %v763 = vmul.f32 %v731, %v731
      %v764 = vmul.f32 %v732, %v732
      %v765 = vmul.f32 %v733, %v733
      %v766 = vmul.f32 %v734, %v734
      %v767 = vmul.f32 %v735, %v735
      %v768 = vmul.f32 %v736, %v736
      %v769 = vmul.f32 %v737, %v737
      %v770 = vmul.f32 %v738, %v738
      %v771 = vmul.f32 %v739, %v739
      %v772 = vmul.f32 %v740, %v740
      %v773 = vmul.f32 %v741, %v741
      %v774 = vmul.f32 %v742, %v742
      %v775 = vmul.f32 %v743, %v743
      %v776 = vmul.f32 %v744, %v744
      %v777 = vmul.f32 %v745, %v745
      %v778 = vmul.f32 %v746, %v746
      %v779 = vmul.f32 %v747, %v747
      %v780 = vmul.f32 %v748, %v748
      %v781 = vmul.f32 %v749, %v749
      %v782 = vmul.f32 %v750, %v750
      %v783 = vmul.f32 %v751, %v751
      %v784 = vmul.f32 %v752, %v752
      %v785 = vmul.f32 %v753, %v753
      %v786 = vmul.f32 %v754, %v754
      %v787 = vmul.f32 %v755, %v755
      %v788 = vmul.f32 %v756, %v756
      %v789 = vmul.f32 %v757, %v757
      %v790 = vmul.f32 %v758, %v758
      %v791 = vsel %vm655, %v759, 0.0
      %v792 = vsel %vm655, %v760, 0.0
      %v793 = vadd.f32 %v791, %v792
      %v794 = vsel %vm655, %v761, 0.0
      %v795 = vadd.f32 %v793, %v794
      %v796 = vsel %vm655, %v762, 0.0
      %v797 = vadd.f32 %v795, %v796
      %v798 = vsel %vm655, %v763, 0.0
      %v799 = vadd.f32 %v797, %v798
      %v800 = vsel %vm655, %v764, 0.0
      %v801 = vadd.f32 %v799, %v800
      %v802 = vsel %vm655, %v765, 0.0
      %v803 = vadd.f32 %v801, %v802
      %v804 = vsel %vm655, %v766, 0.0
      %v805 = vadd.f32 %v803, %v804
      %v806 = vsel %vm655, %v767, 0.0
      %v807 = vadd.f32 %v805, %v806
      %v808 = vsel %vm655, %v768, 0.0
      %v809 = vadd.f32 %v807, %v808
      %v810 = vsel %vm655, %v769, 0.0
      %v811 = vadd.f32 %v809, %v810
      %v812 = vsel %vm655, %v770, 0.0
      %v813 = vadd.f32 %v811, %v812
      %v814 = vsel %vm655, %v771, 0.0
      %v815 = vadd.f32 %v813, %v814
      %v816 = vsel %vm655, %v772, 0.0
      %v817 = vadd.f32 %v815, %v816
      %v818 = vsel %vm655, %v773, 0.0
      %v819 = vadd.f32 %v817, %v818
      %v820 = vsel %vm655, %v774, 0.0
      %v821 = vadd.f32 %v819, %v820
      %v822 = vsel %vm655, %v775, 0.0
      %v823 = vadd.f32 %v821, %v822
      %v824 = vsel %vm655, %v776, 0.0
      %v825 = vadd.f32 %v823, %v824
      %v826 = vsel %vm655, %v777, 0.0
      %v827 = vadd.f32 %v825, %v826
      %v828 = vsel %vm655, %v778, 0.0
      %v829 = vadd.f32 %v827, %v828
      %v830 = vsel %vm655, %v779, 0.0
      %v831 = vadd.f32 %v829, %v830
      %v832 = vsel %vm655, %v780, 0.0
      %v833 = vadd.f32 %v831, %v832
      %v834 = vsel %vm655, %v781, 0.0
      %v835 = vadd.f32 %v833, %v834
      %v836 = vsel %vm655, %v782, 0.0
      %v837 = vadd.f32 %v835, %v836
      %v838 = vsel %vm655, %v783, 0.0
      %v839 = vadd.f32 %v837, %v838
      %v840 = vsel %vm655, %v784, 0.0
      %v841 = vadd.f32 %v839, %v840
      %v842 = vsel %vm655, %v785, 0.0
      %v843 = vadd.f32 %v841, %v842
      %v844 = vsel %vm655, %v786, 0.0
      %v845 = vadd.f32 %v843, %v844
      %v846 = vsel %vm655, %v787, 0.0
      %v847 = vadd.f32 %v845, %v846
      %v848 = vsel %vm655, %v788, 0.0
      %v849 = vadd.f32 %v847, %v848
      %v850 = vsel %vm655, %v789, 0.0
      %v851 = vadd.f32 %v849, %v850
      %v852 = vsel %vm655, %v790, 0.0
      %v853 = vadd.f32 %v851, %v852
      %v854 = vrot.slane %v853, 4
      %v855 = vadd.f32 %v853, %v854
      %v856 = vrot.slane %v855, 2
      %v857 = vadd.f32 %v855, %v856
      %v858 = vrot.slane %v857, 1
      %v859 = vadd.f32 %v857, %v858
      %v860 = vmul.f32 %v859, %v725
      %v861 = vadd.f32 %v860, 1e-05
      %v862 = vrsqrt.pop %v861
      %v863 = vmul.f32 %v653, %v862
      %v864 = vlaneseq
      %v865 = vshrl.u32 %v864, 7
      %v866 = vsub.s32 0, %v865
      %v867 = vrot.slane %v863, %v866
      %v868 = vmul.f32 %v727, %v867
      %v869 = vmul.f32 %v728, %v867
      %v870 = vmul.f32 %v729, %v867
      %v871 = vmul.f32 %v730, %v867
      %v872 = vmul.f32 %v731, %v867
      %v873 = vmul.f32 %v732, %v867
      %v874 = vmul.f32 %v733, %v867
      %v875 = vmul.f32 %v734, %v867
      %v876 = vmul.f32 %v735, %v867
      %v877 = vmul.f32 %v736, %v867
      %v878 = vmul.f32 %v737, %v867
      %v879 = vmul.f32 %v738, %v867
      %v880 = vmul.f32 %v739, %v867
      %v881 = vmul.f32 %v740, %v867
      %v882 = vmul.f32 %v741, %v867
      %v883 = vmul.f32 %v742, %v867
      %v884 = vmul.f32 %v743, %v867
      %v885 = vmul.f32 %v744, %v867
      %v886 = vmul.f32 %v745, %v867
      %v887 = vmul.f32 %v746, %v867
      %v888 = vmul.f32 %v747, %v867
      %v889 = vmul.f32 %v748, %v867
      %v890 = vmul.f32 %v749, %v867
      %v891 = vmul.f32 %v750, %v867
      %v892 = vmul.f32 %v751, %v867
      %v893 = vmul.f32 %v752, %v867
      %v894 = vmul.f32 %v753, %v867
      %v895 = vmul.f32 %v754, %v867
      %v896 = vmul.f32 %v755, %v867
      %v897 = vmul.f32 %v756, %v867
      %v898 = vmul.f32 %v757, %v867
      %v899 = vmul.f32 %v758, %v867
      %v900 = vlaneseq
      %v901 = vshrl.u32 %v900, 7
      %v902 = vsub.s32 0, %v901
      %v903 = vrot.slane %v654, %v902
      %v904 = vadd.f32 %v868, %v903
      %v905 = vadd.f32 %v869, %v903
      %v906 = vadd.f32 %v870, %v903
      %v907 = vadd.f32 %v871, %v903
      %v908 = vadd.f32 %v872, %v903
      %v909 = vadd.f32 %v873, %v903
      %v910 = vadd.f32 %v874, %v903
      %v911 = vadd.f32 %v875, %v903
      %v912 = vadd.f32 %v876, %v903
      %v913 = vadd.f32 %v877, %v903
      %v914 = vadd.f32 %v878, %v903
      %v915 = vadd.f32 %v879, %v903
      %v916 = vadd.f32 %v880, %v903
      %v917 = vadd.f32 %v881, %v903
      %v918 = vadd.f32 %v882, %v903
      %v919 = vadd.f32 %v883, %v903
      %v920 = vadd.f32 %v884, %v903
      %v921 = vadd.f32 %v885, %v903
      %v922 = vadd.f32 %v886, %v903
      %v923 = vadd.f32 %v887, %v903
      %v924 = vadd.f32 %v888, %v903
      %v925 = vadd.f32 %v889, %v903
      %v926 = vadd.f32 %v890, %v903
      %v927 = vadd.f32 %v891, %v903
      %v928 = vadd.f32 %v892, %v903
      %v929 = vadd.f32 %v893, %v903
      %v930 = vadd.f32 %v894, %v903
      %v931 = vadd.f32 %v895, %v903
      %v932 = vadd.f32 %v896, %v903
      %v933 = vadd.f32 %v897, %v903
      %v934 = vadd.f32 %v898, %v903
      %v935 = vadd.f32 %v899, %v903
      %vm936 = vcmp.ge.f32.partialorder %v904, 0.0
      %vm937 = vcmp.ge.f32.partialorder %v905, 0.0
      %vm938 = vcmp.ge.f32.partialorder %v906, 0.0
      %vm939 = vcmp.ge.f32.partialorder %v907, 0.0
      %vm940 = vcmp.ge.f32.partialorder %v908, 0.0
      %vm941 = vcmp.ge.f32.partialorder %v909, 0.0
      %vm942 = vcmp.ge.f32.partialorder %v910, 0.0
      %vm943 = vcmp.ge.f32.partialorder %v911, 0.0
      %vm944 = vcmp.ge.f32.partialorder %v912, 0.0
      %vm945 = vcmp.ge.f32.partialorder %v913, 0.0
      %vm946 = vcmp.ge.f32.partialorder %v914, 0.0
      %vm947 = vcmp.ge.f32.partialorder %v915, 0.0
      %vm948 = vcmp.ge.f32.partialorder %v916, 0.0
      %vm949 = vcmp.ge.f32.partialorder %v917, 0.0
      %vm950 = vcmp.ge.f32.partialorder %v918, 0.0
      %vm951 = vcmp.ge.f32.partialorder %v919, 0.0
      %vm952 = vcmp.ge.f32.partialorder %v920, 0.0
      %vm953 = vcmp.ge.f32.partialorder %v921, 0.0
      %vm954 = vcmp.ge.f32.partialorder %v922, 0.0
      %vm955 = vcmp.ge.f32.partialorder %v923, 0.0
      %vm956 = vcmp.ge.f32.partialorder %v924, 0.0
      %vm957 = vcmp.ge.f32.partialorder %v925, 0.0
      %vm958 = vcmp.ge.f32.partialorder %v926, 0.0
      %vm959 = vcmp.ge.f32.partialorder %v927, 0.0
      %vm960 = vcmp.ge.f32.partialorder %v928, 0.0
      %vm961 = vcmp.ge.f32.partialorder %v929, 0.0
      %vm962 = vcmp.ge.f32.partialorder %v930, 0.0
      %vm963 = vcmp.ge.f32.partialorder %v931, 0.0
      %vm964 = vcmp.ge.f32.partialorder %v932, 0.0
      %vm965 = vcmp.ge.f32.partialorder %v933, 0.0
      %vm966 = vcmp.ge.f32.partialorder %v934, 0.0
      %vm967 = vcmp.ge.f32.partialorder %v935, 0.0
      %v968 = vmul.f32 %v904, 0.01
      %v969 = vmul.f32 %v905, 0.01
      %v970 = vmul.f32 %v906, 0.01
      %v971 = vmul.f32 %v907, 0.01
      %v972 = vmul.f32 %v908, 0.01
      %v973 = vmul.f32 %v909, 0.01
      %v974 = vmul.f32 %v910, 0.01
      %v975 = vmul.f32 %v911, 0.01
      %v976 = vmul.f32 %v912, 0.01
      %v977 = vmul.f32 %v913, 0.01
      %v978 = vmul.f32 %v914, 0.01
      %v979 = vmul.f32 %v915, 0.01
      %v980 = vmul.f32 %v916, 0.01
      %v981 = vmul.f32 %v917, 0.01
      %v982 = vmul.f32 %v918, 0.01
      %v983 = vmul.f32 %v919, 0.01
      %v984 = vmul.f32 %v920, 0.01
      %v985 = vmul.f32 %v921, 0.01
      %v986 = vmul.f32 %v922, 0.01
      %v987 = vmul.f32 %v923, 0.01
      %v988 = vmul.f32 %v924, 0.01
      %v989 = vmul.f32 %v925, 0.01
      %v990 = vmul.f32 %v926, 0.01
      %v991 = vmul.f32 %v927, 0.01
      %v992 = vmul.f32 %v928, 0.01
      %v993 = vmul.f32 %v929, 0.01
      %v994 = vmul.f32 %v930, 0.01
      %v995 = vmul.f32 %v931, 0.01
      %v996 = vmul.f32 %v932, 0.01
      %v997 = vmul.f32 %v933, 0.01
      %v998 = vmul.f32 %v934, 0.01
      %v999 = vmul.f32 %v935, 0.01
      %v1000 = vsel %vm936, %v904, %v968
      %v1001 = vsel %vm937, %v905, %v969
      %v1002 = vsel %vm938, %v906, %v970
      %v1003 = vsel %vm939, %v907, %v971
      %v1004 = vsel %vm940, %v908, %v972
      %v1005 = vsel %vm941, %v909, %v973
      %v1006 = vsel %vm942, %v910, %v974
      %v1007 = vsel %vm943, %v911, %v975
      %v1008 = vsel %vm944, %v912, %v976
      %v1009 = vsel %vm945, %v913, %v977
      %v1010 = vsel %vm946, %v914, %v978
      %v1011 = vsel %vm947, %v915, %v979
      %v1012 = vsel %vm948, %v916, %v980
      %v1013 = vsel %vm949, %v917, %v981
      %v1014 = vsel %vm950, %v918, %v982
      %v1015 = vsel %vm951, %v919, %v983
      %v1016 = vsel %vm952, %v920, %v984
      %v1017 = vsel %vm953, %v921, %v985
      %v1018 = vsel %vm954, %v922, %v986
      %v1019 = vsel %vm955, %v923, %v987
      %v1020 = vsel %vm956, %v924, %v988
      %v1021 = vsel %vm957, %v925, %v989
      %v1022 = vsel %vm958, %v926, %v990
      %v1023 = vsel %vm959, %v927, %v991
      %v1024 = vsel %vm960, %v928, %v992
      %v1025 = vsel %vm961, %v929, %v993
      %v1026 = vsel %vm962, %v930, %v994
      %v1027 = vsel %vm963, %v931, %v995
      %v1028 = vsel %vm964, %v932, %v996
      %v1029 = vsel %vm965, %v933, %v997
      %v1030 = vsel %vm966, %v934, %v998
      %v1031 = vsel %vm967, %v935, %v999
      %v1032 = vld [vmem:[%s6 + $0x2] sm:$0x1]
      %v1033 = vld [vmem:[%s6 + $0x3] sm:$0x1]
      %vm1034 = vcmask 64512
      %v1035 = vsel %vm1034, %v497, 0.0
      %v1036 = vsel %vm1034, %v501, 0.0
      %v1037 = vadd.f32 %v1035, %v1036
      %v1038 = vsel %vm1034, %v507, 0.0
      %v1039 = vadd.f32 %v1037, %v1038
      %v1040 = vsel %vm1034, %v511, 0.0
      %v1041 = vadd.f32 %v1039, %v1040
      %v1042 = vsel %vm1034, %v517, 0.0
      %v1043 = vadd.f32 %v1041, %v1042
      %v1044 = vsel %vm1034, %v521, 0.0
      %v1045 = vadd.f32 %v1043, %v1044
      %v1046 = vsel %vm1034, %v527, 0.0
      %v1047 = vadd.f32 %v1045, %v1046
      %v1048 = vsel %vm1034, %v531, 0.0
      %v1049 = vadd.f32 %v1047, %v1048
      %v1050 = vsel %vm1034, %v537, 0.0
      %v1051 = vadd.f32 %v1049, %v1050
      %v1052 = vsel %vm1034, %v541, 0.0
      %v1053 = vadd.f32 %v1051, %v1052
      %v1054 = vsel %vm1034, %v547, 0.0
      %v1055 = vadd.f32 %v1053, %v1054
      %v1056 = vsel %vm1034, %v551, 0.0
      %v1057 = vadd.f32 %v1055, %v1056
      %v1058 = vsel %vm1034, %v557, 0.0
      %v1059 = vadd.f32 %v1057, %v1058
      %v1060 = vsel %vm1034, %v561, 0.0
      %v1061 = vadd.f32 %v1059, %v1060
      %v1062 = vsel %vm1034, %v567, 0.0
      %v1063 = vadd.f32 %v1061, %v1062
      %v1064 = vsel %vm1034, %v571, 0.0
      %v1065 = vadd.f32 %v1063, %v1064
      %v1066 = vsel %vm1034, %v577, 0.0
      %v1067 = vadd.f32 %v1065, %v1066
      %v1068 = vsel %vm1034, %v581, 0.0
      %v1069 = vadd.f32 %v1067, %v1068
      %v1070 = vsel %vm1034, %v587, 0.0
      %v1071 = vadd.f32 %v1069, %v1070
      %v1072 = vsel %vm1034, %v591, 0.0
      %v1073 = vadd.f32 %v1071, %v1072
      %v1074 = vsel %vm1034, %v597, 0.0
      %v1075 = vadd.f32 %v1073, %v1074
      %v1076 = vsel %vm1034, %v601, 0.0
      %v1077 = vadd.f32 %v1075, %v1076
      %v1078 = vsel %vm1034, %v607, 0.0
      %v1079 = vadd.f32 %v1077, %v1078
      %v1080 = vsel %vm1034, %v611, 0.0
      %v1081 = vadd.f32 %v1079, %v1080
      %v1082 = vsel %vm1034, %v617, 0.0
      %v1083 = vadd.f32 %v1081, %v1082
      %v1084 = vsel %vm1034, %v621, 0.0
      %v1085 = vadd.f32 %v1083, %v1084
      %v1086 = vsel %vm1034, %v627, 0.0
      %v1087 = vadd.f32 %v1085, %v1086
      %v1088 = vsel %vm1034, %v631, 0.0
      %v1089 = vadd.f32 %v1087, %v1088
      %v1090 = vsel %vm1034, %v637, 0.0
      %v1091 = vadd.f32 %v1089, %v1090
      %v1092 = vsel %vm1034, %v641, 0.0
      %v1093 = vadd.f32 %v1091, %v1092
      %v1094 = vsel %vm1034, %v647, 0.0
      %v1095 = vadd.f32 %v1093, %v1094
      %v1096 = vsel %vm1034, %v651, 0.0
      %v1097 = vadd.f32 %v1095, %v1096
      %v1098 = vrot.slane %v1097, 4
      %v1099 = vadd.f32 %v1097, %v1098
      %v1100 = vrot.slane %v1099, 2
      %v1101 = vadd.f32 %v1099, %v1100
      %v1102 = vrot.slane %v1101, 1
      %v1103 = vadd.f32 %v1101, %v1102
      %v1104 = vmul.f32 %v1103, %v725
      %v1105 = vsub.f32 %v497, %v1104
      %v1106 = vsub.f32 %v501, %v1104
      %v1107 = vsub.f32 %v507, %v1104
      %v1108 = vsub.f32 %v511, %v1104
      %v1109 = vsub.f32 %v517, %v1104
      %v1110 = vsub.f32 %v521, %v1104
      %v1111 = vsub.f32 %v527, %v1104
      %v1112 = vsub.f32 %v531, %v1104
      %v1113 = vsub.f32 %v537, %v1104
      %v1114 = vsub.f32 %v541, %v1104
      %v1115 = vsub.f32 %v547, %v1104
      %v1116 = vsub.f32 %v551, %v1104
      %v1117 = vsub.f32 %v557, %v1104
      %v1118 = vsub.f32 %v561, %v1104
      %v1119 = vsub.f32 %v567, %v1104
      %v1120 = vsub.f32 %v571, %v1104
      %v1121 = vsub.f32 %v577, %v1104
      %v1122 = vsub.f32 %v581, %v1104
      %v1123 = vsub.f32 %v587, %v1104
      %v1124 = vsub.f32 %v591, %v1104
      %v1125 = vsub.f32 %v597, %v1104
      %v1126 = vsub.f32 %v601, %v1104
      %v1127 = vsub.f32 %v607, %v1104
      %v1128 = vsub.f32 %v611, %v1104
      %v1129 = vsub.f32 %v617, %v1104
      %v1130 = vsub.f32 %v621, %v1104
      %v1131 = vsub.f32 %v627, %v1104
      %v1132 = vsub.f32 %v631, %v1104
      %v1133 = vsub.f32 %v637, %v1104
      %v1134 = vsub.f32 %v641, %v1104
      %v1135 = vsub.f32 %v647, %v1104
      %v1136 = vsub.f32 %v651, %v1104
      %v1137 = vmul.f32 %v1105, %v1105
      %v1138 = vmul.f32 %v1106, %v1106
      %v1139 = vmul.f32 %v1107, %v1107
      %v1140 = vmul.f32 %v1108, %v1108
      %v1141 = vmul.f32 %v1109, %v1109
      %v1142 = vmul.f32 %v1110, %v1110
      %v1143 = vmul.f32 %v1111, %v1111
      %v1144 = vmul.f32 %v1112, %v1112
      %v1145 = vmul.f32 %v1113, %v1113
      %v1146 = vmul.f32 %v1114, %v1114
      %v1147 = vmul.f32 %v1115, %v1115
      %v1148 = vmul.f32 %v1116, %v1116
      %v1149 = vmul.f32 %v1117, %v1117
      %v1150 = vmul.f32 %v1118, %v1118
      %v1151 = vmul.f32 %v1119, %v1119
      %v1152 = vmul.f32 %v1120, %v1120
      %v1153 = vmul.f32 %v1121, %v1121
      %v1154 = vmul.f32 %v1122, %v1122
      %v1155 = vmul.f32 %v1123, %v1123
      %v1156 = vmul.f32 %v1124, %v1124
      %v1157 = vmul.f32 %v1125, %v1125
      %v1158 = vmul.f32 %v1126, %v1126
      %v1159 = vmul.f32 %v1127, %v1127
      %v1160 = vmul.f32 %v1128, %v1128
      %v1161 = vmul.f32 %v1129, %v1129
      %v1162 = vmul.f32 %v1130, %v1130
      %v1163 = vmul.f32 %v1131, %v1131
      %v1164 = vmul.f32 %v1132, %v1132
      %v1165 = vmul.f32 %v1133, %v1133
      %v1166 = vmul.f32 %v1134, %v1134
      %v1167 = vmul.f32 %v1135, %v1135
      %v1168 = vmul.f32 %v1136, %v1136
      %v1169 = vsel %vm1034, %v1137, 0.0
      %v1170 = vsel %vm1034, %v1138, 0.0
      %v1171 = vadd.f32 %v1169, %v1170
      %v1172 = vsel %vm1034, %v1139, 0.0
      %v1173 = vadd.f32 %v1171, %v1172
      %v1174 = vsel %vm1034, %v1140, 0.0
      %v1175 = vadd.f32 %v1173, %v1174
      %v1176 = vsel %vm1034, %v1141, 0.0
      %v1177 = vadd.f32 %v1175, %v1176
      %v1178 = vsel %vm1034, %v1142, 0.0
      %v1179 = vadd.f32 %v1177, %v1178
      %v1180 = vsel %vm1034, %v1143, 0.0
      %v1181 = vadd.f32 %v1179, %v1180
      %v1182 = vsel %vm1034, %v1144, 0.0
      %v1183 = vadd.f32 %v1181, %v1182
      %v1184 = vsel %vm1034, %v1145, 0.0
      %v1185 = vadd.f32 %v1183, %v1184
      %v1186 = vsel %vm1034, %v1146, 0.0
      %v1187 = vadd.f32 %v1185, %v1186
      %v1188 = vsel %vm1034, %v1147, 0.0
      %v1189 = vadd.f32 %v1187, %v1188
      %v1190 = vsel %vm1034, %v1148, 0.0
      %v1191 = vadd.f32 %v1189, %v1190
      %v1192 = vsel %vm1034, %v1149, 0.0
      %v1193 = vadd.f32 %v1191, %v1192
      %v1194 = vsel %vm1034, %v1150, 0.0
      %v1195 = vadd.f32 %v1193, %v1194
      %v1196 = vsel %vm1034, %v1151, 0.0
      %v1197 = vadd.f32 %v1195, %v1196
      %v1198 = vsel %vm1034, %v1152, 0.0
      %v1199 = vadd.f32 %v1197, %v1198
      %v1200 = vsel %vm1034, %v1153, 0.0
      %v1201 = vadd.f32 %v1199, %v1200
      %v1202 = vsel %vm1034, %v1154, 0.0
      %v1203 = vadd.f32 %v1201, %v1202
      %v1204 = vsel %vm1034, %v1155, 0.0
      %v1205 = vadd.f32 %v1203, %v1204
      %v1206 = vsel %vm1034, %v1156, 0.0
      %v1207 = vadd.f32 %v1205, %v1206
      %v1208 = vsel %vm1034, %v1157, 0.0
      %v1209 = vadd.f32 %v1207, %v1208
      %v1210 = vsel %vm1034, %v1158, 0.0
      %v1211 = vadd.f32 %v1209, %v1210
      %v1212 = vsel %vm1034, %v1159, 0.0
      %v1213 = vadd.f32 %v1211, %v1212
      %v1214 = vsel %vm1034, %v1160, 0.0
      %v1215 = vadd.f32 %v1213, %v1214
      %v1216 = vsel %vm1034, %v1161, 0.0
      %v1217 = vadd.f32 %v1215, %v1216
      %v1218 = vsel %vm1034, %v1162, 0.0
      %v1219 = vadd.f32 %v1217, %v1218
      %v1220 = vsel %vm1034, %v1163, 0.0
      %v1221 = vadd.f32 %v1219, %v1220
      %v1222 = vsel %vm1034, %v1164, 0.0
      %v1223 = vadd.f32 %v1221, %v1222
      %v1224 = vsel %vm1034, %v1165, 0.0
      %v1225 = vadd.f32 %v1223, %v1224
      %v1226 = vsel %vm1034, %v1166, 0.0
      %v1227 = vadd.f32 %v1225, %v1226
      %v1228 = vsel %vm1034, %v1167, 0.0
      %v1229 = vadd.f32 %v1227, %v1228
      %v1230 = vsel %vm1034, %v1168, 0.0
      %v1231 = vadd.f32 %v1229, %v1230
      %v1232 = vrot.slane %v1231, 4
      %v1233 = vadd.f32 %v1231, %v1232
      %v1234 = vrot.slane %v1233, 2
      %v1235 = vadd.f32 %v1233, %v1234
      %v1236 = vrot.slane %v1235, 1
      %v1237 = vadd.f32 %v1235, %v1236
      %v1238 = vmul.f32 %v1237, %v725
      %v1239 = vadd.f32 %v1238, 1e-05
      %v1240 = vrsqrt.pop %v1239
      %v1241 = vmul.f32 %v1032, %v1240
      %v1242 = vlaneseq
      %v1243 = vshrl.u32 %v1242, 7
      %v1244 = vsub.s32 0, %v1243
      %v1245 = vrot.slane %v1241, %v1244
      %v1246 = vmul.f32 %v1105, %v1245
      %v1247 = vmul.f32 %v1106, %v1245
      %v1248 = vmul.f32 %v1107, %v1245
      %v1249 = vmul.f32 %v1108, %v1245
      %v1250 = vmul.f32 %v1109, %v1245
      %v1251 = vmul.f32 %v1110, %v1245
      %v1252 = vmul.f32 %v1111, %v1245
      %v1253 = vmul.f32 %v1112, %v1245
      %v1254 = vmul.f32 %v1113, %v1245
      %v1255 = vmul.f32 %v1114, %v1245
      %v1256 = vmul.f32 %v1115, %v1245
      %v1257 = vmul.f32 %v1116, %v1245
      %v1258 = vmul.f32 %v1117, %v1245
      %v1259 = vmul.f32 %v1118, %v1245
      %v1260 = vmul.f32 %v1119, %v1245
      %v1261 = vmul.f32 %v1120, %v1245
      %v1262 = vmul.f32 %v1121, %v1245
      %v1263 = vmul.f32 %v1122, %v1245
      %v1264 = vmul.f32 %v1123, %v1245
      %v1265 = vmul.f32 %v1124, %v1245
      %v1266 = vmul.f32 %v1125, %v1245
      %v1267 = vmul.f32 %v1126, %v1245
      %v1268 = vmul.f32 %v1127, %v1245
      %v1269 = vmul.f32 %v1128, %v1245
      %v1270 = vmul.f32 %v1129, %v1245
      %v1271 = vmul.f32 %v1130, %v1245
      %v1272 = vmul.f32 %v1131, %v1245
      %v1273 = vmul.f32 %v1132, %v1245
      %v1274 = vmul.f32 %v1133, %v1245
      %v1275 = vmul.f32 %v1134, %v1245
      %v1276 = vmul.f32 %v1135, %v1245
      %v1277 = vmul.f32 %v1136, %v1245
      %v1278 = vlaneseq
      %v1279 = vshrl.u32 %v1278, 7
      %v1280 = vsub.s32 0, %v1279
      %v1281 = vrot.slane %v1033, %v1280
      %v1282 = vadd.f32 %v1246, %v1281
      %v1283 = vadd.f32 %v1247, %v1281
      %v1284 = vadd.f32 %v1248, %v1281
      %v1285 = vadd.f32 %v1249, %v1281
      %v1286 = vadd.f32 %v1250, %v1281
      %v1287 = vadd.f32 %v1251, %v1281
      %v1288 = vadd.f32 %v1252, %v1281
      %v1289 = vadd.f32 %v1253, %v1281
      %v1290 = vadd.f32 %v1254, %v1281
      %v1291 = vadd.f32 %v1255, %v1281
      %v1292 = vadd.f32 %v1256, %v1281
      %v1293 = vadd.f32 %v1257, %v1281
      %v1294 = vadd.f32 %v1258, %v1281
      %v1295 = vadd.f32 %v1259, %v1281
      %v1296 = vadd.f32 %v1260, %v1281
      %v1297 = vadd.f32 %v1261, %v1281
      %v1298 = vadd.f32 %v1262, %v1281
      %v1299 = vadd.f32 %v1263, %v1281
      %v1300 = vadd.f32 %v1264, %v1281
      %v1301 = vadd.f32 %v1265, %v1281
      %v1302 = vadd.f32 %v1266, %v1281
      %v1303 = vadd.f32 %v1267, %v1281
      %v1304 = vadd.f32 %v1268, %v1281
      %v1305 = vadd.f32 %v1269, %v1281
      %v1306 = vadd.f32 %v1270, %v1281
      %v1307 = vadd.f32 %v1271, %v1281
      %v1308 = vadd.f32 %v1272, %v1281
      %v1309 = vadd.f32 %v1273, %v1281
      %v1310 = vadd.f32 %v1274, %v1281
      %v1311 = vadd.f32 %v1275, %v1281
      %v1312 = vadd.f32 %v1276, %v1281
      %v1313 = vadd.f32 %v1277, %v1281
      %vm1314 = vcmask 11264
      %1315 = vst.msk [vmem:[#allocation2] sm:$0xf] %vm1314, 0
      %1316 = vst.msk [vmem:[#allocation2 + $0x4] sm:$0xf] %vm1314, 0
      %1317 = vst.msk [vmem:[#allocation2 + $0x8] sm:$0xf] %vm1314, 0
      %1318 = vst.msk [vmem:[#allocation2 + $0xc] sm:$0xf] %vm1314, 0
      %1319 = vst.msk [vmem:[#allocation2 + $0x90] sm:$0xf] %vm1314, 0
      %1320 = vst.msk [vmem:[#allocation2 + $0x94] sm:$0xf] %vm1314, 0
      %1321 = vst.msk [vmem:[#allocation2 + $0x98] sm:$0xf] %vm1314, 0
      %1322 = vst.msk [vmem:[#allocation2 + $0x9c] sm:$0xf] %vm1314, 0
      %v1323 = vpack.c.bf16 %v1001, %v1000
      %v1324 = vpack.c.bf16 %v1003, %v1002
      %v1325 = vpack.c.bf16 %v1005, %v1004
      %v1326 = vpack.c.bf16 %v1007, %v1006
      %v1327 = vpack.c.bf16 %v1009, %v1008
      %v1328 = vpack.c.bf16 %v1011, %v1010
      %v1329 = vpack.c.bf16 %v1013, %v1012
      %v1330 = vpack.c.bf16 %v1015, %v1014
      %v1331 = vpack.c.bf16 %v1017, %v1016
      %v1332 = vpack.c.bf16 %v1019, %v1018
      %v1333 = vpack.c.bf16 %v1021, %v1020
      %v1334 = vpack.c.bf16 %v1023, %v1022
      %v1335 = vpack.c.bf16 %v1025, %v1024
      %v1336 = vpack.c.bf16 %v1027, %v1026
      %v1337 = vpack.c.bf16 %v1029, %v1028
      %v1338 = vpack.c.bf16 %v1031, %v1030
      %v1355 = vunpack.c.l.b16 %v1323
      %v1356 = vunpack.c.h.b16 %v1323
      %v1357 = vunpack.c.l.b16 %v1324
      %v1358 = vunpack.c.h.b16 %v1324
      %v1359 = vunpack.c.l.b16 %v1325
      %v1360 = vunpack.c.h.b16 %v1325
      %v1361 = vunpack.c.l.b16 %v1326
      %v1362 = vunpack.c.h.b16 %v1326
      %v1363 = vunpack.c.l.b16 %v1327
      %v1364 = vunpack.c.h.b16 %v1327
      %v1365 = vunpack.c.l.b16 %v1328
      %v1366 = vunpack.c.h.b16 %v1328
      %v1367 = vunpack.c.l.b16 %v1329
      %v1368 = vunpack.c.h.b16 %v1329
      %v1369 = vunpack.c.l.b16 %v1330
      %v1370 = vunpack.c.h.b16 %v1330
      %v1371 = vunpack.c.l.b16 %v1331
      %v1372 = vunpack.c.h.b16 %v1331
      %v1373 = vunpack.c.l.b16 %v1332
      %v1374 = vunpack.c.h.b16 %v1332
      %v1375 = vunpack.c.l.b16 %v1333
      %v1376 = vunpack.c.h.b16 %v1333
      %v1377 = vunpack.c.l.b16 %v1334
      %v1378 = vunpack.c.h.b16 %v1334
      %v1379 = vunpack.c.l.b16 %v1335
      %v1380 = vunpack.c.h.b16 %v1335
      %v1381 = vunpack.c.l.b16 %v1336
      %v1382 = vunpack.c.h.b16 %v1336
      %v1383 = vunpack.c.l.b16 %v1337
      %v1384 = vunpack.c.h.b16 %v1337
      %v1385 = vunpack.c.l.b16 %v1338
      %v1386 = vunpack.c.h.b16 %v1338
      %v1387 = vpack.c.b16 %v1355, %v1355
      %v1388 = vpack.c.b16 %v1356, %v1356
      %v1389 = vpack.c.b16 %v1357, %v1357
      %v1390 = vpack.c.b16 %v1358, %v1358
      %v1391 = vpack.c.b16 %v1359, %v1359
      %v1392 = vpack.c.b16 %v1360, %v1360
      %v1393 = vpack.c.b16 %v1361, %v1361
      %v1394 = vpack.c.b16 %v1362, %v1362
      %v1395 = vpack.c.b16 %v1363, %v1363
      %v1396 = vpack.c.b16 %v1364, %v1364
      %v1397 = vpack.c.b16 %v1365, %v1365
      %v1398 = vpack.c.b16 %v1366, %v1366
      %v1399 = vpack.c.b16 %v1367, %v1367
      %v1400 = vpack.c.b16 %v1368, %v1368
      %v1401 = vpack.c.b16 %v1369, %v1369
      %v1402 = vpack.c.b16 %v1370, %v1370
      %v1403 = vpack.c.b16 %v1371, %v1371
      %v1404 = vpack.c.b16 %v1372, %v1372
      %v1405 = vpack.c.b16 %v1373, %v1373
      %v1406 = vpack.c.b16 %v1374, %v1374
      %v1407 = vpack.c.b16 %v1375, %v1375
      %v1408 = vpack.c.b16 %v1376, %v1376
      %v1409 = vpack.c.b16 %v1377, %v1377
      %v1410 = vpack.c.b16 %v1378, %v1378
      %v1411 = vpack.c.b16 %v1379, %v1379
      %v1412 = vpack.c.b16 %v1380, %v1380
      %v1413 = vpack.c.b16 %v1381, %v1381
      %v1414 = vpack.c.b16 %v1382, %v1382
      %v1415 = vpack.c.b16 %v1383, %v1383
      %v1416 = vpack.c.b16 %v1384, %v1384
      %v1417 = vpack.c.b16 %v1385, %v1385
      %v1418 = vpack.c.b16 %v1386, %v1386
      %1451 = vst.msk [vmem:[#allocation2 + $0x10] sm:$0xf] %vm1314, %v1387
      %1452 = vst.msk [vmem:[#allocation2 + $0x14] sm:$0xf] %vm1314, %v1388
      %1453 = vst.msk [vmem:[#allocation2 + $0x18] sm:$0xf] %vm1314, %v1389
      %1454 = vst.msk [vmem:[#allocation2 + $0x1c] sm:$0xf] %vm1314, %v1390
      %1455 = vst.msk [vmem:[#allocation2 + $0x20] sm:$0xf] %vm1314, %v1391
      %1456 = vst.msk [vmem:[#allocation2 + $0x24] sm:$0xf] %vm1314, %v1392
      %1457 = vst.msk [vmem:[#allocation2 + $0x28] sm:$0xf] %vm1314, %v1393
      %1458 = vst.msk [vmem:[#allocation2 + $0x2c] sm:$0xf] %vm1314, %v1394
      %1459 = vst.msk [vmem:[#allocation2 + $0x30] sm:$0xf] %vm1314, %v1395
      %1460 = vst.msk [vmem:[#allocation2 + $0x34] sm:$0xf] %vm1314, %v1396
      %1461 = vst.msk [vmem:[#allocation2 + $0x38] sm:$0xf] %vm1314, %v1397
      %1462 = vst.msk [vmem:[#allocation2 + $0x3c] sm:$0xf] %vm1314, %v1398
      %1463 = vst.msk [vmem:[#allocation2 + $0x40] sm:$0xf] %vm1314, %v1399
      %1464 = vst.msk [vmem:[#allocation2 + $0x44] sm:$0xf] %vm1314, %v1400
      %1465 = vst.msk [vmem:[#allocation2 + $0x48] sm:$0xf] %vm1314, %v1401
      %1466 = vst.msk [vmem:[#allocation2 + $0x4c] sm:$0xf] %vm1314, %v1402
      %1467 = vst.msk [vmem:[#allocation2 + $0x50] sm:$0xf] %vm1314, %v1403
      %1468 = vst.msk [vmem:[#allocation2 + $0x54] sm:$0xf] %vm1314, %v1404
      %1469 = vst.msk [vmem:[#allocation2 + $0x58] sm:$0xf] %vm1314, %v1405
      %1470 = vst.msk [vmem:[#allocation2 + $0x5c] sm:$0xf] %vm1314, %v1406
      %1471 = vst.msk [vmem:[#allocation2 + $0x60] sm:$0xf] %vm1314, %v1407
      %1472 = vst.msk [vmem:[#allocation2 + $0x64] sm:$0xf] %vm1314, %v1408
      %1473 = vst.msk [vmem:[#allocation2 + $0x68] sm:$0xf] %vm1314, %v1409
      %1474 = vst.msk [vmem:[#allocation2 + $0x6c] sm:$0xf] %vm1314, %v1410
      %1475 = vst.msk [vmem:[#allocation2 + $0x70] sm:$0xf] %vm1314, %v1411
      %1476 = vst.msk [vmem:[#allocation2 + $0x74] sm:$0xf] %vm1314, %v1412
      %1477 = vst.msk [vmem:[#allocation2 + $0x78] sm:$0xf] %vm1314, %v1413
      %1478 = vst.msk [vmem:[#allocation2 + $0x7c] sm:$0xf] %vm1314, %v1414
      %1479 = vst.msk [vmem:[#allocation2 + $0x80] sm:$0xf] %vm1314, %v1415
      %1480 = vst.msk [vmem:[#allocation2 + $0x84] sm:$0xf] %vm1314, %v1416
      %1481 = vst.msk [vmem:[#allocation2 + $0x88] sm:$0xf] %vm1314, %v1417
      %1482 = vst.msk [vmem:[#allocation2 + $0x8c] sm:$0xf] %vm1314, %v1418
      %v1483 = vlaneseq
      %v1484 = vshrl.u32 %v1483, 7
      %v1485 = vadd.s32 %v1484, 8
      %v1486 = vadd.s32 %v1484, 16
      %v1487 = vadd.s32 %v1484, 24
      %v1488 = vadd.s32 %v1484, 32
      %v1489 = vadd.s32 %v1484, 40
      %v1490 = vadd.s32 %v1484, 48
      %v1491 = vadd.s32 %v1484, 56
      %v1492 = vadd.s32 %v1484, 64
      %v1493 = vadd.s32 %v1484, 72
      %v1494 = vadd.s32 %v1484, 80
      %v1495 = vadd.s32 %v1484, 88
      %v1496 = vadd.s32 %v1484, 96
      %v1497 = vadd.s32 %v1484, 104
      %v1498 = vadd.s32 %v1484, 112
      %v1499 = vadd.s32 %v1484, 120
      %v1500 = vadd.s32 %v1484, 128
      %v1501 = vadd.s32 %v1484, 136
      %v1502 = vadd.s32 %v1484, 144
      %v1503 = vadd.s32 %v1484, 152
      %v1504 = vadd.s32 %v1484, 160
      %v1505 = vadd.s32 %v1484, 168
      %v1506 = vadd.s32 %v1484, 176
      %v1507 = vadd.s32 %v1484, 184
      %v1508 = vadd.s32 %v1484, 192
      %v1509 = vadd.s32 %v1484, 200
      %v1510 = vadd.s32 %v1484, 208
      %v1511 = vadd.s32 %v1484, 216
      %v1512 = vadd.s32 %v1484, 224
      %v1513 = vadd.s32 %v1484, 232
      %v1514 = vadd.s32 %v1484, 240
      %v1515 = vadd.s32 %v1484, 248
      %vm1516 = vcmp.lt.s32.totalorder %v1484, 0
      %v1517 = vsub.s32 0, %v1484
      %v1518 = vsel %vm1516, %v1517, %v1484
      %v1519 = vshrl.u32 %v1518, 4
      %v1520 = vand.u32 %v1518, 15
      %v1521 = vsub.s32 0, %v1520
      %v1522 = vsel %vm1516, %v1521, %v1520
      %vm1523 = vcmp.lt.s32.totalorder %v1485, 0
      %v1524 = vsub.s32 0, %v1485
      %v1525 = vsel %vm1523, %v1524, %v1485
      %v1526 = vshrl.u32 %v1525, 4
      %v1527 = vand.u32 %v1525, 15
      %v1528 = vsub.s32 0, %v1527
      %v1529 = vsel %vm1523, %v1528, %v1527
      %vm1530 = vcmp.lt.s32.totalorder %v1486, 0
      %v1531 = vsub.s32 0, %v1486
      %v1532 = vsel %vm1530, %v1531, %v1486
      %v1533 = vshrl.u32 %v1532, 4
      %v1534 = vand.u32 %v1532, 15
      %v1535 = vsub.s32 0, %v1534
      %v1536 = vsel %vm1530, %v1535, %v1534
      %vm1537 = vcmp.lt.s32.totalorder %v1487, 0
      %v1538 = vsub.s32 0, %v1487
      %v1539 = vsel %vm1537, %v1538, %v1487
      %v1540 = vshrl.u32 %v1539, 4
      %v1541 = vand.u32 %v1539, 15
      %v1542 = vsub.s32 0, %v1541
      %v1543 = vsel %vm1537, %v1542, %v1541
      %vm1544 = vcmp.lt.s32.totalorder %v1488, 0
      %v1545 = vsub.s32 0, %v1488
      %v1546 = vsel %vm1544, %v1545, %v1488
      %v1547 = vshrl.u32 %v1546, 4
      %v1548 = vand.u32 %v1546, 15
      %v1549 = vsub.s32 0, %v1548
      %v1550 = vsel %vm1544, %v1549, %v1548
      %vm1551 = vcmp.lt.s32.totalorder %v1489, 0
      %v1552 = vsub.s32 0, %v1489
      %v1553 = vsel %vm1551, %v1552, %v1489
      %v1554 = vshrl.u32 %v1553, 4
      %v1555 = vand.u32 %v1553, 15
      %v1556 = vsub.s32 0, %v1555
      %v1557 = vsel %vm1551, %v1556, %v1555
      %vm1558 = vcmp.lt.s32.totalorder %v1490, 0
      %v1559 = vsub.s32 0, %v1490
      %v1560 = vsel %vm1558, %v1559, %v1490
      %v1561 = vshrl.u32 %v1560, 4
      %v1562 = vand.u32 %v1560, 15
      %v1563 = vsub.s32 0, %v1562
      %v1564 = vsel %vm1558, %v1563, %v1562
      %vm1565 = vcmp.lt.s32.totalorder %v1491, 0
      %v1566 = vsub.s32 0, %v1491
      %v1567 = vsel %vm1565, %v1566, %v1491
      %v1568 = vshrl.u32 %v1567, 4
      %v1569 = vand.u32 %v1567, 15
      %v1570 = vsub.s32 0, %v1569
      %v1571 = vsel %vm1565, %v1570, %v1569
      %vm1572 = vcmp.lt.s32.totalorder %v1492, 0
      %v1573 = vsub.s32 0, %v1492
      %v1574 = vsel %vm1572, %v1573, %v1492
      %v1575 = vshrl.u32 %v1574, 4
      %v1576 = vand.u32 %v1574, 15
      %v1577 = vsub.s32 0, %v1576
      %v1578 = vsel %vm1572, %v1577, %v1576
      %vm1579 = vcmp.lt.s32.totalorder %v1493, 0
      %v1580 = vsub.s32 0, %v1493
      %v1581 = vsel %vm1579, %v1580, %v1493
      %v1582 = vshrl.u32 %v1581, 4
      %v1583 = vand.u32 %v1581, 15
      %v1584 = vsub.s32 0, %v1583
      %v1585 = vsel %vm1579, %v1584, %v1583
      %vm1586 = vcmp.lt.s32.totalorder %v1494, 0
      %v1587 = vsub.s32 0, %v1494
      %v1588 = vsel %vm1586, %v1587, %v1494
      %v1589 = vshrl.u32 %v1588, 4
      %v1590 = vand.u32 %v1588, 15
      %v1591 = vsub.s32 0, %v1590
      %v1592 = vsel %vm1586, %v1591, %v1590
      %vm1593 = vcmp.lt.s32.totalorder %v1495, 0
      %v1594 = vsub.s32 0, %v1495
      %v1595 = vsel %vm1593, %v1594, %v1495
      %v1596 = vshrl.u32 %v1595, 4
      %v1597 = vand.u32 %v1595, 15
      %v1598 = vsub.s32 0, %v1597
      %v1599 = vsel %vm1593, %v1598, %v1597
      %vm1600 = vcmp.lt.s32.totalorder %v1496, 0
      %v1601 = vsub.s32 0, %v1496
      %v1602 = vsel %vm1600, %v1601, %v1496
      %v1603 = vshrl.u32 %v1602, 4
      %v1604 = vand.u32 %v1602, 15
      %v1605 = vsub.s32 0, %v1604
      %v1606 = vsel %vm1600, %v1605, %v1604
      %vm1607 = vcmp.lt.s32.totalorder %v1497, 0
      %v1608 = vsub.s32 0, %v1497
      %v1609 = vsel %vm1607, %v1608, %v1497
      %v1610 = vshrl.u32 %v1609, 4
      %v1611 = vand.u32 %v1609, 15
      %v1612 = vsub.s32 0, %v1611
      %v1613 = vsel %vm1607, %v1612, %v1611
      %vm1614 = vcmp.lt.s32.totalorder %v1498, 0
      %v1615 = vsub.s32 0, %v1498
      %v1616 = vsel %vm1614, %v1615, %v1498
      %v1617 = vshrl.u32 %v1616, 4
      %v1618 = vand.u32 %v1616, 15
      %v1619 = vsub.s32 0, %v1618
      %v1620 = vsel %vm1614, %v1619, %v1618
      %vm1621 = vcmp.lt.s32.totalorder %v1499, 0
      %v1622 = vsub.s32 0, %v1499
      %v1623 = vsel %vm1621, %v1622, %v1499
      %v1624 = vshrl.u32 %v1623, 4
      %v1625 = vand.u32 %v1623, 15
      %v1626 = vsub.s32 0, %v1625
      %v1627 = vsel %vm1621, %v1626, %v1625
      %vm1628 = vcmp.lt.s32.totalorder %v1500, 0
      %v1629 = vsub.s32 0, %v1500
      %v1630 = vsel %vm1628, %v1629, %v1500
      %v1631 = vshrl.u32 %v1630, 4
      %v1632 = vand.u32 %v1630, 15
      %v1633 = vsub.s32 0, %v1632
      %v1634 = vsel %vm1628, %v1633, %v1632
      %vm1635 = vcmp.lt.s32.totalorder %v1501, 0
      %v1636 = vsub.s32 0, %v1501
      %v1637 = vsel %vm1635, %v1636, %v1501
      %v1638 = vshrl.u32 %v1637, 4
      %v1639 = vand.u32 %v1637, 15
      %v1640 = vsub.s32 0, %v1639
      %v1641 = vsel %vm1635, %v1640, %v1639
      %vm1642 = vcmp.lt.s32.totalorder %v1502, 0
      %v1643 = vsub.s32 0, %v1502
      %v1644 = vsel %vm1642, %v1643, %v1502
      %v1645 = vshrl.u32 %v1644, 4
      %v1646 = vand.u32 %v1644, 15
      %v1647 = vsub.s32 0, %v1646
      %v1648 = vsel %vm1642, %v1647, %v1646
      %vm1649 = vcmp.lt.s32.totalorder %v1503, 0
      %v1650 = vsub.s32 0, %v1503
      %v1651 = vsel %vm1649, %v1650, %v1503
      %v1652 = vshrl.u32 %v1651, 4
      %v1653 = vand.u32 %v1651, 15
      %v1654 = vsub.s32 0, %v1653
      %v1655 = vsel %vm1649, %v1654, %v1653
      %vm1656 = vcmp.lt.s32.totalorder %v1504, 0
      %v1657 = vsub.s32 0, %v1504
      %v1658 = vsel %vm1656, %v1657, %v1504
      %v1659 = vshrl.u32 %v1658, 4
      %v1660 = vand.u32 %v1658, 15
      %v1661 = vsub.s32 0, %v1660
      %v1662 = vsel %vm1656, %v1661, %v1660
      %vm1663 = vcmp.lt.s32.totalorder %v1505, 0
      %v1664 = vsub.s32 0, %v1505
      %v1665 = vsel %vm1663, %v1664, %v1505
      %v1666 = vshrl.u32 %v1665, 4
      %v1667 = vand.u32 %v1665, 15
      %v1668 = vsub.s32 0, %v1667
      %v1669 = vsel %vm1663, %v1668, %v1667
      %vm1670 = vcmp.lt.s32.totalorder %v1506, 0
      %v1671 = vsub.s32 0, %v1506
      %v1672 = vsel %vm1670, %v1671, %v1506
      %v1673 = vshrl.u32 %v1672, 4
      %v1674 = vand.u32 %v1672, 15
      %v1675 = vsub.s32 0, %v1674
      %v1676 = vsel %vm1670, %v1675, %v1674
      %vm1677 = vcmp.lt.s32.totalorder %v1507, 0
      %v1678 = vsub.s32 0, %v1507
      %v1679 = vsel %vm1677, %v1678, %v1507
      %v1680 = vshrl.u32 %v1679, 4
      %v1681 = vand.u32 %v1679, 15
      %v1682 = vsub.s32 0, %v1681
      %v1683 = vsel %vm1677, %v1682, %v1681
      %vm1684 = vcmp.lt.s32.totalorder %v1508, 0
      %v1685 = vsub.s32 0, %v1508
      %v1686 = vsel %vm1684, %v1685, %v1508
      %v1687 = vshrl.u32 %v1686, 4
      %v1688 = vand.u32 %v1686, 15
      %v1689 = vsub.s32 0, %v1688
      %v1690 = vsel %vm1684, %v1689, %v1688
      %vm1691 = vcmp.lt.s32.totalorder %v1509, 0
      %v1692 = vsub.s32 0, %v1509
      %v1693 = vsel %vm1691, %v1692, %v1509
      %v1694 = vshrl.u32 %v1693, 4
      %v1695 = vand.u32 %v1693, 15
      %v1696 = vsub.s32 0, %v1695
      %v1697 = vsel %vm1691, %v1696, %v1695
      %vm1698 = vcmp.lt.s32.totalorder %v1510, 0
      %v1699 = vsub.s32 0, %v1510
      %v1700 = vsel %vm1698, %v1699, %v1510
      %v1701 = vshrl.u32 %v1700, 4
      %v1702 = vand.u32 %v1700, 15
      %v1703 = vsub.s32 0, %v1702
      %v1704 = vsel %vm1698, %v1703, %v1702
      %vm1705 = vcmp.lt.s32.totalorder %v1511, 0
      %v1706 = vsub.s32 0, %v1511
      %v1707 = vsel %vm1705, %v1706, %v1511
      %v1708 = vshrl.u32 %v1707, 4
      %v1709 = vand.u32 %v1707, 15
      %v1710 = vsub.s32 0, %v1709
      %v1711 = vsel %vm1705, %v1710, %v1709
      %vm1712 = vcmp.lt.s32.totalorder %v1512, 0
      %v1713 = vsub.s32 0, %v1512
      %v1714 = vsel %vm1712, %v1713, %v1512
      %v1715 = vshrl.u32 %v1714, 4
      %v1716 = vand.u32 %v1714, 15
      %v1717 = vsub.s32 0, %v1716
      %v1718 = vsel %vm1712, %v1717, %v1716
      %vm1719 = vcmp.lt.s32.totalorder %v1513, 0
      %v1720 = vsub.s32 0, %v1513
      %v1721 = vsel %vm1719, %v1720, %v1513
      %v1722 = vshrl.u32 %v1721, 4
      %v1723 = vand.u32 %v1721, 15
      %v1724 = vsub.s32 0, %v1723
      %v1725 = vsel %vm1719, %v1724, %v1723
      %vm1726 = vcmp.lt.s32.totalorder %v1514, 0
      %v1727 = vsub.s32 0, %v1514
      %v1728 = vsel %vm1726, %v1727, %v1514
      %v1729 = vshrl.u32 %v1728, 4
      %v1730 = vand.u32 %v1728, 15
      %v1731 = vsub.s32 0, %v1730
      %v1732 = vsel %vm1726, %v1731, %v1730
      %vm1733 = vcmp.lt.s32.totalorder %v1515, 0
      %v1734 = vsub.s32 0, %v1515
      %v1735 = vsel %vm1733, %v1734, %v1515
      %v1736 = vshrl.u32 %v1735, 4
      %v1737 = vand.u32 %v1735, 15
      %v1738 = vsub.s32 0, %v1737
      %v1739 = vsel %vm1733, %v1738, %v1737
      %vm1740 = vcmp.ne.s32.totalorder %v1522, 0
      %vm1741 = vcmp.ne.s32.totalorder %v1529, 0
      %vm1742 = vcmp.ne.s32.totalorder %v1536, 0
      %vm1743 = vcmp.ne.s32.totalorder %v1543, 0
      %vm1744 = vcmp.ne.s32.totalorder %v1550, 0
      %vm1745 = vcmp.ne.s32.totalorder %v1557, 0
      %vm1746 = vcmp.ne.s32.totalorder %v1564, 0
      %vm1747 = vcmp.ne.s32.totalorder %v1571, 0
      %vm1748 = vcmp.ne.s32.totalorder %v1578, 0
      %vm1749 = vcmp.ne.s32.totalorder %v1585, 0
      %vm1750 = vcmp.ne.s32.totalorder %v1592, 0
      %vm1751 = vcmp.ne.s32.totalorder %v1599, 0
      %vm1752 = vcmp.ne.s32.totalorder %v1606, 0
      %vm1753 = vcmp.ne.s32.totalorder %v1613, 0
      %vm1754 = vcmp.ne.s32.totalorder %v1620, 0
      %vm1755 = vcmp.ne.s32.totalorder %v1627, 0
      %vm1756 = vcmp.ne.s32.totalorder %v1634, 0
      %vm1757 = vcmp.ne.s32.totalorder %v1641, 0
      %vm1758 = vcmp.ne.s32.totalorder %v1648, 0
      %vm1759 = vcmp.ne.s32.totalorder %v1655, 0
      %vm1760 = vcmp.ne.s32.totalorder %v1662, 0
      %vm1761 = vcmp.ne.s32.totalorder %v1669, 0
      %vm1762 = vcmp.ne.s32.totalorder %v1676, 0
      %vm1763 = vcmp.ne.s32.totalorder %v1683, 0
      %vm1764 = vcmp.ne.s32.totalorder %v1690, 0
      %vm1765 = vcmp.ne.s32.totalorder %v1697, 0
      %vm1766 = vcmp.ne.s32.totalorder %v1704, 0
      %vm1767 = vcmp.ne.s32.totalorder %v1711, 0
      %vm1768 = vcmp.ne.s32.totalorder %v1718, 0
      %vm1769 = vcmp.ne.s32.totalorder %v1725, 0
      %vm1770 = vcmp.ne.s32.totalorder %v1732, 0
      %vm1771 = vcmp.ne.s32.totalorder %v1739, 0
      %vm1772 = vcmp.lt.s32.totalorder %v1522, 0
      %vm1773 = vcmp.lt.s32.totalorder %v1529, 0
      %vm1774 = vcmp.lt.s32.totalorder %v1536, 0
      %vm1775 = vcmp.lt.s32.totalorder %v1543, 0
      %vm1776 = vcmp.lt.s32.totalorder %v1550, 0
      %vm1777 = vcmp.lt.s32.totalorder %v1557, 0
      %vm1778 = vcmp.lt.s32.totalorder %v1564, 0
      %vm1779 = vcmp.lt.s32.totalorder %v1571, 0
      %vm1780 = vcmp.lt.s32.totalorder %v1578, 0
      %vm1781 = vcmp.lt.s32.totalorder %v1585, 0
      %vm1782 = vcmp.lt.s32.totalorder %v1592, 0
      %vm1783 = vcmp.lt.s32.totalorder %v1599, 0
      %vm1784 = vcmp.lt.s32.totalorder %v1606, 0
      %vm1785 = vcmp.lt.s32.totalorder %v1613, 0
      %vm1786 = vcmp.lt.s32.totalorder %v1620, 0
      %vm1787 = vcmp.lt.s32.totalorder %v1627, 0
      %vm1788 = vcmp.lt.s32.totalorder %v1634, 0
      %vm1789 = vcmp.lt.s32.totalorder %v1641, 0
      %vm1790 = vcmp.lt.s32.totalorder %v1648, 0
      %vm1791 = vcmp.lt.s32.totalorder %v1655, 0
      %vm1792 = vcmp.lt.s32.totalorder %v1662, 0
      %vm1793 = vcmp.lt.s32.totalorder %v1669, 0
      %vm1794 = vcmp.lt.s32.totalorder %v1676, 0
      %vm1795 = vcmp.lt.s32.totalorder %v1683, 0
      %vm1796 = vcmp.lt.s32.totalorder %v1690, 0
      %vm1797 = vcmp.lt.s32.totalorder %v1697, 0
      %vm1798 = vcmp.lt.s32.totalorder %v1704, 0
      %vm1799 = vcmp.lt.s32.totalorder %v1711, 0
      %vm1800 = vcmp.lt.s32.totalorder %v1718, 0
      %vm1801 = vcmp.lt.s32.totalorder %v1725, 0
      %vm1802 = vcmp.lt.s32.totalorder %v1732, 0
      %vm1803 = vcmp.lt.s32.totalorder %v1739, 0
      %vm1804 = vmand %vm1772, %vm1740
      %vm1805 = vmand %vm1773, %vm1741
      %vm1806 = vmand %vm1774, %vm1742
      %vm1807 = vmand %vm1775, %vm1743
      %vm1808 = vmand %vm1776, %vm1744
      %vm1809 = vmand %vm1777, %vm1745
      %vm1810 = vmand %vm1778, %vm1746
      %vm1811 = vmand %vm1779, %vm1747
      %vm1812 = vmand %vm1780, %vm1748
      %vm1813 = vmand %vm1781, %vm1749
      %vm1814 = vmand %vm1782, %vm1750
      %vm1815 = vmand %vm1783, %vm1751
      %vm1816 = vmand %vm1784, %vm1752
      %vm1817 = vmand %vm1785, %vm1753
      %vm1818 = vmand %vm1786, %vm1754
      %vm1819 = vmand %vm1787, %vm1755
      %vm1820 = vmand %vm1788, %vm1756
      %vm1821 = vmand %vm1789, %vm1757
      %vm1822 = vmand %vm1790, %vm1758
      %vm1823 = vmand %vm1791, %vm1759
      %vm1824 = vmand %vm1792, %vm1760
      %vm1825 = vmand %vm1793, %vm1761
      %vm1826 = vmand %vm1794, %vm1762
      %vm1827 = vmand %vm1795, %vm1763
      %vm1828 = vmand %vm1796, %vm1764
      %vm1829 = vmand %vm1797, %vm1765
      %vm1830 = vmand %vm1798, %vm1766
      %vm1831 = vmand %vm1799, %vm1767
      %vm1832 = vmand %vm1800, %vm1768
      %vm1833 = vmand %vm1801, %vm1769
      %vm1834 = vmand %vm1802, %vm1770
      %vm1835 = vmand %vm1803, %vm1771
      %v1836 = vadd.s32 %v1522, 16
      %v1837 = vadd.s32 %v1529, 16
      %v1838 = vadd.s32 %v1536, 16
      %v1839 = vadd.s32 %v1543, 16
      %v1840 = vadd.s32 %v1550, 16
      %v1841 = vadd.s32 %v1557, 16
      %v1842 = vadd.s32 %v1564, 16
      %v1843 = vadd.s32 %v1571, 16
      %v1844 = vadd.s32 %v1578, 16
      %v1845 = vadd.s32 %v1585, 16
      %v1846 = vadd.s32 %v1592, 16
      %v1847 = vadd.s32 %v1599, 16
      %v1848 = vadd.s32 %v1606, 16
      %v1849 = vadd.s32 %v1613, 16
      %v1850 = vadd.s32 %v1620, 16
      %v1851 = vadd.s32 %v1627, 16
      %v1852 = vadd.s32 %v1634, 16
      %v1853 = vadd.s32 %v1641, 16
      %v1854 = vadd.s32 %v1648, 16
      %v1855 = vadd.s32 %v1655, 16
      %v1856 = vadd.s32 %v1662, 16
      %v1857 = vadd.s32 %v1669, 16
      %v1858 = vadd.s32 %v1676, 16
      %v1859 = vadd.s32 %v1683, 16
      %v1860 = vadd.s32 %v1690, 16
      %v1861 = vadd.s32 %v1697, 16
      %v1862 = vadd.s32 %v1704, 16
      %v1863 = vadd.s32 %v1711, 16
      %v1864 = vadd.s32 %v1718, 16
      %v1865 = vadd.s32 %v1725, 16
      %v1866 = vadd.s32 %v1732, 16
      %v1867 = vadd.s32 %v1739, 16
      %v1868 = vsel %vm1804, %v1836, %v1522
      %v1869 = vsel %vm1805, %v1837, %v1529
      %v1870 = vsel %vm1806, %v1838, %v1536
      %v1871 = vsel %vm1807, %v1839, %v1543
      %v1872 = vsel %vm1808, %v1840, %v1550
      %v1873 = vsel %vm1809, %v1841, %v1557
      %v1874 = vsel %vm1810, %v1842, %v1564
      %v1875 = vsel %vm1811, %v1843, %v1571
      %v1876 = vsel %vm1812, %v1844, %v1578
      %v1877 = vsel %vm1813, %v1845, %v1585
      %v1878 = vsel %vm1814, %v1846, %v1592
      %v1879 = vsel %vm1815, %v1847, %v1599
      %v1880 = vsel %vm1816, %v1848, %v1606
      %v1881 = vsel %vm1817, %v1849, %v1613
      %v1882 = vsel %vm1818, %v1850, %v1620
      %v1883 = vsel %vm1819, %v1851, %v1627
      %v1884 = vsel %vm1820, %v1852, %v1634
      %v1885 = vsel %vm1821, %v1853, %v1641
      %v1886 = vsel %vm1822, %v1854, %v1648
      %v1887 = vsel %vm1823, %v1855, %v1655
      %v1888 = vsel %vm1824, %v1856, %v1662
      %v1889 = vsel %vm1825, %v1857, %v1669
      %v1890 = vsel %vm1826, %v1858, %v1676
      %v1891 = vsel %vm1827, %v1859, %v1683
      %v1892 = vsel %vm1828, %v1860, %v1690
      %v1893 = vsel %vm1829, %v1861, %v1697
      %v1894 = vsel %vm1830, %v1862, %v1704
      %v1895 = vsel %vm1831, %v1863, %v1711
      %v1896 = vsel %vm1832, %v1864, %v1718
      %v1897 = vsel %vm1833, %v1865, %v1725
      %v1898 = vsel %vm1834, %v1866, %v1732
      %v1899 = vsel %vm1835, %v1867, %v1739
      %v1900 = vld [vmem:[#allocation2 + $0x4] sm:$0x8]
      %v1901 = vld [vmem:[#allocation2 + $0x8] sm:$0xf]
      %v1902 = vld [vmem:[#allocation2 + $0xc] sm:$0xf]
      %v1903 = vld [vmem:[#allocation2 + $0x10] sm:$0xf]
      %v1904 = vld [vmem:[#allocation2 + $0x14] sm:$0xf]
      %v1905 = vld [vmem:[#allocation2 + $0x18] sm:$0xf]
      %v1906 = vld [vmem:[#allocation2 + $0x1c] sm:$0xf]
      %v1907 = vld [vmem:[#allocation2 + $0x20] sm:$0xf]
      %v1908 = vld [vmem:[#allocation2 + $0x24] sm:$0xf]
      %v1909 = vld [vmem:[#allocation2 + $0x28] sm:$0xf]
      %v1910 = vld [vmem:[#allocation2 + $0x2c] sm:$0xf]
      %v1911 = vld [vmem:[#allocation2 + $0x30] sm:$0xf]
      %v1912 = vld [vmem:[#allocation2 + $0x34] sm:$0xf]
      %v1913 = vld [vmem:[#allocation2 + $0x38] sm:$0xf]
      %v1914 = vld [vmem:[#allocation2 + $0x3c] sm:$0xf]
      %v1915 = vld [vmem:[#allocation2 + $0x40] sm:$0xf]
      %v1916 = vld [vmem:[#allocation2 + $0x44] sm:$0xf]
      %v1917 = vld [vmem:[#allocation2 + $0x48] sm:$0xf]
      %v1918 = vld [vmem:[#allocation2 + $0x4c] sm:$0xf]
      %v1919 = vld [vmem:[#allocation2 + $0x50] sm:$0xf]
      %v1920 = vld [vmem:[#allocation2 + $0x54] sm:$0xf]
      %v1921 = vld [vmem:[#allocation2 + $0x58] sm:$0xf]
      %v1922 = vld [vmem:[#allocation2 + $0x5c] sm:$0xf]
      %v1923 = vld [vmem:[#allocation2 + $0x60] sm:$0xf]
      %v1924 = vld [vmem:[#allocation2 + $0x64] sm:$0xf]
      %v1925 = vld [vmem:[#allocation2 + $0x68] sm:$0xf]
      %v1926 = vld [vmem:[#allocation2 + $0x6c] sm:$0xf]
      %v1927 = vld [vmem:[#allocation2 + $0x70] sm:$0xf]
      %v1928 = vld [vmem:[#allocation2 + $0x74] sm:$0xf]
      %v1929 = vld [vmem:[#allocation2 + $0x78] sm:$0xf]
      %v1930 = vld [vmem:[#allocation2 + $0x7c] sm:$0xf]
      %v1931 = vld [vmem:[#allocation2 + $0x80] sm:$0xf]
      %v1932 = vld [vmem:[#allocation2 + $0x84] sm:$0xf]
      %vm1933 = vcmp.ge.s32.totalorder %v1868, 1
      %vm1934 = vcmp.ge.s32.totalorder %v1869, 1
      %vm1935 = vcmp.ge.s32.totalorder %v1870, 1
      %vm1936 = vcmp.ge.s32.totalorder %v1871, 1
      %vm1937 = vcmp.ge.s32.totalorder %v1872, 1
      %vm1938 = vcmp.ge.s32.totalorder %v1873, 1
      %vm1939 = vcmp.ge.s32.totalorder %v1874, 1
      %vm1940 = vcmp.ge.s32.totalorder %v1875, 1
      %vm1941 = vcmp.ge.s32.totalorder %v1876, 1
      %vm1942 = vcmp.ge.s32.totalorder %v1877, 1
      %vm1943 = vcmp.ge.s32.totalorder %v1878, 1
      %vm1944 = vcmp.ge.s32.totalorder %v1879, 1
      %vm1945 = vcmp.ge.s32.totalorder %v1880, 1
      %vm1946 = vcmp.ge.s32.totalorder %v1881, 1
      %vm1947 = vcmp.ge.s32.totalorder %v1882, 1
      %vm1948 = vcmp.ge.s32.totalorder %v1883, 1
      %vm1949 = vcmp.ge.s32.totalorder %v1884, 1
      %vm1950 = vcmp.ge.s32.totalorder %v1885, 1
      %vm1951 = vcmp.ge.s32.totalorder %v1886, 1
      %vm1952 = vcmp.ge.s32.totalorder %v1887, 1
      %vm1953 = vcmp.ge.s32.totalorder %v1888, 1
      %vm1954 = vcmp.ge.s32.totalorder %v1889, 1
      %vm1955 = vcmp.ge.s32.totalorder %v1890, 1
      %vm1956 = vcmp.ge.s32.totalorder %v1891, 1
      %vm1957 = vcmp.ge.s32.totalorder %v1892, 1
      %vm1958 = vcmp.ge.s32.totalorder %v1893, 1
      %vm1959 = vcmp.ge.s32.totalorder %v1894, 1
      %vm1960 = vcmp.ge.s32.totalorder %v1895, 1
      %vm1961 = vcmp.ge.s32.totalorder %v1896, 1
      %vm1962 = vcmp.ge.s32.totalorder %v1897, 1
      %vm1963 = vcmp.ge.s32.totalorder %v1898, 1
      %vm1964 = vcmp.ge.s32.totalorder %v1899, 1
      %v1965 = vsel %vm1933, 1, 0
      %v1966 = vsel %vm1934, 1, 0
      %v1967 = vsel %vm1935, 1, 0
      %v1968 = vsel %vm1936, 1, 0
      %v1969 = vsel %vm1937, 1, 0
      %v1970 = vsel %vm1938, 1, 0
      %v1971 = vsel %vm1939, 1, 0
      %v1972 = vsel %vm1940, 1, 0
      %v1973 = vsel %vm1941, 1, 0
      %v1974 = vsel %vm1942, 1, 0
      %v1975 = vsel %vm1943, 1, 0
      %v1976 = vsel %vm1944, 1, 0
      %v1977 = vsel %vm1945, 1, 0
      %v1978 = vsel %vm1946, 1, 0
      %v1979 = vsel %vm1947, 1, 0
      %v1980 = vsel %vm1948, 1, 0
      %v1981 = vsel %vm1949, 1, 0
      %v1982 = vsel %vm1950, 1, 0
      %v1983 = vsel %vm1951, 1, 0
      %v1984 = vsel %vm1952, 1, 0
      %v1985 = vsel %vm1953, 1, 0
      %v1986 = vsel %vm1954, 1, 0
      %v1987 = vsel %vm1955, 1, 0
      %v1988 = vsel %vm1956, 1, 0
      %v1989 = vsel %vm1957, 1, 0
      %v1990 = vsel %vm1958, 1, 0
      %v1991 = vsel %vm1959, 1, 0
      %v1992 = vsel %vm1960, 1, 0
      %v1993 = vsel %vm1961, 1, 0
      %v1994 = vsel %vm1962, 1, 0
      %v1995 = vsel %vm1963, 1, 0
      %v1996 = vsel %vm1964, 1, 0
      %vm1997 = vcmp.eq.s32.totalorder %v1965, 1
      %vm1998 = vcmp.eq.s32.totalorder %v1966, 1
      %vm1999 = vcmp.eq.s32.totalorder %v1967, 1
      %vm2000 = vcmp.eq.s32.totalorder %v1968, 1
      %vm2001 = vcmp.eq.s32.totalorder %v1969, 1
      %vm2002 = vcmp.eq.s32.totalorder %v1970, 1
      %vm2003 = vcmp.eq.s32.totalorder %v1971, 1
      %vm2004 = vcmp.eq.s32.totalorder %v1972, 1
      %vm2005 = vcmp.eq.s32.totalorder %v1973, 1
      %vm2006 = vcmp.eq.s32.totalorder %v1974, 1
      %vm2007 = vcmp.eq.s32.totalorder %v1975, 1
      %vm2008 = vcmp.eq.s32.totalorder %v1976, 1
      %vm2009 = vcmp.eq.s32.totalorder %v1977, 1
      %vm2010 = vcmp.eq.s32.totalorder %v1978, 1
      %vm2011 = vcmp.eq.s32.totalorder %v1979, 1
      %vm2012 = vcmp.eq.s32.totalorder %v1980, 1
      %vm2013 = vcmp.eq.s32.totalorder %v1981, 1
      %vm2014 = vcmp.eq.s32.totalorder %v1982, 1
      %vm2015 = vcmp.eq.s32.totalorder %v1983, 1
      %vm2016 = vcmp.eq.s32.totalorder %v1984, 1
      %vm2017 = vcmp.eq.s32.totalorder %v1985, 1
      %vm2018 = vcmp.eq.s32.totalorder %v1986, 1
      %vm2019 = vcmp.eq.s32.totalorder %v1987, 1
      %vm2020 = vcmp.eq.s32.totalorder %v1988, 1
      %vm2021 = vcmp.eq.s32.totalorder %v1989, 1
      %vm2022 = vcmp.eq.s32.totalorder %v1990, 1
      %vm2023 = vcmp.eq.s32.totalorder %v1991, 1
      %vm2024 = vcmp.eq.s32.totalorder %v1992, 1
      %vm2025 = vcmp.eq.s32.totalorder %v1993, 1
      %vm2026 = vcmp.eq.s32.totalorder %v1994, 1
      %vm2027 = vcmp.eq.s32.totalorder %v1995, 1
      %vm2028 = vcmp.eq.s32.totalorder %v1996, 1
      %vm2029 = vmpackc.low %vm1997, %vm1997
      %vm2030 = vmpackc.low %vm1998, %vm1998
      %vm2031 = vmpackc.low %vm1999, %vm1999
      %vm2032 = vmpackc.low %vm2000, %vm2000
      %vm2033 = vmpackc.low %vm2001, %vm2001
      %vm2034 = vmpackc.low %vm2002, %vm2002
      %vm2035 = vmpackc.low %vm2003, %vm2003
      %vm2036 = vmpackc.low %vm2004, %vm2004
      %vm2037 = vmpackc.low %vm2005, %vm2005
      %vm2038 = vmpackc.low %vm2006, %vm2006
      %vm2039 = vmpackc.low %vm2007, %vm2007
      %vm2040 = vmpackc.low %vm2008, %vm2008
      %vm2041 = vmpackc.low %vm2009, %vm2009
      %vm2042 = vmpackc.low %vm2010, %vm2010
      %vm2043 = vmpackc.low %vm2011, %vm2011
      %vm2044 = vmpackc.low %vm2012, %vm2012
      %vm2045 = vmpackc.low %vm2013, %vm2013
      %vm2046 = vmpackc.low %vm2014, %vm2014
      %vm2047 = vmpackc.low %vm2015, %vm2015
      %vm2048 = vmpackc.low %vm2016, %vm2016
      %vm2049 = vmpackc.low %vm2017, %vm2017
      %vm2050 = vmpackc.low %vm2018, %vm2018
      %vm2051 = vmpackc.low %vm2019, %vm2019
      %vm2052 = vmpackc.low %vm2020, %vm2020
      %vm2053 = vmpackc.low %vm2021, %vm2021
      %vm2054 = vmpackc.low %vm2022, %vm2022
      %vm2055 = vmpackc.low %vm2023, %vm2023
      %vm2056 = vmpackc.low %vm2024, %vm2024
      %vm2057 = vmpackc.low %vm2025, %vm2025
      %vm2058 = vmpackc.low %vm2026, %vm2026
      %vm2059 = vmpackc.low %vm2027, %vm2027
      %vm2060 = vmpackc.low %vm2028, %vm2028
      %v2061 = vsel %vm2029, 65537, 0
      %v2062 = vsel %vm2030, 65537, 0
      %v2063 = vsel %vm2031, 65537, 0
      %v2064 = vsel %vm2032, 65537, 0
      %v2065 = vsel %vm2033, 65537, 0
      %v2066 = vsel %vm2034, 65537, 0
      %v2067 = vsel %vm2035, 65537, 0
      %v2068 = vsel %vm2036, 65537, 0
      %v2069 = vsel %vm2037, 65537, 0
      %v2070 = vsel %vm2038, 65537, 0
      %v2071 = vsel %vm2039, 65537, 0
      %v2072 = vsel %vm2040, 65537, 0
      %v2073 = vsel %vm2041, 65537, 0
      %v2074 = vsel %vm2042, 65537, 0
      %v2075 = vsel %vm2043, 65537, 0
      %v2076 = vsel %vm2044, 65537, 0
      %v2077 = vsel %vm2045, 65537, 0
      %v2078 = vsel %vm2046, 65537, 0
      %v2079 = vsel %vm2047, 65537, 0
      %v2080 = vsel %vm2048, 65537, 0
      %v2081 = vsel %vm2049, 65537, 0
      %v2082 = vsel %vm2050, 65537, 0
      %v2083 = vsel %vm2051, 65537, 0
      %v2084 = vsel %vm2052, 65537, 0
      %v2085 = vsel %vm2053, 65537, 0
      %v2086 = vsel %vm2054, 65537, 0
      %v2087 = vsel %vm2055, 65537, 0
      %v2088 = vsel %vm2056, 65537, 0
      %v2089 = vsel %vm2057, 65537, 0
      %v2090 = vsel %vm2058, 65537, 0
      %v2091 = vsel %vm2059, 65537, 0
      %v2092 = vsel %vm2060, 65537, 0
      %vm2093 = vsmask.f32 3328
      %vm2094 = vsmask.f32 7440
      %vm2095 = vmor %vm2093, %vm2094
      %v2097 = vshll.u32 %v2061, 16
      %v2099 = vrot.slane %v2097, 5
      %v2100 = vshrl.u32 %v2061, 16
      %v2102 = vrot.slane %v2100, 4
      %v2103 = vor.u32 %v2102, %v2099
      %v2104 = vrot.slane %v2103, 4
      %v2106 = vshll.u32 %v2062, 16
      %v2108 = vrot.slane %v2106, 5
      %v2109 = vsel %vm2095, %v2104, %v2108
      %v2110 = vshrl.u32 %v2062, 16
      %v2112 = vrot.slane %v2110, 4
      %v2113 = vor.u32 %v2112, %v2108
      %v2114 = vrot.slane %v2113, 4
      %v2116 = vshll.u32 %v2063, 16
      %v2118 = vrot.slane %v2116, 5
      %v2119 = vsel %vm2095, %v2114, %v2118
      %v2120 = vshrl.u32 %v2063, 16
      %v2122 = vrot.slane %v2120, 4
      %v2123 = vor.u32 %v2122, %v2118
      %v2124 = vrot.slane %v2123, 4
      %v2126 = vshll.u32 %v2064, 16
      %v2128 = vrot.slane %v2126, 5
      %v2129 = vsel %vm2095, %v2124, %v2128
      %v2130 = vshrl.u32 %v2064, 16
      %v2132 = vrot.slane %v2130, 4
      %v2133 = vor.u32 %v2132, %v2128
      %v2134 = vrot.slane %v2133, 4
      %v2136 = vshll.u32 %v2065, 16
      %v2138 = vrot.slane %v2136, 5
      %v2139 = vsel %vm2095, %v2134, %v2138
      %v2140 = vshrl.u32 %v2065, 16
      %v2142 = vrot.slane %v2140, 4
      %v2143 = vor.u32 %v2142, %v2138
      %v2144 = vrot.slane %v2143, 4
      %v2146 = vshll.u32 %v2066, 16
      %v2148 = vrot.slane %v2146, 5
      %v2149 = vsel %vm2095, %v2144, %v2148
      %v2150 = vshrl.u32 %v2066, 16
      %v2152 = vrot.slane %v2150, 4
      %v2153 = vor.u32 %v2152, %v2148
      %v2154 = vrot.slane %v2153, 4
      %v2156 = vshll.u32 %v2067, 16
      %v2158 = vrot.slane %v2156, 5
      %v2159 = vsel %vm2095, %v2154, %v2158
      %v2160 = vshrl.u32 %v2067, 16
      %v2162 = vrot.slane %v2160, 4
      %v2163 = vor.u32 %v2162, %v2158
      %v2164 = vrot.slane %v2163, 4
      %v2166 = vshll.u32 %v2068, 16
      %v2168 = vrot.slane %v2166, 5
      %v2169 = vsel %vm2095, %v2164, %v2168
      %v2170 = vshrl.u32 %v2068, 16
      %v2172 = vrot.slane %v2170, 4
      %v2173 = vor.u32 %v2172, %v2168
      %v2174 = vrot.slane %v2173, 4
      %v2176 = vshll.u32 %v2069, 16
      %v2178 = vrot.slane %v2176, 5
      %v2179 = vsel %vm2095, %v2174, %v2178
      %v2180 = vshrl.u32 %v2069, 16
      %v2182 = vrot.slane %v2180, 4
      %v2183 = vor.u32 %v2182, %v2178
      %v2184 = vrot.slane %v2183, 4
      %v2186 = vshll.u32 %v2070, 16
      %v2188 = vrot.slane %v2186, 5
      %v2189 = vsel %vm2095, %v2184, %v2188
      %v2190 = vshrl.u32 %v2070, 16
      %v2192 = vrot.slane %v2190, 4
      %v2193 = vor.u32 %v2192, %v2188
      %v2194 = vrot.slane %v2193, 4
      %v2196 = vshll.u32 %v2071, 16
      %v2198 = vrot.slane %v2196, 5
      %v2199 = vsel %vm2095, %v2194, %v2198
      %v2200 = vshrl.u32 %v2071, 16
      %v2202 = vrot.slane %v2200, 4
      %v2203 = vor.u32 %v2202, %v2198
      %v2204 = vrot.slane %v2203, 4
      %v2206 = vshll.u32 %v2072, 16
      %v2208 = vrot.slane %v2206, 5
      %v2209 = vsel %vm2095, %v2204, %v2208
      %v2210 = vshrl.u32 %v2072, 16
      %v2212 = vrot.slane %v2210, 4
      %v2213 = vor.u32 %v2212, %v2208
      %v2214 = vrot.slane %v2213, 4
      %v2216 = vshll.u32 %v2073, 16
      %v2218 = vrot.slane %v2216, 5
      %v2219 = vsel %vm2095, %v2214, %v2218
      %v2220 = vshrl.u32 %v2073, 16
      %v2222 = vrot.slane %v2220, 4
      %v2223 = vor.u32 %v2222, %v2218
      %v2224 = vrot.slane %v2223, 4
      %v2226 = vshll.u32 %v2074, 16
      %v2228 = vrot.slane %v2226, 5
      %v2229 = vsel %vm2095, %v2224, %v2228
      %v2230 = vshrl.u32 %v2074, 16
      %v2232 = vrot.slane %v2230, 4
      %v2233 = vor.u32 %v2232, %v2228
      %v2234 = vrot.slane %v2233, 4
      %v2236 = vshll.u32 %v2075, 16
      %v2238 = vrot.slane %v2236, 5
      %v2239 = vsel %vm2095, %v2234, %v2238
      %v2240 = vshrl.u32 %v2075, 16
      %v2242 = vrot.slane %v2240, 4
      %v2243 = vor.u32 %v2242, %v2238
      %v2244 = vrot.slane %v2243, 4
      %v2246 = vshll.u32 %v2076, 16
      %v2248 = vrot.slane %v2246, 5
      %v2249 = vsel %vm2095, %v2244, %v2248
      %v2250 = vshrl.u32 %v2076, 16
      %v2252 = vrot.slane %v2250, 4
      %v2253 = vor.u32 %v2252, %v2248
      %v2254 = vrot.slane %v2253, 4
      %v2256 = vshll.u32 %v2077, 16
      %v2258 = vrot.slane %v2256, 5
      %v2259 = vsel %vm2095, %v2254, %v2258
      %v2260 = vshrl.u32 %v2077, 16
      %v2262 = vrot.slane %v2260, 4
      %v2263 = vor.u32 %v2262, %v2258
      %v2264 = vrot.slane %v2263, 4
      %v2266 = vshll.u32 %v2078, 16
      %v2268 = vrot.slane %v2266, 5
      %v2269 = vsel %vm2095, %v2264, %v2268
      %v2270 = vshrl.u32 %v2078, 16
      %v2272 = vrot.slane %v2270, 4
      %v2273 = vor.u32 %v2272, %v2268
      %v2274 = vrot.slane %v2273, 4
      %v2276 = vshll.u32 %v2079, 16
      %v2278 = vrot.slane %v2276, 5
      %v2279 = vsel %vm2095, %v2274, %v2278
      %v2280 = vshrl.u32 %v2079, 16
      %v2282 = vrot.slane %v2280, 4
      %v2283 = vor.u32 %v2282, %v2278
      %v2284 = vrot.slane %v2283, 4
      %v2286 = vshll.u32 %v2080, 16
      %v2288 = vrot.slane %v2286, 5
      %v2289 = vsel %vm2095, %v2284, %v2288
      %v2290 = vshrl.u32 %v2080, 16
      %v2292 = vrot.slane %v2290, 4
      %v2293 = vor.u32 %v2292, %v2288
      %v2294 = vrot.slane %v2293, 4
      %v2296 = vshll.u32 %v2081, 16
      %v2298 = vrot.slane %v2296, 5
      %v2299 = vsel %vm2095, %v2294, %v2298
      %v2300 = vshrl.u32 %v2081, 16
      %v2302 = vrot.slane %v2300, 4
      %v2303 = vor.u32 %v2302, %v2298
      %v2304 = vrot.slane %v2303, 4
      %v2306 = vshll.u32 %v2082, 16
      %v2308 = vrot.slane %v2306, 5
      %v2309 = vsel %vm2095, %v2304, %v2308
      %v2310 = vshrl.u32 %v2082, 16
      %v2312 = vrot.slane %v2310, 4
      %v2313 = vor.u32 %v2312, %v2308
      %v2314 = vrot.slane %v2313, 4
      %v2316 = vshll.u32 %v2083, 16
      %v2318 = vrot.slane %v2316, 5
      %v2319 = vsel %vm2095, %v2314, %v2318
      %v2320 = vshrl.u32 %v2083, 16
      %v2322 = vrot.slane %v2320, 4
      %v2323 = vor.u32 %v2322, %v2318
      %v2324 = vrot.slane %v2323, 4
      %v2326 = vshll.u32 %v2084, 16
      %v2328 = vrot.slane %v2326, 5
      %v2329 = vsel %vm2095, %v2324, %v2328
      %v2330 = vshrl.u32 %v2084, 16
      %v2332 = vrot.slane %v2330, 4
      %v2333 = vor.u32 %v2332, %v2328
      %v2334 = vrot.slane %v2333, 4
      %v2336 = vshll.u32 %v2085, 16
      %v2338 = vrot.slane %v2336, 5
      %v2339 = vsel %vm2095, %v2334, %v2338
      %v2340 = vshrl.u32 %v2085, 16
      %v2342 = vrot.slane %v2340, 4
      %v2343 = vor.u32 %v2342, %v2338
      %v2344 = vrot.slane %v2343, 4
      %v2346 = vshll.u32 %v2086, 16
      %v2348 = vrot.slane %v2346, 5
      %v2349 = vsel %vm2095, %v2344, %v2348
      %v2350 = vshrl.u32 %v2086, 16
      %v2352 = vrot.slane %v2350, 4
      %v2353 = vor.u32 %v2352, %v2348
      %v2354 = vrot.slane %v2353, 4
      %v2356 = vshll.u32 %v2087, 16
      %v2358 = vrot.slane %v2356, 5
      %v2359 = vsel %vm2095, %v2354, %v2358
      %v2360 = vshrl.u32 %v2087, 16
      %v2362 = vrot.slane %v2360, 4
      %v2363 = vor.u32 %v2362, %v2358
      %v2364 = vrot.slane %v2363, 4
      %v2366 = vshll.u32 %v2088, 16
      %v2368 = vrot.slane %v2366, 5
      %v2369 = vsel %vm2095, %v2364, %v2368
      %v2370 = vshrl.u32 %v2088, 16
      %v2372 = vrot.slane %v2370, 4
      %v2373 = vor.u32 %v2372, %v2368
      %v2374 = vrot.slane %v2373, 4
      %v2376 = vshll.u32 %v2089, 16
      %v2378 = vrot.slane %v2376, 5
      %v2379 = vsel %vm2095, %v2374, %v2378
      %v2380 = vshrl.u32 %v2089, 16
      %v2382 = vrot.slane %v2380, 4
      %v2383 = vor.u32 %v2382, %v2378
      %v2384 = vrot.slane %v2383, 4
      %v2386 = vshll.u32 %v2090, 16
      %v2388 = vrot.slane %v2386, 5
      %v2389 = vsel %vm2095, %v2384, %v2388
      %v2390 = vshrl.u32 %v2090, 16
      %v2392 = vrot.slane %v2390, 4
      %v2393 = vor.u32 %v2392, %v2388
      %v2394 = vrot.slane %v2393, 4
      %v2396 = vshll.u32 %v2091, 16
      %v2398 = vrot.slane %v2396, 5
      %v2399 = vsel %vm2095, %v2394, %v2398
      %v2400 = vshrl.u32 %v2091, 16
      %v2402 = vrot.slane %v2400, 4
      %v2403 = vor.u32 %v2402, %v2398
      %v2404 = vrot.slane %v2403, 4
      %v2406 = vshll.u32 %v2092, 16
      %v2408 = vrot.slane %v2406, 5
      %v2409 = vsel %vm2095, %v2404, %v2408
      %v2410 = vshrl.u32 %v2092, 16
      %v2412 = vrot.slane %v2410, 4
      %v2413 = vor.u32 %v2412, %v2408
      %v2414 = vrot.slane %v2413, 4
      %vm2415 = vcmp.ne.s16.totalorder %v2099, 0
      %vm2416 = vcmp.ne.s16.totalorder %v2109, 0
      %vm2417 = vcmp.ne.s16.totalorder %v2119, 0
      %vm2418 = vcmp.ne.s16.totalorder %v2129, 0
      %vm2419 = vcmp.ne.s16.totalorder %v2139, 0
      %vm2420 = vcmp.ne.s16.totalorder %v2149, 0
      %vm2421 = vcmp.ne.s16.totalorder %v2159, 0
      %vm2422 = vcmp.ne.s16.totalorder %v2169, 0
      %vm2423 = vcmp.ne.s16.totalorder %v2179, 0
      %vm2424 = vcmp.ne.s16.totalorder %v2189, 0
      %vm2425 = vcmp.ne.s16.totalorder %v2199, 0
      %vm2426 = vcmp.ne.s16.totalorder %v2209, 0
      %vm2427 = vcmp.ne.s16.totalorder %v2219, 0
      %vm2428 = vcmp.ne.s16.totalorder %v2229, 0
      %vm2429 = vcmp.ne.s16.totalorder %v2239, 0
      %vm2430 = vcmp.ne.s16.totalorder %v2249, 0
      %vm2431 = vcmp.ne.s16.totalorder %v2259, 0
      %vm2432 = vcmp.ne.s16.totalorder %v2269, 0
      %vm2433 = vcmp.ne.s16.totalorder %v2279, 0
      %vm2434 = vcmp.ne.s16.totalorder %v2289, 0
      %vm2435 = vcmp.ne.s16.totalorder %v2299, 0
      %vm2436 = vcmp.ne.s16.totalorder %v2309, 0
      %vm2437 = vcmp.ne.s16.totalorder %v2319, 0
      %vm2438 = vcmp.ne.s16.totalorder %v2329, 0
      %vm2439 = vcmp.ne.s16.totalorder %v2339, 0
      %vm2440 = vcmp.ne.s16.totalorder %v2349, 0
      %vm2441 = vcmp.ne.s16.totalorder %v2359, 0
      %vm2442 = vcmp.ne.s16.totalorder %v2369, 0
      %vm2443 = vcmp.ne.s16.totalorder %v2379, 0
      %vm2444 = vcmp.ne.s16.totalorder %v2389, 0
      %vm2445 = vcmp.ne.s16.totalorder %v2399, 0
      %vm2446 = vcmp.ne.s16.totalorder %v2409, 0
      %vm2447 = vcmp.ne.s16.totalorder %v2414, 0
      %v2448 = vsel %vm2415, %v1900, 0
      %v2449 = vsel %vm2416, %v1901, 0
      %v2450 = vsel %vm2417, %v1902, 0
      %v2451 = vsel %vm2418, %v1903, 0
      %v2452 = vsel %vm2419, %v1904, 0
      %v2453 = vsel %vm2420, %v1905, 0
      %v2454 = vsel %vm2421, %v1906, 0
      %v2455 = vsel %vm2422, %v1907, 0
      %v2456 = vsel %vm2423, %v1908, 0
      %v2457 = vsel %vm2424, %v1909, 0
      %v2458 = vsel %vm2425, %v1910, 0
      %v2459 = vsel %vm2426, %v1911, 0
      %v2460 = vsel %vm2427, %v1912, 0
      %v2461 = vsel %vm2428, %v1913, 0
      %v2462 = vsel %vm2429, %v1914, 0
      %v2463 = vsel %vm2430, %v1915, 0
      %v2464 = vsel %vm2431, %v1916, 0
      %v2465 = vsel %vm2432, %v1917, 0
      %v2466 = vsel %vm2433, %v1918, 0
      %v2467 = vsel %vm2434, %v1919, 0
      %v2468 = vsel %vm2435, %v1920, 0
      %v2469 = vsel %vm2436, %v1921, 0
      %v2470 = vsel %vm2437, %v1922, 0
      %v2471 = vsel %vm2438, %v1923, 0
      %v2472 = vsel %vm2439, %v1924, 0
      %v2473 = vsel %vm2440, %v1925, 0
      %v2474 = vsel %vm2441, %v1926, 0
      %v2475 = vsel %vm2442, %v1927, 0
      %v2476 = vsel %vm2443, %v1928, 0
      %v2477 = vsel %vm2444, %v1929, 0
      %v2478 = vsel %vm2445, %v1930, 0
      %v2479 = vsel %vm2446, %v1931, 0
      %v2480 = vsel %vm2447, %v1932, 0
      %v2481 = vld [vmem:[%s2] sm:$0x1]
      %s2482 = scalar_lea.vmem %s2, 1
      %v2483 = vld [vmem:[%s2482] sm:$0x1]
      %v2516 = vunpack.c.l.b16 %v1901
      %v2517 = vunpack.c.l.b16 %v1902
      %v2518 = vunpack.c.l.b16 %v1903
      %v2519 = vunpack.c.l.b16 %v1904
      %v2520 = vunpack.c.l.b16 %v1905
      %v2521 = vunpack.c.l.b16 %v1906
      %v2522 = vunpack.c.l.b16 %v1907
      %v2523 = vunpack.c.l.b16 %v1908
      %v2524 = vunpack.c.l.b16 %v1909
      %v2525 = vunpack.c.l.b16 %v1910
      %v2526 = vunpack.c.l.b16 %v1911
      %v2527 = vunpack.c.l.b16 %v1912
      %v2528 = vunpack.c.l.b16 %v1913
      %v2529 = vunpack.c.l.b16 %v1914
      %v2530 = vunpack.c.l.b16 %v1915
      %v2531 = vunpack.c.l.b16 %v1916
      %v2532 = vunpack.c.l.b16 %v1917
      %v2533 = vunpack.c.l.b16 %v1918
      %v2534 = vunpack.c.l.b16 %v1919
      %v2535 = vunpack.c.l.b16 %v1920
      %v2536 = vunpack.c.l.b16 %v1921
      %v2537 = vunpack.c.l.b16 %v1922
      %v2538 = vunpack.c.l.b16 %v1923
      %v2539 = vunpack.c.l.b16 %v1924
      %v2540 = vunpack.c.l.b16 %v1925
      %v2541 = vunpack.c.l.b16 %v1926
      %v2542 = vunpack.c.l.b16 %v1927
      %v2543 = vunpack.c.l.b16 %v1928
      %v2544 = vunpack.c.l.b16 %v1929
      %v2545 = vunpack.c.l.b16 %v1930
      %v2546 = vunpack.c.l.b16 %v1931
      %v2547 = vunpack.c.l.b16 %v1932
      %v2548 = vpack.c.b16 %v2517, %v2516
      %v2549 = vpack.c.b16 %v2519, %v2518
      %v2550 = vpack.c.b16 %v2521, %v2520
      %v2551 = vpack.c.b16 %v2523, %v2522
      %v2552 = vpack.c.b16 %v2525, %v2524
      %v2553 = vpack.c.b16 %v2527, %v2526
      %v2554 = vpack.c.b16 %v2529, %v2528
      %v2555 = vpack.c.b16 %v2531, %v2530
      %v2556 = vpack.c.b16 %v2533, %v2532
      %v2557 = vpack.c.b16 %v2535, %v2534
      %v2558 = vpack.c.b16 %v2537, %v2536
      %v2559 = vpack.c.b16 %v2539, %v2538
      %v2560 = vpack.c.b16 %v2541, %v2540
      %v2561 = vpack.c.b16 %v2543, %v2542
      %v2562 = vpack.c.b16 %v2545, %v2544
      %v2563 = vpack.c.b16 %v2547, %v2546
      %v2565 = vsel %vm655, %v2548, 0
      %v2568 = vsel %vm655, %v2549, 0
      %v2571 = vsel %vm655, %v2550, 0
      %v2574 = vsel %vm655, %v2551, 0
      %v2577 = vsel %vm655, %v2552, 0
      %v2580 = vsel %vm655, %v2553, 0
      %v2583 = vsel %vm655, %v2554, 0
      %v2586 = vsel %vm655, %v2555, 0
      %v2589 = vsel %vm655, %v2556, 0
      %v2592 = vsel %vm655, %v2557, 0
      %v2595 = vsel %vm655, %v2558, 0
      %v2598 = vsel %vm655, %v2559, 0
      %v2601 = vsel %vm655, %v2560, 0
      %v2604 = vsel %vm655, %v2561, 0
      %v2607 = vsel %vm655, %v2562, 0
      %v2610 = vsel %vm655, %v2563, 0
      %vm2612 = vcmask 1040384
      %v2614 = vsel %vm2612, %v2483, 0
      %2616 = vmatprep.subr.bf16.mxu0 0
      %2617 = vmatpush1.bf16.msra.mxu0 0
      %2618 = vmatprep.subr.bf16.mxu0 0
      %2619 = vmatpush1.bf16.msra.mxu0 0
      %2620 = vmatprep.subr.bf16.mxu0 0
      %2621 = vmatpush1.bf16.msra.mxu0 0
      %2622 = vmatprep.subr.bf16.mxu0 0
      %2623 = vmatpush1.bf16.msra.mxu0 0
      %2624 = vmatprep.subr.bf16.mxu0 0
      %2625 = vmatpush1.bf16.msra.mxu0 0
      %2626 = vmatprep.subr.bf16.mxu0 0
      %2627 = vmatpush1.bf16.msra.mxu0 0
      %2628 = vmatprep.subr.bf16.mxu0 0
      %2629 = vmatpush1.bf16.msra.mxu0 0
      %2630 = vmatprep.subr.bf16.mxu0 0
      %2631 = vmatpush1.bf16.msra.mxu0 %v2614
      %2632 = vmatprep.subr.bf16.mxu0 0
      %2633 = vmatpush2.bf16.msra.mxu0 0
      %2634 = vmatprep.subr.bf16.mxu0 0
      %2635 = vmatpush2.bf16.msra.mxu0 0
      %2636 = vmatprep.subr.bf16.mxu0 0
      %2637 = vmatpush2.bf16.msra.mxu0 0
      %2638 = vmatprep.subr.bf16.mxu0 0
      %2639 = vmatpush2.bf16.msra.mxu0 0
      %2640 = vmatprep.subr.bf16.mxu0 0
      %2641 = vmatpush2.bf16.msra.mxu0 0
      %2642 = vmatprep.subr.bf16.mxu0 0
      %2643 = vmatpush2.bf16.msra.mxu0 0
      %2644 = vmatprep.subr.bf16.mxu0 0
      %2645 = vmatpush2.bf16.msra.mxu0 0
      %2646 = vmatprep.subr.bf16.mxu0 0
      %2647 = vmatpush2.bf16.msra.mxu0 0
      %2648 = vmatprep.mubr.bf16.mxu0 0
      %2649 = vmatmul.mubr.bf16.gmra.mxu0 %v2565
      %v2650 = vpop.f32.mrf.mxu0
      %v2651 = vadd.f32 0.0, %v2650
      %v2652 = vpop.f32.mrf.mxu0
      %v2653 = vpop.f32.mrf.mxu0
      %v2654 = vadd.f32 0.0, %v2653
      %v2655 = vpop.f32.mrf.mxu0
      %2656 = vmatprep.mubr.bf16.mxu0 0
      %2657 = vmatmul.mubr.bf16.gmra.mxu0 %v2568
      %v2658 = vpop.f32.mrf.mxu0
      %v2659 = vadd.f32 0.0, %v2658
      %v2660 = vpop.f32.mrf.mxu0
      %v2661 = vpop.f32.mrf.mxu0
      %v2662 = vadd.f32 0.0, %v2661
      %v2663 = vpop.f32.mrf.mxu0
      %2664 = vmatprep.mubr.bf16.mxu0 0
      %2665 = vmatmul.mubr.bf16.gmra.mxu0 %v2571
      %v2666 = vpop.f32.mrf.mxu0
      %v2667 = vadd.f32 0.0, %v2666
      %v2668 = vpop.f32.mrf.mxu0
      %v2669 = vpop.f32.mrf.mxu0
      %v2670 = vadd.f32 0.0, %v2669
      %v2671 = vpop.f32.mrf.mxu0
      %2672 = vmatprep.mubr.bf16.mxu0 0
      %2673 = vmatmul.mubr.bf16.gmra.mxu0 %v2574
      %v2674 = vpop.f32.mrf.mxu0
      %v2675 = vadd.f32 0.0, %v2674
      %v2676 = vpop.f32.mrf.mxu0
      %v2677 = vpop.f32.mrf.mxu0
      %v2678 = vadd.f32 0.0, %v2677
      %v2679 = vpop.f32.mrf.mxu0
      %2680 = vmatprep.mubr.bf16.mxu0 0
      %2681 = vmatmul.mubr.bf16.gmra.mxu0 %v2577
      %v2682 = vpop.f32.mrf.mxu0
      %v2683 = vadd.f32 0.0, %v2682
      %v2684 = vpop.f32.mrf.mxu0
      %v2685 = vpop.f32.mrf.mxu0
      %v2686 = vadd.f32 0.0, %v2685
      %v2687 = vpop.f32.mrf.mxu0
      %2688 = vmatprep.mubr.bf16.mxu0 0
      %2689 = vmatmul.mubr.bf16.gmra.mxu0 %v2580
      %v2690 = vpop.f32.mrf.mxu0
      %v2691 = vadd.f32 0.0, %v2690
      %v2692 = vpop.f32.mrf.mxu0
      %v2693 = vpop.f32.mrf.mxu0
      %v2694 = vadd.f32 0.0, %v2693
      %v2695 = vpop.f32.mrf.mxu0
      %2696 = vmatprep.mubr.bf16.mxu0 0
      %2697 = vmatmul.mubr.bf16.gmra.mxu0 %v2583
      %v2698 = vpop.f32.mrf.mxu0
      %v2699 = vadd.f32 0.0, %v2698
      %v2700 = vpop.f32.mrf.mxu0
      %v2701 = vpop.f32.mrf.mxu0
      %v2702 = vadd.f32 0.0, %v2701
      %v2703 = vpop.f32.mrf.mxu0
      %2704 = vmatprep.mubr.bf16.mxu0 0
      %2705 = vmatmul.mubr.bf16.gmra.mxu0 %v2586
      %v2706 = vpop.f32.mrf.mxu0
      %v2707 = vadd.f32 0.0, %v2706
      %v2708 = vpop.f32.mrf.mxu0
      %v2709 = vpop.f32.mrf.mxu0
      %v2710 = vadd.f32 0.0, %v2709
      %v2711 = vpop.f32.mrf.mxu0
      %2712 = vmatprep.mubr.bf16.mxu0 0
      %2713 = vmatmul.mubr.bf16.gmra.mxu0 %v2589
      %v2714 = vpop.f32.mrf.mxu0
      %v2715 = vadd.f32 0.0, %v2714
      %v2716 = vpop.f32.mrf.mxu0
      %v2717 = vpop.f32.mrf.mxu0
      %v2718 = vadd.f32 0.0, %v2717
      %v2719 = vpop.f32.mrf.mxu0
      %2720 = vmatprep.mubr.bf16.mxu0 0
      %2721 = vmatmul.mubr.bf16.gmra.mxu0 %v2592
      %v2722 = vpop.f32.mrf.mxu0
      %v2723 = vadd.f32 0.0, %v2722
      %v2724 = vpop.f32.mrf.mxu0
      %v2725 = vpop.f32.mrf.mxu0
      %v2726 = vadd.f32 0.0, %v2725
      %v2727 = vpop.f32.mrf.mxu0
      %2728 = vmatprep.mubr.bf16.mxu0 0
      %2729 = vmatmul.mubr.bf16.gmra.mxu0 %v2595
      %v2730 = vpop.f32.mrf.mxu0
      %v2731 = vadd.f32 0.0, %v2730
      %v2732 = vpop.f32.mrf.mxu0
      %v2733 = vpop.f32.mrf.mxu0
      %v2734 = vadd.f32 0.0, %v2733
      %v2735 = vpop.f32.mrf.mxu0
      %2736 = vmatprep.mubr.bf16.mxu0 0
      %2737 = vmatmul.mubr.bf16.gmra.mxu0 %v2598
      %v2738 = vpop.f32.mrf.mxu0
      %v2739 = vadd.f32 0.0, %v2738
      %v2740 = vpop.f32.mrf.mxu0
      %v2741 = vpop.f32.mrf.mxu0
      %v2742 = vadd.f32 0.0, %v2741
      %v2743 = vpop.f32.mrf.mxu0
      %2744 = vmatprep.mubr.bf16.mxu0 0
      %2745 = vmatmul.mubr.bf16.gmra.mxu0 %v2601
      %v2746 = vpop.f32.mrf.mxu0
      %v2747 = vadd.f32 0.0, %v2746
      %v2748 = vpop.f32.mrf.mxu0
      %v2749 = vpop.f32.mrf.mxu0
      %v2750 = vadd.f32 0.0, %v2749
      %v2751 = vpop.f32.mrf.mxu0
      %2752 = vmatprep.mubr.bf16.mxu0 0
      %2753 = vmatmul.mubr.bf16.gmra.mxu0 %v2604
      %v2754 = vpop.f32.mrf.mxu0
      %v2755 = vadd.f32 0.0, %v2754
      %v2756 = vpop.f32.mrf.mxu0
      %v2757 = vpop.f32.mrf.mxu0
      %v2758 = vadd.f32 0.0, %v2757
      %v2759 = vpop.f32.mrf.mxu0
      %2760 = vmatprep.mubr.bf16.mxu0 0
      %2761 = vmatmul.mubr.bf16.gmra.mxu0 %v2607
      %v2762 = vpop.f32.mrf.mxu0
      %v2763 = vadd.f32 0.0, %v2762
      %v2764 = vpop.f32.mrf.mxu0
      %v2765 = vpop.f32.mrf.mxu0
      %v2766 = vadd.f32 0.0, %v2765
      %v2767 = vpop.f32.mrf.mxu0
      %2768 = vmatprep.mubr.bf16.mxu0 0
      %2769 = vmatmul.mubr.bf16.gmra.mxu0 %v2610
      %v2770 = vpop.f32.mrf.mxu0
      %v2771 = vadd.f32 0.0, %v2770
      %v2772 = vpop.f32.mrf.mxu0
      %v2773 = vpop.f32.mrf.mxu0
      %v2774 = vadd.f32 0.0, %v2773
      %v2775 = vpop.f32.mrf.mxu0
      %2776 = vdwg.mxu0
      %v2810 = vunpack.c.l.b16 %v2448
      %v2811 = vunpack.c.l.b16 %v2449
      %v2812 = vunpack.c.l.b16 %v2450
      %v2813 = vunpack.c.l.b16 %v2451
      %v2814 = vunpack.c.l.b16 %v2452
      %v2815 = vunpack.c.l.b16 %v2453
      %v2816 = vunpack.c.l.b16 %v2454
      %v2817 = vunpack.c.l.b16 %v2455
      %v2818 = vunpack.c.l.b16 %v2456
      %v2819 = vunpack.c.l.b16 %v2457
      %v2820 = vunpack.c.l.b16 %v2458
      %v2821 = vunpack.c.l.b16 %v2459
      %v2822 = vunpack.c.l.b16 %v2460
      %v2823 = vunpack.c.l.b16 %v2461
      %v2824 = vunpack.c.l.b16 %v2462
      %v2825 = vunpack.c.l.b16 %v2463
      %v2826 = vunpack.c.l.b16 %v2464
      %v2827 = vunpack.c.l.b16 %v2465
      %v2828 = vunpack.c.l.b16 %v2466
      %v2829 = vunpack.c.l.b16 %v2467
      %v2830 = vunpack.c.l.b16 %v2468
      %v2831 = vunpack.c.l.b16 %v2469
      %v2832 = vunpack.c.l.b16 %v2470
      %v2833 = vunpack.c.l.b16 %v2471
      %v2834 = vunpack.c.l.b16 %v2472
      %v2835 = vunpack.c.l.b16 %v2473
      %v2836 = vunpack.c.l.b16 %v2474
      %v2837 = vunpack.c.l.b16 %v2475
      %v2838 = vunpack.c.l.b16 %v2476
      %v2839 = vunpack.c.l.b16 %v2477
      %v2840 = vunpack.c.l.b16 %v2478
      %v2841 = vunpack.c.l.b16 %v2479
      %v2842 = vunpack.c.l.b16 %v2480
      %v2843 = vpack.c.b16 %v2811, %v2810
      %v2844 = vpack.c.b16 %v2813, %v2812
      %v2845 = vpack.c.b16 %v2815, %v2814
      %v2846 = vpack.c.b16 %v2817, %v2816
      %v2847 = vpack.c.b16 %v2819, %v2818
      %v2848 = vpack.c.b16 %v2821, %v2820
      %v2849 = vpack.c.b16 %v2823, %v2822
      %v2850 = vpack.c.b16 %v2825, %v2824
      %v2851 = vpack.c.b16 %v2827, %v2826
      %v2852 = vpack.c.b16 %v2829, %v2828
      %v2853 = vpack.c.b16 %v2831, %v2830
      %v2854 = vpack.c.b16 %v2833, %v2832
      %v2855 = vpack.c.b16 %v2835, %v2834
      %v2856 = vpack.c.b16 %v2837, %v2836
      %v2857 = vpack.c.b16 %v2839, %v2838
      %v2858 = vpack.c.b16 %v2841, %v2840
      %v2859 = vpack.c.b16 %v2842, %v2842
      %vm2860 = vsmask.f32 4352
      %v2862 = vshrl.u32 %v2843, 16
      %v2864 = vrot.slane %v2862, 3
      %v2865 = vshll.u32 %v2843, 16
      %v2867 = vrot.slane %v2865, 4
      %v2868 = vor.u32 %v2864, %v2867
      %v2870 = vshrl.u32 %v2844, 16
      %v2872 = vrot.slane %v2870, 3
      %v2873 = vshll.u32 %v2844, 16
      %v2875 = vrot.slane %v2873, 4
      %v2876 = vor.u32 %v2872, %v2875
      %v2877 = vsel %vm2860, %v2868, %v2876
      %v2879 = vshrl.u32 %v2845, 16
      %v2881 = vrot.slane %v2879, 3
      %v2882 = vshll.u32 %v2845, 16
      %v2884 = vrot.slane %v2882, 4
      %v2885 = vor.u32 %v2881, %v2884
      %v2886 = vsel %vm2860, %v2876, %v2885
      %v2888 = vshrl.u32 %v2846, 16
      %v2890 = vrot.slane %v2888, 3
      %v2891 = vshll.u32 %v2846, 16
      %v2893 = vrot.slane %v2891, 4
      %v2894 = vor.u32 %v2890, %v2893
      %v2895 = vsel %vm2860, %v2885, %v2894
      %v2897 = vshrl.u32 %v2847, 16
      %v2899 = vrot.slane %v2897, 3
      %v2900 = vshll.u32 %v2847, 16
      %v2902 = vrot.slane %v2900, 4
      %v2903 = vor.u32 %v2899, %v2902
      %v2904 = vsel %vm2860, %v2894, %v2903
      %v2906 = vshrl.u32 %v2848, 16
      %v2908 = vrot.slane %v2906, 3
      %v2909 = vshll.u32 %v2848, 16
      %v2911 = vrot.slane %v2909, 4
      %v2912 = vor.u32 %v2908, %v2911
      %v2913 = vsel %vm2860, %v2903, %v2912
      %v2915 = vshrl.u32 %v2849, 16
      %v2917 = vrot.slane %v2915, 3
      %v2918 = vshll.u32 %v2849, 16
      %v2920 = vrot.slane %v2918, 4
      %v2921 = vor.u32 %v2917, %v2920
      %v2922 = vsel %vm2860, %v2912, %v2921
      %v2924 = vshrl.u32 %v2850, 16
      %v2926 = vrot.slane %v2924, 3
      %v2927 = vshll.u32 %v2850, 16
      %v2929 = vrot.slane %v2927, 4
      %v2930 = vor.u32 %v2926, %v2929
      %v2931 = vsel %vm2860, %v2921, %v2930
      %v2933 = vshrl.u32 %v2851, 16
      %v2935 = vrot.slane %v2933, 3
      %v2936 = vshll.u32 %v2851, 16
      %v2938 = vrot.slane %v2936, 4
      %v2939 = vor.u32 %v2935, %v2938
      %v2940 = vsel %vm2860, %v2930, %v2939
      %v2942 = vshrl.u32 %v2852, 16
      %v2944 = vrot.slane %v2942, 3
      %v2945 = vshll.u32 %v2852, 16
      %v2947 = vrot.slane %v2945, 4
      %v2948 = vor.u32 %v2944, %v2947
      %v2949 = vsel %vm2860, %v2939, %v2948
      %v2951 = vshrl.u32 %v2853, 16
      %v2953 = vrot.slane %v2951, 3
      %v2954 = vshll.u32 %v2853, 16
      %v2956 = vrot.slane %v2954, 4
      %v2957 = vor.u32 %v2953, %v2956
      %v2958 = vsel %vm2860, %v2948, %v2957
      %v2960 = vshrl.u32 %v2854, 16
      %v2962 = vrot.slane %v2960, 3
      %v2963 = vshll.u32 %v2854, 16
      %v2965 = vrot.slane %v2963, 4
      %v2966 = vor.u32 %v2962, %v2965
      %v2967 = vsel %vm2860, %v2957, %v2966
      %v2969 = vshrl.u32 %v2855, 16
      %v2971 = vrot.slane %v2969, 3
      %v2972 = vshll.u32 %v2855, 16
      %v2974 = vrot.slane %v2972, 4
      %v2975 = vor.u32 %v2971, %v2974
      %v2976 = vsel %vm2860, %v2966, %v2975
      %v2978 = vshrl.u32 %v2856, 16
      %v2980 = vrot.slane %v2978, 3
      %v2981 = vshll.u32 %v2856, 16
      %v2983 = vrot.slane %v2981, 4
      %v2984 = vor.u32 %v2980, %v2983
      %v2985 = vsel %vm2860, %v2975, %v2984
      %v2987 = vshrl.u32 %v2857, 16
      %v2989 = vrot.slane %v2987, 3
      %v2990 = vshll.u32 %v2857, 16
      %v2992 = vrot.slane %v2990, 4
      %v2993 = vor.u32 %v2989, %v2992
      %v2994 = vsel %vm2860, %v2984, %v2993
      %v2996 = vshrl.u32 %v2858, 16
      %v2998 = vrot.slane %v2996, 3
      %v2999 = vshll.u32 %v2858, 16
      %v3001 = vrot.slane %v2999, 4
      %v3002 = vor.u32 %v2998, %v3001
      %v3003 = vsel %vm2860, %v2993, %v3002
      %v3005 = vshrl.u32 %v2859, 16
      %v3007 = vrot.slane %v3005, 3
      %v3008 = vshll.u32 %v2859, 16
      %v3010 = vrot.slane %v3008, 4
      %v3011 = vor.u32 %v3007, %v3010
      %v3012 = vsel %vm2860, %v3002, %v3011
      %v3014 = vsel %vm655, %v2877, 0
      %v3017 = vsel %vm655, %v2886, 0
      %v3020 = vsel %vm655, %v2895, 0
      %v3023 = vsel %vm655, %v2904, 0
      %v3026 = vsel %vm655, %v2913, 0
      %v3029 = vsel %vm655, %v2922, 0
      %v3032 = vsel %vm655, %v2931, 0
      %v3035 = vsel %vm655, %v2940, 0
      %v3038 = vsel %vm655, %v2949, 0
      %v3041 = vsel %vm655, %v2958, 0
      %v3044 = vsel %vm655, %v2967, 0
      %v3047 = vsel %vm655, %v2976, 0
      %v3050 = vsel %vm655, %v2985, 0
      %v3053 = vsel %vm655, %v2994, 0
      %v3056 = vsel %vm655, %v3003, 0
      %v3059 = vsel %vm655, %v3012, 0
      %v3062 = vsel %vm2612, %v2481, 0
      %3064 = vmatprep.subr.bf16.mxu0 0
      %3065 = vmatpush1.bf16.msra.mxu0 0
      %3066 = vmatprep.subr.bf16.mxu0 0
      %3067 = vmatpush1.bf16.msra.mxu0 0
      %3068 = vmatprep.subr.bf16.mxu0 0
      %3069 = vmatpush1.bf16.msra.mxu0 0
      %3070 = vmatprep.subr.bf16.mxu0 0
      %3071 = vmatpush1.bf16.msra.mxu0 0
      %3072 = vmatprep.subr.bf16.mxu0 0
      %3073 = vmatpush1.bf16.msra.mxu0 0
      %3074 = vmatprep.subr.bf16.mxu0 0
      %3075 = vmatpush1.bf16.msra.mxu0 0
      %3076 = vmatprep.subr.bf16.mxu0 0
      %3077 = vmatpush1.bf16.msra.mxu0 0
      %3078 = vmatprep.subr.bf16.mxu0 0
      %3079 = vmatpush1.bf16.msra.mxu0 %v3062
      %3080 = vmatprep.subr.bf16.mxu0 0
      %3081 = vmatpush2.bf16.msra.mxu0 0
      %3082 = vmatprep.subr.bf16.mxu0 0
      %3083 = vmatpush2.bf16.msra.mxu0 0
      %3084 = vmatprep.subr.bf16.mxu0 0
      %3085 = vmatpush2.bf16.msra.mxu0 0
      %3086 = vmatprep.subr.bf16.mxu0 0
      %3087 = vmatpush2.bf16.msra.mxu0 0
      %3088 = vmatprep.subr.bf16.mxu0 0
      %3089 = vmatpush2.bf16.msra.mxu0 0
      %3090 = vmatprep.subr.bf16.mxu0 0
      %3091 = vmatpush2.bf16.msra.mxu0 0
      %3092 = vmatprep.subr.bf16.mxu0 0
      %3093 = vmatpush2.bf16.msra.mxu0 0
      %3094 = vmatprep.subr.bf16.mxu0 0
      %3095 = vmatpush2.bf16.msra.mxu0 0
      %3096 = vmatprep.mubr.bf16.mxu0 0
      %3097 = vmatmul.mubr.bf16.gmra.mxu0 %v3014
      %v3098 = vpop.f32.mrf.mxu0
      %v3099 = vadd.f32 %v2651, %v3098
      %v3100 = vpop.f32.mrf.mxu0
      %v3101 = vpop.f32.mrf.mxu0
      %v3102 = vadd.f32 %v2654, %v3101
      %v3103 = vpop.f32.mrf.mxu0
      %3104 = vmatprep.mubr.bf16.mxu0 0
      %3105 = vmatmul.mubr.bf16.gmra.mxu0 %v3017
      %v3106 = vpop.f32.mrf.mxu0
      %v3107 = vadd.f32 %v2659, %v3106
      %v3108 = vpop.f32.mrf.mxu0
      %v3109 = vpop.f32.mrf.mxu0
      %v3110 = vadd.f32 %v2662, %v3109
      %v3111 = vpop.f32.mrf.mxu0
      %3112 = vmatprep.mubr.bf16.mxu0 0
      %3113 = vmatmul.mubr.bf16.gmra.mxu0 %v3020
      %v3114 = vpop.f32.mrf.mxu0
      %v3115 = vadd.f32 %v2667, %v3114
      %v3116 = vpop.f32.mrf.mxu0
      %v3117 = vpop.f32.mrf.mxu0
      %v3118 = vadd.f32 %v2670, %v3117
      %v3119 = vpop.f32.mrf.mxu0
      %3120 = vmatprep.mubr.bf16.mxu0 0
      %3121 = vmatmul.mubr.bf16.gmra.mxu0 %v3023
      %v3122 = vpop.f32.mrf.mxu0
      %v3123 = vadd.f32 %v2675, %v3122
      %v3124 = vpop.f32.mrf.mxu0
      %v3125 = vpop.f32.mrf.mxu0
      %v3126 = vadd.f32 %v2678, %v3125
      %v3127 = vpop.f32.mrf.mxu0
      %3128 = vmatprep.mubr.bf16.mxu0 0
      %3129 = vmatmul.mubr.bf16.gmra.mxu0 %v3026
      %v3130 = vpop.f32.mrf.mxu0
      %v3131 = vadd.f32 %v2683, %v3130
      %v3132 = vpop.f32.mrf.mxu0
      %v3133 = vpop.f32.mrf.mxu0
      %v3134 = vadd.f32 %v2686, %v3133
      %v3135 = vpop.f32.mrf.mxu0
      %3136 = vmatprep.mubr.bf16.mxu0 0
      %3137 = vmatmul.mubr.bf16.gmra.mxu0 %v3029
      %v3138 = vpop.f32.mrf.mxu0
      %v3139 = vadd.f32 %v2691, %v3138
      %v3140 = vpop.f32.mrf.mxu0
      %v3141 = vpop.f32.mrf.mxu0
      %v3142 = vadd.f32 %v2694, %v3141
      %v3143 = vpop.f32.mrf.mxu0
      %3144 = vmatprep.mubr.bf16.mxu0 0
      %3145 = vmatmul.mubr.bf16.gmra.mxu0 %v3032
      %v3146 = vpop.f32.mrf.mxu0
      %v3147 = vadd.f32 %v2699, %v3146
      %v3148 = vpop.f32.mrf.mxu0
      %v3149 = vpop.f32.mrf.mxu0
      %v3150 = vadd.f32 %v2702, %v3149
      %v3151 = vpop.f32.mrf.mxu0
      %3152 = vmatprep.mubr.bf16.mxu0 0
      %3153 = vmatmul.mubr.bf16.gmra.mxu0 %v3035
      %v3154 = vpop.f32.mrf.mxu0
      %v3155 = vadd.f32 %v2707, %v3154
      %v3156 = vpop.f32.mrf.mxu0
      %v3157 = vpop.f32.mrf.mxu0
      %v3158 = vadd.f32 %v2710, %v3157
      %v3159 = vpop.f32.mrf.mxu0
      %3160 = vmatprep.mubr.bf16.mxu0 0
      %3161 = vmatmul.mubr.bf16.gmra.mxu0 %v3038
      %v3162 = vpop.f32.mrf.mxu0
      %v3163 = vadd.f32 %v2715, %v3162
      %v3164 = vpop.f32.mrf.mxu0
      %v3165 = vpop.f32.mrf.mxu0
      %v3166 = vadd.f32 %v2718, %v3165
      %v3167 = vpop.f32.mrf.mxu0
      %3168 = vmatprep.mubr.bf16.mxu0 0
      %3169 = vmatmul.mubr.bf16.gmra.mxu0 %v3041
      %v3170 = vpop.f32.mrf.mxu0
      %v3171 = vadd.f32 %v2723, %v3170
      %v3172 = vpop.f32.mrf.mxu0
      %v3173 = vpop.f32.mrf.mxu0
      %v3174 = vadd.f32 %v2726, %v3173
      %v3175 = vpop.f32.mrf.mxu0
      %3176 = vmatprep.mubr.bf16.mxu0 0
      %3177 = vmatmul.mubr.bf16.gmra.mxu0 %v3044
      %v3178 = vpop.f32.mrf.mxu0
      %v3179 = vadd.f32 %v2731, %v3178
      %v3180 = vpop.f32.mrf.mxu0
      %v3181 = vpop.f32.mrf.mxu0
      %v3182 = vadd.f32 %v2734, %v3181
      %v3183 = vpop.f32.mrf.mxu0
      %3184 = vmatprep.mubr.bf16.mxu0 0
      %3185 = vmatmul.mubr.bf16.gmra.mxu0 %v3047
      %v3186 = vpop.f32.mrf.mxu0
      %v3187 = vadd.f32 %v2739, %v3186
      %v3188 = vpop.f32.mrf.mxu0
      %v3189 = vpop.f32.mrf.mxu0
      %v3190 = vadd.f32 %v2742, %v3189
      %v3191 = vpop.f32.mrf.mxu0
      %3192 = vmatprep.mubr.bf16.mxu0 0
      %3193 = vmatmul.mubr.bf16.gmra.mxu0 %v3050
      %v3194 = vpop.f32.mrf.mxu0
      %v3195 = vadd.f32 %v2747, %v3194
      %v3196 = vpop.f32.mrf.mxu0
      %v3197 = vpop.f32.mrf.mxu0
      %v3198 = vadd.f32 %v2750, %v3197
      %v3199 = vpop.f32.mrf.mxu0
      %3200 = vmatprep.mubr.bf16.mxu0 0
      %3201 = vmatmul.mubr.bf16.gmra.mxu0 %v3053
      %v3202 = vpop.f32.mrf.mxu0
      %v3203 = vadd.f32 %v2755, %v3202
      %v3204 = vpop.f32.mrf.mxu0
      %v3205 = vpop.f32.mrf.mxu0
      %v3206 = vadd.f32 %v2758, %v3205
      %v3207 = vpop.f32.mrf.mxu0
      %3208 = vmatprep.mubr.bf16.mxu0 0
      %3209 = vmatmul.mubr.bf16.gmra.mxu0 %v3056
      %v3210 = vpop.f32.mrf.mxu0
      %v3211 = vadd.f32 %v2763, %v3210
      %v3212 = vpop.f32.mrf.mxu0
      %v3213 = vpop.f32.mrf.mxu0
      %v3214 = vadd.f32 %v2766, %v3213
      %v3215 = vpop.f32.mrf.mxu0
      %3216 = vmatprep.mubr.bf16.mxu0 0
      %3217 = vmatmul.mubr.bf16.gmra.mxu0 %v3059
      %v3218 = vpop.f32.mrf.mxu0
      %v3219 = vadd.f32 %v2771, %v3218
      %v3220 = vpop.f32.mrf.mxu0
      %v3221 = vpop.f32.mrf.mxu0
      %v3222 = vadd.f32 %v2774, %v3221
      %v3223 = vpop.f32.mrf.mxu0
      %3224 = vdwg.mxu0
      %v3225 = vld [vmem:[#allocation2 + $0x8] sm:$0xf]
      %v3226 = vld [vmem:[#allocation2 + $0xc] sm:$0xf]
      %v3227 = vld [vmem:[#allocation2 + $0x10] sm:$0xf]
      %v3228 = vld [vmem:[#allocation2 + $0x14] sm:$0xf]
      %v3229 = vld [vmem:[#allocation2 + $0x18] sm:$0xf]
      %v3230 = vld [vmem:[#allocation2 + $0x1c] sm:$0xf]
      %v3231 = vld [vmem:[#allocation2 + $0x20] sm:$0xf]
      %v3232 = vld [vmem:[#allocation2 + $0x24] sm:$0xf]
      %v3233 = vld [vmem:[#allocation2 + $0x28] sm:$0xf]
      %v3234 = vld [vmem:[#allocation2 + $0x2c] sm:$0xf]
      %v3235 = vld [vmem:[#allocation2 + $0x30] sm:$0xf]
      %v3236 = vld [vmem:[#allocation2 + $0x34] sm:$0xf]
      %v3237 = vld [vmem:[#allocation2 + $0x38] sm:$0xf]
      %v3238 = vld [vmem:[#allocation2 + $0x3c] sm:$0xf]
      %v3239 = vld [vmem:[#allocation2 + $0x40] sm:$0xf]
      %v3240 = vld [vmem:[#allocation2 + $0x44] sm:$0xf]
      %v3241 = vld [vmem:[#allocation2 + $0x48] sm:$0xf]
      %v3242 = vld [vmem:[#allocation2 + $0x4c] sm:$0xf]
      %v3243 = vld [vmem:[#allocation2 + $0x50] sm:$0xf]
      %v3244 = vld [vmem:[#allocation2 + $0x54] sm:$0xf]
      %v3245 = vld [vmem:[#allocation2 + $0x58] sm:$0xf]
      %v3246 = vld [vmem:[#allocation2 + $0x5c] sm:$0xf]
      %v3247 = vld [vmem:[#allocation2 + $0x60] sm:$0xf]
      %v3248 = vld [vmem:[#allocation2 + $0x64] sm:$0xf]
      %v3249 = vld [vmem:[#allocation2 + $0x68] sm:$0xf]
      %v3250 = vld [vmem:[#allocation2 + $0x6c] sm:$0xf]
      %v3251 = vld [vmem:[#allocation2 + $0x70] sm:$0xf]
      %v3252 = vld [vmem:[#allocation2 + $0x74] sm:$0xf]
      %v3253 = vld [vmem:[#allocation2 + $0x78] sm:$0xf]
      %v3254 = vld [vmem:[#allocation2 + $0x7c] sm:$0xf]
      %v3255 = vld [vmem:[#allocation2 + $0x80] sm:$0xf]
      %v3256 = vld [vmem:[#allocation2 + $0x84] sm:$0xf]
      %v3257 = vld [vmem:[#allocation2 + $0x88] sm:$0x1]
      %vm3258 = vcmp.lt.s32.totalorder %v1868, 15
      %vm3259 = vcmp.lt.s32.totalorder %v1869, 15
      %vm3260 = vcmp.lt.s32.totalorder %v1870, 15
      %vm3261 = vcmp.lt.s32.totalorder %v1871, 15
      %vm3262 = vcmp.lt.s32.totalorder %v1872, 15
      %vm3263 = vcmp.lt.s32.totalorder %v1873, 15
      %vm3264 = vcmp.lt.s32.totalorder %v1874, 15
      %vm3265 = vcmp.lt.s32.totalorder %v1875, 15
      %vm3266 = vcmp.lt.s32.totalorder %v1876, 15
      %vm3267 = vcmp.lt.s32.totalorder %v1877, 15
      %vm3268 = vcmp.lt.s32.totalorder %v1878, 15
      %vm3269 = vcmp.lt.s32.totalorder %v1879, 15
      %vm3270 = vcmp.lt.s32.totalorder %v1880, 15
      %vm3271 = vcmp.lt.s32.totalorder %v1881, 15
      %vm3272 = vcmp.lt.s32.totalorder %v1882, 15
      %vm3273 = vcmp.lt.s32.totalorder %v1883, 15
      %vm3274 = vcmp.lt.s32.totalorder %v1884, 15
      %vm3275 = vcmp.lt.s32.totalorder %v1885, 15
      %vm3276 = vcmp.lt.s32.totalorder %v1886, 15
      %vm3277 = vcmp.lt.s32.totalorder %v1887, 15
      %vm3278 = vcmp.lt.s32.totalorder %v1888, 15
      %vm3279 = vcmp.lt.s32.totalorder %v1889, 15
      %vm3280 = vcmp.lt.s32.totalorder %v1890, 15
      %vm3281 = vcmp.lt.s32.totalorder %v1891, 15
      %vm3282 = vcmp.lt.s32.totalorder %v1892, 15
      %vm3283 = vcmp.lt.s32.totalorder %v1893, 15
      %vm3284 = vcmp.lt.s32.totalorder %v1894, 15
      %vm3285 = vcmp.lt.s32.totalorder %v1895, 15
      %vm3286 = vcmp.lt.s32.totalorder %v1896, 15
      %vm3287 = vcmp.lt.s32.totalorder %v1897, 15
      %vm3288 = vcmp.lt.s32.totalorder %v1898, 15
      %vm3289 = vcmp.lt.s32.totalorder %v1899, 15
      %v3290 = vsel %vm3258, 1, 0
      %v3291 = vsel %vm3259, 1, 0
      %v3292 = vsel %vm3260, 1, 0
      %v3293 = vsel %vm3261, 1, 0
      %v3294 = vsel %vm3262, 1, 0
      %v3295 = vsel %vm3263, 1, 0
      %v3296 = vsel %vm3264, 1, 0
      %v3297 = vsel %vm3265, 1, 0
      %v3298 = vsel %vm3266, 1, 0
      %v3299 = vsel %vm3267, 1, 0
      %v3300 = vsel %vm3268, 1, 0
      %v3301 = vsel %vm3269, 1, 0
      %v3302 = vsel %vm3270, 1, 0
      %v3303 = vsel %vm3271, 1, 0
      %v3304 = vsel %vm3272, 1, 0
      %v3305 = vsel %vm3273, 1, 0
      %v3306 = vsel %vm3274, 1, 0
      %v3307 = vsel %vm3275, 1, 0
      %v3308 = vsel %vm3276, 1, 0
      %v3309 = vsel %vm3277, 1, 0
      %v3310 = vsel %vm3278, 1, 0
      %v3311 = vsel %vm3279, 1, 0
      %v3312 = vsel %vm3280, 1, 0
      %v3313 = vsel %vm3281, 1, 0
      %v3314 = vsel %vm3282, 1, 0
      %v3315 = vsel %vm3283, 1, 0
      %v3316 = vsel %vm3284, 1, 0
      %v3317 = vsel %vm3285, 1, 0
      %v3318 = vsel %vm3286, 1, 0
      %v3319 = vsel %vm3287, 1, 0
      %v3320 = vsel %vm3288, 1, 0
      %v3321 = vsel %vm3289, 1, 0
      %vm3322 = vcmp.eq.s32.totalorder %v3290, 1
      %vm3323 = vcmp.eq.s32.totalorder %v3291, 1
      %vm3324 = vcmp.eq.s32.totalorder %v3292, 1
      %vm3325 = vcmp.eq.s32.totalorder %v3293, 1
      %vm3326 = vcmp.eq.s32.totalorder %v3294, 1
      %vm3327 = vcmp.eq.s32.totalorder %v3295, 1
      %vm3328 = vcmp.eq.s32.totalorder %v3296, 1
      %vm3329 = vcmp.eq.s32.totalorder %v3297, 1
      %vm3330 = vcmp.eq.s32.totalorder %v3298, 1
      %vm3331 = vcmp.eq.s32.totalorder %v3299, 1
      %vm3332 = vcmp.eq.s32.totalorder %v3300, 1
      %vm3333 = vcmp.eq.s32.totalorder %v3301, 1
      %vm3334 = vcmp.eq.s32.totalorder %v3302, 1
      %vm3335 = vcmp.eq.s32.totalorder %v3303, 1
      %vm3336 = vcmp.eq.s32.totalorder %v3304, 1
      %vm3337 = vcmp.eq.s32.totalorder %v3305, 1
      %vm3338 = vcmp.eq.s32.totalorder %v3306, 1
      %vm3339 = vcmp.eq.s32.totalorder %v3307, 1
      %vm3340 = vcmp.eq.s32.totalorder %v3308, 1
      %vm3341 = vcmp.eq.s32.totalorder %v3309, 1
      %vm3342 = vcmp.eq.s32.totalorder %v3310, 1
      %vm3343 = vcmp.eq.s32.totalorder %v3311, 1
      %vm3344 = vcmp.eq.s32.totalorder %v3312, 1
      %vm3345 = vcmp.eq.s32.totalorder %v3313, 1
      %vm3346 = vcmp.eq.s32.totalorder %v3314, 1
      %vm3347 = vcmp.eq.s32.totalorder %v3315, 1
      %vm3348 = vcmp.eq.s32.totalorder %v3316, 1
      %vm3349 = vcmp.eq.s32.totalorder %v3317, 1
      %vm3350 = vcmp.eq.s32.totalorder %v3318, 1
      %vm3351 = vcmp.eq.s32.totalorder %v3319, 1
      %vm3352 = vcmp.eq.s32.totalorder %v3320, 1
      %vm3353 = vcmp.eq.s32.totalorder %v3321, 1
      %vm3354 = vmpackc.low %vm3322, %vm3322
      %vm3355 = vmpackc.low %vm3323, %vm3323
      %vm3356 = vmpackc.low %vm3324, %vm3324
      %vm3357 = vmpackc.low %vm3325, %vm3325
      %vm3358 = vmpackc.low %vm3326, %vm3326
      %vm3359 = vmpackc.low %vm3327, %vm3327
      %vm3360 = vmpackc.low %vm3328, %vm3328
      %vm3361 = vmpackc.low %vm3329, %vm3329
      %vm3362 = vmpackc.low %vm3330, %vm3330
      %vm3363 = vmpackc.low %vm3331, %vm3331
      %vm3364 = vmpackc.low %vm3332, %vm3332
      %vm3365 = vmpackc.low %vm3333, %vm3333
      %vm3366 = vmpackc.low %vm3334, %vm3334
      %vm3367 = vmpackc.low %vm3335, %vm3335
      %vm3368 = vmpackc.low %vm3336, %vm3336
      %vm3369 = vmpackc.low %vm3337, %vm3337
      %vm3370 = vmpackc.low %vm3338, %vm3338
      %vm3371 = vmpackc.low %vm3339, %vm3339
      %vm3372 = vmpackc.low %vm3340, %vm3340
      %vm3373 = vmpackc.low %vm3341, %vm3341
      %vm3374 = vmpackc.low %vm3342, %vm3342
      %vm3375 = vmpackc.low %vm3343, %vm3343
      %vm3376 = vmpackc.low %vm3344, %vm3344
      %vm3377 = vmpackc.low %vm3345, %vm3345
      %vm3378 = vmpackc.low %vm3346, %vm3346
      %vm3379 = vmpackc.low %vm3347, %vm3347
      %vm3380 = vmpackc.low %vm3348, %vm3348
      %vm3381 = vmpackc.low %vm3349, %vm3349
      %vm3382 = vmpackc.low %vm3350, %vm3350
      %vm3383 = vmpackc.low %vm3351, %vm3351
      %vm3384 = vmpackc.low %vm3352, %vm3352
      %vm3385 = vmpackc.low %vm3353, %vm3353
      %v3386 = vsel %vm3354, 65537, 0
      %v3387 = vsel %vm3355, 65537, 0
      %v3388 = vsel %vm3356, 65537, 0
      %v3389 = vsel %vm3357, 65537, 0
      %v3390 = vsel %vm3358, 65537, 0
      %v3391 = vsel %vm3359, 65537, 0
      %v3392 = vsel %vm3360, 65537, 0
      %v3393 = vsel %vm3361, 65537, 0
      %v3394 = vsel %vm3362, 65537, 0
      %v3395 = vsel %vm3363, 65537, 0
      %v3396 = vsel %vm3364, 65537, 0
      %v3397 = vsel %vm3365, 65537, 0
      %v3398 = vsel %vm3366, 65537, 0
      %v3399 = vsel %vm3367, 65537, 0
      %v3400 = vsel %vm3368, 65537, 0
      %v3401 = vsel %vm3369, 65537, 0
      %v3402 = vsel %vm3370, 65537, 0
      %v3403 = vsel %vm3371, 65537, 0
      %v3404 = vsel %vm3372, 65537, 0
      %v3405 = vsel %vm3373, 65537, 0
      %v3406 = vsel %vm3374, 65537, 0
      %v3407 = vsel %vm3375, 65537, 0
      %v3408 = vsel %vm3376, 65537, 0
      %v3409 = vsel %vm3377, 65537, 0
      %v3410 = vsel %vm3378, 65537, 0
      %v3411 = vsel %vm3379, 65537, 0
      %v3412 = vsel %vm3380, 65537, 0
      %v3413 = vsel %vm3381, 65537, 0
      %v3414 = vsel %vm3382, 65537, 0
      %v3415 = vsel %vm3383, 65537, 0
      %v3416 = vsel %vm3384, 65537, 0
      %v3417 = vsel %vm3385, 65537, 0
      %vm3418 = vsmask.f32 256
      %vm3419 = vsmask.f32 4368
      %vm3420 = vmor %vm3418, %vm3419
      %v3422 = vshrl.u32 %v3386, 16
      %v3424 = vrot.slane %v3422, 7
      %v3425 = vshll.u32 %v3386, 16
      %v3427 = vor.u32 %v3424, %v3425
      %v3428 = vrot.slane %v3424, 4
      %v3430 = vshrl.u32 %v3387, 16
      %v3432 = vrot.slane %v3430, 7
      %v3433 = vshll.u32 %v3387, 16
      %v3435 = vor.u32 %v3432, %v3433
      %v3436 = vsel %vm3420, %v3428, %v3435
      %v3437 = vrot.slane %v3432, 4
      %v3439 = vshrl.u32 %v3388, 16
      %v3441 = vrot.slane %v3439, 7
      %v3442 = vshll.u32 %v3388, 16
      %v3444 = vor.u32 %v3441, %v3442
      %v3445 = vsel %vm3420, %v3437, %v3444
      %v3446 = vrot.slane %v3441, 4
      %v3448 = vshrl.u32 %v3389, 16
      %v3450 = vrot.slane %v3448, 7
      %v3451 = vshll.u32 %v3389, 16
      %v3453 = vor.u32 %v3450, %v3451
      %v3454 = vsel %vm3420, %v3446, %v3453
      %v3455 = vrot.slane %v3450, 4
      %v3457 = vshrl.u32 %v3390, 16
      %v3459 = vrot.slane %v3457, 7
      %v3460 = vshll.u32 %v3390, 16
      %v3462 = vor.u32 %v3459, %v3460
      %v3463 = vsel %vm3420, %v3455, %v3462
      %v3464 = vrot.slane %v3459, 4
      %v3466 = vshrl.u32 %v3391, 16
      %v3468 = vrot.slane %v3466, 7
      %v3469 = vshll.u32 %v3391, 16
      %v3471 = vor.u32 %v3468, %v3469
      %v3472 = vsel %vm3420, %v3464, %v3471
      %v3473 = vrot.slane %v3468, 4
      %v3475 = vshrl.u32 %v3392, 16
      %v3477 = vrot.slane %v3475, 7
      %v3478 = vshll.u32 %v3392, 16
      %v3480 = vor.u32 %v3477, %v3478
      %v3481 = vsel %vm3420, %v3473, %v3480
      %v3482 = vrot.slane %v3477, 4
      %v3484 = vshrl.u32 %v3393, 16
      %v3486 = vrot.slane %v3484, 7
      %v3487 = vshll.u32 %v3393, 16
      %v3489 = vor.u32 %v3486, %v3487
      %v3490 = vsel %vm3420, %v3482, %v3489
      %v3491 = vrot.slane %v3486, 4
      %v3493 = vshrl.u32 %v3394, 16
      %v3495 = vrot.slane %v3493, 7
      %v3496 = vshll.u32 %v3394, 16
      %v3498 = vor.u32 %v3495, %v3496
      %v3499 = vsel %vm3420, %v3491, %v3498
      %v3500 = vrot.slane %v3495, 4
      %v3502 = vshrl.u32 %v3395, 16
      %v3504 = vrot.slane %v3502, 7
      %v3505 = vshll.u32 %v3395, 16
      %v3507 = vor.u32 %v3504, %v3505
      %v3508 = vsel %vm3420, %v3500, %v3507
      %v3509 = vrot.slane %v3504, 4
      %v3511 = vshrl.u32 %v3396, 16
      %v3513 = vrot.slane %v3511, 7
      %v3514 = vshll.u32 %v3396, 16
      %v3516 = vor.u32 %v3513, %v3514
      %v3517 = vsel %vm3420, %v3509, %v3516
      %v3518 = vrot.slane %v3513, 4
      %v3520 = vshrl.u32 %v3397, 16
      %v3522 = vrot.slane %v3520, 7
      %v3523 = vshll.u32 %v3397, 16
      %v3525 = vor.u32 %v3522, %v3523
      %v3526 = vsel %vm3420, %v3518, %v3525
      %v3527 = vrot.slane %v3522, 4
      %v3529 = vshrl.u32 %v3398, 16
      %v3531 = vrot.slane %v3529, 7
      %v3532 = vshll.u32 %v3398, 16
      %v3534 = vor.u32 %v3531, %v3532
      %v3535 = vsel %vm3420, %v3527, %v3534
      %v3536 = vrot.slane %v3531, 4
      %v3538 = vshrl.u32 %v3399, 16
      %v3540 = vrot.slane %v3538, 7
      %v3541 = vshll.u32 %v3399, 16
      %v3543 = vor.u32 %v3540, %v3541
      %v3544 = vsel %vm3420, %v3536, %v3543
      %v3545 = vrot.slane %v3540, 4
      %v3547 = vshrl.u32 %v3400, 16
      %v3549 = vrot.slane %v3547, 7
      %v3550 = vshll.u32 %v3400, 16
      %v3552 = vor.u32 %v3549, %v3550
      %v3553 = vsel %vm3420, %v3545, %v3552
      %v3554 = vrot.slane %v3549, 4
      %v3556 = vshrl.u32 %v3401, 16
      %v3558 = vrot.slane %v3556, 7
      %v3559 = vshll.u32 %v3401, 16
      %v3561 = vor.u32 %v3558, %v3559
      %v3562 = vsel %vm3420, %v3554, %v3561
      %v3563 = vrot.slane %v3558, 4
      %v3565 = vshrl.u32 %v3402, 16
      %v3567 = vrot.slane %v3565, 7
      %v3568 = vshll.u32 %v3402, 16
      %v3570 = vor.u32 %v3567, %v3568
      %v3571 = vsel %vm3420, %v3563, %v3570
      %v3572 = vrot.slane %v3567, 4
      %v3574 = vshrl.u32 %v3403, 16
      %v3576 = vrot.slane %v3574, 7
      %v3577 = vshll.u32 %v3403, 16
      %v3579 = vor.u32 %v3576, %v3577
      %v3580 = vsel %vm3420, %v3572, %v3579
      %v3581 = vrot.slane %v3576, 4
      %v3583 = vshrl.u32 %v3404, 16
      %v3585 = vrot.slane %v3583, 7
      %v3586 = vshll.u32 %v3404, 16
      %v3588 = vor.u32 %v3585, %v3586
      %v3589 = vsel %vm3420, %v3581, %v3588
      %v3590 = vrot.slane %v3585, 4
      %v3592 = vshrl.u32 %v3405, 16
      %v3594 = vrot.slane %v3592, 7
      %v3595 = vshll.u32 %v3405, 16
      %v3597 = vor.u32 %v3594, %v3595
      %v3598 = vsel %vm3420, %v3590, %v3597
      %v3599 = vrot.slane %v3594, 4
      %v3601 = vshrl.u32 %v3406, 16
      %v3603 = vrot.slane %v3601, 7
      %v3604 = vshll.u32 %v3406, 16
      %v3606 = vor.u32 %v3603, %v3604
      %v3607 = vsel %vm3420, %v3599, %v3606
      %v3608 = vrot.slane %v3603, 4
      %v3610 = vshrl.u32 %v3407, 16
      %v3612 = vrot.slane %v3610, 7
      %v3613 = vshll.u32 %v3407, 16
      %v3615 = vor.u32 %v3612, %v3613
      %v3616 = vsel %vm3420, %v3608, %v3615
      %v3617 = vrot.slane %v3612, 4
      %v3619 = vshrl.u32 %v3408, 16
      %v3621 = vrot.slane %v3619, 7
      %v3622 = vshll.u32 %v3408, 16
      %v3624 = vor.u32 %v3621, %v3622
      %v3625 = vsel %vm3420, %v3617, %v3624
      %v3626 = vrot.slane %v3621, 4
      %v3628 = vshrl.u32 %v3409, 16
      %v3630 = vrot.slane %v3628, 7
      %v3631 = vshll.u32 %v3409, 16
      %v3633 = vor.u32 %v3630, %v3631
      %v3634 = vsel %vm3420, %v3626, %v3633
      %v3635 = vrot.slane %v3630, 4
      %v3637 = vshrl.u32 %v3410, 16
      %v3639 = vrot.slane %v3637, 7
      %v3640 = vshll.u32 %v3410, 16
      %v3642 = vor.u32 %v3639, %v3640
      %v3643 = vsel %vm3420, %v3635, %v3642
      %v3644 = vrot.slane %v3639, 4
      %v3646 = vshrl.u32 %v3411, 16
      %v3648 = vrot.slane %v3646, 7
      %v3649 = vshll.u32 %v3411, 16
      %v3651 = vor.u32 %v3648, %v3649
      %v3652 = vsel %vm3420, %v3644, %v3651
      %v3653 = vrot.slane %v3648, 4
      %v3655 = vshrl.u32 %v3412, 16
      %v3657 = vrot.slane %v3655, 7
      %v3658 = vshll.u32 %v3412, 16
      %v3660 = vor.u32 %v3657, %v3658
      %v3661 = vsel %vm3420, %v3653, %v3660
      %v3662 = vrot.slane %v3657, 4
      %v3664 = vshrl.u32 %v3413, 16
      %v3666 = vrot.slane %v3664, 7
      %v3667 = vshll.u32 %v3413, 16
      %v3669 = vor.u32 %v3666, %v3667
      %v3670 = vsel %vm3420, %v3662, %v3669
      %v3671 = vrot.slane %v3666, 4
      %v3673 = vshrl.u32 %v3414, 16
      %v3675 = vrot.slane %v3673, 7
      %v3676 = vshll.u32 %v3414, 16
      %v3678 = vor.u32 %v3675, %v3676
      %v3679 = vsel %vm3420, %v3671, %v3678
      %v3680 = vrot.slane %v3675, 4
      %v3682 = vshrl.u32 %v3415, 16
      %v3684 = vrot.slane %v3682, 7
      %v3685 = vshll.u32 %v3415, 16
      %v3687 = vor.u32 %v3684, %v3685
      %v3688 = vsel %vm3420, %v3680, %v3687
      %v3689 = vrot.slane %v3684, 4
      %v3691 = vshrl.u32 %v3416, 16
      %v3693 = vrot.slane %v3691, 7
      %v3694 = vshll.u32 %v3416, 16
      %v3696 = vor.u32 %v3693, %v3694
      %v3697 = vsel %vm3420, %v3689, %v3696
      %v3698 = vrot.slane %v3693, 4
      %v3700 = vshrl.u32 %v3417, 16
      %v3702 = vrot.slane %v3700, 7
      %v3703 = vshll.u32 %v3417, 16
      %v3705 = vor.u32 %v3702, %v3703
      %v3706 = vsel %vm3420, %v3698, %v3705
      %v3707 = vrot.slane %v3702, 4
      %vm3708 = vcmp.ne.s16.totalorder %v3427, 0
      %vm3709 = vcmp.ne.s16.totalorder %v3436, 0
      %vm3710 = vcmp.ne.s16.totalorder %v3445, 0
      %vm3711 = vcmp.ne.s16.totalorder %v3454, 0
      %vm3712 = vcmp.ne.s16.totalorder %v3463, 0
      %vm3713 = vcmp.ne.s16.totalorder %v3472, 0
      %vm3714 = vcmp.ne.s16.totalorder %v3481, 0
      %vm3715 = vcmp.ne.s16.totalorder %v3490, 0
      %vm3716 = vcmp.ne.s16.totalorder %v3499, 0
      %vm3717 = vcmp.ne.s16.totalorder %v3508, 0
      %vm3718 = vcmp.ne.s16.totalorder %v3517, 0
      %vm3719 = vcmp.ne.s16.totalorder %v3526, 0
      %vm3720 = vcmp.ne.s16.totalorder %v3535, 0
      %vm3721 = vcmp.ne.s16.totalorder %v3544, 0
      %vm3722 = vcmp.ne.s16.totalorder %v3553, 0
      %vm3723 = vcmp.ne.s16.totalorder %v3562, 0
      %vm3724 = vcmp.ne.s16.totalorder %v3571, 0
      %vm3725 = vcmp.ne.s16.totalorder %v3580, 0
      %vm3726 = vcmp.ne.s16.totalorder %v3589, 0
      %vm3727 = vcmp.ne.s16.totalorder %v3598, 0
      %vm3728 = vcmp.ne.s16.totalorder %v3607, 0
      %vm3729 = vcmp.ne.s16.totalorder %v3616, 0
      %vm3730 = vcmp.ne.s16.totalorder %v3625, 0
      %vm3731 = vcmp.ne.s16.totalorder %v3634, 0
      %vm3732 = vcmp.ne.s16.totalorder %v3643, 0
      %vm3733 = vcmp.ne.s16.totalorder %v3652, 0
      %vm3734 = vcmp.ne.s16.totalorder %v3661, 0
      %vm3735 = vcmp.ne.s16.totalorder %v3670, 0
      %vm3736 = vcmp.ne.s16.totalorder %v3679, 0
      %vm3737 = vcmp.ne.s16.totalorder %v3688, 0
      %vm3738 = vcmp.ne.s16.totalorder %v3697, 0
      %vm3739 = vcmp.ne.s16.totalorder %v3706, 0
      %vm3740 = vcmp.ne.s16.totalorder %v3707, 0
      %v3741 = vsel %vm3708, %v3225, 0
      %v3742 = vsel %vm3709, %v3226, 0
      %v3743 = vsel %vm3710, %v3227, 0
      %v3744 = vsel %vm3711, %v3228, 0
      %v3745 = vsel %vm3712, %v3229, 0
      %v3746 = vsel %vm3713, %v3230, 0
      %v3747 = vsel %vm3714, %v3231, 0
      %v3748 = vsel %vm3715, %v3232, 0
      %v3749 = vsel %vm3716, %v3233, 0
      %v3750 = vsel %vm3717, %v3234, 0
      %v3751 = vsel %vm3718, %v3235, 0
      %v3752 = vsel %vm3719, %v3236, 0
      %v3753 = vsel %vm3720, %v3237, 0
      %v3754 = vsel %vm3721, %v3238, 0
      %v3755 = vsel %vm3722, %v3239, 0
      %v3756 = vsel %vm3723, %v3240, 0
      %v3757 = vsel %vm3724, %v3241, 0
      %v3758 = vsel %vm3725, %v3242, 0
      %v3759 = vsel %vm3726, %v3243, 0
      %v3760 = vsel %vm3727, %v3244, 0
      %v3761 = vsel %vm3728, %v3245, 0
      %v3762 = vsel %vm3729, %v3246, 0
      %v3763 = vsel %vm3730, %v3247, 0
      %v3764 = vsel %vm3731, %v3248, 0
      %v3765 = vsel %vm3732, %v3249, 0
      %v3766 = vsel %vm3733, %v3250, 0
      %v3767 = vsel %vm3734, %v3251, 0
      %v3768 = vsel %vm3735, %v3252, 0
      %v3769 = vsel %vm3736, %v3253, 0
      %v3770 = vsel %vm3737, %v3254, 0
      %v3771 = vsel %vm3738, %v3255, 0
      %v3772 = vsel %vm3739, %v3256, 0
      %v3773 = vsel %vm3740, %v3257, 0
      %s3774 = scalar_lea.vmem %s2, 2
      %v3775 = vld [vmem:[%s3774] sm:$0x1]
      %v3809 = vunpack.c.l.b16 %v3741
      %v3810 = vunpack.c.l.b16 %v3742
      %v3811 = vunpack.c.l.b16 %v3743
      %v3812 = vunpack.c.l.b16 %v3744
      %v3813 = vunpack.c.l.b16 %v3745
      %v3814 = vunpack.c.l.b16 %v3746
      %v3815 = vunpack.c.l.b16 %v3747
      %v3816 = vunpack.c.l.b16 %v3748
      %v3817 = vunpack.c.l.b16 %v3749
      %v3818 = vunpack.c.l.b16 %v3750
      %v3819 = vunpack.c.l.b16 %v3751
      %v3820 = vunpack.c.l.b16 %v3752
      %v3821 = vunpack.c.l.b16 %v3753
      %v3822 = vunpack.c.l.b16 %v3754
      %v3823 = vunpack.c.l.b16 %v3755
      %v3824 = vunpack.c.l.b16 %v3756
      %v3825 = vunpack.c.l.b16 %v3757
      %v3826 = vunpack.c.l.b16 %v3758
      %v3827 = vunpack.c.l.b16 %v3759
      %v3828 = vunpack.c.l.b16 %v3760
      %v3829 = vunpack.c.l.b16 %v3761
      %v3830 = vunpack.c.l.b16 %v3762
      %v3831 = vunpack.c.l.b16 %v3763
      %v3832 = vunpack.c.l.b16 %v3764
      %v3833 = vunpack.c.l.b16 %v3765
      %v3834 = vunpack.c.l.b16 %v3766
      %v3835 = vunpack.c.l.b16 %v3767
      %v3836 = vunpack.c.l.b16 %v3768
      %v3837 = vunpack.c.l.b16 %v3769
      %v3838 = vunpack.c.l.b16 %v3770
      %v3839 = vunpack.c.l.b16 %v3771
      %v3840 = vunpack.c.l.b16 %v3772
      %v3841 = vunpack.c.l.b16 %v3773
      %v3842 = vpack.c.b16 %v3810, %v3809
      %v3843 = vpack.c.b16 %v3812, %v3811
      %v3844 = vpack.c.b16 %v3814, %v3813
      %v3845 = vpack.c.b16 %v3816, %v3815
      %v3846 = vpack.c.b16 %v3818, %v3817
      %v3847 = vpack.c.b16 %v3820, %v3819
      %v3848 = vpack.c.b16 %v3822, %v3821
      %v3849 = vpack.c.b16 %v3824, %v3823
      %v3850 = vpack.c.b16 %v3826, %v3825
      %v3851 = vpack.c.b16 %v3828, %v3827
      %v3852 = vpack.c.b16 %v3830, %v3829
      %v3853 = vpack.c.b16 %v3832, %v3831
      %v3854 = vpack.c.b16 %v3834, %v3833
      %v3855 = vpack.c.b16 %v3836, %v3835
      %v3856 = vpack.c.b16 %v3838, %v3837
      %v3857 = vpack.c.b16 %v3840, %v3839
      %v3858 = vpack.c.b16 %v3841, %v3841
      %vm3859 = vsmask.f32 7424
      %v3861 = vshrl.u32 %v3842, 16
      %v3863 = vshll.u32 %v3842, 16
      %v3865 = vrot.slane %v3863, 1
      %v3866 = vor.u32 %v3861, %v3865
      %v3868 = vshll.u32 %v3843, 16
      %v3870 = vrot.slane %v3868, 1
      %v3871 = vsel %vm3859, %v3866, %v3870
      %v3872 = vshrl.u32 %v3843, 16
      %v3874 = vor.u32 %v3872, %v3870
      %v3876 = vshll.u32 %v3844, 16
      %v3878 = vrot.slane %v3876, 1
      %v3879 = vsel %vm3859, %v3874, %v3878
      %v3880 = vshrl.u32 %v3844, 16
      %v3882 = vor.u32 %v3880, %v3878
      %v3884 = vshll.u32 %v3845, 16
      %v3886 = vrot.slane %v3884, 1
      %v3887 = vsel %vm3859, %v3882, %v3886
      %v3888 = vshrl.u32 %v3845, 16
      %v3890 = vor.u32 %v3888, %v3886
      %v3892 = vshll.u32 %v3846, 16
      %v3894 = vrot.slane %v3892, 1
      %v3895 = vsel %vm3859, %v3890, %v3894
      %v3896 = vshrl.u32 %v3846, 16
      %v3898 = vor.u32 %v3896, %v3894
      %v3900 = vshll.u32 %v3847, 16
      %v3902 = vrot.slane %v3900, 1
      %v3903 = vsel %vm3859, %v3898, %v3902
      %v3904 = vshrl.u32 %v3847, 16
      %v3906 = vor.u32 %v3904, %v3902
      %v3908 = vshll.u32 %v3848, 16
      %v3910 = vrot.slane %v3908, 1
      %v3911 = vsel %vm3859, %v3906, %v3910
      %v3912 = vshrl.u32 %v3848, 16
      %v3914 = vor.u32 %v3912, %v3910
      %v3916 = vshll.u32 %v3849, 16
      %v3918 = vrot.slane %v3916, 1
      %v3919 = vsel %vm3859, %v3914, %v3918
      %v3920 = vshrl.u32 %v3849, 16
      %v3922 = vor.u32 %v3920, %v3918
      %v3924 = vshll.u32 %v3850, 16
      %v3926 = vrot.slane %v3924, 1
      %v3927 = vsel %vm3859, %v3922, %v3926
      %v3928 = vshrl.u32 %v3850, 16
      %v3930 = vor.u32 %v3928, %v3926
      %v3932 = vshll.u32 %v3851, 16
      %v3934 = vrot.slane %v3932, 1
      %v3935 = vsel %vm3859, %v3930, %v3934
      %v3936 = vshrl.u32 %v3851, 16
      %v3938 = vor.u32 %v3936, %v3934
      %v3940 = vshll.u32 %v3852, 16
      %v3942 = vrot.slane %v3940, 1
      %v3943 = vsel %vm3859, %v3938, %v3942
      %v3944 = vshrl.u32 %v3852, 16
      %v3946 = vor.u32 %v3944, %v3942
      %v3948 = vshll.u32 %v3853, 16
      %v3950 = vrot.slane %v3948, 1
      %v3951 = vsel %vm3859, %v3946, %v3950
      %v3952 = vshrl.u32 %v3853, 16
      %v3954 = vor.u32 %v3952, %v3950
      %v3956 = vshll.u32 %v3854, 16
      %v3958 = vrot.slane %v3956, 1
      %v3959 = vsel %vm3859, %v3954, %v3958
      %v3960 = vshrl.u32 %v3854, 16
      %v3962 = vor.u32 %v3960, %v3958
      %v3964 = vshll.u32 %v3855, 16
      %v3966 = vrot.slane %v3964, 1
      %v3967 = vsel %vm3859, %v3962, %v3966
      %v3968 = vshrl.u32 %v3855, 16
      %v3970 = vor.u32 %v3968, %v3966
      %v3972 = vshll.u32 %v3856, 16
      %v3974 = vrot.slane %v3972, 1
      %v3975 = vsel %vm3859, %v3970, %v3974
      %v3976 = vshrl.u32 %v3856, 16
      %v3978 = vor.u32 %v3976, %v3974
      %v3980 = vshll.u32 %v3857, 16
      %v3982 = vrot.slane %v3980, 1
      %v3983 = vsel %vm3859, %v3978, %v3982
      %v3984 = vshrl.u32 %v3857, 16
      %v3986 = vor.u32 %v3984, %v3982
      %v3988 = vshll.u32 %v3858, 16
      %v3990 = vrot.slane %v3988, 1
      %v3991 = vsel %vm3859, %v3986, %v3990
      %v3993 = vsel %vm655, %v3871, 0
      %v3996 = vsel %vm655, %v3879, 0
      %v3999 = vsel %vm655, %v3887, 0
      %v4002 = vsel %vm655, %v3895, 0
      %v4005 = vsel %vm655, %v3903, 0
      %v4008 = vsel %vm655, %v3911, 0
      %v4011 = vsel %vm655, %v3919, 0
      %v4014 = vsel %vm655, %v3927, 0
      %v4017 = vsel %vm655, %v3935, 0
      %v4020 = vsel %vm655, %v3943, 0
      %v4023 = vsel %vm655, %v3951, 0
      %v4026 = vsel %vm655, %v3959, 0
      %v4029 = vsel %vm655, %v3967, 0
      %v4032 = vsel %vm655, %v3975, 0
      %v4035 = vsel %vm655, %v3983, 0
      %v4038 = vsel %vm655, %v3991, 0
      %v4041 = vsel %vm2612, %v3775, 0
      %4043 = vmatprep.subr.bf16.mxu0 0
      %4044 = vmatpush1.bf16.msra.mxu0 0
      %4045 = vmatprep.subr.bf16.mxu0 0
      %4046 = vmatpush1.bf16.msra.mxu0 0
      %4047 = vmatprep.subr.bf16.mxu0 0
      %4048 = vmatpush1.bf16.msra.mxu0 0
      %4049 = vmatprep.subr.bf16.mxu0 0
      %4050 = vmatpush1.bf16.msra.mxu0 0
      %4051 = vmatprep.subr.bf16.mxu0 0
      %4052 = vmatpush1.bf16.msra.mxu0 0
      %4053 = vmatprep.subr.bf16.mxu0 0
      %4054 = vmatpush1.bf16.msra.mxu0 0
      %4055 = vmatprep.subr.bf16.mxu0 0
      %4056 = vmatpush1.bf16.msra.mxu0 0
      %4057 = vmatprep.subr.bf16.mxu0 0
      %4058 = vmatpush1.bf16.msra.mxu0 %v4041
      %4059 = vmatprep.subr.bf16.mxu0 0
      %4060 = vmatpush2.bf16.msra.mxu0 0
      %4061 = vmatprep.subr.bf16.mxu0 0
      %4062 = vmatpush2.bf16.msra.mxu0 0
      %4063 = vmatprep.subr.bf16.mxu0 0
      %4064 = vmatpush2.bf16.msra.mxu0 0
      %4065 = vmatprep.subr.bf16.mxu0 0
      %4066 = vmatpush2.bf16.msra.mxu0 0
      %4067 = vmatprep.subr.bf16.mxu0 0
      %4068 = vmatpush2.bf16.msra.mxu0 0
      %4069 = vmatprep.subr.bf16.mxu0 0
      %4070 = vmatpush2.bf16.msra.mxu0 0
      %4071 = vmatprep.subr.bf16.mxu0 0
      %4072 = vmatpush2.bf16.msra.mxu0 0
      %4073 = vmatprep.subr.bf16.mxu0 0
      %4074 = vmatpush2.bf16.msra.mxu0 0
      %4075 = vmatprep.mubr.bf16.mxu0 0
      %4076 = vmatmul.mubr.bf16.gmra.mxu0 %v3993
      %v4077 = vpop.f32.mrf.mxu0
      %v4078 = vadd.f32 0.0, %v4077
      %v4079 = vpop.f32.mrf.mxu0
      %v4080 = vpop.f32.mrf.mxu0
      %v4081 = vadd.f32 0.0, %v4080
      %v4082 = vpop.f32.mrf.mxu0
      %4083 = vmatprep.mubr.bf16.mxu0 0
      %4084 = vmatmul.mubr.bf16.gmra.mxu0 %v3996
      %v4085 = vpop.f32.mrf.mxu0
      %v4086 = vadd.f32 0.0, %v4085
      %v4087 = vpop.f32.mrf.mxu0
      %v4088 = vpop.f32.mrf.mxu0
      %v4089 = vadd.f32 0.0, %v4088
      %v4090 = vpop.f32.mrf.mxu0
      %4091 = vmatprep.mubr.bf16.mxu0 0
      %4092 = vmatmul.mubr.bf16.gmra.mxu0 %v3999
      %v4093 = vpop.f32.mrf.mxu0
      %v4094 = vadd.f32 0.0, %v4093
      %v4095 = vpop.f32.mrf.mxu0
      %v4096 = vpop.f32.mrf.mxu0
      %v4097 = vadd.f32 0.0, %v4096
      %v4098 = vpop.f32.mrf.mxu0
      %4099 = vmatprep.mubr.bf16.mxu0 0
      %4100 = vmatmul.mubr.bf16.gmra.mxu0 %v4002
      %v4101 = vpop.f32.mrf.mxu0
      %v4102 = vadd.f32 0.0, %v4101
      %v4103 = vpop.f32.mrf.mxu0
      %v4104 = vpop.f32.mrf.mxu0
      %v4105 = vadd.f32 0.0, %v4104
      %v4106 = vpop.f32.mrf.mxu0
      %4107 = vmatprep.mubr.bf16.mxu0 0
      %4108 = vmatmul.mubr.bf16.gmra.mxu0 %v4005
      %v4109 = vpop.f32.mrf.mxu0
      %v4110 = vadd.f32 0.0, %v4109
      %v4111 = vpop.f32.mrf.mxu0
      %v4112 = vpop.f32.mrf.mxu0
      %v4113 = vadd.f32 0.0, %v4112
      %v4114 = vpop.f32.mrf.mxu0
      %4115 = vmatprep.mubr.bf16.mxu0 0
      %4116 = vmatmul.mubr.bf16.gmra.mxu0 %v4008
      %v4117 = vpop.f32.mrf.mxu0
      %v4118 = vadd.f32 0.0, %v4117
      %v4119 = vpop.f32.mrf.mxu0
      %v4120 = vpop.f32.mrf.mxu0
      %v4121 = vadd.f32 0.0, %v4120
      %v4122 = vpop.f32.mrf.mxu0
      %4123 = vmatprep.mubr.bf16.mxu0 0
      %4124 = vmatmul.mubr.bf16.gmra.mxu0 %v4011
      %v4125 = vpop.f32.mrf.mxu0
      %v4126 = vadd.f32 0.0, %v4125
      %v4127 = vpop.f32.mrf.mxu0
      %v4128 = vpop.f32.mrf.mxu0
      %v4129 = vadd.f32 0.0, %v4128
      %v4130 = vpop.f32.mrf.mxu0
      %4131 = vmatprep.mubr.bf16.mxu0 0
      %4132 = vmatmul.mubr.bf16.gmra.mxu0 %v4014
      %v4133 = vpop.f32.mrf.mxu0
      %v4134 = vadd.f32 0.0, %v4133
      %v4135 = vpop.f32.mrf.mxu0
      %v4136 = vpop.f32.mrf.mxu0
      %v4137 = vadd.f32 0.0, %v4136
      %v4138 = vpop.f32.mrf.mxu0
      %4139 = vmatprep.mubr.bf16.mxu0 0
      %4140 = vmatmul.mubr.bf16.gmra.mxu0 %v4017
      %v4141 = vpop.f32.mrf.mxu0
      %v4142 = vadd.f32 0.0, %v4141
      %v4143 = vpop.f32.mrf.mxu0
      %v4144 = vpop.f32.mrf.mxu0
      %v4145 = vadd.f32 0.0, %v4144
      %v4146 = vpop.f32.mrf.mxu0
      %4147 = vmatprep.mubr.bf16.mxu0 0
      %4148 = vmatmul.mubr.bf16.gmra.mxu0 %v4020
      %v4149 = vpop.f32.mrf.mxu0
      %v4150 = vadd.f32 0.0, %v4149
      %v4151 = vpop.f32.mrf.mxu0
      %v4152 = vpop.f32.mrf.mxu0
      %v4153 = vadd.f32 0.0, %v4152
      %v4154 = vpop.f32.mrf.mxu0
      %4155 = vmatprep.mubr.bf16.mxu0 0
      %4156 = vmatmul.mubr.bf16.gmra.mxu0 %v4023
      %v4157 = vpop.f32.mrf.mxu0
      %v4158 = vadd.f32 0.0, %v4157
      %v4159 = vpop.f32.mrf.mxu0
      %v4160 = vpop.f32.mrf.mxu0
      %v4161 = vadd.f32 0.0, %v4160
      %v4162 = vpop.f32.mrf.mxu0
      %4163 = vmatprep.mubr.bf16.mxu0 0
      %4164 = vmatmul.mubr.bf16.gmra.mxu0 %v4026
      %v4165 = vpop.f32.mrf.mxu0
      %v4166 = vadd.f32 0.0, %v4165
      %v4167 = vpop.f32.mrf.mxu0
      %v4168 = vpop.f32.mrf.mxu0
      %v4169 = vadd.f32 0.0, %v4168
      %v4170 = vpop.f32.mrf.mxu0
      %4171 = vmatprep.mubr.bf16.mxu0 0
      %4172 = vmatmul.mubr.bf16.gmra.mxu0 %v4029
      %v4173 = vpop.f32.mrf.mxu0
      %v4174 = vadd.f32 0.0, %v4173
      %v4175 = vpop.f32.mrf.mxu0
      %v4176 = vpop.f32.mrf.mxu0
      %v4177 = vadd.f32 0.0, %v4176
      %v4178 = vpop.f32.mrf.mxu0
      %4179 = vmatprep.mubr.bf16.mxu0 0
      %4180 = vmatmul.mubr.bf16.gmra.mxu0 %v4032
      %v4181 = vpop.f32.mrf.mxu0
      %v4182 = vadd.f32 0.0, %v4181
      %v4183 = vpop.f32.mrf.mxu0
      %v4184 = vpop.f32.mrf.mxu0
      %v4185 = vadd.f32 0.0, %v4184
      %v4186 = vpop.f32.mrf.mxu0
      %4187 = vmatprep.mubr.bf16.mxu0 0
      %4188 = vmatmul.mubr.bf16.gmra.mxu0 %v4035
      %v4189 = vpop.f32.mrf.mxu0
      %v4190 = vadd.f32 0.0, %v4189
      %v4191 = vpop.f32.mrf.mxu0
      %v4192 = vpop.f32.mrf.mxu0
      %v4193 = vadd.f32 0.0, %v4192
      %v4194 = vpop.f32.mrf.mxu0
      %4195 = vmatprep.mubr.bf16.mxu0 0
      %4196 = vmatmul.mubr.bf16.gmra.mxu0 %v4038
      %v4197 = vpop.f32.mrf.mxu0
      %v4198 = vadd.f32 0.0, %v4197
      %v4199 = vpop.f32.mrf.mxu0
      %v4200 = vpop.f32.mrf.mxu0
      %v4201 = vadd.f32 0.0, %v4200
      %v4202 = vpop.f32.mrf.mxu0
      %4203 = vdwg.mxu0
      %v4204 = vadd.f32 %v3099, %v4078
      %v4205 = vadd.f32 %v3102, %v4081
      %v4206 = vadd.f32 %v3107, %v4086
      %v4207 = vadd.f32 %v3110, %v4089
      %v4208 = vadd.f32 %v3115, %v4094
      %v4209 = vadd.f32 %v3118, %v4097
      %v4210 = vadd.f32 %v3123, %v4102
      %v4211 = vadd.f32 %v3126, %v4105
      %v4212 = vadd.f32 %v3131, %v4110
      %v4213 = vadd.f32 %v3134, %v4113
      %v4214 = vadd.f32 %v3139, %v4118
      %v4215 = vadd.f32 %v3142, %v4121
      %v4216 = vadd.f32 %v3147, %v4126
      %v4217 = vadd.f32 %v3150, %v4129
      %v4218 = vadd.f32 %v3155, %v4134
      %v4219 = vadd.f32 %v3158, %v4137
      %v4220 = vadd.f32 %v3163, %v4142
      %v4221 = vadd.f32 %v3166, %v4145
      %v4222 = vadd.f32 %v3171, %v4150
      %v4223 = vadd.f32 %v3174, %v4153
      %v4224 = vadd.f32 %v3179, %v4158
      %v4225 = vadd.f32 %v3182, %v4161
      %v4226 = vadd.f32 %v3187, %v4166
      %v4227 = vadd.f32 %v3190, %v4169
      %v4228 = vadd.f32 %v3195, %v4174
      %v4229 = vadd.f32 %v3198, %v4177
      %v4230 = vadd.f32 %v3203, %v4182
      %v4231 = vadd.f32 %v3206, %v4185
      %v4232 = vadd.f32 %v3211, %v4190
      %v4233 = vadd.f32 %v3214, %v4193
      %v4234 = vadd.f32 %v3219, %v4198
      %v4235 = vadd.f32 %v3222, %v4201
      %v4236 = vld [vmem:[#allocation2 + $0xc] sm:$0x8]
      %v4237 = vld [vmem:[#allocation2 + $0x10] sm:$0xf]
      %v4238 = vld [vmem:[#allocation2 + $0x14] sm:$0xf]
      %v4239 = vld [vmem:[#allocation2 + $0x18] sm:$0xf]
      %v4240 = vld [vmem:[#allocation2 + $0x1c] sm:$0xf]
      %v4241 = vld [vmem:[#allocation2 + $0x20] sm:$0xf]
      %v4242 = vld [vmem:[#allocation2 + $0x24] sm:$0xf]
      %v4243 = vld [vmem:[#allocation2 + $0x28] sm:$0xf]
      %v4244 = vld [vmem:[#allocation2 + $0x2c] sm:$0xf]
      %v4245 = vld [vmem:[#allocation2 + $0x30] sm:$0xf]
      %v4246 = vld [vmem:[#allocation2 + $0x34] sm:$0xf]
      %v4247 = vld [vmem:[#allocation2 + $0x38] sm:$0xf]
      %v4248 = vld [vmem:[#allocation2 + $0x3c] sm:$0xf]
      %v4249 = vld [vmem:[#allocation2 + $0x40] sm:$0xf]
      %v4250 = vld [vmem:[#allocation2 + $0x44] sm:$0xf]
      %v4251 = vld [vmem:[#allocation2 + $0x48] sm:$0xf]
      %v4252 = vld [vmem:[#allocation2 + $0x4c] sm:$0xf]
      %v4253 = vld [vmem:[#allocation2 + $0x50] sm:$0xf]
      %v4254 = vld [vmem:[#allocation2 + $0x54] sm:$0xf]
      %v4255 = vld [vmem:[#allocation2 + $0x58] sm:$0xf]
      %v4256 = vld [vmem:[#allocation2 + $0x5c] sm:$0xf]
      %v4257 = vld [vmem:[#allocation2 + $0x60] sm:$0xf]
      %v4258 = vld [vmem:[#allocation2 + $0x64] sm:$0xf]
      %v4259 = vld [vmem:[#allocation2 + $0x68] sm:$0xf]
      %v4260 = vld [vmem:[#allocation2 + $0x6c] sm:$0xf]
      %v4261 = vld [vmem:[#allocation2 + $0x70] sm:$0xf]
      %v4262 = vld [vmem:[#allocation2 + $0x74] sm:$0xf]
      %v4263 = vld [vmem:[#allocation2 + $0x78] sm:$0xf]
      %v4264 = vld [vmem:[#allocation2 + $0x7c] sm:$0xf]
      %v4265 = vld [vmem:[#allocation2 + $0x80] sm:$0xf]
      %v4266 = vld [vmem:[#allocation2 + $0x84] sm:$0xf]
      %v4267 = vld [vmem:[#allocation2 + $0x88] sm:$0xf]
      %v4268 = vld [vmem:[#allocation2 + $0x8c] sm:$0xf]
      %v4269 = vsel %vm2415, %v4236, 0
      %v4270 = vsel %vm2416, %v4237, 0
      %v4271 = vsel %vm2417, %v4238, 0
      %v4272 = vsel %vm2418, %v4239, 0
      %v4273 = vsel %vm2419, %v4240, 0
      %v4274 = vsel %vm2420, %v4241, 0
      %v4275 = vsel %vm2421, %v4242, 0
      %v4276 = vsel %vm2422, %v4243, 0
      %v4277 = vsel %vm2423, %v4244, 0
      %v4278 = vsel %vm2424, %v4245, 0
      %v4279 = vsel %vm2425, %v4246, 0
      %v4280 = vsel %vm2426, %v4247, 0
      %v4281 = vsel %vm2427, %v4248, 0
      %v4282 = vsel %vm2428, %v4249, 0
      %v4283 = vsel %vm2429, %v4250, 0
      %v4284 = vsel %vm2430, %v4251, 0
      %v4285 = vsel %vm2431, %v4252, 0
      %v4286 = vsel %vm2432, %v4253, 0
      %v4287 = vsel %vm2433, %v4254, 0
      %v4288 = vsel %vm2434, %v4255, 0
      %v4289 = vsel %vm2435, %v4256, 0
      %v4290 = vsel %vm2436, %v4257, 0
      %v4291 = vsel %vm2437, %v4258, 0
      %v4292 = vsel %vm2438, %v4259, 0
      %v4293 = vsel %vm2439, %v4260, 0
      %v4294 = vsel %vm2440, %v4261, 0
      %v4295 = vsel %vm2441, %v4262, 0
      %v4296 = vsel %vm2442, %v4263, 0
      %v4297 = vsel %vm2443, %v4264, 0
      %v4298 = vsel %vm2444, %v4265, 0
      %v4299 = vsel %vm2445, %v4266, 0
      %v4300 = vsel %vm2446, %v4267, 0
      %v4301 = vsel %vm2447, %v4268, 0
      %s4302 = scalar_lea.vmem %s2, 3
      %v4303 = vld [vmem:[%s4302] sm:$0x1]
      %v4337 = vunpack.c.l.b16 %v4269
      %v4338 = vunpack.c.l.b16 %v4270
      %v4339 = vunpack.c.l.b16 %v4271
      %v4340 = vunpack.c.l.b16 %v4272
      %v4341 = vunpack.c.l.b16 %v4273
      %v4342 = vunpack.c.l.b16 %v4274
      %v4343 = vunpack.c.l.b16 %v4275
      %v4344 = vunpack.c.l.b16 %v4276
      %v4345 = vunpack.c.l.b16 %v4277
      %v4346 = vunpack.c.l.b16 %v4278
      %v4347 = vunpack.c.l.b16 %v4279
      %v4348 = vunpack.c.l.b16 %v4280
      %v4349 = vunpack.c.l.b16 %v4281
      %v4350 = vunpack.c.l.b16 %v4282
      %v4351 = vunpack.c.l.b16 %v4283
      %v4352 = vunpack.c.l.b16 %v4284
      %v4353 = vunpack.c.l.b16 %v4285
      %v4354 = vunpack.c.l.b16 %v4286
      %v4355 = vunpack.c.l.b16 %v4287
      %v4356 = vunpack.c.l.b16 %v4288
      %v4357 = vunpack.c.l.b16 %v4289
      %v4358 = vunpack.c.l.b16 %v4290
      %v4359 = vunpack.c.l.b16 %v4291
      %v4360 = vunpack.c.l.b16 %v4292
      %v4361 = vunpack.c.l.b16 %v4293
      %v4362 = vunpack.c.l.b16 %v4294
      %v4363 = vunpack.c.l.b16 %v4295
      %v4364 = vunpack.c.l.b16 %v4296
      %v4365 = vunpack.c.l.b16 %v4297
      %v4366 = vunpack.c.l.b16 %v4298
      %v4367 = vunpack.c.l.b16 %v4299
      %v4368 = vunpack.c.l.b16 %v4300
      %v4369 = vunpack.c.l.b16 %v4301
      %v4370 = vpack.c.b16 %v4338, %v4337
      %v4371 = vpack.c.b16 %v4340, %v4339
      %v4372 = vpack.c.b16 %v4342, %v4341
      %v4373 = vpack.c.b16 %v4344, %v4343
      %v4374 = vpack.c.b16 %v4346, %v4345
      %v4375 = vpack.c.b16 %v4348, %v4347
      %v4376 = vpack.c.b16 %v4350, %v4349
      %v4377 = vpack.c.b16 %v4352, %v4351
      %v4378 = vpack.c.b16 %v4354, %v4353
      %v4379 = vpack.c.b16 %v4356, %v4355
      %v4380 = vpack.c.b16 %v4358, %v4357
      %v4381 = vpack.c.b16 %v4360, %v4359
      %v4382 = vpack.c.b16 %v4362, %v4361
      %v4383 = vpack.c.b16 %v4364, %v4363
      %v4384 = vpack.c.b16 %v4366, %v4365
      %v4385 = vpack.c.b16 %v4368, %v4367
      %v4386 = vpack.c.b16 %v4369, %v4369
      %v4388 = vshrl.u32 %v4370, 16
      %v4390 = vrot.slane %v4388, 3
      %v4391 = vshll.u32 %v4370, 16
      %v4393 = vrot.slane %v4391, 4
      %v4394 = vor.u32 %v4390, %v4393
      %v4396 = vshrl.u32 %v4371, 16
      %v4398 = vrot.slane %v4396, 3
      %v4399 = vshll.u32 %v4371, 16
      %v4401 = vrot.slane %v4399, 4
      %v4402 = vor.u32 %v4398, %v4401
      %v4403 = vsel %vm2860, %v4394, %v4402
      %v4405 = vshrl.u32 %v4372, 16
      %v4407 = vrot.slane %v4405, 3
      %v4408 = vshll.u32 %v4372, 16
      %v4410 = vrot.slane %v4408, 4
      %v4411 = vor.u32 %v4407, %v4410
      %v4412 = vsel %vm2860, %v4402, %v4411
      %v4414 = vshrl.u32 %v4373, 16
      %v4416 = vrot.slane %v4414, 3
      %v4417 = vshll.u32 %v4373, 16
      %v4419 = vrot.slane %v4417, 4
      %v4420 = vor.u32 %v4416, %v4419
      %v4421 = vsel %vm2860, %v4411, %v4420
      %v4423 = vshrl.u32 %v4374, 16
      %v4425 = vrot.slane %v4423, 3
      %v4426 = vshll.u32 %v4374, 16
      %v4428 = vrot.slane %v4426, 4
      %v4429 = vor.u32 %v4425, %v4428
      %v4430 = vsel %vm2860, %v4420, %v4429
      %v4432 = vshrl.u32 %v4375, 16
      %v4434 = vrot.slane %v4432, 3
      %v4435 = vshll.u32 %v4375, 16
      %v4437 = vrot.slane %v4435, 4
      %v4438 = vor.u32 %v4434, %v4437
      %v4439 = vsel %vm2860, %v4429, %v4438
      %v4441 = vshrl.u32 %v4376, 16
      %v4443 = vrot.slane %v4441, 3
      %v4444 = vshll.u32 %v4376, 16
      %v4446 = vrot.slane %v4444, 4
      %v4447 = vor.u32 %v4443, %v4446
      %v4448 = vsel %vm2860, %v4438, %v4447
      %v4450 = vshrl.u32 %v4377, 16
      %v4452 = vrot.slane %v4450, 3
      %v4453 = vshll.u32 %v4377, 16
      %v4455 = vrot.slane %v4453, 4
      %v4456 = vor.u32 %v4452, %v4455
      %v4457 = vsel %vm2860, %v4447, %v4456
      %v4459 = vshrl.u32 %v4378, 16
      %v4461 = vrot.slane %v4459, 3
      %v4462 = vshll.u32 %v4378, 16
      %v4464 = vrot.slane %v4462, 4
      %v4465 = vor.u32 %v4461, %v4464
      %v4466 = vsel %vm2860, %v4456, %v4465
      %v4468 = vshrl.u32 %v4379, 16
      %v4470 = vrot.slane %v4468, 3
      %v4471 = vshll.u32 %v4379, 16
      %v4473 = vrot.slane %v4471, 4
      %v4474 = vor.u32 %v4470, %v4473
      %v4475 = vsel %vm2860, %v4465, %v4474
      %v4477 = vshrl.u32 %v4380, 16
      %v4479 = vrot.slane %v4477, 3
      %v4480 = vshll.u32 %v4380, 16
      %v4482 = vrot.slane %v4480, 4
      %v4483 = vor.u32 %v4479, %v4482
      %v4484 = vsel %vm2860, %v4474, %v4483
      %v4486 = vshrl.u32 %v4381, 16
      %v4488 = vrot.slane %v4486, 3
      %v4489 = vshll.u32 %v4381, 16
      %v4491 = vrot.slane %v4489, 4
      %v4492 = vor.u32 %v4488, %v4491
      %v4493 = vsel %vm2860, %v4483, %v4492
      %v4495 = vshrl.u32 %v4382, 16
      %v4497 = vrot.slane %v4495, 3
      %v4498 = vshll.u32 %v4382, 16
      %v4500 = vrot.slane %v4498, 4
      %v4501 = vor.u32 %v4497, %v4500
      %v4502 = vsel %vm2860, %v4492, %v4501
      %v4504 = vshrl.u32 %v4383, 16
      %v4506 = vrot.slane %v4504, 3
      %v4507 = vshll.u32 %v4383, 16
      %v4509 = vrot.slane %v4507, 4
      %v4510 = vor.u32 %v4506, %v4509
      %v4511 = vsel %vm2860, %v4501, %v4510
      %v4513 = vshrl.u32 %v4384, 16
      %v4515 = vrot.slane %v4513, 3
      %v4516 = vshll.u32 %v4384, 16
      %v4518 = vrot.slane %v4516, 4
      %v4519 = vor.u32 %v4515, %v4518
      %v4520 = vsel %vm2860, %v4510, %v4519
      %v4522 = vshrl.u32 %v4385, 16
      %v4524 = vrot.slane %v4522, 3
      %v4525 = vshll.u32 %v4385, 16
      %v4527 = vrot.slane %v4525, 4
      %v4528 = vor.u32 %v4524, %v4527
      %v4529 = vsel %vm2860, %v4519, %v4528
      %v4531 = vshrl.u32 %v4386, 16
      %v4533 = vrot.slane %v4531, 3
      %v4534 = vshll.u32 %v4386, 16
      %v4536 = vrot.slane %v4534, 4
      %v4537 = vor.u32 %v4533, %v4536
      %v4538 = vsel %vm2860, %v4528, %v4537
      %v4540 = vsel %vm655, %v4403, 0
      %v4543 = vsel %vm655, %v4412, 0
      %v4546 = vsel %vm655, %v4421, 0
      %v4549 = vsel %vm655, %v4430, 0
      %v4552 = vsel %vm655, %v4439, 0
      %v4555 = vsel %vm655, %v4448, 0
      %v4558 = vsel %vm655, %v4457, 0
      %v4561 = vsel %vm655, %v4466, 0
      %v4564 = vsel %vm655, %v4475, 0
      %v4567 = vsel %vm655, %v4484, 0
      %v4570 = vsel %vm655, %v4493, 0
      %v4573 = vsel %vm655, %v4502, 0
      %v4576 = vsel %vm655, %v4511, 0
      %v4579 = vsel %vm655, %v4520, 0
      %v4582 = vsel %vm655, %v4529, 0
      %v4585 = vsel %vm655, %v4538, 0
      %v4588 = vsel %vm2612, %v4303, 0
      %4590 = vmatprep.subr.bf16.mxu0 0
      %4591 = vmatpush1.bf16.msra.mxu0 0
      %4592 = vmatprep.subr.bf16.mxu0 0
      %4593 = vmatpush1.bf16.msra.mxu0 0
      %4594 = vmatprep.subr.bf16.mxu0 0
      %4595 = vmatpush1.bf16.msra.mxu0 0
      %4596 = vmatprep.subr.bf16.mxu0 0
      %4597 = vmatpush1.bf16.msra.mxu0 0
      %4598 = vmatprep.subr.bf16.mxu0 0
      %4599 = vmatpush1.bf16.msra.mxu0 0
      %4600 = vmatprep.subr.bf16.mxu0 0
      %4601 = vmatpush1.bf16.msra.mxu0 0
      %4602 = vmatprep.subr.bf16.mxu0 0
      %4603 = vmatpush1.bf16.msra.mxu0 0
      %4604 = vmatprep.subr.bf16.mxu0 0
      %4605 = vmatpush1.bf16.msra.mxu0 %v4588
      %4606 = vmatprep.subr.bf16.mxu0 0
      %4607 = vmatpush2.bf16.msra.mxu0 0
      %4608 = vmatprep.subr.bf16.mxu0 0
      %4609 = vmatpush2.bf16.msra.mxu0 0
      %4610 = vmatprep.subr.bf16.mxu0 0
      %4611 = vmatpush2.bf16.msra.mxu0 0
      %4612 = vmatprep.subr.bf16.mxu0 0
      %4613 = vmatpush2.bf16.msra.mxu0 0
      %4614 = vmatprep.subr.bf16.mxu0 0
      %4615 = vmatpush2.bf16.msra.mxu0 0
      %4616 = vmatprep.subr.bf16.mxu0 0
      %4617 = vmatpush2.bf16.msra.mxu0 0
      %4618 = vmatprep.subr.bf16.mxu0 0
      %4619 = vmatpush2.bf16.msra.mxu0 0
      %4620 = vmatprep.subr.bf16.mxu0 0
      %4621 = vmatpush2.bf16.msra.mxu0 0
      %4622 = vmatprep.mubr.bf16.mxu0 0
      %4623 = vmatmul.mubr.bf16.gmra.mxu0 %v4540
      %v4624 = vpop.f32.mrf.mxu0
      %v4625 = vadd.f32 0.0, %v4624
      %v4626 = vpop.f32.mrf.mxu0
      %v4627 = vpop.f32.mrf.mxu0
      %v4628 = vadd.f32 0.0, %v4627
      %v4629 = vpop.f32.mrf.mxu0
      %4630 = vmatprep.mubr.bf16.mxu0 0
      %4631 = vmatmul.mubr.bf16.gmra.mxu0 %v4543
      %v4632 = vpop.f32.mrf.mxu0
      %v4633 = vadd.f32 0.0, %v4632
      %v4634 = vpop.f32.mrf.mxu0
      %v4635 = vpop.f32.mrf.mxu0
      %v4636 = vadd.f32 0.0, %v4635
      %v4637 = vpop.f32.mrf.mxu0
      %4638 = vmatprep.mubr.bf16.mxu0 0
      %4639 = vmatmul.mubr.bf16.gmra.mxu0 %v4546
      %v4640 = vpop.f32.mrf.mxu0
      %v4641 = vadd.f32 0.0, %v4640
      %v4642 = vpop.f32.mrf.mxu0
      %v4643 = vpop.f32.mrf.mxu0
      %v4644 = vadd.f32 0.0, %v4643
      %v4645 = vpop.f32.mrf.mxu0
      %4646 = vmatprep.mubr.bf16.mxu0 0
      %4647 = vmatmul.mubr.bf16.gmra.mxu0 %v4549
      %v4648 = vpop.f32.mrf.mxu0
      %v4649 = vadd.f32 0.0, %v4648
      %v4650 = vpop.f32.mrf.mxu0
      %v4651 = vpop.f32.mrf.mxu0
      %v4652 = vadd.f32 0.0, %v4651
      %v4653 = vpop.f32.mrf.mxu0
      %4654 = vmatprep.mubr.bf16.mxu0 0
      %4655 = vmatmul.mubr.bf16.gmra.mxu0 %v4552
      %v4656 = vpop.f32.mrf.mxu0
      %v4657 = vadd.f32 0.0, %v4656
      %v4658 = vpop.f32.mrf.mxu0
      %v4659 = vpop.f32.mrf.mxu0
      %v4660 = vadd.f32 0.0, %v4659
      %v4661 = vpop.f32.mrf.mxu0
      %4662 = vmatprep.mubr.bf16.mxu0 0
      %4663 = vmatmul.mubr.bf16.gmra.mxu0 %v4555
      %v4664 = vpop.f32.mrf.mxu0
      %v4665 = vadd.f32 0.0, %v4664
      %v4666 = vpop.f32.mrf.mxu0
      %v4667 = vpop.f32.mrf.mxu0
      %v4668 = vadd.f32 0.0, %v4667
      %v4669 = vpop.f32.mrf.mxu0
      %4670 = vmatprep.mubr.bf16.mxu0 0
      %4671 = vmatmul.mubr.bf16.gmra.mxu0 %v4558
      %v4672 = vpop.f32.mrf.mxu0
      %v4673 = vadd.f32 0.0, %v4672
      %v4674 = vpop.f32.mrf.mxu0
      %v4675 = vpop.f32.mrf.mxu0
      %v4676 = vadd.f32 0.0, %v4675
      %v4677 = vpop.f32.mrf.mxu0
      %4678 = vmatprep.mubr.bf16.mxu0 0
      %4679 = vmatmul.mubr.bf16.gmra.mxu0 %v4561
      %v4680 = vpop.f32.mrf.mxu0
      %v4681 = vadd.f32 0.0, %v4680
      %v4682 = vpop.f32.mrf.mxu0
      %v4683 = vpop.f32.mrf.mxu0
      %v4684 = vadd.f32 0.0, %v4683
      %v4685 = vpop.f32.mrf.mxu0
      %4686 = vmatprep.mubr.bf16.mxu0 0
      %4687 = vmatmul.mubr.bf16.gmra.mxu0 %v4564
      %v4688 = vpop.f32.mrf.mxu0
      %v4689 = vadd.f32 0.0, %v4688
      %v4690 = vpop.f32.mrf.mxu0
      %v4691 = vpop.f32.mrf.mxu0
      %v4692 = vadd.f32 0.0, %v4691
      %v4693 = vpop.f32.mrf.mxu0
      %4694 = vmatprep.mubr.bf16.mxu0 0
      %4695 = vmatmul.mubr.bf16.gmra.mxu0 %v4567
      %v4696 = vpop.f32.mrf.mxu0
      %v4697 = vadd.f32 0.0, %v4696
      %v4698 = vpop.f32.mrf.mxu0
      %v4699 = vpop.f32.mrf.mxu0
      %v4700 = vadd.f32 0.0, %v4699
      %v4701 = vpop.f32.mrf.mxu0
      %4702 = vmatprep.mubr.bf16.mxu0 0
      %4703 = vmatmul.mubr.bf16.gmra.mxu0 %v4570
      %v4704 = vpop.f32.mrf.mxu0
      %v4705 = vadd.f32 0.0, %v4704
      %v4706 = vpop.f32.mrf.mxu0
      %v4707 = vpop.f32.mrf.mxu0
      %v4708 = vadd.f32 0.0, %v4707
      %v4709 = vpop.f32.mrf.mxu0
      %4710 = vmatprep.mubr.bf16.mxu0 0
      %4711 = vmatmul.mubr.bf16.gmra.mxu0 %v4573
      %v4712 = vpop.f32.mrf.mxu0
      %v4713 = vadd.f32 0.0, %v4712
      %v4714 = vpop.f32.mrf.mxu0
      %v4715 = vpop.f32.mrf.mxu0
      %v4716 = vadd.f32 0.0, %v4715
      %v4717 = vpop.f32.mrf.mxu0
      %4718 = vmatprep.mubr.bf16.mxu0 0
      %4719 = vmatmul.mubr.bf16.gmra.mxu0 %v4576
      %v4720 = vpop.f32.mrf.mxu0
      %v4721 = vadd.f32 0.0, %v4720
      %v4722 = vpop.f32.mrf.mxu0
      %v4723 = vpop.f32.mrf.mxu0
      %v4724 = vadd.f32 0.0, %v4723
      %v4725 = vpop.f32.mrf.mxu0
      %4726 = vmatprep.mubr.bf16.mxu0 0
      %4727 = vmatmul.mubr.bf16.gmra.mxu0 %v4579
      %v4728 = vpop.f32.mrf.mxu0
      %v4729 = vadd.f32 0.0, %v4728
      %v4730 = vpop.f32.mrf.mxu0
      %v4731 = vpop.f32.mrf.mxu0
      %v4732 = vadd.f32 0.0, %v4731
      %v4733 = vpop.f32.mrf.mxu0
      %4734 = vmatprep.mubr.bf16.mxu0 0
      %4735 = vmatmul.mubr.bf16.gmra.mxu0 %v4582
      %v4736 = vpop.f32.mrf.mxu0
      %v4737 = vadd.f32 0.0, %v4736
      %v4738 = vpop.f32.mrf.mxu0
      %v4739 = vpop.f32.mrf.mxu0
      %v4740 = vadd.f32 0.0, %v4739
      %v4741 = vpop.f32.mrf.mxu0
      %4742 = vmatprep.mubr.bf16.mxu0 0
      %4743 = vmatmul.mubr.bf16.gmra.mxu0 %v4585
      %v4744 = vpop.f32.mrf.mxu0
      %v4745 = vadd.f32 0.0, %v4744
      %v4746 = vpop.f32.mrf.mxu0
      %v4747 = vpop.f32.mrf.mxu0
      %v4748 = vadd.f32 0.0, %v4747
      %v4749 = vpop.f32.mrf.mxu0
      %4750 = vdwg.mxu0
      %v4751 = vadd.f32 %v4204, %v4625
      %v4752 = vadd.f32 %v4205, %v4628
      %v4753 = vadd.f32 %v4206, %v4633
      %v4754 = vadd.f32 %v4207, %v4636
      %v4755 = vadd.f32 %v4208, %v4641
      %v4756 = vadd.f32 %v4209, %v4644
      %v4757 = vadd.f32 %v4210, %v4649
      %v4758 = vadd.f32 %v4211, %v4652
      %v4759 = vadd.f32 %v4212, %v4657
      %v4760 = vadd.f32 %v4213, %v4660
      %v4761 = vadd.f32 %v4214, %v4665
      %v4762 = vadd.f32 %v4215, %v4668
      %v4763 = vadd.f32 %v4216, %v4673
      %v4764 = vadd.f32 %v4217, %v4676
      %v4765 = vadd.f32 %v4218, %v4681
      %v4766 = vadd.f32 %v4219, %v4684
      %v4767 = vadd.f32 %v4220, %v4689
      %v4768 = vadd.f32 %v4221, %v4692
      %v4769 = vadd.f32 %v4222, %v4697
      %v4770 = vadd.f32 %v4223, %v4700
      %v4771 = vadd.f32 %v4224, %v4705
      %v4772 = vadd.f32 %v4225, %v4708
      %v4773 = vadd.f32 %v4226, %v4713
      %v4774 = vadd.f32 %v4227, %v4716
      %v4775 = vadd.f32 %v4228, %v4721
      %v4776 = vadd.f32 %v4229, %v4724
      %v4777 = vadd.f32 %v4230, %v4729
      %v4778 = vadd.f32 %v4231, %v4732
      %v4779 = vadd.f32 %v4232, %v4737
      %v4780 = vadd.f32 %v4233, %v4740
      %v4781 = vadd.f32 %v4234, %v4745
      %v4782 = vadd.f32 %v4235, %v4748
      %s4783 = scalar_lea.vmem %s2, 4
      %v4784 = vld [vmem:[%s4783] sm:$0x1]
      %v4817 = vunpack.c.l.b16 %v4237
      %v4818 = vunpack.c.l.b16 %v4238
      %v4819 = vunpack.c.l.b16 %v4239
      %v4820 = vunpack.c.l.b16 %v4240
      %v4821 = vunpack.c.l.b16 %v4241
      %v4822 = vunpack.c.l.b16 %v4242
      %v4823 = vunpack.c.l.b16 %v4243
      %v4824 = vunpack.c.l.b16 %v4244
      %v4825 = vunpack.c.l.b16 %v4245
      %v4826 = vunpack.c.l.b16 %v4246
      %v4827 = vunpack.c.l.b16 %v4247
      %v4828 = vunpack.c.l.b16 %v4248
      %v4829 = vunpack.c.l.b16 %v4249
      %v4830 = vunpack.c.l.b16 %v4250
      %v4831 = vunpack.c.l.b16 %v4251
      %v4832 = vunpack.c.l.b16 %v4252
      %v4833 = vunpack.c.l.b16 %v4253
      %v4834 = vunpack.c.l.b16 %v4254
      %v4835 = vunpack.c.l.b16 %v4255
      %v4836 = vunpack.c.l.b16 %v4256
      %v4837 = vunpack.c.l.b16 %v4257
      %v4838 = vunpack.c.l.b16 %v4258
      %v4839 = vunpack.c.l.b16 %v4259
      %v4840 = vunpack.c.l.b16 %v4260
      %v4841 = vunpack.c.l.b16 %v4261
      %v4842 = vunpack.c.l.b16 %v4262
      %v4843 = vunpack.c.l.b16 %v4263
      %v4844 = vunpack.c.l.b16 %v4264
      %v4845 = vunpack.c.l.b16 %v4265
      %v4846 = vunpack.c.l.b16 %v4266
      %v4847 = vunpack.c.l.b16 %v4267
      %v4848 = vunpack.c.l.b16 %v4268
      %v4849 = vpack.c.b16 %v4818, %v4817
      %v4850 = vpack.c.b16 %v4820, %v4819
      %v4851 = vpack.c.b16 %v4822, %v4821
      %v4852 = vpack.c.b16 %v4824, %v4823
      %v4853 = vpack.c.b16 %v4826, %v4825
      %v4854 = vpack.c.b16 %v4828, %v4827
      %v4855 = vpack.c.b16 %v4830, %v4829
      %v4856 = vpack.c.b16 %v4832, %v4831
      %v4857 = vpack.c.b16 %v4834, %v4833
      %v4858 = vpack.c.b16 %v4836, %v4835
      %v4859 = vpack.c.b16 %v4838, %v4837
      %v4860 = vpack.c.b16 %v4840, %v4839
      %v4861 = vpack.c.b16 %v4842, %v4841
      %v4862 = vpack.c.b16 %v4844, %v4843
      %v4863 = vpack.c.b16 %v4846, %v4845
      %v4864 = vpack.c.b16 %v4848, %v4847
      %v4866 = vsel %vm655, %v4849, 0
      %v4869 = vsel %vm655, %v4850, 0
      %v4872 = vsel %vm655, %v4851, 0
      %v4875 = vsel %vm655, %v4852, 0
      %v4878 = vsel %vm655, %v4853, 0
      %v4881 = vsel %vm655, %v4854, 0
      %v4884 = vsel %vm655, %v4855, 0
      %v4887 = vsel %vm655, %v4856, 0
      %v4890 = vsel %vm655, %v4857, 0
      %v4893 = vsel %vm655, %v4858, 0
      %v4896 = vsel %vm655, %v4859, 0
      %v4899 = vsel %vm655, %v4860, 0
      %v4902 = vsel %vm655, %v4861, 0
      %v4905 = vsel %vm655, %v4862, 0
      %v4908 = vsel %vm655, %v4863, 0
      %v4911 = vsel %vm655, %v4864, 0
      %v4914 = vsel %vm2612, %v4784, 0
      %4916 = vmatprep.subr.bf16.mxu0 0
      %4917 = vmatpush1.bf16.msra.mxu0 0
      %4918 = vmatprep.subr.bf16.mxu0 0
      %4919 = vmatpush1.bf16.msra.mxu0 0
      %4920 = vmatprep.subr.bf16.mxu0 0
      %4921 = vmatpush1.bf16.msra.mxu0 0
      %4922 = vmatprep.subr.bf16.mxu0 0
      %4923 = vmatpush1.bf16.msra.mxu0 0
      %4924 = vmatprep.subr.bf16.mxu0 0
      %4925 = vmatpush1.bf16.msra.mxu0 0
      %4926 = vmatprep.subr.bf16.mxu0 0
      %4927 = vmatpush1.bf16.msra.mxu0 0
      %4928 = vmatprep.subr.bf16.mxu0 0
      %4929 = vmatpush1.bf16.msra.mxu0 0
      %4930 = vmatprep.subr.bf16.mxu0 0
      %4931 = vmatpush1.bf16.msra.mxu0 %v4914
      %4932 = vmatprep.subr.bf16.mxu0 0
      %4933 = vmatpush2.bf16.msra.mxu0 0
      %4934 = vmatprep.subr.bf16.mxu0 0
      %4935 = vmatpush2.bf16.msra.mxu0 0
      %4936 = vmatprep.subr.bf16.mxu0 0
      %4937 = vmatpush2.bf16.msra.mxu0 0
      %4938 = vmatprep.subr.bf16.mxu0 0
      %4939 = vmatpush2.bf16.msra.mxu0 0
      %4940 = vmatprep.subr.bf16.mxu0 0
      %4941 = vmatpush2.bf16.msra.mxu0 0
      %4942 = vmatprep.subr.bf16.mxu0 0
      %4943 = vmatpush2.bf16.msra.mxu0 0
      %4944 = vmatprep.subr.bf16.mxu0 0
      %4945 = vmatpush2.bf16.msra.mxu0 0
      %4946 = vmatprep.subr.bf16.mxu0 0
      %4947 = vmatpush2.bf16.msra.mxu0 0
      %4948 = vmatprep.mubr.bf16.mxu0 0
      %4949 = vmatmul.mubr.bf16.gmra.mxu0 %v4866
      %v4950 = vpop.f32.mrf.mxu0
      %v4951 = vadd.f32 0.0, %v4950
      %v4952 = vpop.f32.mrf.mxu0
      %v4953 = vpop.f32.mrf.mxu0
      %v4954 = vadd.f32 0.0, %v4953
      %v4955 = vpop.f32.mrf.mxu0
      %4956 = vmatprep.mubr.bf16.mxu0 0
      %4957 = vmatmul.mubr.bf16.gmra.mxu0 %v4869
      %v4958 = vpop.f32.mrf.mxu0
      %v4959 = vadd.f32 0.0, %v4958
      %v4960 = vpop.f32.mrf.mxu0
      %v4961 = vpop.f32.mrf.mxu0
      %v4962 = vadd.f32 0.0, %v4961
      %v4963 = vpop.f32.mrf.mxu0
      %4964 = vmatprep.mubr.bf16.mxu0 0
      %4965 = vmatmul.mubr.bf16.gmra.mxu0 %v4872
      %v4966 = vpop.f32.mrf.mxu0
      %v4967 = vadd.f32 0.0, %v4966
      %v4968 = vpop.f32.mrf.mxu0
      %v4969 = vpop.f32.mrf.mxu0
      %v4970 = vadd.f32 0.0, %v4969
      %v4971 = vpop.f32.mrf.mxu0
      %4972 = vmatprep.mubr.bf16.mxu0 0
      %4973 = vmatmul.mubr.bf16.gmra.mxu0 %v4875
      %v4974 = vpop.f32.mrf.mxu0
      %v4975 = vadd.f32 0.0, %v4974
      %v4976 = vpop.f32.mrf.mxu0
      %v4977 = vpop.f32.mrf.mxu0
      %v4978 = vadd.f32 0.0, %v4977
      %v4979 = vpop.f32.mrf.mxu0
      %4980 = vmatprep.mubr.bf16.mxu0 0
      %4981 = vmatmul.mubr.bf16.gmra.mxu0 %v4878
      %v4982 = vpop.f32.mrf.mxu0
      %v4983 = vadd.f32 0.0, %v4982
      %v4984 = vpop.f32.mrf.mxu0
      %v4985 = vpop.f32.mrf.mxu0
      %v4986 = vadd.f32 0.0, %v4985
      %v4987 = vpop.f32.mrf.mxu0
      %4988 = vmatprep.mubr.bf16.mxu0 0
      %4989 = vmatmul.mubr.bf16.gmra.mxu0 %v4881
      %v4990 = vpop.f32.mrf.mxu0
      %v4991 = vadd.f32 0.0, %v4990
      %v4992 = vpop.f32.mrf.mxu0
      %v4993 = vpop.f32.mrf.mxu0
      %v4994 = vadd.f32 0.0, %v4993
      %v4995 = vpop.f32.mrf.mxu0
      %4996 = vmatprep.mubr.bf16.mxu0 0
      %4997 = vmatmul.mubr.bf16.gmra.mxu0 %v4884
      %v4998 = vpop.f32.mrf.mxu0
      %v4999 = vadd.f32 0.0, %v4998
      %v5000 = vpop.f32.mrf.mxu0
      %v5001 = vpop.f32.mrf.mxu0
      %v5002 = vadd.f32 0.0, %v5001
      %v5003 = vpop.f32.mrf.mxu0
      %5004 = vmatprep.mubr.bf16.mxu0 0
      %5005 = vmatmul.mubr.bf16.gmra.mxu0 %v4887
      %v5006 = vpop.f32.mrf.mxu0
      %v5007 = vadd.f32 0.0, %v5006
      %v5008 = vpop.f32.mrf.mxu0
      %v5009 = vpop.f32.mrf.mxu0
      %v5010 = vadd.f32 0.0, %v5009
      %v5011 = vpop.f32.mrf.mxu0
      %5012 = vmatprep.mubr.bf16.mxu0 0
      %5013 = vmatmul.mubr.bf16.gmra.mxu0 %v4890
      %v5014 = vpop.f32.mrf.mxu0
      %v5015 = vadd.f32 0.0, %v5014
      %v5016 = vpop.f32.mrf.mxu0
      %v5017 = vpop.f32.mrf.mxu0
      %v5018 = vadd.f32 0.0, %v5017
      %v5019 = vpop.f32.mrf.mxu0
      %5020 = vmatprep.mubr.bf16.mxu0 0
      %5021 = vmatmul.mubr.bf16.gmra.mxu0 %v4893
      %v5022 = vpop.f32.mrf.mxu0
      %v5023 = vadd.f32 0.0, %v5022
      %v5024 = vpop.f32.mrf.mxu0
      %v5025 = vpop.f32.mrf.mxu0
      %v5026 = vadd.f32 0.0, %v5025
      %v5027 = vpop.f32.mrf.mxu0
      %5028 = vmatprep.mubr.bf16.mxu0 0
      %5029 = vmatmul.mubr.bf16.gmra.mxu0 %v4896
      %v5030 = vpop.f32.mrf.mxu0
      %v5031 = vadd.f32 0.0, %v5030
      %v5032 = vpop.f32.mrf.mxu0
      %v5033 = vpop.f32.mrf.mxu0
      %v5034 = vadd.f32 0.0, %v5033
      %v5035 = vpop.f32.mrf.mxu0
      %5036 = vmatprep.mubr.bf16.mxu0 0
      %5037 = vmatmul.mubr.bf16.gmra.mxu0 %v4899
      %v5038 = vpop.f32.mrf.mxu0
      %v5039 = vadd.f32 0.0, %v5038
      %v5040 = vpop.f32.mrf.mxu0
      %v5041 = vpop.f32.mrf.mxu0
      %v5042 = vadd.f32 0.0, %v5041
      %v5043 = vpop.f32.mrf.mxu0
      %5044 = vmatprep.mubr.bf16.mxu0 0
      %5045 = vmatmul.mubr.bf16.gmra.mxu0 %v4902
      %v5046 = vpop.f32.mrf.mxu0
      %v5047 = vadd.f32 0.0, %v5046
      %v5048 = vpop.f32.mrf.mxu0
      %v5049 = vpop.f32.mrf.mxu0
      %v5050 = vadd.f32 0.0, %v5049
      %v5051 = vpop.f32.mrf.mxu0
      %5052 = vmatprep.mubr.bf16.mxu0 0
      %5053 = vmatmul.mubr.bf16.gmra.mxu0 %v4905
      %v5054 = vpop.f32.mrf.mxu0
      %v5055 = vadd.f32 0.0, %v5054
      %v5056 = vpop.f32.mrf.mxu0
      %v5057 = vpop.f32.mrf.mxu0
      %v5058 = vadd.f32 0.0, %v5057
      %v5059 = vpop.f32.mrf.mxu0
      %5060 = vmatprep.mubr.bf16.mxu0 0
      %5061 = vmatmul.mubr.bf16.gmra.mxu0 %v4908
      %v5062 = vpop.f32.mrf.mxu0
      %v5063 = vadd.f32 0.0, %v5062
      %v5064 = vpop.f32.mrf.mxu0
      %v5065 = vpop.f32.mrf.mxu0
      %v5066 = vadd.f32 0.0, %v5065
      %v5067 = vpop.f32.mrf.mxu0
      %5068 = vmatprep.mubr.bf16.mxu0 0
      %5069 = vmatmul.mubr.bf16.gmra.mxu0 %v4911
      %v5070 = vpop.f32.mrf.mxu0
      %v5071 = vadd.f32 0.0, %v5070
      %v5072 = vpop.f32.mrf.mxu0
      %v5073 = vpop.f32.mrf.mxu0
      %v5074 = vadd.f32 0.0, %v5073
      %v5075 = vpop.f32.mrf.mxu0
      %5076 = vdwg.mxu0
      %v5077 = vadd.f32 %v4751, %v4951
      %v5078 = vadd.f32 %v4752, %v4954
      %v5079 = vadd.f32 %v4753, %v4959
      %v5080 = vadd.f32 %v4754, %v4962
      %v5081 = vadd.f32 %v4755, %v4967
      %v5082 = vadd.f32 %v4756, %v4970
      %v5083 = vadd.f32 %v4757, %v4975
      %v5084 = vadd.f32 %v4758, %v4978
      %v5085 = vadd.f32 %v4759, %v4983
      %v5086 = vadd.f32 %v4760, %v4986
      %v5087 = vadd.f32 %v4761, %v4991
      %v5088 = vadd.f32 %v4762, %v4994
      %v5089 = vadd.f32 %v4763, %v4999
      %v5090 = vadd.f32 %v4764, %v5002
      %v5091 = vadd.f32 %v4765, %v5007
      %v5092 = vadd.f32 %v4766, %v5010
      %v5093 = vadd.f32 %v4767, %v5015
      %v5094 = vadd.f32 %v4768, %v5018
      %v5095 = vadd.f32 %v4769, %v5023
      %v5096 = vadd.f32 %v4770, %v5026
      %v5097 = vadd.f32 %v4771, %v5031
      %v5098 = vadd.f32 %v4772, %v5034
      %v5099 = vadd.f32 %v4773, %v5039
      %v5100 = vadd.f32 %v4774, %v5042
      %v5101 = vadd.f32 %v4775, %v5047
      %v5102 = vadd.f32 %v4776, %v5050
      %v5103 = vadd.f32 %v4777, %v5055
      %v5104 = vadd.f32 %v4778, %v5058
      %v5105 = vadd.f32 %v4779, %v5063
      %v5106 = vadd.f32 %v4780, %v5066
      %v5107 = vadd.f32 %v4781, %v5071
      %v5108 = vadd.f32 %v4782, %v5074
      %v5109 = vld [vmem:[#allocation2 + $0x10] sm:$0xf]
      %v5110 = vld [vmem:[#allocation2 + $0x14] sm:$0xf]
      %v5111 = vld [vmem:[#allocation2 + $0x18] sm:$0xf]
      %v5112 = vld [vmem:[#allocation2 + $0x1c] sm:$0xf]
      %v5113 = vld [vmem:[#allocation2 + $0x20] sm:$0xf]
      %v5114 = vld [vmem:[#allocation2 + $0x24] sm:$0xf]
      %v5115 = vld [vmem:[#allocation2 + $0x28] sm:$0xf]
      %v5116 = vld [vmem:[#allocation2 + $0x2c] sm:$0xf]
      %v5117 = vld [vmem:[#allocation2 + $0x30] sm:$0xf]
      %v5118 = vld [vmem:[#allocation2 + $0x34] sm:$0xf]
      %v5119 = vld [vmem:[#allocation2 + $0x38] sm:$0xf]
      %v5120 = vld [vmem:[#allocation2 + $0x3c] sm:$0xf]
      %v5121 = vld [vmem:[#allocation2 + $0x40] sm:$0xf]
      %v5122 = vld [vmem:[#allocation2 + $0x44] sm:$0xf]
      %v5123 = vld [vmem:[#allocation2 + $0x48] sm:$0xf]
      %v5124 = vld [vmem:[#allocation2 + $0x4c] sm:$0xf]
      %v5125 = vld [vmem:[#allocation2 + $0x50] sm:$0xf]
      %v5126 = vld [vmem:[#allocation2 + $0x54] sm:$0xf]
      %v5127 = vld [vmem:[#allocation2 + $0x58] sm:$0xf]
      %v5128 = vld [vmem:[#allocation2 + $0x5c] sm:$0xf]
      %v5129 = vld [vmem:[#allocation2 + $0x60] sm:$0xf]
      %v5130 = vld [vmem:[#allocation2 + $0x64] sm:$0xf]
      %v5131 = vld [vmem:[#allocation2 + $0x68] sm:$0xf]
      %v5132 = vld [vmem:[#allocation2 + $0x6c] sm:$0xf]
      %v5133 = vld [vmem:[#allocation2 + $0x70] sm:$0xf]
      %v5134 = vld [vmem:[#allocation2 + $0x74] sm:$0xf]
      %v5135 = vld [vmem:[#allocation2 + $0x78] sm:$0xf]
      %v5136 = vld [vmem:[#allocation2 + $0x7c] sm:$0xf]
      %v5137 = vld [vmem:[#allocation2 + $0x80] sm:$0xf]
      %v5138 = vld [vmem:[#allocation2 + $0x84] sm:$0xf]
      %v5139 = vld [vmem:[#allocation2 + $0x88] sm:$0xf]
      %v5140 = vld [vmem:[#allocation2 + $0x8c] sm:$0xf]
      %v5141 = vld [vmem:[#allocation2 + $0x90] sm:$0x1]
      %v5142 = vsel %vm3708, %v5109, 0
      %v5143 = vsel %vm3709, %v5110, 0
      %v5144 = vsel %vm3710, %v5111, 0
      %v5145 = vsel %vm3711, %v5112, 0
      %v5146 = vsel %vm3712, %v5113, 0
      %v5147 = vsel %vm3713, %v5114, 0
      %v5148 = vsel %vm3714, %v5115, 0
      %v5149 = vsel %vm3715, %v5116, 0
      %v5150 = vsel %vm3716, %v5117, 0
      %v5151 = vsel %vm3717, %v5118, 0
      %v5152 = vsel %vm3718, %v5119, 0
      %v5153 = vsel %vm3719, %v5120, 0
      %v5154 = vsel %vm3720, %v5121, 0
      %v5155 = vsel %vm3721, %v5122, 0
      %v5156 = vsel %vm3722, %v5123, 0
      %v5157 = vsel %vm3723, %v5124, 0
      %v5158 = vsel %vm3724, %v5125, 0
      %v5159 = vsel %vm3725, %v5126, 0
      %v5160 = vsel %vm3726, %v5127, 0
      %v5161 = vsel %vm3727, %v5128, 0
      %v5162 = vsel %vm3728, %v5129, 0
      %v5163 = vsel %vm3729, %v5130, 0
      %v5164 = vsel %vm3730, %v5131, 0
      %v5165 = vsel %vm3731, %v5132, 0
      %v5166 = vsel %vm3732, %v5133, 0
      %v5167 = vsel %vm3733, %v5134, 0
      %v5168 = vsel %vm3734, %v5135, 0
      %v5169 = vsel %vm3735, %v5136, 0
      %v5170 = vsel %vm3736, %v5137, 0
      %v5171 = vsel %vm3737, %v5138, 0
      %v5172 = vsel %vm3738, %v5139, 0
      %v5173 = vsel %vm3739, %v5140, 0
      %v5174 = vsel %vm3740, %v5141, 0
      %s5175 = scalar_lea.vmem %s2, 5
      %v5176 = vld [vmem:[%s5175] sm:$0x1]
      %v5210 = vunpack.c.l.b16 %v5142
      %v5211 = vunpack.c.l.b16 %v5143
      %v5212 = vunpack.c.l.b16 %v5144
      %v5213 = vunpack.c.l.b16 %v5145
      %v5214 = vunpack.c.l.b16 %v5146
      %v5215 = vunpack.c.l.b16 %v5147
      %v5216 = vunpack.c.l.b16 %v5148
      %v5217 = vunpack.c.l.b16 %v5149
      %v5218 = vunpack.c.l.b16 %v5150
      %v5219 = vunpack.c.l.b16 %v5151
      %v5220 = vunpack.c.l.b16 %v5152
      %v5221 = vunpack.c.l.b16 %v5153
      %v5222 = vunpack.c.l.b16 %v5154
      %v5223 = vunpack.c.l.b16 %v5155
      %v5224 = vunpack.c.l.b16 %v5156
      %v5225 = vunpack.c.l.b16 %v5157
      %v5226 = vunpack.c.l.b16 %v5158
      %v5227 = vunpack.c.l.b16 %v5159
      %v5228 = vunpack.c.l.b16 %v5160
      %v5229 = vunpack.c.l.b16 %v5161
      %v5230 = vunpack.c.l.b16 %v5162
      %v5231 = vunpack.c.l.b16 %v5163
      %v5232 = vunpack.c.l.b16 %v5164
      %v5233 = vunpack.c.l.b16 %v5165
      %v5234 = vunpack.c.l.b16 %v5166
      %v5235 = vunpack.c.l.b16 %v5167
      %v5236 = vunpack.c.l.b16 %v5168
      %v5237 = vunpack.c.l.b16 %v5169
      %v5238 = vunpack.c.l.b16 %v5170
      %v5239 = vunpack.c.l.b16 %v5171
      %v5240 = vunpack.c.l.b16 %v5172
      %v5241 = vunpack.c.l.b16 %v5173
      %v5242 = vunpack.c.l.b16 %v5174
      %v5243 = vpack.c.b16 %v5211, %v5210
      %v5244 = vpack.c.b16 %v5213, %v5212
      %v5245 = vpack.c.b16 %v5215, %v5214
      %v5246 = vpack.c.b16 %v5217, %v5216
      %v5247 = vpack.c.b16 %v5219, %v5218
      %v5248 = vpack.c.b16 %v5221, %v5220
      %v5249 = vpack.c.b16 %v5223, %v5222
      %v5250 = vpack.c.b16 %v5225, %v5224
      %v5251 = vpack.c.b16 %v5227, %v5226
      %v5252 = vpack.c.b16 %v5229, %v5228
      %v5253 = vpack.c.b16 %v5231, %v5230
      %v5254 = vpack.c.b16 %v5233, %v5232
      %v5255 = vpack.c.b16 %v5235, %v5234
      %v5256 = vpack.c.b16 %v5237, %v5236
      %v5257 = vpack.c.b16 %v5239, %v5238
      %v5258 = vpack.c.b16 %v5241, %v5240
      %v5259 = vpack.c.b16 %v5242, %v5242
      %v5261 = vshrl.u32 %v5243, 16
      %v5263 = vshll.u32 %v5243, 16
      %v5265 = vrot.slane %v5263, 1
      %v5266 = vor.u32 %v5261, %v5265
      %v5268 = vshll.u32 %v5244, 16
      %v5270 = vrot.slane %v5268, 1
      %v5271 = vsel %vm3859, %v5266, %v5270
      %v5272 = vshrl.u32 %v5244, 16
      %v5274 = vor.u32 %v5272, %v5270
      %v5276 = vshll.u32 %v5245, 16
      %v5278 = vrot.slane %v5276, 1
      %v5279 = vsel %vm3859, %v5274, %v5278
      %v5280 = vshrl.u32 %v5245, 16
      %v5282 = vor.u32 %v5280, %v5278
      %v5284 = vshll.u32 %v5246, 16
      %v5286 = vrot.slane %v5284, 1
      %v5287 = vsel %vm3859, %v5282, %v5286
      %v5288 = vshrl.u32 %v5246, 16
      %v5290 = vor.u32 %v5288, %v5286
      %v5292 = vshll.u32 %v5247, 16
      %v5294 = vrot.slane %v5292, 1
      %v5295 = vsel %vm3859, %v5290, %v5294
      %v5296 = vshrl.u32 %v5247, 16
      %v5298 = vor.u32 %v5296, %v5294
      %v5300 = vshll.u32 %v5248, 16
      %v5302 = vrot.slane %v5300, 1
      %v5303 = vsel %vm3859, %v5298, %v5302
      %v5304 = vshrl.u32 %v5248, 16
      %v5306 = vor.u32 %v5304, %v5302
      %v5308 = vshll.u32 %v5249, 16
      %v5310 = vrot.slane %v5308, 1
      %v5311 = vsel %vm3859, %v5306, %v5310
      %v5312 = vshrl.u32 %v5249, 16
      %v5314 = vor.u32 %v5312, %v5310
      %v5316 = vshll.u32 %v5250, 16
      %v5318 = vrot.slane %v5316, 1
      %v5319 = vsel %vm3859, %v5314, %v5318
      %v5320 = vshrl.u32 %v5250, 16
      %v5322 = vor.u32 %v5320, %v5318
      %v5324 = vshll.u32 %v5251, 16
      %v5326 = vrot.slane %v5324, 1
      %v5327 = vsel %vm3859, %v5322, %v5326
      %v5328 = vshrl.u32 %v5251, 16
      %v5330 = vor.u32 %v5328, %v5326
      %v5332 = vshll.u32 %v5252, 16
      %v5334 = vrot.slane %v5332, 1
      %v5335 = vsel %vm3859, %v5330, %v5334
      %v5336 = vshrl.u32 %v5252, 16
      %v5338 = vor.u32 %v5336, %v5334
      %v5340 = vshll.u32 %v5253, 16
      %v5342 = vrot.slane %v5340, 1
      %v5343 = vsel %vm3859, %v5338, %v5342
      %v5344 = vshrl.u32 %v5253, 16
      %v5346 = vor.u32 %v5344, %v5342
      %v5348 = vshll.u32 %v5254, 16
      %v5350 = vrot.slane %v5348, 1
      %v5351 = vsel %vm3859, %v5346, %v5350
      %v5352 = vshrl.u32 %v5254, 16
      %v5354 = vor.u32 %v5352, %v5350
      %v5356 = vshll.u32 %v5255, 16
      %v5358 = vrot.slane %v5356, 1
      %v5359 = vsel %vm3859, %v5354, %v5358
      %v5360 = vshrl.u32 %v5255, 16
      %v5362 = vor.u32 %v5360, %v5358
      %v5364 = vshll.u32 %v5256, 16
      %v5366 = vrot.slane %v5364, 1
      %v5367 = vsel %vm3859, %v5362, %v5366
      %v5368 = vshrl.u32 %v5256, 16
      %v5370 = vor.u32 %v5368, %v5366
      %v5372 = vshll.u32 %v5257, 16
      %v5374 = vrot.slane %v5372, 1
      %v5375 = vsel %vm3859, %v5370, %v5374
      %v5376 = vshrl.u32 %v5257, 16
      %v5378 = vor.u32 %v5376, %v5374
      %v5380 = vshll.u32 %v5258, 16
      %v5382 = vrot.slane %v5380, 1
      %v5383 = vsel %vm3859, %v5378, %v5382
      %v5384 = vshrl.u32 %v5258, 16
      %v5386 = vor.u32 %v5384, %v5382
      %v5388 = vshll.u32 %v5259, 16
      %v5390 = vrot.slane %v5388, 1
      %v5391 = vsel %vm3859, %v5386, %v5390
      %v5393 = vsel %vm655, %v5271, 0
      %v5396 = vsel %vm655, %v5279, 0
      %v5399 = vsel %vm655, %v5287, 0
      %v5402 = vsel %vm655, %v5295, 0
      %v5405 = vsel %vm655, %v5303, 0
      %v5408 = vsel %vm655, %v5311, 0
      %v5411 = vsel %vm655, %v5319, 0
      %v5414 = vsel %vm655, %v5327, 0
      %v5417 = vsel %vm655, %v5335, 0
      %v5420 = vsel %vm655, %v5343, 0
      %v5423 = vsel %vm655, %v5351, 0
      %v5426 = vsel %vm655, %v5359, 0
      %v5429 = vsel %vm655, %v5367, 0
      %v5432 = vsel %vm655, %v5375, 0
      %v5435 = vsel %vm655, %v5383, 0
      %v5438 = vsel %vm655, %v5391, 0
      %v5441 = vsel %vm2612, %v5176, 0
      %5443 = vmatprep.subr.bf16.mxu0 0
      %5444 = vmatpush1.bf16.msra.mxu0 0
      %5445 = vmatprep.subr.bf16.mxu0 0
      %5446 = vmatpush1.bf16.msra.mxu0 0
      %5447 = vmatprep.subr.bf16.mxu0 0
      %5448 = vmatpush1.bf16.msra.mxu0 0
      %5449 = vmatprep.subr.bf16.mxu0 0
      %5450 = vmatpush1.bf16.msra.mxu0 0
      %5451 = vmatprep.subr.bf16.mxu0 0
      %5452 = vmatpush1.bf16.msra.mxu0 0
      %5453 = vmatprep.subr.bf16.mxu0 0
      %5454 = vmatpush1.bf16.msra.mxu0 0
      %5455 = vmatprep.subr.bf16.mxu0 0
      %5456 = vmatpush1.bf16.msra.mxu0 0
      %5457 = vmatprep.subr.bf16.mxu0 0
      %5458 = vmatpush1.bf16.msra.mxu0 %v5441
      %5459 = vmatprep.subr.bf16.mxu0 0
      %5460 = vmatpush2.bf16.msra.mxu0 0
      %5461 = vmatprep.subr.bf16.mxu0 0
      %5462 = vmatpush2.bf16.msra.mxu0 0
      %5463 = vmatprep.subr.bf16.mxu0 0
      %5464 = vmatpush2.bf16.msra.mxu0 0
      %5465 = vmatprep.subr.bf16.mxu0 0
      %5466 = vmatpush2.bf16.msra.mxu0 0
      %5467 = vmatprep.subr.bf16.mxu0 0
      %5468 = vmatpush2.bf16.msra.mxu0 0
      %5469 = vmatprep.subr.bf16.mxu0 0
      %5470 = vmatpush2.bf16.msra.mxu0 0
      %5471 = vmatprep.subr.bf16.mxu0 0
      %5472 = vmatpush2.bf16.msra.mxu0 0
      %5473 = vmatprep.subr.bf16.mxu0 0
      %5474 = vmatpush2.bf16.msra.mxu0 0
      %5475 = vmatprep.mubr.bf16.mxu0 0
      %5476 = vmatmul.mubr.bf16.gmra.mxu0 %v5393
      %v5477 = vpop.f32.mrf.mxu0
      %v5478 = vadd.f32 0.0, %v5477
      %v5479 = vpop.f32.mrf.mxu0
      %v5480 = vpop.f32.mrf.mxu0
      %v5481 = vadd.f32 0.0, %v5480
      %v5482 = vpop.f32.mrf.mxu0
      %5483 = vmatprep.mubr.bf16.mxu0 0
      %5484 = vmatmul.mubr.bf16.gmra.mxu0 %v5396
      %v5485 = vpop.f32.mrf.mxu0
      %v5486 = vadd.f32 0.0, %v5485
      %v5487 = vpop.f32.mrf.mxu0
      %v5488 = vpop.f32.mrf.mxu0
      %v5489 = vadd.f32 0.0, %v5488
      %v5490 = vpop.f32.mrf.mxu0
      %5491 = vmatprep.mubr.bf16.mxu0 0
      %5492 = vmatmul.mubr.bf16.gmra.mxu0 %v5399
      %v5493 = vpop.f32.mrf.mxu0
      %v5494 = vadd.f32 0.0, %v5493
      %v5495 = vpop.f32.mrf.mxu0
      %v5496 = vpop.f32.mrf.mxu0
      %v5497 = vadd.f32 0.0, %v5496
      %v5498 = vpop.f32.mrf.mxu0
      %5499 = vmatprep.mubr.bf16.mxu0 0
      %5500 = vmatmul.mubr.bf16.gmra.mxu0 %v5402
      %v5501 = vpop.f32.mrf.mxu0
      %v5502 = vadd.f32 0.0, %v5501
      %v5503 = vpop.f32.mrf.mxu0
      %v5504 = vpop.f32.mrf.mxu0
      %v5505 = vadd.f32 0.0, %v5504
      %v5506 = vpop.f32.mrf.mxu0
      %5507 = vmatprep.mubr.bf16.mxu0 0
      %5508 = vmatmul.mubr.bf16.gmra.mxu0 %v5405
      %v5509 = vpop.f32.mrf.mxu0
      %v5510 = vadd.f32 0.0, %v5509
      %v5511 = vpop.f32.mrf.mxu0
      %v5512 = vpop.f32.mrf.mxu0
      %v5513 = vadd.f32 0.0, %v5512
      %v5514 = vpop.f32.mrf.mxu0
      %5515 = vmatprep.mubr.bf16.mxu0 0
      %5516 = vmatmul.mubr.bf16.gmra.mxu0 %v5408
      %v5517 = vpop.f32.mrf.mxu0
      %v5518 = vadd.f32 0.0, %v5517
      %v5519 = vpop.f32.mrf.mxu0
      %v5520 = vpop.f32.mrf.mxu0
      %v5521 = vadd.f32 0.0, %v5520
      %v5522 = vpop.f32.mrf.mxu0
      %5523 = vmatprep.mubr.bf16.mxu0 0
      %5524 = vmatmul.mubr.bf16.gmra.mxu0 %v5411
      %v5525 = vpop.f32.mrf.mxu0
      %v5526 = vadd.f32 0.0, %v5525
      %v5527 = vpop.f32.mrf.mxu0
      %v5528 = vpop.f32.mrf.mxu0
      %v5529 = vadd.f32 0.0, %v5528
      %v5530 = vpop.f32.mrf.mxu0
      %5531 = vmatprep.mubr.bf16.mxu0 0
      %5532 = vmatmul.mubr.bf16.gmra.mxu0 %v5414
      %v5533 = vpop.f32.mrf.mxu0
      %v5534 = vadd.f32 0.0, %v5533
      %v5535 = vpop.f32.mrf.mxu0
      %v5536 = vpop.f32.mrf.mxu0
      %v5537 = vadd.f32 0.0, %v5536
      %v5538 = vpop.f32.mrf.mxu0
      %5539 = vmatprep.mubr.bf16.mxu0 0
      %5540 = vmatmul.mubr.bf16.gmra.mxu0 %v5417
      %v5541 = vpop.f32.mrf.mxu0
      %v5542 = vadd.f32 0.0, %v5541
      %v5543 = vpop.f32.mrf.mxu0
      %v5544 = vpop.f32.mrf.mxu0
      %v5545 = vadd.f32 0.0, %v5544
      %v5546 = vpop.f32.mrf.mxu0
      %5547 = vmatprep.mubr.bf16.mxu0 0
      %5548 = vmatmul.mubr.bf16.gmra.mxu0 %v5420
      %v5549 = vpop.f32.mrf.mxu0
      %v5550 = vadd.f32 0.0, %v5549
      %v5551 = vpop.f32.mrf.mxu0
      %v5552 = vpop.f32.mrf.mxu0
      %v5553 = vadd.f32 0.0, %v5552
      %v5554 = vpop.f32.mrf.mxu0
      %5555 = vmatprep.mubr.bf16.mxu0 0
      %5556 = vmatmul.mubr.bf16.gmra.mxu0 %v5423
      %v5557 = vpop.f32.mrf.mxu0
      %v5558 = vadd.f32 0.0, %v5557
      %v5559 = vpop.f32.mrf.mxu0
      %v5560 = vpop.f32.mrf.mxu0
      %v5561 = vadd.f32 0.0, %v5560
      %v5562 = vpop.f32.mrf.mxu0
      %5563 = vmatprep.mubr.bf16.mxu0 0
      %5564 = vmatmul.mubr.bf16.gmra.mxu0 %v5426
      %v5565 = vpop.f32.mrf.mxu0
      %v5566 = vadd.f32 0.0, %v5565
      %v5567 = vpop.f32.mrf.mxu0
      %v5568 = vpop.f32.mrf.mxu0
      %v5569 = vadd.f32 0.0, %v5568
      %v5570 = vpop.f32.mrf.mxu0
      %5571 = vmatprep.mubr.bf16.mxu0 0
      %5572 = vmatmul.mubr.bf16.gmra.mxu0 %v5429
      %v5573 = vpop.f32.mrf.mxu0
      %v5574 = vadd.f32 0.0, %v5573
      %v5575 = vpop.f32.mrf.mxu0
      %v5576 = vpop.f32.mrf.mxu0
      %v5577 = vadd.f32 0.0, %v5576
      %v5578 = vpop.f32.mrf.mxu0
      %5579 = vmatprep.mubr.bf16.mxu0 0
      %5580 = vmatmul.mubr.bf16.gmra.mxu0 %v5432
      %v5581 = vpop.f32.mrf.mxu0
      %v5582 = vadd.f32 0.0, %v5581
      %v5583 = vpop.f32.mrf.mxu0
      %v5584 = vpop.f32.mrf.mxu0
      %v5585 = vadd.f32 0.0, %v5584
      %v5586 = vpop.f32.mrf.mxu0
      %5587 = vmatprep.mubr.bf16.mxu0 0
      %5588 = vmatmul.mubr.bf16.gmra.mxu0 %v5435
      %v5589 = vpop.f32.mrf.mxu0
      %v5590 = vadd.f32 0.0, %v5589
      %v5591 = vpop.f32.mrf.mxu0
      %v5592 = vpop.f32.mrf.mxu0
      %v5593 = vadd.f32 0.0, %v5592
      %v5594 = vpop.f32.mrf.mxu0
      %5595 = vmatprep.mubr.bf16.mxu0 0
      %5596 = vmatmul.mubr.bf16.gmra.mxu0 %v5438
      %v5597 = vpop.f32.mrf.mxu0
      %v5598 = vadd.f32 0.0, %v5597
      %v5599 = vpop.f32.mrf.mxu0
      %v5600 = vpop.f32.mrf.mxu0
      %v5601 = vadd.f32 0.0, %v5600
      %v5602 = vpop.f32.mrf.mxu0
      %5603 = vdwg.mxu0
      %v5604 = vadd.f32 %v5077, %v5478
      %v5605 = vadd.f32 %v5078, %v5481
      %v5606 = vadd.f32 %v5079, %v5486
      %v5607 = vadd.f32 %v5080, %v5489
      %v5608 = vadd.f32 %v5081, %v5494
      %v5609 = vadd.f32 %v5082, %v5497
      %v5610 = vadd.f32 %v5083, %v5502
      %v5611 = vadd.f32 %v5084, %v5505
      %v5612 = vadd.f32 %v5085, %v5510
      %v5613 = vadd.f32 %v5086, %v5513
      %v5614 = vadd.f32 %v5087, %v5518
      %v5615 = vadd.f32 %v5088, %v5521
      %v5616 = vadd.f32 %v5089, %v5526
      %v5617 = vadd.f32 %v5090, %v5529
      %v5618 = vadd.f32 %v5091, %v5534
      %v5619 = vadd.f32 %v5092, %v5537
      %v5620 = vadd.f32 %v5093, %v5542
      %v5621 = vadd.f32 %v5094, %v5545
      %v5622 = vadd.f32 %v5095, %v5550
      %v5623 = vadd.f32 %v5096, %v5553
      %v5624 = vadd.f32 %v5097, %v5558
      %v5625 = vadd.f32 %v5098, %v5561
      %v5626 = vadd.f32 %v5099, %v5566
      %v5627 = vadd.f32 %v5100, %v5569
      %v5628 = vadd.f32 %v5101, %v5574
      %v5629 = vadd.f32 %v5102, %v5577
      %v5630 = vadd.f32 %v5103, %v5582
      %v5631 = vadd.f32 %v5104, %v5585
      %v5632 = vadd.f32 %v5105, %v5590
      %v5633 = vadd.f32 %v5106, %v5593
      %v5634 = vadd.f32 %v5107, %v5598
      %v5635 = vadd.f32 %v5108, %v5601
      %v5636 = vld [vmem:[#allocation2 + $0x14] sm:$0x8]
      %v5637 = vld [vmem:[#allocation2 + $0x18] sm:$0xf]
      %v5638 = vld [vmem:[#allocation2 + $0x1c] sm:$0xf]
      %v5639 = vld [vmem:[#allocation2 + $0x20] sm:$0xf]
      %v5640 = vld [vmem:[#allocation2 + $0x24] sm:$0xf]
      %v5641 = vld [vmem:[#allocation2 + $0x28] sm:$0xf]
      %v5642 = vld [vmem:[#allocation2 + $0x2c] sm:$0xf]
      %v5643 = vld [vmem:[#allocation2 + $0x30] sm:$0xf]
      %v5644 = vld [vmem:[#allocation2 + $0x34] sm:$0xf]
      %v5645 = vld [vmem:[#allocation2 + $0x38] sm:$0xf]
      %v5646 = vld [vmem:[#allocation2 + $0x3c] sm:$0xf]
      %v5647 = vld [vmem:[#allocation2 + $0x40] sm:$0xf]
      %v5648 = vld [vmem:[#allocation2 + $0x44] sm:$0xf]
      %v5649 = vld [vmem:[#allocation2 + $0x48] sm:$0xf]
      %v5650 = vld [vmem:[#allocation2 + $0x4c] sm:$0xf]
      %v5651 = vld [vmem:[#allocation2 + $0x50] sm:$0xf]
      %v5652 = vld [vmem:[#allocation2 + $0x54] sm:$0xf]
      %v5653 = vld [vmem:[#allocation2 + $0x58] sm:$0xf]
      %v5654 = vld [vmem:[#allocation2 + $0x5c] sm:$0xf]
      %v5655 = vld [vmem:[#allocation2 + $0x60] sm:$0xf]
      %v5656 = vld [vmem:[#allocation2 + $0x64] sm:$0xf]
      %v5657 = vld [vmem:[#allocation2 + $0x68] sm:$0xf]
      %v5658 = vld [vmem:[#allocation2 + $0x6c] sm:$0xf]
      %v5659 = vld [vmem:[#allocation2 + $0x70] sm:$0xf]
      %v5660 = vld [vmem:[#allocation2 + $0x74] sm:$0xf]
      %v5661 = vld [vmem:[#allocation2 + $0x78] sm:$0xf]
      %v5662 = vld [vmem:[#allocation2 + $0x7c] sm:$0xf]
      %v5663 = vld [vmem:[#allocation2 + $0x80] sm:$0xf]
      %v5664 = vld [vmem:[#allocation2 + $0x84] sm:$0xf]
      %v5665 = vld [vmem:[#allocation2 + $0x88] sm:$0xf]
      %v5666 = vld [vmem:[#allocation2 + $0x8c] sm:$0xf]
      %v5667 = vld [vmem:[#allocation2 + $0x90] sm:$0xf]
      %v5668 = vld [vmem:[#allocation2 + $0x94] sm:$0xf]
      %v5669 = vsel %vm2415, %v5636, 0
      %v5670 = vsel %vm2416, %v5637, 0
      %v5671 = vsel %vm2417, %v5638, 0
      %v5672 = vsel %vm2418, %v5639, 0
      %v5673 = vsel %vm2419, %v5640, 0
      %v5674 = vsel %vm2420, %v5641, 0
      %v5675 = vsel %vm2421, %v5642, 0
      %v5676 = vsel %vm2422, %v5643, 0
      %v5677 = vsel %vm2423, %v5644, 0
      %v5678 = vsel %vm2424, %v5645, 0
      %v5679 = vsel %vm2425, %v5646, 0
      %v5680 = vsel %vm2426, %v5647, 0
      %v5681 = vsel %vm2427, %v5648, 0
      %v5682 = vsel %vm2428, %v5649, 0
      %v5683 = vsel %vm2429, %v5650, 0
      %v5684 = vsel %vm2430, %v5651, 0
      %v5685 = vsel %vm2431, %v5652, 0
      %v5686 = vsel %vm2432, %v5653, 0
      %v5687 = vsel %vm2433, %v5654, 0
      %v5688 = vsel %vm2434, %v5655, 0
      %v5689 = vsel %vm2435, %v5656, 0
      %v5690 = vsel %vm2436, %v5657, 0
      %v5691 = vsel %vm2437, %v5658, 0
      %v5692 = vsel %vm2438, %v5659, 0
      %v5693 = vsel %vm2439, %v5660, 0
      %v5694 = vsel %vm2440, %v5661, 0
      %v5695 = vsel %vm2441, %v5662, 0
      %v5696 = vsel %vm2442, %v5663, 0
      %v5697 = vsel %vm2443, %v5664, 0
      %v5698 = vsel %vm2444, %v5665, 0
      %v5699 = vsel %vm2445, %v5666, 0
      %v5700 = vsel %vm2446, %v5667, 0
      %v5701 = vsel %vm2447, %v5668, 0
      %s5702 = scalar_lea.vmem %s2, 6
      %v5703 = vld [vmem:[%s5702] sm:$0x1]
      %v5737 = vunpack.c.l.b16 %v5669
      %v5738 = vunpack.c.l.b16 %v5670
      %v5739 = vunpack.c.l.b16 %v5671
      %v5740 = vunpack.c.l.b16 %v5672
      %v5741 = vunpack.c.l.b16 %v5673
      %v5742 = vunpack.c.l.b16 %v5674
      %v5743 = vunpack.c.l.b16 %v5675
      %v5744 = vunpack.c.l.b16 %v5676
      %v5745 = vunpack.c.l.b16 %v5677
      %v5746 = vunpack.c.l.b16 %v5678
      %v5747 = vunpack.c.l.b16 %v5679
      %v5748 = vunpack.c.l.b16 %v5680
      %v5749 = vunpack.c.l.b16 %v5681
      %v5750 = vunpack.c.l.b16 %v5682
      %v5751 = vunpack.c.l.b16 %v5683
      %v5752 = vunpack.c.l.b16 %v5684
      %v5753 = vunpack.c.l.b16 %v5685
      %v5754 = vunpack.c.l.b16 %v5686
      %v5755 = vunpack.c.l.b16 %v5687
      %v5756 = vunpack.c.l.b16 %v5688
      %v5757 = vunpack.c.l.b16 %v5689
      %v5758 = vunpack.c.l.b16 %v5690
      %v5759 = vunpack.c.l.b16 %v5691
      %v5760 = vunpack.c.l.b16 %v5692
      %v5761 = vunpack.c.l.b16 %v5693
      %v5762 = vunpack.c.l.b16 %v5694
      %v5763 = vunpack.c.l.b16 %v5695
      %v5764 = vunpack.c.l.b16 %v5696
      %v5765 = vunpack.c.l.b16 %v5697
      %v5766 = vunpack.c.l.b16 %v5698
      %v5767 = vunpack.c.l.b16 %v5699
      %v5768 = vunpack.c.l.b16 %v5700
      %v5769 = vunpack.c.l.b16 %v5701
      %v5770 = vpack.c.b16 %v5738, %v5737
      %v5771 = vpack.c.b16 %v5740, %v5739
      %v5772 = vpack.c.b16 %v5742, %v5741
      %v5773 = vpack.c.b16 %v5744, %v5743
      %v5774 = vpack.c.b16 %v5746, %v5745
      %v5775 = vpack.c.b16 %v5748, %v5747
      %v5776 = vpack.c.b16 %v5750, %v5749
      %v5777 = vpack.c.b16 %v5752, %v5751
      %v5778 = vpack.c.b16 %v5754, %v5753
      %v5779 = vpack.c.b16 %v5756, %v5755
      %v5780 = vpack.c.b16 %v5758, %v5757
      %v5781 = vpack.c.b16 %v5760, %v5759
      %v5782 = vpack.c.b16 %v5762, %v5761
      %v5783 = vpack.c.b16 %v5764, %v5763
      %v5784 = vpack.c.b16 %v5766, %v5765
      %v5785 = vpack.c.b16 %v5768, %v5767
      %v5786 = vpack.c.b16 %v5769, %v5769
      %v5788 = vshrl.u32 %v5770, 16
      %v5790 = vrot.slane %v5788, 3
      %v5791 = vshll.u32 %v5770, 16
      %v5793 = vrot.slane %v5791, 4
      %v5794 = vor.u32 %v5790, %v5793
      %v5796 = vshrl.u32 %v5771, 16
      %v5798 = vrot.slane %v5796, 3
      %v5799 = vshll.u32 %v5771, 16
      %v5801 = vrot.slane %v5799, 4
      %v5802 = vor.u32 %v5798, %v5801
      %v5803 = vsel %vm2860, %v5794, %v5802
      %v5805 = vshrl.u32 %v5772, 16
      %v5807 = vrot.slane %v5805, 3
      %v5808 = vshll.u32 %v5772, 16
      %v5810 = vrot.slane %v5808, 4
      %v5811 = vor.u32 %v5807, %v5810
      %v5812 = vsel %vm2860, %v5802, %v5811
      %v5814 = vshrl.u32 %v5773, 16
      %v5816 = vrot.slane %v5814, 3
      %v5817 = vshll.u32 %v5773, 16
      %v5819 = vrot.slane %v5817, 4
      %v5820 = vor.u32 %v5816, %v5819
      %v5821 = vsel %vm2860, %v5811, %v5820
      %v5823 = vshrl.u32 %v5774, 16
      %v5825 = vrot.slane %v5823, 3
      %v5826 = vshll.u32 %v5774, 16
      %v5828 = vrot.slane %v5826, 4
      %v5829 = vor.u32 %v5825, %v5828
      %v5830 = vsel %vm2860, %v5820, %v5829
      %v5832 = vshrl.u32 %v5775, 16
      %v5834 = vrot.slane %v5832, 3
      %v5835 = vshll.u32 %v5775, 16
      %v5837 = vrot.slane %v5835, 4
      %v5838 = vor.u32 %v5834, %v5837
      %v5839 = vsel %vm2860, %v5829, %v5838
      %v5841 = vshrl.u32 %v5776, 16
      %v5843 = vrot.slane %v5841, 3
      %v5844 = vshll.u32 %v5776, 16
      %v5846 = vrot.slane %v5844, 4
      %v5847 = vor.u32 %v5843, %v5846
      %v5848 = vsel %vm2860, %v5838, %v5847
      %v5850 = vshrl.u32 %v5777, 16
      %v5852 = vrot.slane %v5850, 3
      %v5853 = vshll.u32 %v5777, 16
      %v5855 = vrot.slane %v5853, 4
      %v5856 = vor.u32 %v5852, %v5855
      %v5857 = vsel %vm2860, %v5847, %v5856
      %v5859 = vshrl.u32 %v5778, 16
      %v5861 = vrot.slane %v5859, 3
      %v5862 = vshll.u32 %v5778, 16
      %v5864 = vrot.slane %v5862, 4
      %v5865 = vor.u32 %v5861, %v5864
      %v5866 = vsel %vm2860, %v5856, %v5865
      %v5868 = vshrl.u32 %v5779, 16
      %v5870 = vrot.slane %v5868, 3
      %v5871 = vshll.u32 %v5779, 16
      %v5873 = vrot.slane %v5871, 4
      %v5874 = vor.u32 %v5870, %v5873
      %v5875 = vsel %vm2860, %v5865, %v5874
      %v5877 = vshrl.u32 %v5780, 16
      %v5879 = vrot.slane %v5877, 3
      %v5880 = vshll.u32 %v5780, 16
      %v5882 = vrot.slane %v5880, 4
      %v5883 = vor.u32 %v5879, %v5882
      %v5884 = vsel %vm2860, %v5874, %v5883
      %v5886 = vshrl.u32 %v5781, 16
      %v5888 = vrot.slane %v5886, 3
      %v5889 = vshll.u32 %v5781, 16
      %v5891 = vrot.slane %v5889, 4
      %v5892 = vor.u32 %v5888, %v5891
      %v5893 = vsel %vm2860, %v5883, %v5892
      %v5895 = vshrl.u32 %v5782, 16
      %v5897 = vrot.slane %v5895, 3
      %v5898 = vshll.u32 %v5782, 16
      %v5900 = vrot.slane %v5898, 4
      %v5901 = vor.u32 %v5897, %v5900
      %v5902 = vsel %vm2860, %v5892, %v5901
      %v5904 = vshrl.u32 %v5783, 16
      %v5906 = vrot.slane %v5904, 3
      %v5907 = vshll.u32 %v5783, 16
      %v5909 = vrot.slane %v5907, 4
      %v5910 = vor.u32 %v5906, %v5909
      %v5911 = vsel %vm2860, %v5901, %v5910
      %v5913 = vshrl.u32 %v5784, 16
      %v5915 = vrot.slane %v5913, 3
      %v5916 = vshll.u32 %v5784, 16
      %v5918 = vrot.slane %v5916, 4
      %v5919 = vor.u32 %v5915, %v5918
      %v5920 = vsel %vm2860, %v5910, %v5919
      %v5922 = vshrl.u32 %v5785, 16
      %v5924 = vrot.slane %v5922, 3
      %v5925 = vshll.u32 %v5785, 16
      %v5927 = vrot.slane %v5925, 4
      %v5928 = vor.u32 %v5924, %v5927
      %v5929 = vsel %vm2860, %v5919, %v5928
      %v5931 = vshrl.u32 %v5786, 16
      %v5933 = vrot.slane %v5931, 3
      %v5934 = vshll.u32 %v5786, 16
      %v5936 = vrot.slane %v5934, 4
      %v5937 = vor.u32 %v5933, %v5936
      %v5938 = vsel %vm2860, %v5928, %v5937
      %v5940 = vsel %vm655, %v5803, 0
      %v5943 = vsel %vm655, %v5812, 0
      %v5946 = vsel %vm655, %v5821, 0
      %v5949 = vsel %vm655, %v5830, 0
      %v5952 = vsel %vm655, %v5839, 0
      %v5955 = vsel %vm655, %v5848, 0
      %v5958 = vsel %vm655, %v5857, 0
      %v5961 = vsel %vm655, %v5866, 0
      %v5964 = vsel %vm655, %v5875, 0
      %v5967 = vsel %vm655, %v5884, 0
      %v5970 = vsel %vm655, %v5893, 0
      %v5973 = vsel %vm655, %v5902, 0
      %v5976 = vsel %vm655, %v5911, 0
      %v5979 = vsel %vm655, %v5920, 0
      %v5982 = vsel %vm655, %v5929, 0
      %v5985 = vsel %vm655, %v5938, 0
      %v5988 = vsel %vm2612, %v5703, 0
      %5990 = vmatprep.subr.bf16.mxu0 0
      %5991 = vmatpush1.bf16.msra.mxu0 0
      %5992 = vmatprep.subr.bf16.mxu0 0
      %5993 = vmatpush1.bf16.msra.mxu0 0
      %5994 = vmatprep.subr.bf16.mxu0 0
      %5995 = vmatpush1.bf16.msra.mxu0 0
      %5996 = vmatprep.subr.bf16.mxu0 0
      %5997 = vmatpush1.bf16.msra.mxu0 0
      %5998 = vmatprep.subr.bf16.mxu0 0
      %5999 = vmatpush1.bf16.msra.mxu0 0
      %6000 = vmatprep.subr.bf16.mxu0 0
      %6001 = vmatpush1.bf16.msra.mxu0 0
      %6002 = vmatprep.subr.bf16.mxu0 0
      %6003 = vmatpush1.bf16.msra.mxu0 0
      %6004 = vmatprep.subr.bf16.mxu0 0
      %6005 = vmatpush1.bf16.msra.mxu0 %v5988
      %6006 = vmatprep.subr.bf16.mxu0 0
      %6007 = vmatpush2.bf16.msra.mxu0 0
      %6008 = vmatprep.subr.bf16.mxu0 0
      %6009 = vmatpush2.bf16.msra.mxu0 0
      %6010 = vmatprep.subr.bf16.mxu0 0
      %6011 = vmatpush2.bf16.msra.mxu0 0
      %6012 = vmatprep.subr.bf16.mxu0 0
      %6013 = vmatpush2.bf16.msra.mxu0 0
      %6014 = vmatprep.subr.bf16.mxu0 0
      %6015 = vmatpush2.bf16.msra.mxu0 0
      %6016 = vmatprep.subr.bf16.mxu0 0
      %6017 = vmatpush2.bf16.msra.mxu0 0
      %6018 = vmatprep.subr.bf16.mxu0 0
      %6019 = vmatpush2.bf16.msra.mxu0 0
      %6020 = vmatprep.subr.bf16.mxu0 0
      %6021 = vmatpush2.bf16.msra.mxu0 0
      %6022 = vmatprep.mubr.bf16.mxu0 0
      %6023 = vmatmul.mubr.bf16.gmra.mxu0 %v5940
      %v6024 = vpop.f32.mrf.mxu0
      %v6025 = vadd.f32 0.0, %v6024
      %v6026 = vpop.f32.mrf.mxu0
      %v6027 = vpop.f32.mrf.mxu0
      %v6028 = vadd.f32 0.0, %v6027
      %v6029 = vpop.f32.mrf.mxu0
      %6030 = vmatprep.mubr.bf16.mxu0 0
      %6031 = vmatmul.mubr.bf16.gmra.mxu0 %v5943
      %v6032 = vpop.f32.mrf.mxu0
      %v6033 = vadd.f32 0.0, %v6032
      %v6034 = vpop.f32.mrf.mxu0
      %v6035 = vpop.f32.mrf.mxu0
      %v6036 = vadd.f32 0.0, %v6035
      %v6037 = vpop.f32.mrf.mxu0
      %6038 = vmatprep.mubr.bf16.mxu0 0
      %6039 = vmatmul.mubr.bf16.gmra.mxu0 %v5946
      %v6040 = vpop.f32.mrf.mxu0
      %v6041 = vadd.f32 0.0, %v6040
      %v6042 = vpop.f32.mrf.mxu0
      %v6043 = vpop.f32.mrf.mxu0
      %v6044 = vadd.f32 0.0, %v6043
      %v6045 = vpop.f32.mrf.mxu0
      %6046 = vmatprep.mubr.bf16.mxu0 0
      %6047 = vmatmul.mubr.bf16.gmra.mxu0 %v5949
      %v6048 = vpop.f32.mrf.mxu0
      %v6049 = vadd.f32 0.0, %v6048
      %v6050 = vpop.f32.mrf.mxu0
      %v6051 = vpop.f32.mrf.mxu0
      %v6052 = vadd.f32 0.0, %v6051
      %v6053 = vpop.f32.mrf.mxu0
      %6054 = vmatprep.mubr.bf16.mxu0 0
      %6055 = vmatmul.mubr.bf16.gmra.mxu0 %v5952
      %v6056 = vpop.f32.mrf.mxu0
      %v6057 = vadd.f32 0.0, %v6056
      %v6058 = vpop.f32.mrf.mxu0
      %v6059 = vpop.f32.mrf.mxu0
      %v6060 = vadd.f32 0.0, %v6059
      %v6061 = vpop.f32.mrf.mxu0
      %6062 = vmatprep.mubr.bf16.mxu0 0
      %6063 = vmatmul.mubr.bf16.gmra.mxu0 %v5955
      %v6064 = vpop.f32.mrf.mxu0
      %v6065 = vadd.f32 0.0, %v6064
      %v6066 = vpop.f32.mrf.mxu0
      %v6067 = vpop.f32.mrf.mxu0
      %v6068 = vadd.f32 0.0, %v6067
      %v6069 = vpop.f32.mrf.mxu0
      %6070 = vmatprep.mubr.bf16.mxu0 0
      %6071 = vmatmul.mubr.bf16.gmra.mxu0 %v5958
      %v6072 = vpop.f32.mrf.mxu0
      %v6073 = vadd.f32 0.0, %v6072
      %v6074 = vpop.f32.mrf.mxu0
      %v6075 = vpop.f32.mrf.mxu0
      %v6076 = vadd.f32 0.0, %v6075
      %v6077 = vpop.f32.mrf.mxu0
      %6078 = vmatprep.mubr.bf16.mxu0 0
      %6079 = vmatmul.mubr.bf16.gmra.mxu0 %v5961
      %v6080 = vpop.f32.mrf.mxu0
      %v6081 = vadd.f32 0.0, %v6080
      %v6082 = vpop.f32.mrf.mxu0
      %v6083 = vpop.f32.mrf.mxu0
      %v6084 = vadd.f32 0.0, %v6083
      %v6085 = vpop.f32.mrf.mxu0
      %6086 = vmatprep.mubr.bf16.mxu0 0
      %6087 = vmatmul.mubr.bf16.gmra.mxu0 %v5964
      %v6088 = vpop.f32.mrf.mxu0
      %v6089 = vadd.f32 0.0, %v6088
      %v6090 = vpop.f32.mrf.mxu0
      %v6091 = vpop.f32.mrf.mxu0
      %v6092 = vadd.f32 0.0, %v6091
      %v6093 = vpop.f32.mrf.mxu0
      %6094 = vmatprep.mubr.bf16.mxu0 0
      %6095 = vmatmul.mubr.bf16.gmra.mxu0 %v5967
      %v6096 = vpop.f32.mrf.mxu0
      %v6097 = vadd.f32 0.0, %v6096
      %v6098 = vpop.f32.mrf.mxu0
      %v6099 = vpop.f32.mrf.mxu0
      %v6100 = vadd.f32 0.0, %v6099
      %v6101 = vpop.f32.mrf.mxu0
      %6102 = vmatprep.mubr.bf16.mxu0 0
      %6103 = vmatmul.mubr.bf16.gmra.mxu0 %v5970
      %v6104 = vpop.f32.mrf.mxu0
      %v6105 = vadd.f32 0.0, %v6104
      %v6106 = vpop.f32.mrf.mxu0
      %v6107 = vpop.f32.mrf.mxu0
      %v6108 = vadd.f32 0.0, %v6107
      %v6109 = vpop.f32.mrf.mxu0
      %6110 = vmatprep.mubr.bf16.mxu0 0
      %6111 = vmatmul.mubr.bf16.gmra.mxu0 %v5973
      %v6112 = vpop.f32.mrf.mxu0
      %v6113 = vadd.f32 0.0, %v6112
      %v6114 = vpop.f32.mrf.mxu0
      %v6115 = vpop.f32.mrf.mxu0
      %v6116 = vadd.f32 0.0, %v6115
      %v6117 = vpop.f32.mrf.mxu0
      %6118 = vmatprep.mubr.bf16.mxu0 0
      %6119 = vmatmul.mubr.bf16.gmra.mxu0 %v5976
      %v6120 = vpop.f32.mrf.mxu0
      %v6121 = vadd.f32 0.0, %v6120
      %v6122 = vpop.f32.mrf.mxu0
      %v6123 = vpop.f32.mrf.mxu0
      %v6124 = vadd.f32 0.0, %v6123
      %v6125 = vpop.f32.mrf.mxu0
      %6126 = vmatprep.mubr.bf16.mxu0 0
      %6127 = vmatmul.mubr.bf16.gmra.mxu0 %v5979
      %v6128 = vpop.f32.mrf.mxu0
      %v6129 = vadd.f32 0.0, %v6128
      %v6130 = vpop.f32.mrf.mxu0
      %v6131 = vpop.f32.mrf.mxu0
      %v6132 = vadd.f32 0.0, %v6131
      %v6133 = vpop.f32.mrf.mxu0
      %6134 = vmatprep.mubr.bf16.mxu0 0
      %6135 = vmatmul.mubr.bf16.gmra.mxu0 %v5982
      %v6136 = vpop.f32.mrf.mxu0
      %v6137 = vadd.f32 0.0, %v6136
      %v6138 = vpop.f32.mrf.mxu0
      %v6139 = vpop.f32.mrf.mxu0
      %v6140 = vadd.f32 0.0, %v6139
      %v6141 = vpop.f32.mrf.mxu0
      %6142 = vmatprep.mubr.bf16.mxu0 0
      %6143 = vmatmul.mubr.bf16.gmra.mxu0 %v5985
      %v6144 = vpop.f32.mrf.mxu0
      %v6145 = vadd.f32 0.0, %v6144
      %v6146 = vpop.f32.mrf.mxu0
      %v6147 = vpop.f32.mrf.mxu0
      %v6148 = vadd.f32 0.0, %v6147
      %v6149 = vpop.f32.mrf.mxu0
      %6150 = vdwg.mxu0
      %v6151 = vadd.f32 %v5604, %v6025
      %v6152 = vadd.f32 %v5605, %v6028
      %v6153 = vadd.f32 %v5606, %v6033
      %v6154 = vadd.f32 %v5607, %v6036
      %v6155 = vadd.f32 %v5608, %v6041
      %v6156 = vadd.f32 %v5609, %v6044
      %v6157 = vadd.f32 %v5610, %v6049
      %v6158 = vadd.f32 %v5611, %v6052
      %v6159 = vadd.f32 %v5612, %v6057
      %v6160 = vadd.f32 %v5613, %v6060
      %v6161 = vadd.f32 %v5614, %v6065
      %v6162 = vadd.f32 %v5615, %v6068
      %v6163 = vadd.f32 %v5616, %v6073
      %v6164 = vadd.f32 %v5617, %v6076
      %v6165 = vadd.f32 %v5618, %v6081
      %v6166 = vadd.f32 %v5619, %v6084
      %v6167 = vadd.f32 %v5620, %v6089
      %v6168 = vadd.f32 %v5621, %v6092
      %v6169 = vadd.f32 %v5622, %v6097
      %v6170 = vadd.f32 %v5623, %v6100
      %v6171 = vadd.f32 %v5624, %v6105
      %v6172 = vadd.f32 %v5625, %v6108
      %v6173 = vadd.f32 %v5626, %v6113
      %v6174 = vadd.f32 %v5627, %v6116
      %v6175 = vadd.f32 %v5628, %v6121
      %v6176 = vadd.f32 %v5629, %v6124
      %v6177 = vadd.f32 %v5630, %v6129
      %v6178 = vadd.f32 %v5631, %v6132
      %v6179 = vadd.f32 %v5632, %v6137
      %v6180 = vadd.f32 %v5633, %v6140
      %v6181 = vadd.f32 %v5634, %v6145
      %v6182 = vadd.f32 %v5635, %v6148
      %s6183 = scalar_lea.vmem %s2, 7
      %v6184 = vld [vmem:[%s6183] sm:$0x1]
      %v6217 = vunpack.c.l.b16 %v5637
      %v6218 = vunpack.c.l.b16 %v5638
      %v6219 = vunpack.c.l.b16 %v5639
      %v6220 = vunpack.c.l.b16 %v5640
      %v6221 = vunpack.c.l.b16 %v5641
      %v6222 = vunpack.c.l.b16 %v5642
      %v6223 = vunpack.c.l.b16 %v5643
      %v6224 = vunpack.c.l.b16 %v5644
      %v6225 = vunpack.c.l.b16 %v5645
      %v6226 = vunpack.c.l.b16 %v5646
      %v6227 = vunpack.c.l.b16 %v5647
      %v6228 = vunpack.c.l.b16 %v5648
      %v6229 = vunpack.c.l.b16 %v5649
      %v6230 = vunpack.c.l.b16 %v5650
      %v6231 = vunpack.c.l.b16 %v5651
      %v6232 = vunpack.c.l.b16 %v5652
      %v6233 = vunpack.c.l.b16 %v5653
      %v6234 = vunpack.c.l.b16 %v5654
      %v6235 = vunpack.c.l.b16 %v5655
      %v6236 = vunpack.c.l.b16 %v5656
      %v6237 = vunpack.c.l.b16 %v5657
      %v6238 = vunpack.c.l.b16 %v5658
      %v6239 = vunpack.c.l.b16 %v5659
      %v6240 = vunpack.c.l.b16 %v5660
      %v6241 = vunpack.c.l.b16 %v5661
      %v6242 = vunpack.c.l.b16 %v5662
      %v6243 = vunpack.c.l.b16 %v5663
      %v6244 = vunpack.c.l.b16 %v5664
      %v6245 = vunpack.c.l.b16 %v5665
      %v6246 = vunpack.c.l.b16 %v5666
      %v6247 = vunpack.c.l.b16 %v5667
      %v6248 = vunpack.c.l.b16 %v5668
      %v6249 = vpack.c.b16 %v6218, %v6217
      %v6250 = vpack.c.b16 %v6220, %v6219
      %v6251 = vpack.c.b16 %v6222, %v6221
      %v6252 = vpack.c.b16 %v6224, %v6223
      %v6253 = vpack.c.b16 %v6226, %v6225
      %v6254 = vpack.c.b16 %v6228, %v6227
      %v6255 = vpack.c.b16 %v6230, %v6229
      %v6256 = vpack.c.b16 %v6232, %v6231
      %v6257 = vpack.c.b16 %v6234, %v6233
      %v6258 = vpack.c.b16 %v6236, %v6235
      %v6259 = vpack.c.b16 %v6238, %v6237
      %v6260 = vpack.c.b16 %v6240, %v6239
      %v6261 = vpack.c.b16 %v6242, %v6241
      %v6262 = vpack.c.b16 %v6244, %v6243
      %v6263 = vpack.c.b16 %v6246, %v6245
      %v6264 = vpack.c.b16 %v6248, %v6247
      %v6266 = vsel %vm655, %v6249, 0
      %v6269 = vsel %vm655, %v6250, 0
      %v6272 = vsel %vm655, %v6251, 0
      %v6275 = vsel %vm655, %v6252, 0
      %v6278 = vsel %vm655, %v6253, 0
      %v6281 = vsel %vm655, %v6254, 0
      %v6284 = vsel %vm655, %v6255, 0
      %v6287 = vsel %vm655, %v6256, 0
      %v6290 = vsel %vm655, %v6257, 0
      %v6293 = vsel %vm655, %v6258, 0
      %v6296 = vsel %vm655, %v6259, 0
      %v6299 = vsel %vm655, %v6260, 0
      %v6302 = vsel %vm655, %v6261, 0
      %v6305 = vsel %vm655, %v6262, 0
      %v6308 = vsel %vm655, %v6263, 0
      %v6311 = vsel %vm655, %v6264, 0
      %v6314 = vsel %vm2612, %v6184, 0
      %6316 = vmatprep.subr.bf16.mxu0 0
      %6317 = vmatpush1.bf16.msra.mxu0 0
      %6318 = vmatprep.subr.bf16.mxu0 0
      %6319 = vmatpush1.bf16.msra.mxu0 0
      %6320 = vmatprep.subr.bf16.mxu0 0
      %6321 = vmatpush1.bf16.msra.mxu0 0
      %6322 = vmatprep.subr.bf16.mxu0 0
      %6323 = vmatpush1.bf16.msra.mxu0 0
      %6324 = vmatprep.subr.bf16.mxu0 0
      %6325 = vmatpush1.bf16.msra.mxu0 0
      %6326 = vmatprep.subr.bf16.mxu0 0
      %6327 = vmatpush1.bf16.msra.mxu0 0
      %6328 = vmatprep.subr.bf16.mxu0 0
      %6329 = vmatpush1.bf16.msra.mxu0 0
      %6330 = vmatprep.subr.bf16.mxu0 0
      %6331 = vmatpush1.bf16.msra.mxu0 %v6314
      %6332 = vmatprep.subr.bf16.mxu0 0
      %6333 = vmatpush2.bf16.msra.mxu0 0
      %6334 = vmatprep.subr.bf16.mxu0 0
      %6335 = vmatpush2.bf16.msra.mxu0 0
      %6336 = vmatprep.subr.bf16.mxu0 0
      %6337 = vmatpush2.bf16.msra.mxu0 0
      %6338 = vmatprep.subr.bf16.mxu0 0
      %6339 = vmatpush2.bf16.msra.mxu0 0
      %6340 = vmatprep.subr.bf16.mxu0 0
      %6341 = vmatpush2.bf16.msra.mxu0 0
      %6342 = vmatprep.subr.bf16.mxu0 0
      %6343 = vmatpush2.bf16.msra.mxu0 0
      %6344 = vmatprep.subr.bf16.mxu0 0
      %6345 = vmatpush2.bf16.msra.mxu0 0
      %6346 = vmatprep.subr.bf16.mxu0 0
      %6347 = vmatpush2.bf16.msra.mxu0 0
      %6348 = vmatprep.mubr.bf16.mxu0 0
      %6349 = vmatmul.mubr.bf16.gmra.mxu0 %v6266
      %v6350 = vpop.f32.mrf.mxu0
      %v6351 = vadd.f32 0.0, %v6350
      %v6352 = vpop.f32.mrf.mxu0
      %v6353 = vpop.f32.mrf.mxu0
      %v6354 = vadd.f32 0.0, %v6353
      %v6355 = vpop.f32.mrf.mxu0
      %6356 = vmatprep.mubr.bf16.mxu0 0
      %6357 = vmatmul.mubr.bf16.gmra.mxu0 %v6269
      %v6358 = vpop.f32.mrf.mxu0
      %v6359 = vadd.f32 0.0, %v6358
      %v6360 = vpop.f32.mrf.mxu0
      %v6361 = vpop.f32.mrf.mxu0
      %v6362 = vadd.f32 0.0, %v6361
      %v6363 = vpop.f32.mrf.mxu0
      %6364 = vmatprep.mubr.bf16.mxu0 0
      %6365 = vmatmul.mubr.bf16.gmra.mxu0 %v6272
      %v6366 = vpop.f32.mrf.mxu0
      %v6367 = vadd.f32 0.0, %v6366
      %v6368 = vpop.f32.mrf.mxu0
      %v6369 = vpop.f32.mrf.mxu0
      %v6370 = vadd.f32 0.0, %v6369
      %v6371 = vpop.f32.mrf.mxu0
      %6372 = vmatprep.mubr.bf16.mxu0 0
      %6373 = vmatmul.mubr.bf16.gmra.mxu0 %v6275
      %v6374 = vpop.f32.mrf.mxu0
      %v6375 = vadd.f32 0.0, %v6374
      %v6376 = vpop.f32.mrf.mxu0
      %v6377 = vpop.f32.mrf.mxu0
      %v6378 = vadd.f32 0.0, %v6377
      %v6379 = vpop.f32.mrf.mxu0
      %6380 = vmatprep.mubr.bf16.mxu0 0
      %6381 = vmatmul.mubr.bf16.gmra.mxu0 %v6278
      %v6382 = vpop.f32.mrf.mxu0
      %v6383 = vadd.f32 0.0, %v6382
      %v6384 = vpop.f32.mrf.mxu0
      %v6385 = vpop.f32.mrf.mxu0
      %v6386 = vadd.f32 0.0, %v6385
      %v6387 = vpop.f32.mrf.mxu0
      %6388 = vmatprep.mubr.bf16.mxu0 0
      %6389 = vmatmul.mubr.bf16.gmra.mxu0 %v6281
      %v6390 = vpop.f32.mrf.mxu0
      %v6391 = vadd.f32 0.0, %v6390
      %v6392 = vpop.f32.mrf.mxu0
      %v6393 = vpop.f32.mrf.mxu0
      %v6394 = vadd.f32 0.0, %v6393
      %v6395 = vpop.f32.mrf.mxu0
      %6396 = vmatprep.mubr.bf16.mxu0 0
      %6397 = vmatmul.mubr.bf16.gmra.mxu0 %v6284
      %v6398 = vpop.f32.mrf.mxu0
      %v6399 = vadd.f32 0.0, %v6398
      %v6400 = vpop.f32.mrf.mxu0
      %v6401 = vpop.f32.mrf.mxu0
      %v6402 = vadd.f32 0.0, %v6401
      %v6403 = vpop.f32.mrf.mxu0
      %6404 = vmatprep.mubr.bf16.mxu0 0
      %6405 = vmatmul.mubr.bf16.gmra.mxu0 %v6287
      %v6406 = vpop.f32.mrf.mxu0
      %v6407 = vadd.f32 0.0, %v6406
      %v6408 = vpop.f32.mrf.mxu0
      %v6409 = vpop.f32.mrf.mxu0
      %v6410 = vadd.f32 0.0, %v6409
      %v6411 = vpop.f32.mrf.mxu0
      %6412 = vmatprep.mubr.bf16.mxu0 0
      %6413 = vmatmul.mubr.bf16.gmra.mxu0 %v6290
      %v6414 = vpop.f32.mrf.mxu0
      %v6415 = vadd.f32 0.0, %v6414
      %v6416 = vpop.f32.mrf.mxu0
      %v6417 = vpop.f32.mrf.mxu0
      %v6418 = vadd.f32 0.0, %v6417
      %v6419 = vpop.f32.mrf.mxu0
      %6420 = vmatprep.mubr.bf16.mxu0 0
      %6421 = vmatmul.mubr.bf16.gmra.mxu0 %v6293
      %v6422 = vpop.f32.mrf.mxu0
      %v6423 = vadd.f32 0.0, %v6422
      %v6424 = vpop.f32.mrf.mxu0
      %v6425 = vpop.f32.mrf.mxu0
      %v6426 = vadd.f32 0.0, %v6425
      %v6427 = vpop.f32.mrf.mxu0
      %6428 = vmatprep.mubr.bf16.mxu0 0
      %6429 = vmatmul.mubr.bf16.gmra.mxu0 %v6296
      %v6430 = vpop.f32.mrf.mxu0
      %v6431 = vadd.f32 0.0, %v6430
      %v6432 = vpop.f32.mrf.mxu0
      %v6433 = vpop.f32.mrf.mxu0
      %v6434 = vadd.f32 0.0, %v6433
      %v6435 = vpop.f32.mrf.mxu0
      %6436 = vmatprep.mubr.bf16.mxu0 0
      %6437 = vmatmul.mubr.bf16.gmra.mxu0 %v6299
      %v6438 = vpop.f32.mrf.mxu0
      %v6439 = vadd.f32 0.0, %v6438
      %v6440 = vpop.f32.mrf.mxu0
      %v6441 = vpop.f32.mrf.mxu0
      %v6442 = vadd.f32 0.0, %v6441
      %v6443 = vpop.f32.mrf.mxu0
      %6444 = vmatprep.mubr.bf16.mxu0 0
      %6445 = vmatmul.mubr.bf16.gmra.mxu0 %v6302
      %v6446 = vpop.f32.mrf.mxu0
      %v6447 = vadd.f32 0.0, %v6446
      %v6448 = vpop.f32.mrf.mxu0
      %v6449 = vpop.f32.mrf.mxu0
      %v6450 = vadd.f32 0.0, %v6449
      %v6451 = vpop.f32.mrf.mxu0
      %6452 = vmatprep.mubr.bf16.mxu0 0
      %6453 = vmatmul.mubr.bf16.gmra.mxu0 %v6305
      %v6454 = vpop.f32.mrf.mxu0
      %v6455 = vadd.f32 0.0, %v6454
      %v6456 = vpop.f32.mrf.mxu0
      %v6457 = vpop.f32.mrf.mxu0
      %v6458 = vadd.f32 0.0, %v6457
      %v6459 = vpop.f32.mrf.mxu0
      %6460 = vmatprep.mubr.bf16.mxu0 0
      %6461 = vmatmul.mubr.bf16.gmra.mxu0 %v6308
      %v6462 = vpop.f32.mrf.mxu0
      %v6463 = vadd.f32 0.0, %v6462
      %v6464 = vpop.f32.mrf.mxu0
      %v6465 = vpop.f32.mrf.mxu0
      %v6466 = vadd.f32 0.0, %v6465
      %v6467 = vpop.f32.mrf.mxu0
      %6468 = vmatprep.mubr.bf16.mxu0 0
      %6469 = vmatmul.mubr.bf16.gmra.mxu0 %v6311
      %v6470 = vpop.f32.mrf.mxu0
      %v6471 = vadd.f32 0.0, %v6470
      %v6472 = vpop.f32.mrf.mxu0
      %v6473 = vpop.f32.mrf.mxu0
      %v6474 = vadd.f32 0.0, %v6473
      %v6475 = vpop.f32.mrf.mxu0
      %6476 = vdwg.mxu0
      %v6477 = vadd.f32 %v6151, %v6351
      %v6478 = vadd.f32 %v6152, %v6354
      %v6479 = vadd.f32 %v6153, %v6359
      %v6480 = vadd.f32 %v6154, %v6362
      %v6481 = vadd.f32 %v6155, %v6367
      %v6482 = vadd.f32 %v6156, %v6370
      %v6483 = vadd.f32 %v6157, %v6375
      %v6484 = vadd.f32 %v6158, %v6378
      %v6485 = vadd.f32 %v6159, %v6383
      %v6486 = vadd.f32 %v6160, %v6386
      %v6487 = vadd.f32 %v6161, %v6391
      %v6488 = vadd.f32 %v6162, %v6394
      %v6489 = vadd.f32 %v6163, %v6399
      %v6490 = vadd.f32 %v6164, %v6402
      %v6491 = vadd.f32 %v6165, %v6407
      %v6492 = vadd.f32 %v6166, %v6410
      %v6493 = vadd.f32 %v6167, %v6415
      %v6494 = vadd.f32 %v6168, %v6418
      %v6495 = vadd.f32 %v6169, %v6423
      %v6496 = vadd.f32 %v6170, %v6426
      %v6497 = vadd.f32 %v6171, %v6431
      %v6498 = vadd.f32 %v6172, %v6434
      %v6499 = vadd.f32 %v6173, %v6439
      %v6500 = vadd.f32 %v6174, %v6442
      %v6501 = vadd.f32 %v6175, %v6447
      %v6502 = vadd.f32 %v6176, %v6450
      %v6503 = vadd.f32 %v6177, %v6455
      %v6504 = vadd.f32 %v6178, %v6458
      %v6505 = vadd.f32 %v6179, %v6463
      %v6506 = vadd.f32 %v6180, %v6466
      %v6507 = vadd.f32 %v6181, %v6471
      %v6508 = vadd.f32 %v6182, %v6474
      %v6509 = vld [vmem:[#allocation2 + $0x18] sm:$0xf]
      %v6510 = vld [vmem:[#allocation2 + $0x1c] sm:$0xf]
      %v6511 = vld [vmem:[#allocation2 + $0x20] sm:$0xf]
      %v6512 = vld [vmem:[#allocation2 + $0x24] sm:$0xf]
      %v6513 = vld [vmem:[#allocation2 + $0x28] sm:$0xf]
      %v6514 = vld [vmem:[#allocation2 + $0x2c] sm:$0xf]
      %v6515 = vld [vmem:[#allocation2 + $0x30] sm:$0xf]
      %v6516 = vld [vmem:[#allocation2 + $0x34] sm:$0xf]
      %v6517 = vld [vmem:[#allocation2 + $0x38] sm:$0xf]
      %v6518 = vld [vmem:[#allocation2 + $0x3c] sm:$0xf]
      %v6519 = vld [vmem:[#allocation2 + $0x40] sm:$0xf]
      %v6520 = vld [vmem:[#allocation2 + $0x44] sm:$0xf]
      %v6521 = vld [vmem:[#allocation2 + $0x48] sm:$0xf]
      %v6522 = vld [vmem:[#allocation2 + $0x4c] sm:$0xf]
      %v6523 = vld [vmem:[#allocation2 + $0x50] sm:$0xf]
      %v6524 = vld [vmem:[#allocation2 + $0x54] sm:$0xf]
      %v6525 = vld [vmem:[#allocation2 + $0x58] sm:$0xf]
      %v6526 = vld [vmem:[#allocation2 + $0x5c] sm:$0xf]
      %v6527 = vld [vmem:[#allocation2 + $0x60] sm:$0xf]
      %v6528 = vld [vmem:[#allocation2 + $0x64] sm:$0xf]
      %v6529 = vld [vmem:[#allocation2 + $0x68] sm:$0xf]
      %v6530 = vld [vmem:[#allocation2 + $0x6c] sm:$0xf]
      %v6531 = vld [vmem:[#allocation2 + $0x70] sm:$0xf]
      %v6532 = vld [vmem:[#allocation2 + $0x74] sm:$0xf]
      %v6533 = vld [vmem:[#allocation2 + $0x78] sm:$0xf]
      %v6534 = vld [vmem:[#allocation2 + $0x7c] sm:$0xf]
      %v6535 = vld [vmem:[#allocation2 + $0x80] sm:$0xf]
      %v6536 = vld [vmem:[#allocation2 + $0x84] sm:$0xf]
      %v6537 = vld [vmem:[#allocation2 + $0x88] sm:$0xf]
      %v6538 = vld [vmem:[#allocation2 + $0x8c] sm:$0xf]
      %v6539 = vld [vmem:[#allocation2 + $0x90] sm:$0xf]
      %v6540 = vld [vmem:[#allocation2 + $0x94] sm:$0xf]
      %v6541 = vld [vmem:[#allocation2 + $0x98] sm:$0x1]
      %v6542 = vsel %vm3708, %v6509, 0
      %v6543 = vsel %vm3709, %v6510, 0
      %v6544 = vsel %vm3710, %v6511, 0
      %v6545 = vsel %vm3711, %v6512, 0
      %v6546 = vsel %vm3712, %v6513, 0
      %v6547 = vsel %vm3713, %v6514, 0
      %v6548 = vsel %vm3714, %v6515, 0
      %v6549 = vsel %vm3715, %v6516, 0
      %v6550 = vsel %vm3716, %v6517, 0
      %v6551 = vsel %vm3717, %v6518, 0
      %v6552 = vsel %vm3718, %v6519, 0
      %v6553 = vsel %vm3719, %v6520, 0
      %v6554 = vsel %vm3720, %v6521, 0
      %v6555 = vsel %vm3721, %v6522, 0
      %v6556 = vsel %vm3722, %v6523, 0
      %v6557 = vsel %vm3723, %v6524, 0
      %v6558 = vsel %vm3724, %v6525, 0
      %v6559 = vsel %vm3725, %v6526, 0
      %v6560 = vsel %vm3726, %v6527, 0
      %v6561 = vsel %vm3727, %v6528, 0
      %v6562 = vsel %vm3728, %v6529, 0
      %v6563 = vsel %vm3729, %v6530, 0
      %v6564 = vsel %vm3730, %v6531, 0
      %v6565 = vsel %vm3731, %v6532, 0
      %v6566 = vsel %vm3732, %v6533, 0
      %v6567 = vsel %vm3733, %v6534, 0
      %v6568 = vsel %vm3734, %v6535, 0
      %v6569 = vsel %vm3735, %v6536, 0
      %v6570 = vsel %vm3736, %v6537, 0
      %v6571 = vsel %vm3737, %v6538, 0
      %v6572 = vsel %vm3738, %v6539, 0
      %v6573 = vsel %vm3739, %v6540, 0
      %v6574 = vsel %vm3740, %v6541, 0
      %s6575 = scalar_lea.vmem %s2, 8
      %v6576 = vld [vmem:[%s6575] sm:$0x1]
      %v6610 = vunpack.c.l.b16 %v6542
      %v6611 = vunpack.c.l.b16 %v6543
      %v6612 = vunpack.c.l.b16 %v6544
      %v6613 = vunpack.c.l.b16 %v6545
      %v6614 = vunpack.c.l.b16 %v6546
      %v6615 = vunpack.c.l.b16 %v6547
      %v6616 = vunpack.c.l.b16 %v6548
      %v6617 = vunpack.c.l.b16 %v6549
      %v6618 = vunpack.c.l.b16 %v6550
      %v6619 = vunpack.c.l.b16 %v6551
      %v6620 = vunpack.c.l.b16 %v6552
      %v6621 = vunpack.c.l.b16 %v6553
      %v6622 = vunpack.c.l.b16 %v6554
      %v6623 = vunpack.c.l.b16 %v6555
      %v6624 = vunpack.c.l.b16 %v6556
      %v6625 = vunpack.c.l.b16 %v6557
      %v6626 = vunpack.c.l.b16 %v6558
      %v6627 = vunpack.c.l.b16 %v6559
      %v6628 = vunpack.c.l.b16 %v6560
      %v6629 = vunpack.c.l.b16 %v6561
      %v6630 = vunpack.c.l.b16 %v6562
      %v6631 = vunpack.c.l.b16 %v6563
      %v6632 = vunpack.c.l.b16 %v6564
      %v6633 = vunpack.c.l.b16 %v6565
      %v6634 = vunpack.c.l.b16 %v6566
      %v6635 = vunpack.c.l.b16 %v6567
      %v6636 = vunpack.c.l.b16 %v6568
      %v6637 = vunpack.c.l.b16 %v6569
      %v6638 = vunpack.c.l.b16 %v6570
      %v6639 = vunpack.c.l.b16 %v6571
      %v6640 = vunpack.c.l.b16 %v6572
      %v6641 = vunpack.c.l.b16 %v6573
      %v6642 = vunpack.c.l.b16 %v6574
      %v6643 = vpack.c.b16 %v6611, %v6610
      %v6644 = vpack.c.b16 %v6613, %v6612
      %v6645 = vpack.c.b16 %v6615, %v6614
      %v6646 = vpack.c.b16 %v6617, %v6616
      %v6647 = vpack.c.b16 %v6619, %v6618
      %v6648 = vpack.c.b16 %v6621, %v6620
      %v6649 = vpack.c.b16 %v6623, %v6622
      %v6650 = vpack.c.b16 %v6625, %v6624
      %v6651 = vpack.c.b16 %v6627, %v6626
      %v6652 = vpack.c.b16 %v6629, %v6628
      %v6653 = vpack.c.b16 %v6631, %v6630
      %v6654 = vpack.c.b16 %v6633, %v6632
      %v6655 = vpack.c.b16 %v6635, %v6634
      %v6656 = vpack.c.b16 %v6637, %v6636
      %v6657 = vpack.c.b16 %v6639, %v6638
      %v6658 = vpack.c.b16 %v6641, %v6640
      %v6659 = vpack.c.b16 %v6642, %v6642
      %v6661 = vshrl.u32 %v6643, 16
      %v6663 = vshll.u32 %v6643, 16
      %v6665 = vrot.slane %v6663, 1
      %v6666 = vor.u32 %v6661, %v6665
      %v6668 = vshll.u32 %v6644, 16
      %v6670 = vrot.slane %v6668, 1
      %v6671 = vsel %vm3859, %v6666, %v6670
      %v6672 = vshrl.u32 %v6644, 16
      %v6674 = vor.u32 %v6672, %v6670
      %v6676 = vshll.u32 %v6645, 16
      %v6678 = vrot.slane %v6676, 1
      %v6679 = vsel %vm3859, %v6674, %v6678
      %v6680 = vshrl.u32 %v6645, 16
      %v6682 = vor.u32 %v6680, %v6678
      %v6684 = vshll.u32 %v6646, 16
      %v6686 = vrot.slane %v6684, 1
      %v6687 = vsel %vm3859, %v6682, %v6686
      %v6688 = vshrl.u32 %v6646, 16
      %v6690 = vor.u32 %v6688, %v6686
      %v6692 = vshll.u32 %v6647, 16
      %v6694 = vrot.slane %v6692, 1
      %v6695 = vsel %vm3859, %v6690, %v6694
      %v6696 = vshrl.u32 %v6647, 16
      %v6698 = vor.u32 %v6696, %v6694
      %v6700 = vshll.u32 %v6648, 16
      %v6702 = vrot.slane %v6700, 1
      %v6703 = vsel %vm3859, %v6698, %v6702
      %v6704 = vshrl.u32 %v6648, 16
      %v6706 = vor.u32 %v6704, %v6702
      %v6708 = vshll.u32 %v6649, 16
      %v6710 = vrot.slane %v6708, 1
      %v6711 = vsel %vm3859, %v6706, %v6710
      %v6712 = vshrl.u32 %v6649, 16
      %v6714 = vor.u32 %v6712, %v6710
      %v6716 = vshll.u32 %v6650, 16
      %v6718 = vrot.slane %v6716, 1
      %v6719 = vsel %vm3859, %v6714, %v6718
      %v6720 = vshrl.u32 %v6650, 16
      %v6722 = vor.u32 %v6720, %v6718
      %v6724 = vshll.u32 %v6651, 16
      %v6726 = vrot.slane %v6724, 1
      %v6727 = vsel %vm3859, %v6722, %v6726
      %v6728 = vshrl.u32 %v6651, 16
      %v6730 = vor.u32 %v6728, %v6726
      %v6732 = vshll.u32 %v6652, 16
      %v6734 = vrot.slane %v6732, 1
      %v6735 = vsel %vm3859, %v6730, %v6734
      %v6736 = vshrl.u32 %v6652, 16
      %v6738 = vor.u32 %v6736, %v6734
      %v6740 = vshll.u32 %v6653, 16
      %v6742 = vrot.slane %v6740, 1
      %v6743 = vsel %vm3859, %v6738, %v6742
      %v6744 = vshrl.u32 %v6653, 16
      %v6746 = vor.u32 %v6744, %v6742
      %v6748 = vshll.u32 %v6654, 16
      %v6750 = vrot.slane %v6748, 1
      %v6751 = vsel %vm3859, %v6746, %v6750
      %v6752 = vshrl.u32 %v6654, 16
      %v6754 = vor.u32 %v6752, %v6750
      %v6756 = vshll.u32 %v6655, 16
      %v6758 = vrot.slane %v6756, 1
      %v6759 = vsel %vm3859, %v6754, %v6758
      %v6760 = vshrl.u32 %v6655, 16
      %v6762 = vor.u32 %v6760, %v6758
      %v6764 = vshll.u32 %v6656, 16
      %v6766 = vrot.slane %v6764, 1
      %v6767 = vsel %vm3859, %v6762, %v6766
      %v6768 = vshrl.u32 %v6656, 16
      %v6770 = vor.u32 %v6768, %v6766
      %v6772 = vshll.u32 %v6657, 16
      %v6774 = vrot.slane %v6772, 1
      %v6775 = vsel %vm3859, %v6770, %v6774
      %v6776 = vshrl.u32 %v6657, 16
      %v6778 = vor.u32 %v6776, %v6774
      %v6780 = vshll.u32 %v6658, 16
      %v6782 = vrot.slane %v6780, 1
      %v6783 = vsel %vm3859, %v6778, %v6782
      %v6784 = vshrl.u32 %v6658, 16
      %v6786 = vor.u32 %v6784, %v6782
      %v6788 = vshll.u32 %v6659, 16
      %v6790 = vrot.slane %v6788, 1
      %v6791 = vsel %vm3859, %v6786, %v6790
      %v6793 = vsel %vm655, %v6671, 0
      %v6796 = vsel %vm655, %v6679, 0
      %v6799 = vsel %vm655, %v6687, 0
      %v6802 = vsel %vm655, %v6695, 0
      %v6805 = vsel %vm655, %v6703, 0
      %v6808 = vsel %vm655, %v6711, 0
      %v6811 = vsel %vm655, %v6719, 0
      %v6814 = vsel %vm655, %v6727, 0
      %v6817 = vsel %vm655, %v6735, 0
      %v6820 = vsel %vm655, %v6743, 0
      %v6823 = vsel %vm655, %v6751, 0
      %v6826 = vsel %vm655, %v6759, 0
      %v6829 = vsel %vm655, %v6767, 0
      %v6832 = vsel %vm655, %v6775, 0
      %v6835 = vsel %vm655, %v6783, 0
      %v6838 = vsel %vm655, %v6791, 0
      %v6841 = vsel %vm2612, %v6576, 0
      %6843 = vmatprep.subr.bf16.mxu0 0
      %6844 = vmatpush1.bf16.msra.mxu0 0
      %6845 = vmatprep.subr.bf16.mxu0 0
      %6846 = vmatpush1.bf16.msra.mxu0 0
      %6847 = vmatprep.subr.bf16.mxu0 0
      %6848 = vmatpush1.bf16.msra.mxu0 0
      %6849 = vmatprep.subr.bf16.mxu0 0
      %6850 = vmatpush1.bf16.msra.mxu0 0
      %6851 = vmatprep.subr.bf16.mxu0 0
      %6852 = vmatpush1.bf16.msra.mxu0 0
      %6853 = vmatprep.subr.bf16.mxu0 0
      %6854 = vmatpush1.bf16.msra.mxu0 0
      %6855 = vmatprep.subr.bf16.mxu0 0
      %6856 = vmatpush1.bf16.msra.mxu0 0
      %6857 = vmatprep.subr.bf16.mxu0 0
      %6858 = vmatpush1.bf16.msra.mxu0 %v6841
      %6859 = vmatprep.subr.bf16.mxu0 0
      %6860 = vmatpush2.bf16.msra.mxu0 0
      %6861 = vmatprep.subr.bf16.mxu0 0
      %6862 = vmatpush2.bf16.msra.mxu0 0
      %6863 = vmatprep.subr.bf16.mxu0 0
      %6864 = vmatpush2.bf16.msra.mxu0 0
      %6865 = vmatprep.subr.bf16.mxu0 0
      %6866 = vmatpush2.bf16.msra.mxu0 0
      %6867 = vmatprep.subr.bf16.mxu0 0
      %6868 = vmatpush2.bf16.msra.mxu0 0
      %6869 = vmatprep.subr.bf16.mxu0 0
      %6870 = vmatpush2.bf16.msra.mxu0 0
      %6871 = vmatprep.subr.bf16.mxu0 0
      %6872 = vmatpush2.bf16.msra.mxu0 0
      %6873 = vmatprep.subr.bf16.mxu0 0
      %6874 = vmatpush2.bf16.msra.mxu0 0
      %6875 = vmatprep.mubr.bf16.mxu0 0
      %6876 = vmatmul.mubr.bf16.gmra.mxu0 %v6793
      %v6877 = vpop.f32.mrf.mxu0
      %v6878 = vadd.f32 0.0, %v6877
      %v6879 = vpop.f32.mrf.mxu0
      %v6880 = vpop.f32.mrf.mxu0
      %v6881 = vadd.f32 0.0, %v6880
      %v6882 = vpop.f32.mrf.mxu0
      %6883 = vmatprep.mubr.bf16.mxu0 0
      %6884 = vmatmul.mubr.bf16.gmra.mxu0 %v6796
      %v6885 = vpop.f32.mrf.mxu0
      %v6886 = vadd.f32 0.0, %v6885
      %v6887 = vpop.f32.mrf.mxu0
      %v6888 = vpop.f32.mrf.mxu0
      %v6889 = vadd.f32 0.0, %v6888
      %v6890 = vpop.f32.mrf.mxu0
      %6891 = vmatprep.mubr.bf16.mxu0 0
      %6892 = vmatmul.mubr.bf16.gmra.mxu0 %v6799
      %v6893 = vpop.f32.mrf.mxu0
      %v6894 = vadd.f32 0.0, %v6893
      %v6895 = vpop.f32.mrf.mxu0
      %v6896 = vpop.f32.mrf.mxu0
      %v6897 = vadd.f32 0.0, %v6896
      %v6898 = vpop.f32.mrf.mxu0
      %6899 = vmatprep.mubr.bf16.mxu0 0
      %6900 = vmatmul.mubr.bf16.gmra.mxu0 %v6802
      %v6901 = vpop.f32.mrf.mxu0
      %v6902 = vadd.f32 0.0, %v6901
      %v6903 = vpop.f32.mrf.mxu0
      %v6904 = vpop.f32.mrf.mxu0
      %v6905 = vadd.f32 0.0, %v6904
      %v6906 = vpop.f32.mrf.mxu0
      %6907 = vmatprep.mubr.bf16.mxu0 0
      %6908 = vmatmul.mubr.bf16.gmra.mxu0 %v6805
      %v6909 = vpop.f32.mrf.mxu0
      %v6910 = vadd.f32 0.0, %v6909
      %v6911 = vpop.f32.mrf.mxu0
      %v6912 = vpop.f32.mrf.mxu0
      %v6913 = vadd.f32 0.0, %v6912
      %v6914 = vpop.f32.mrf.mxu0
      %6915 = vmatprep.mubr.bf16.mxu0 0
      %6916 = vmatmul.mubr.bf16.gmra.mxu0 %v6808
      %v6917 = vpop.f32.mrf.mxu0
      %v6918 = vadd.f32 0.0, %v6917
      %v6919 = vpop.f32.mrf.mxu0
      %v6920 = vpop.f32.mrf.mxu0
      %v6921 = vadd.f32 0.0, %v6920
      %v6922 = vpop.f32.mrf.mxu0
      %6923 = vmatprep.mubr.bf16.mxu0 0
      %6924 = vmatmul.mubr.bf16.gmra.mxu0 %v6811
      %v6925 = vpop.f32.mrf.mxu0
      %v6926 = vadd.f32 0.0, %v6925
      %v6927 = vpop.f32.mrf.mxu0
      %v6928 = vpop.f32.mrf.mxu0
      %v6929 = vadd.f32 0.0, %v6928
      %v6930 = vpop.f32.mrf.mxu0
      %6931 = vmatprep.mubr.bf16.mxu0 0
      %6932 = vmatmul.mubr.bf16.gmra.mxu0 %v6814
      %v6933 = vpop.f32.mrf.mxu0
      %v6934 = vadd.f32 0.0, %v6933
      %v6935 = vpop.f32.mrf.mxu0
      %v6936 = vpop.f32.mrf.mxu0
      %v6937 = vadd.f32 0.0, %v6936
      %v6938 = vpop.f32.mrf.mxu0
      %6939 = vmatprep.mubr.bf16.mxu0 0
      %6940 = vmatmul.mubr.bf16.gmra.mxu0 %v6817
      %v6941 = vpop.f32.mrf.mxu0
      %v6942 = vadd.f32 0.0, %v6941
      %v6943 = vpop.f32.mrf.mxu0
      %v6944 = vpop.f32.mrf.mxu0
      %v6945 = vadd.f32 0.0, %v6944
      %v6946 = vpop.f32.mrf.mxu0
      %6947 = vmatprep.mubr.bf16.mxu0 0
      %6948 = vmatmul.mubr.bf16.gmra.mxu0 %v6820
      %v6949 = vpop.f32.mrf.mxu0
      %v6950 = vadd.f32 0.0, %v6949
      %v6951 = vpop.f32.mrf.mxu0
      %v6952 = vpop.f32.mrf.mxu0
      %v6953 = vadd.f32 0.0, %v6952
      %v6954 = vpop.f32.mrf.mxu0
      %6955 = vmatprep.mubr.bf16.mxu0 0
      %6956 = vmatmul.mubr.bf16.gmra.mxu0 %v6823
      %v6957 = vpop.f32.mrf.mxu0
      %v6958 = vadd.f32 0.0, %v6957
      %v6959 = vpop.f32.mrf.mxu0
      %v6960 = vpop.f32.mrf.mxu0
      %v6961 = vadd.f32 0.0, %v6960
      %v6962 = vpop.f32.mrf.mxu0
      %6963 = vmatprep.mubr.bf16.mxu0 0
      %6964 = vmatmul.mubr.bf16.gmra.mxu0 %v6826
      %v6965 = vpop.f32.mrf.mxu0
      %v6966 = vadd.f32 0.0, %v6965
      %v6967 = vpop.f32.mrf.mxu0
      %v6968 = vpop.f32.mrf.mxu0
      %v6969 = vadd.f32 0.0, %v6968
      %v6970 = vpop.f32.mrf.mxu0
      %6971 = vmatprep.mubr.bf16.mxu0 0
      %6972 = vmatmul.mubr.bf16.gmra.mxu0 %v6829
      %v6973 = vpop.f32.mrf.mxu0
      %v6974 = vadd.f32 0.0, %v6973
      %v6975 = vpop.f32.mrf.mxu0
      %v6976 = vpop.f32.mrf.mxu0
      %v6977 = vadd.f32 0.0, %v6976
      %v6978 = vpop.f32.mrf.mxu0
      %6979 = vmatprep.mubr.bf16.mxu0 0
      %6980 = vmatmul.mubr.bf16.gmra.mxu0 %v6832
      %v6981 = vpop.f32.mrf.mxu0
      %v6982 = vadd.f32 0.0, %v6981
      %v6983 = vpop.f32.mrf.mxu0
      %v6984 = vpop.f32.mrf.mxu0
      %v6985 = vadd.f32 0.0, %v6984
      %v6986 = vpop.f32.mrf.mxu0
      %6987 = vmatprep.mubr.bf16.mxu0 0
      %6988 = vmatmul.mubr.bf16.gmra.mxu0 %v6835
      %v6989 = vpop.f32.mrf.mxu0
      %v6990 = vadd.f32 0.0, %v6989
      %v6991 = vpop.f32.mrf.mxu0
      %v6992 = vpop.f32.mrf.mxu0
      %v6993 = vadd.f32 0.0, %v6992
      %v6994 = vpop.f32.mrf.mxu0
      %6995 = vmatprep.mubr.bf16.mxu0 0
      %6996 = vmatmul.mubr.bf16.gmra.mxu0 %v6838
      %v6997 = vpop.f32.mrf.mxu0
      %v6998 = vadd.f32 0.0, %v6997
      %v6999 = vpop.f32.mrf.mxu0
      %v7000 = vpop.f32.mrf.mxu0
      %v7001 = vadd.f32 0.0, %v7000
      %v7002 = vpop.f32.mrf.mxu0
      %7003 = vdwg.mxu0
      %v7004 = vadd.f32 %v6477, %v6878
      %v7005 = vadd.f32 %v6478, %v6881
      %v7006 = vadd.f32 %v6479, %v6886
      %v7007 = vadd.f32 %v6480, %v6889
      %v7008 = vadd.f32 %v6481, %v6894
      %v7009 = vadd.f32 %v6482, %v6897
      %v7010 = vadd.f32 %v6483, %v6902
      %v7011 = vadd.f32 %v6484, %v6905
      %v7012 = vadd.f32 %v6485, %v6910
      %v7013 = vadd.f32 %v6486, %v6913
      %v7014 = vadd.f32 %v6487, %v6918
      %v7015 = vadd.f32 %v6488, %v6921
      %v7016 = vadd.f32 %v6489, %v6926
      %v7017 = vadd.f32 %v6490, %v6929
      %v7018 = vadd.f32 %v6491, %v6934
      %v7019 = vadd.f32 %v6492, %v6937
      %v7020 = vadd.f32 %v6493, %v6942
      %v7021 = vadd.f32 %v6494, %v6945
      %v7022 = vadd.f32 %v6495, %v6950
      %v7023 = vadd.f32 %v6496, %v6953
      %v7024 = vadd.f32 %v6497, %v6958
      %v7025 = vadd.f32 %v6498, %v6961
      %v7026 = vadd.f32 %v6499, %v6966
      %v7027 = vadd.f32 %v6500, %v6969
      %v7028 = vadd.f32 %v6501, %v6974
      %v7029 = vadd.f32 %v6502, %v6977
      %v7030 = vadd.f32 %v6503, %v6982
      %v7031 = vadd.f32 %v6504, %v6985
      %v7032 = vadd.f32 %v6505, %v6990
      %v7033 = vadd.f32 %v6506, %v6993
      %v7034 = vadd.f32 %v6507, %v6998
      %v7035 = vadd.f32 %v6508, %v7001
      %v7036 = vld [vmem:[%s5] sm:$0x1]
      %v7037 = vld [vmem:[%s5 + $0x1] sm:$0x1]
      %v7038 = vsel %vm655, %v7004, 0.0
      %v7039 = vsel %vm655, %v7005, 0.0
      %v7040 = vadd.f32 %v7038, %v7039
      %v7041 = vsel %vm655, %v7006, 0.0
      %v7042 = vadd.f32 %v7040, %v7041
      %v7043 = vsel %vm655, %v7007, 0.0
      %v7044 = vadd.f32 %v7042, %v7043
      %v7045 = vsel %vm655, %v7008, 0.0
      %v7046 = vadd.f32 %v7044, %v7045
      %v7047 = vsel %vm655, %v7009, 0.0
      %v7048 = vadd.f32 %v7046, %v7047
      %v7049 = vsel %vm655, %v7010, 0.0
      %v7050 = vadd.f32 %v7048, %v7049
      %v7051 = vsel %vm655, %v7011, 0.0
      %v7052 = vadd.f32 %v7050, %v7051
      %v7053 = vsel %vm655, %v7012, 0.0
      %v7054 = vadd.f32 %v7052, %v7053
      %v7055 = vsel %vm655, %v7013, 0.0
      %v7056 = vadd.f32 %v7054, %v7055
      %v7057 = vsel %vm655, %v7014, 0.0
      %v7058 = vadd.f32 %v7056, %v7057
      %v7059 = vsel %vm655, %v7015, 0.0
      %v7060 = vadd.f32 %v7058, %v7059
      %v7061 = vsel %vm655, %v7016, 0.0
      %v7062 = vadd.f32 %v7060, %v7061
      %v7063 = vsel %vm655, %v7017, 0.0
      %v7064 = vadd.f32 %v7062, %v7063
      %v7065 = vsel %vm655, %v7018, 0.0
      %v7066 = vadd.f32 %v7064, %v7065
      %v7067 = vsel %vm655, %v7019, 0.0
      %v7068 = vadd.f32 %v7066, %v7067
      %v7069 = vsel %vm655, %v7020, 0.0
      %v7070 = vadd.f32 %v7068, %v7069
      %v7071 = vsel %vm655, %v7021, 0.0
      %v7072 = vadd.f32 %v7070, %v7071
      %v7073 = vsel %vm655, %v7022, 0.0
      %v7074 = vadd.f32 %v7072, %v7073
      %v7075 = vsel %vm655, %v7023, 0.0
      %v7076 = vadd.f32 %v7074, %v7075
      %v7077 = vsel %vm655, %v7024, 0.0
      %v7078 = vadd.f32 %v7076, %v7077
      %v7079 = vsel %vm655, %v7025, 0.0
      %v7080 = vadd.f32 %v7078, %v7079
      %v7081 = vsel %vm655, %v7026, 0.0
      %v7082 = vadd.f32 %v7080, %v7081
      %v7083 = vsel %vm655, %v7027, 0.0
      %v7084 = vadd.f32 %v7082, %v7083
      %v7085 = vsel %vm655, %v7028, 0.0
      %v7086 = vadd.f32 %v7084, %v7085
      %v7087 = vsel %vm655, %v7029, 0.0
      %v7088 = vadd.f32 %v7086, %v7087
      %v7089 = vsel %vm655, %v7030, 0.0
      %v7090 = vadd.f32 %v7088, %v7089
      %v7091 = vsel %vm655, %v7031, 0.0
      %v7092 = vadd.f32 %v7090, %v7091
      %v7093 = vsel %vm655, %v7032, 0.0
      %v7094 = vadd.f32 %v7092, %v7093
      %v7095 = vsel %vm655, %v7033, 0.0
      %v7096 = vadd.f32 %v7094, %v7095
      %v7097 = vsel %vm655, %v7034, 0.0
      %v7098 = vadd.f32 %v7096, %v7097
      %v7099 = vsel %vm655, %v7035, 0.0
      %v7100 = vadd.f32 %v7098, %v7099
      %v7101 = vrot.slane %v7100, 4
      %v7102 = vadd.f32 %v7100, %v7101
      %v7103 = vrot.slane %v7102, 2
      %v7104 = vadd.f32 %v7102, %v7103
      %v7105 = vrot.slane %v7104, 1
      %v7106 = vadd.f32 %v7104, %v7105
      %v7107 = vmul.f32 %v7106, %v725
      %v7108 = vsub.f32 %v7004, %v7107
      %v7109 = vsub.f32 %v7005, %v7107
      %v7110 = vsub.f32 %v7006, %v7107
      %v7111 = vsub.f32 %v7007, %v7107
      %v7112 = vsub.f32 %v7008, %v7107
      %v7113 = vsub.f32 %v7009, %v7107
      %v7114 = vsub.f32 %v7010, %v7107
      %v7115 = vsub.f32 %v7011, %v7107
      %v7116 = vsub.f32 %v7012, %v7107
      %v7117 = vsub.f32 %v7013, %v7107
      %v7118 = vsub.f32 %v7014, %v7107
      %v7119 = vsub.f32 %v7015, %v7107
      %v7120 = vsub.f32 %v7016, %v7107
      %v7121 = vsub.f32 %v7017, %v7107
      %v7122 = vsub.f32 %v7018, %v7107
      %v7123 = vsub.f32 %v7019, %v7107
      %v7124 = vsub.f32 %v7020, %v7107
      %v7125 = vsub.f32 %v7021, %v7107
      %v7126 = vsub.f32 %v7022, %v7107
      %v7127 = vsub.f32 %v7023, %v7107
      %v7128 = vsub.f32 %v7024, %v7107
      %v7129 = vsub.f32 %v7025, %v7107
      %v7130 = vsub.f32 %v7026, %v7107
      %v7131 = vsub.f32 %v7027, %v7107
      %v7132 = vsub.f32 %v7028, %v7107
      %v7133 = vsub.f32 %v7029, %v7107
      %v7134 = vsub.f32 %v7030, %v7107
      %v7135 = vsub.f32 %v7031, %v7107
      %v7136 = vsub.f32 %v7032, %v7107
      %v7137 = vsub.f32 %v7033, %v7107
      %v7138 = vsub.f32 %v7034, %v7107
      %v7139 = vsub.f32 %v7035, %v7107
      %v7140 = vmul.f32 %v7108, %v7108
      %v7141 = vmul.f32 %v7109, %v7109
      %v7142 = vmul.f32 %v7110, %v7110
      %v7143 = vmul.f32 %v7111, %v7111
      %v7144 = vmul.f32 %v7112, %v7112
      %v7145 = vmul.f32 %v7113, %v7113
      %v7146 = vmul.f32 %v7114, %v7114
      %v7147 = vmul.f32 %v7115, %v7115
      %v7148 = vmul.f32 %v7116, %v7116
      %v7149 = vmul.f32 %v7117, %v7117
      %v7150 = vmul.f32 %v7118, %v7118
      %v7151 = vmul.f32 %v7119, %v7119
      %v7152 = vmul.f32 %v7120, %v7120
      %v7153 = vmul.f32 %v7121, %v7121
      %v7154 = vmul.f32 %v7122, %v7122
      %v7155 = vmul.f32 %v7123, %v7123
      %v7156 = vmul.f32 %v7124, %v7124
      %v7157 = vmul.f32 %v7125, %v7125
      %v7158 = vmul.f32 %v7126, %v7126
      %v7159 = vmul.f32 %v7127, %v7127
      %v7160 = vmul.f32 %v7128, %v7128
      %v7161 = vmul.f32 %v7129, %v7129
      %v7162 = vmul.f32 %v7130, %v7130
      %v7163 = vmul.f32 %v7131, %v7131
      %v7164 = vmul.f32 %v7132, %v7132
      %v7165 = vmul.f32 %v7133, %v7133
      %v7166 = vmul.f32 %v7134, %v7134
      %v7167 = vmul.f32 %v7135, %v7135
      %v7168 = vmul.f32 %v7136, %v7136
      %v7169 = vmul.f32 %v7137, %v7137
      %v7170 = vmul.f32 %v7138, %v7138
      %v7171 = vmul.f32 %v7139, %v7139
      %v7172 = vsel %vm655, %v7140, 0.0
      %v7173 = vsel %vm655, %v7141, 0.0
      %v7174 = vadd.f32 %v7172, %v7173
      %v7175 = vsel %vm655, %v7142, 0.0
      %v7176 = vadd.f32 %v7174, %v7175
      %v7177 = vsel %vm655, %v7143, 0.0
      %v7178 = vadd.f32 %v7176, %v7177
      %v7179 = vsel %vm655, %v7144, 0.0
      %v7180 = vadd.f32 %v7178, %v7179
      %v7181 = vsel %vm655, %v7145, 0.0
      %v7182 = vadd.f32 %v7180, %v7181
      %v7183 = vsel %vm655, %v7146, 0.0
      %v7184 = vadd.f32 %v7182, %v7183
      %v7185 = vsel %vm655, %v7147, 0.0
      %v7186 = vadd.f32 %v7184, %v7185
      %v7187 = vsel %vm655, %v7148, 0.0
      %v7188 = vadd.f32 %v7186, %v7187
      %v7189 = vsel %vm655, %v7149, 0.0
      %v7190 = vadd.f32 %v7188, %v7189
      %v7191 = vsel %vm655, %v7150, 0.0
      %v7192 = vadd.f32 %v7190, %v7191
      %v7193 = vsel %vm655, %v7151, 0.0
      %v7194 = vadd.f32 %v7192, %v7193
      %v7195 = vsel %vm655, %v7152, 0.0
      %v7196 = vadd.f32 %v7194, %v7195
      %v7197 = vsel %vm655, %v7153, 0.0
      %v7198 = vadd.f32 %v7196, %v7197
      %v7199 = vsel %vm655, %v7154, 0.0
      %v7200 = vadd.f32 %v7198, %v7199
      %v7201 = vsel %vm655, %v7155, 0.0
      %v7202 = vadd.f32 %v7200, %v7201
      %v7203 = vsel %vm655, %v7156, 0.0
      %v7204 = vadd.f32 %v7202, %v7203
      %v7205 = vsel %vm655, %v7157, 0.0
      %v7206 = vadd.f32 %v7204, %v7205
      %v7207 = vsel %vm655, %v7158, 0.0
      %v7208 = vadd.f32 %v7206, %v7207
      %v7209 = vsel %vm655, %v7159, 0.0
      %v7210 = vadd.f32 %v7208, %v7209
      %v7211 = vsel %vm655, %v7160, 0.0
      %v7212 = vadd.f32 %v7210, %v7211
      %v7213 = vsel %vm655, %v7161, 0.0
      %v7214 = vadd.f32 %v7212, %v7213
      %v7215 = vsel %vm655, %v7162, 0.0
      %v7216 = vadd.f32 %v7214, %v7215
      %v7217 = vsel %vm655, %v7163, 0.0
      %v7218 = vadd.f32 %v7216, %v7217
      %v7219 = vsel %vm655, %v7164, 0.0
      %v7220 = vadd.f32 %v7218, %v7219
      %v7221 = vsel %vm655, %v7165, 0.0
      %v7222 = vadd.f32 %v7220, %v7221
      %v7223 = vsel %vm655, %v7166, 0.0
      %v7224 = vadd.f32 %v7222, %v7223
      %v7225 = vsel %vm655, %v7167, 0.0
      %v7226 = vadd.f32 %v7224, %v7225
      %v7227 = vsel %vm655, %v7168, 0.0
      %v7228 = vadd.f32 %v7226, %v7227
      %v7229 = vsel %vm655, %v7169, 0.0
      %v7230 = vadd.f32 %v7228, %v7229
      %v7231 = vsel %vm655, %v7170, 0.0
      %v7232 = vadd.f32 %v7230, %v7231
      %v7233 = vsel %vm655, %v7171, 0.0
      %v7234 = vadd.f32 %v7232, %v7233
      %v7235 = vrot.slane %v7234, 4
      %v7236 = vadd.f32 %v7234, %v7235
      %v7237 = vrot.slane %v7236, 2
      %v7238 = vadd.f32 %v7236, %v7237
      %v7239 = vrot.slane %v7238, 1
      %v7240 = vadd.f32 %v7238, %v7239
      %v7241 = vmul.f32 %v7240, %v725
      %v7242 = vadd.f32 %v7241, 1e-05
      %v7243 = vrsqrt.pop %v7242
      %v7244 = vmul.f32 %v7036, %v7243
      %v7245 = vlaneseq
      %v7246 = vshrl.u32 %v7245, 7
      %v7247 = vsub.s32 0, %v7246
      %v7248 = vrot.slane %v7244, %v7247
      %v7249 = vmul.f32 %v7108, %v7248
      %v7250 = vmul.f32 %v7109, %v7248
      %v7251 = vmul.f32 %v7110, %v7248
      %v7252 = vmul.f32 %v7111, %v7248
      %v7253 = vmul.f32 %v7112, %v7248
      %v7254 = vmul.f32 %v7113, %v7248
      %v7255 = vmul.f32 %v7114, %v7248
      %v7256 = vmul.f32 %v7115, %v7248
      %v7257 = vmul.f32 %v7116, %v7248
      %v7258 = vmul.f32 %v7117, %v7248
      %v7259 = vmul.f32 %v7118, %v7248
      %v7260 = vmul.f32 %v7119, %v7248
      %v7261 = vmul.f32 %v7120, %v7248
      %v7262 = vmul.f32 %v7121, %v7248
      %v7263 = vmul.f32 %v7122, %v7248
      %v7264 = vmul.f32 %v7123, %v7248
      %v7265 = vmul.f32 %v7124, %v7248
      %v7266 = vmul.f32 %v7125, %v7248
      %v7267 = vmul.f32 %v7126, %v7248
      %v7268 = vmul.f32 %v7127, %v7248
      %v7269 = vmul.f32 %v7128, %v7248
      %v7270 = vmul.f32 %v7129, %v7248
      %v7271 = vmul.f32 %v7130, %v7248
      %v7272 = vmul.f32 %v7131, %v7248
      %v7273 = vmul.f32 %v7132, %v7248
      %v7274 = vmul.f32 %v7133, %v7248
      %v7275 = vmul.f32 %v7134, %v7248
      %v7276 = vmul.f32 %v7135, %v7248
      %v7277 = vmul.f32 %v7136, %v7248
      %v7278 = vmul.f32 %v7137, %v7248
      %v7279 = vmul.f32 %v7138, %v7248
      %v7280 = vmul.f32 %v7139, %v7248
      %v7281 = vlaneseq
      %v7282 = vshrl.u32 %v7281, 7
      %v7283 = vsub.s32 0, %v7282
      %v7284 = vrot.slane %v7037, %v7283
      %v7285 = vadd.f32 %v7249, %v7284
      %v7286 = vadd.f32 %v7250, %v7284
      %v7287 = vadd.f32 %v7251, %v7284
      %v7288 = vadd.f32 %v7252, %v7284
      %v7289 = vadd.f32 %v7253, %v7284
      %v7290 = vadd.f32 %v7254, %v7284
      %v7291 = vadd.f32 %v7255, %v7284
      %v7292 = vadd.f32 %v7256, %v7284
      %v7293 = vadd.f32 %v7257, %v7284
      %v7294 = vadd.f32 %v7258, %v7284
      %v7295 = vadd.f32 %v7259, %v7284
      %v7296 = vadd.f32 %v7260, %v7284
      %v7297 = vadd.f32 %v7261, %v7284
      %v7298 = vadd.f32 %v7262, %v7284
      %v7299 = vadd.f32 %v7263, %v7284
      %v7300 = vadd.f32 %v7264, %v7284
      %v7301 = vadd.f32 %v7265, %v7284
      %v7302 = vadd.f32 %v7266, %v7284
      %v7303 = vadd.f32 %v7267, %v7284
      %v7304 = vadd.f32 %v7268, %v7284
      %v7305 = vadd.f32 %v7269, %v7284
      %v7306 = vadd.f32 %v7270, %v7284
      %v7307 = vadd.f32 %v7271, %v7284
      %v7308 = vadd.f32 %v7272, %v7284
      %v7309 = vadd.f32 %v7273, %v7284
      %v7310 = vadd.f32 %v7274, %v7284
      %v7311 = vadd.f32 %v7275, %v7284
      %v7312 = vadd.f32 %v7276, %v7284
      %v7313 = vadd.f32 %v7277, %v7284
      %v7314 = vadd.f32 %v7278, %v7284
      %v7315 = vadd.f32 %v7279, %v7284
      %v7316 = vadd.f32 %v7280, %v7284
      %vm7317 = vcmp.ge.f32.partialorder %v7285, 0.0
      %vm7318 = vcmp.ge.f32.partialorder %v7286, 0.0
      %vm7319 = vcmp.ge.f32.partialorder %v7287, 0.0
      %vm7320 = vcmp.ge.f32.partialorder %v7288, 0.0
      %vm7321 = vcmp.ge.f32.partialorder %v7289, 0.0
      %vm7322 = vcmp.ge.f32.partialorder %v7290, 0.0
      %vm7323 = vcmp.ge.f32.partialorder %v7291, 0.0
      %vm7324 = vcmp.ge.f32.partialorder %v7292, 0.0
      %vm7325 = vcmp.ge.f32.partialorder %v7293, 0.0
      %vm7326 = vcmp.ge.f32.partialorder %v7294, 0.0
      %vm7327 = vcmp.ge.f32.partialorder %v7295, 0.0
      %vm7328 = vcmp.ge.f32.partialorder %v7296, 0.0
      %vm7329 = vcmp.ge.f32.partialorder %v7297, 0.0
      %vm7330 = vcmp.ge.f32.partialorder %v7298, 0.0
      %vm7331 = vcmp.ge.f32.partialorder %v7299, 0.0
      %vm7332 = vcmp.ge.f32.partialorder %v7300, 0.0
      %vm7333 = vcmp.ge.f32.partialorder %v7301, 0.0
      %vm7334 = vcmp.ge.f32.partialorder %v7302, 0.0
      %vm7335 = vcmp.ge.f32.partialorder %v7303, 0.0
      %vm7336 = vcmp.ge.f32.partialorder %v7304, 0.0
      %vm7337 = vcmp.ge.f32.partialorder %v7305, 0.0
      %vm7338 = vcmp.ge.f32.partialorder %v7306, 0.0
      %vm7339 = vcmp.ge.f32.partialorder %v7307, 0.0
      %vm7340 = vcmp.ge.f32.partialorder %v7308, 0.0
      %vm7341 = vcmp.ge.f32.partialorder %v7309, 0.0
      %vm7342 = vcmp.ge.f32.partialorder %v7310, 0.0
      %vm7343 = vcmp.ge.f32.partialorder %v7311, 0.0
      %vm7344 = vcmp.ge.f32.partialorder %v7312, 0.0
      %vm7345 = vcmp.ge.f32.partialorder %v7313, 0.0
      %vm7346 = vcmp.ge.f32.partialorder %v7314, 0.0
      %vm7347 = vcmp.ge.f32.partialorder %v7315, 0.0
      %vm7348 = vcmp.ge.f32.partialorder %v7316, 0.0
      %v7349 = vmul.f32 %v7285, 0.01
      %v7350 = vmul.f32 %v7286, 0.01
      %v7351 = vmul.f32 %v7287, 0.01
      %v7352 = vmul.f32 %v7288, 0.01
      %v7353 = vmul.f32 %v7289, 0.01
      %v7354 = vmul.f32 %v7290, 0.01
      %v7355 = vmul.f32 %v7291, 0.01
      %v7356 = vmul.f32 %v7292, 0.01
      %v7357 = vmul.f32 %v7293, 0.01
      %v7358 = vmul.f32 %v7294, 0.01
      %v7359 = vmul.f32 %v7295, 0.01
      %v7360 = vmul.f32 %v7296, 0.01
      %v7361 = vmul.f32 %v7297, 0.01
      %v7362 = vmul.f32 %v7298, 0.01
      %v7363 = vmul.f32 %v7299, 0.01
      %v7364 = vmul.f32 %v7300, 0.01
      %v7365 = vmul.f32 %v7301, 0.01
      %v7366 = vmul.f32 %v7302, 0.01
      %v7367 = vmul.f32 %v7303, 0.01
      %v7368 = vmul.f32 %v7304, 0.01
      %v7369 = vmul.f32 %v7305, 0.01
      %v7370 = vmul.f32 %v7306, 0.01
      %v7371 = vmul.f32 %v7307, 0.01
      %v7372 = vmul.f32 %v7308, 0.01
      %v7373 = vmul.f32 %v7309, 0.01
      %v7374 = vmul.f32 %v7310, 0.01
      %v7375 = vmul.f32 %v7311, 0.01
      %v7376 = vmul.f32 %v7312, 0.01
      %v7377 = vmul.f32 %v7313, 0.01
      %v7378 = vmul.f32 %v7314, 0.01
      %v7379 = vmul.f32 %v7315, 0.01
      %v7380 = vmul.f32 %v7316, 0.01
      %v7381 = vsel %vm7317, %v7285, %v7349
      %v7382 = vsel %vm7318, %v7286, %v7350
      %v7383 = vsel %vm7319, %v7287, %v7351
      %v7384 = vsel %vm7320, %v7288, %v7352
      %v7385 = vsel %vm7321, %v7289, %v7353
      %v7386 = vsel %vm7322, %v7290, %v7354
      %v7387 = vsel %vm7323, %v7291, %v7355
      %v7388 = vsel %vm7324, %v7292, %v7356
      %v7389 = vsel %vm7325, %v7293, %v7357
      %v7390 = vsel %vm7326, %v7294, %v7358
      %v7391 = vsel %vm7327, %v7295, %v7359
      %v7392 = vsel %vm7328, %v7296, %v7360
      %v7393 = vsel %vm7329, %v7297, %v7361
      %v7394 = vsel %vm7330, %v7298, %v7362
      %v7395 = vsel %vm7331, %v7299, %v7363
      %v7396 = vsel %vm7332, %v7300, %v7364
      %v7397 = vsel %vm7333, %v7301, %v7365
      %v7398 = vsel %vm7334, %v7302, %v7366
      %v7399 = vsel %vm7335, %v7303, %v7367
      %v7400 = vsel %vm7336, %v7304, %v7368
      %v7401 = vsel %vm7337, %v7305, %v7369
      %v7402 = vsel %vm7338, %v7306, %v7370
      %v7403 = vsel %vm7339, %v7307, %v7371
      %v7404 = vsel %vm7340, %v7308, %v7372
      %v7405 = vsel %vm7341, %v7309, %v7373
      %v7406 = vsel %vm7342, %v7310, %v7374
      %v7407 = vsel %vm7343, %v7311, %v7375
      %v7408 = vsel %vm7344, %v7312, %v7376
      %v7409 = vsel %vm7345, %v7313, %v7377
      %v7410 = vsel %vm7346, %v7314, %v7378
      %v7411 = vsel %vm7347, %v7315, %v7379
      %v7412 = vsel %vm7348, %v7316, %v7380
      %v7413 = vpack.c.bf16 %v7382, %v7381
      %v7414 = vpack.c.bf16 %v7384, %v7383
      %v7415 = vpack.c.bf16 %v7386, %v7385
      %v7416 = vpack.c.bf16 %v7388, %v7387
      %v7417 = vpack.c.bf16 %v7390, %v7389
      %v7418 = vpack.c.bf16 %v7392, %v7391
      %v7419 = vpack.c.bf16 %v7394, %v7393
      %v7420 = vpack.c.bf16 %v7396, %v7395
      %v7421 = vpack.c.bf16 %v7398, %v7397
      %v7422 = vpack.c.bf16 %v7400, %v7399
      %v7423 = vpack.c.bf16 %v7402, %v7401
      %v7424 = vpack.c.bf16 %v7404, %v7403
      %v7425 = vpack.c.bf16 %v7406, %v7405
      %v7426 = vpack.c.bf16 %v7408, %v7407
      %v7427 = vpack.c.bf16 %v7410, %v7409
      %v7428 = vpack.c.bf16 %v7412, %v7411
      %v7429 = vld [vmem:[%s3] sm:$0x1]
      %v7431 = vsel %vm655, %v7413, 0
      %v7434 = vsel %vm655, %v7414, 0
      %v7437 = vsel %vm655, %v7415, 0
      %v7440 = vsel %vm655, %v7416, 0
      %v7443 = vsel %vm655, %v7417, 0
      %v7446 = vsel %vm655, %v7418, 0
      %v7449 = vsel %vm655, %v7419, 0
      %v7452 = vsel %vm655, %v7420, 0
      %v7455 = vsel %vm655, %v7421, 0
      %v7458 = vsel %vm655, %v7422, 0
      %v7461 = vsel %vm655, %v7423, 0
      %v7464 = vsel %vm655, %v7424, 0
      %v7467 = vsel %vm655, %v7425, 0
      %v7470 = vsel %vm655, %v7426, 0
      %v7473 = vsel %vm655, %v7427, 0
      %v7476 = vsel %vm655, %v7428, 0
      %v7479 = vsel %vm2612, %v7429, 0
      %7481 = vmatprep.subr.bf16.mxu0 0
      %7482 = vmatpush1.bf16.msra.mxu0 0
      %7483 = vmatprep.subr.bf16.mxu0 0
      %7484 = vmatpush1.bf16.msra.mxu0 0
      %7485 = vmatprep.subr.bf16.mxu0 0
      %7486 = vmatpush1.bf16.msra.mxu0 0
      %7487 = vmatprep.subr.bf16.mxu0 0
      %7488 = vmatpush1.bf16.msra.mxu0 0
      %7489 = vmatprep.subr.bf16.mxu0 0
      %7490 = vmatpush1.bf16.msra.mxu0 0
      %7491 = vmatprep.subr.bf16.mxu0 0
      %7492 = vmatpush1.bf16.msra.mxu0 0
      %7493 = vmatprep.subr.bf16.mxu0 0
      %7494 = vmatpush1.bf16.msra.mxu0 0
      %7495 = vmatprep.subr.bf16.mxu0 0
      %7496 = vmatpush1.bf16.msra.mxu0 %v7479
      %7497 = vmatprep.subr.bf16.mxu0 0
      %7498 = vmatpush2.bf16.msra.mxu0 0
      %7499 = vmatprep.subr.bf16.mxu0 0
      %7500 = vmatpush2.bf16.msra.mxu0 0
      %7501 = vmatprep.subr.bf16.mxu0 0
      %7502 = vmatpush2.bf16.msra.mxu0 0
      %7503 = vmatprep.subr.bf16.mxu0 0
      %7504 = vmatpush2.bf16.msra.mxu0 0
      %7505 = vmatprep.subr.bf16.mxu0 0
      %7506 = vmatpush2.bf16.msra.mxu0 0
      %7507 = vmatprep.subr.bf16.mxu0 0
      %7508 = vmatpush2.bf16.msra.mxu0 0
      %7509 = vmatprep.subr.bf16.mxu0 0
      %7510 = vmatpush2.bf16.msra.mxu0 0
      %7511 = vmatprep.subr.bf16.mxu0 0
      %7512 = vmatpush2.bf16.msra.mxu0 0
      %7513 = vmatprep.mubr.bf16.mxu0 0
      %7514 = vmatmul.mubr.bf16.gmra.mxu0 %v7431
      %v7515 = vpop.f32.mrf.mxu0
      %v7516 = vadd.f32 0.0, %v7515
      %v7517 = vpop.f32.mrf.mxu0
      %v7518 = vpop.f32.mrf.mxu0
      %v7519 = vadd.f32 0.0, %v7518
      %v7520 = vpop.f32.mrf.mxu0
      %7521 = vmatprep.mubr.bf16.mxu0 0
      %7522 = vmatmul.mubr.bf16.gmra.mxu0 %v7434
      %v7523 = vpop.f32.mrf.mxu0
      %v7524 = vadd.f32 0.0, %v7523
      %v7525 = vpop.f32.mrf.mxu0
      %v7526 = vpop.f32.mrf.mxu0
      %v7527 = vadd.f32 0.0, %v7526
      %v7528 = vpop.f32.mrf.mxu0
      %7529 = vmatprep.mubr.bf16.mxu0 0
      %7530 = vmatmul.mubr.bf16.gmra.mxu0 %v7437
      %v7531 = vpop.f32.mrf.mxu0
      %v7532 = vadd.f32 0.0, %v7531
      %v7533 = vpop.f32.mrf.mxu0
      %v7534 = vpop.f32.mrf.mxu0
      %v7535 = vadd.f32 0.0, %v7534
      %v7536 = vpop.f32.mrf.mxu0
      %7537 = vmatprep.mubr.bf16.mxu0 0
      %7538 = vmatmul.mubr.bf16.gmra.mxu0 %v7440
      %v7539 = vpop.f32.mrf.mxu0
      %v7540 = vadd.f32 0.0, %v7539
      %v7541 = vpop.f32.mrf.mxu0
      %v7542 = vpop.f32.mrf.mxu0
      %v7543 = vadd.f32 0.0, %v7542
      %v7544 = vpop.f32.mrf.mxu0
      %7545 = vmatprep.mubr.bf16.mxu0 0
      %7546 = vmatmul.mubr.bf16.gmra.mxu0 %v7443
      %v7547 = vpop.f32.mrf.mxu0
      %v7548 = vadd.f32 0.0, %v7547
      %v7549 = vpop.f32.mrf.mxu0
      %v7550 = vpop.f32.mrf.mxu0
      %v7551 = vadd.f32 0.0, %v7550
      %v7552 = vpop.f32.mrf.mxu0
      %7553 = vmatprep.mubr.bf16.mxu0 0
      %7554 = vmatmul.mubr.bf16.gmra.mxu0 %v7446
      %v7555 = vpop.f32.mrf.mxu0
      %v7556 = vadd.f32 0.0, %v7555
      %v7557 = vpop.f32.mrf.mxu0
      %v7558 = vpop.f32.mrf.mxu0
      %v7559 = vadd.f32 0.0, %v7558
      %v7560 = vpop.f32.mrf.mxu0
      %7561 = vmatprep.mubr.bf16.mxu0 0
      %7562 = vmatmul.mubr.bf16.gmra.mxu0 %v7449
      %v7563 = vpop.f32.mrf.mxu0
      %v7564 = vadd.f32 0.0, %v7563
      %v7565 = vpop.f32.mrf.mxu0
      %v7566 = vpop.f32.mrf.mxu0
      %v7567 = vadd.f32 0.0, %v7566
      %v7568 = vpop.f32.mrf.mxu0
      %7569 = vmatprep.mubr.bf16.mxu0 0
      %7570 = vmatmul.mubr.bf16.gmra.mxu0 %v7452
      %v7571 = vpop.f32.mrf.mxu0
      %v7572 = vadd.f32 0.0, %v7571
      %v7573 = vpop.f32.mrf.mxu0
      %v7574 = vpop.f32.mrf.mxu0
      %v7575 = vadd.f32 0.0, %v7574
      %v7576 = vpop.f32.mrf.mxu0
      %7577 = vmatprep.mubr.bf16.mxu0 0
      %7578 = vmatmul.mubr.bf16.gmra.mxu0 %v7455
      %v7579 = vpop.f32.mrf.mxu0
      %v7580 = vadd.f32 0.0, %v7579
      %v7581 = vpop.f32.mrf.mxu0
      %v7582 = vpop.f32.mrf.mxu0
      %v7583 = vadd.f32 0.0, %v7582
      %v7584 = vpop.f32.mrf.mxu0
      %7585 = vmatprep.mubr.bf16.mxu0 0
      %7586 = vmatmul.mubr.bf16.gmra.mxu0 %v7458
      %v7587 = vpop.f32.mrf.mxu0
      %v7588 = vadd.f32 0.0, %v7587
      %v7589 = vpop.f32.mrf.mxu0
      %v7590 = vpop.f32.mrf.mxu0
      %v7591 = vadd.f32 0.0, %v7590
      %v7592 = vpop.f32.mrf.mxu0
      %7593 = vmatprep.mubr.bf16.mxu0 0
      %7594 = vmatmul.mubr.bf16.gmra.mxu0 %v7461
      %v7595 = vpop.f32.mrf.mxu0
      %v7596 = vadd.f32 0.0, %v7595
      %v7597 = vpop.f32.mrf.mxu0
      %v7598 = vpop.f32.mrf.mxu0
      %v7599 = vadd.f32 0.0, %v7598
      %v7600 = vpop.f32.mrf.mxu0
      %7601 = vmatprep.mubr.bf16.mxu0 0
      %7602 = vmatmul.mubr.bf16.gmra.mxu0 %v7464
      %v7603 = vpop.f32.mrf.mxu0
      %v7604 = vadd.f32 0.0, %v7603
      %v7605 = vpop.f32.mrf.mxu0
      %v7606 = vpop.f32.mrf.mxu0
      %v7607 = vadd.f32 0.0, %v7606
      %v7608 = vpop.f32.mrf.mxu0
      %7609 = vmatprep.mubr.bf16.mxu0 0
      %7610 = vmatmul.mubr.bf16.gmra.mxu0 %v7467
      %v7611 = vpop.f32.mrf.mxu0
      %v7612 = vadd.f32 0.0, %v7611
      %v7613 = vpop.f32.mrf.mxu0
      %v7614 = vpop.f32.mrf.mxu0
      %v7615 = vadd.f32 0.0, %v7614
      %v7616 = vpop.f32.mrf.mxu0
      %7617 = vmatprep.mubr.bf16.mxu0 0
      %7618 = vmatmul.mubr.bf16.gmra.mxu0 %v7470
      %v7619 = vpop.f32.mrf.mxu0
      %v7620 = vadd.f32 0.0, %v7619
      %v7621 = vpop.f32.mrf.mxu0
      %v7622 = vpop.f32.mrf.mxu0
      %v7623 = vadd.f32 0.0, %v7622
      %v7624 = vpop.f32.mrf.mxu0
      %7625 = vmatprep.mubr.bf16.mxu0 0
      %7626 = vmatmul.mubr.bf16.gmra.mxu0 %v7473
      %v7627 = vpop.f32.mrf.mxu0
      %v7628 = vadd.f32 0.0, %v7627
      %v7629 = vpop.f32.mrf.mxu0
      %v7630 = vpop.f32.mrf.mxu0
      %v7631 = vadd.f32 0.0, %v7630
      %v7632 = vpop.f32.mrf.mxu0
      %7633 = vmatprep.mubr.bf16.mxu0 0
      %7634 = vmatmul.mubr.bf16.gmra.mxu0 %v7476
      %v7635 = vpop.f32.mrf.mxu0
      %v7636 = vadd.f32 0.0, %v7635
      %v7637 = vpop.f32.mrf.mxu0
      %v7638 = vpop.f32.mrf.mxu0
      %v7639 = vadd.f32 0.0, %v7638
      %v7640 = vpop.f32.mrf.mxu0
      %7641 = vdwg.mxu0
      %v7642 = vld [vmem:[%s6] sm:$0x1]
      %v7643 = vld [vmem:[%s6 + $0x1] sm:$0x1]
      %v7644 = vsel %vm1034, %v7516, 0.0
      %v7645 = vsel %vm1034, %v7519, 0.0
      %v7646 = vadd.f32 %v7644, %v7645
      %v7647 = vsel %vm1034, %v7524, 0.0
      %v7648 = vadd.f32 %v7646, %v7647
      %v7649 = vsel %vm1034, %v7527, 0.0
      %v7650 = vadd.f32 %v7648, %v7649
      %v7651 = vsel %vm1034, %v7532, 0.0
      %v7652 = vadd.f32 %v7650, %v7651
      %v7653 = vsel %vm1034, %v7535, 0.0
      %v7654 = vadd.f32 %v7652, %v7653
      %v7655 = vsel %vm1034, %v7540, 0.0
      %v7656 = vadd.f32 %v7654, %v7655
      %v7657 = vsel %vm1034, %v7543, 0.0
      %v7658 = vadd.f32 %v7656, %v7657
      %v7659 = vsel %vm1034, %v7548, 0.0
      %v7660 = vadd.f32 %v7658, %v7659
      %v7661 = vsel %vm1034, %v7551, 0.0
      %v7662 = vadd.f32 %v7660, %v7661
      %v7663 = vsel %vm1034, %v7556, 0.0
      %v7664 = vadd.f32 %v7662, %v7663
      %v7665 = vsel %vm1034, %v7559, 0.0
      %v7666 = vadd.f32 %v7664, %v7665
      %v7667 = vsel %vm1034, %v7564, 0.0
      %v7668 = vadd.f32 %v7666, %v7667
      %v7669 = vsel %vm1034, %v7567, 0.0
      %v7670 = vadd.f32 %v7668, %v7669
      %v7671 = vsel %vm1034, %v7572, 0.0
      %v7672 = vadd.f32 %v7670, %v7671
      %v7673 = vsel %vm1034, %v7575, 0.0
      %v7674 = vadd.f32 %v7672, %v7673
      %v7675 = vsel %vm1034, %v7580, 0.0
      %v7676 = vadd.f32 %v7674, %v7675
      %v7677 = vsel %vm1034, %v7583, 0.0
      %v7678 = vadd.f32 %v7676, %v7677
      %v7679 = vsel %vm1034, %v7588, 0.0
      %v7680 = vadd.f32 %v7678, %v7679
      %v7681 = vsel %vm1034, %v7591, 0.0
      %v7682 = vadd.f32 %v7680, %v7681
      %v7683 = vsel %vm1034, %v7596, 0.0
      %v7684 = vadd.f32 %v7682, %v7683
      %v7685 = vsel %vm1034, %v7599, 0.0
      %v7686 = vadd.f32 %v7684, %v7685
      %v7687 = vsel %vm1034, %v7604, 0.0
      %v7688 = vadd.f32 %v7686, %v7687
      %v7689 = vsel %vm1034, %v7607, 0.0
      %v7690 = vadd.f32 %v7688, %v7689
      %v7691 = vsel %vm1034, %v7612, 0.0
      %v7692 = vadd.f32 %v7690, %v7691
      %v7693 = vsel %vm1034, %v7615, 0.0
      %v7694 = vadd.f32 %v7692, %v7693
      %v7695 = vsel %vm1034, %v7620, 0.0
      %v7696 = vadd.f32 %v7694, %v7695
      %v7697 = vsel %vm1034, %v7623, 0.0
      %v7698 = vadd.f32 %v7696, %v7697
      %v7699 = vsel %vm1034, %v7628, 0.0
      %v7700 = vadd.f32 %v7698, %v7699
      %v7701 = vsel %vm1034, %v7631, 0.0
      %v7702 = vadd.f32 %v7700, %v7701
      %v7703 = vsel %vm1034, %v7636, 0.0
      %v7704 = vadd.f32 %v7702, %v7703
      %v7705 = vsel %vm1034, %v7639, 0.0
      %v7706 = vadd.f32 %v7704, %v7705
      %v7707 = vrot.slane %v7706, 4
      %v7708 = vadd.f32 %v7706, %v7707
      %v7709 = vrot.slane %v7708, 2
      %v7710 = vadd.f32 %v7708, %v7709
      %v7711 = vrot.slane %v7710, 1
      %v7712 = vadd.f32 %v7710, %v7711
      %v7713 = vmul.f32 %v7712, %v725
      %v7714 = vsub.f32 %v7516, %v7713
      %v7715 = vsub.f32 %v7519, %v7713
      %v7716 = vsub.f32 %v7524, %v7713
      %v7717 = vsub.f32 %v7527, %v7713
      %v7718 = vsub.f32 %v7532, %v7713
      %v7719 = vsub.f32 %v7535, %v7713
      %v7720 = vsub.f32 %v7540, %v7713
      %v7721 = vsub.f32 %v7543, %v7713
      %v7722 = vsub.f32 %v7548, %v7713
      %v7723 = vsub.f32 %v7551, %v7713
      %v7724 = vsub.f32 %v7556, %v7713
      %v7725 = vsub.f32 %v7559, %v7713
      %v7726 = vsub.f32 %v7564, %v7713
      %v7727 = vsub.f32 %v7567, %v7713
      %v7728 = vsub.f32 %v7572, %v7713
      %v7729 = vsub.f32 %v7575, %v7713
      %v7730 = vsub.f32 %v7580, %v7713
      %v7731 = vsub.f32 %v7583, %v7713
      %v7732 = vsub.f32 %v7588, %v7713
      %v7733 = vsub.f32 %v7591, %v7713
      %v7734 = vsub.f32 %v7596, %v7713
      %v7735 = vsub.f32 %v7599, %v7713
      %v7736 = vsub.f32 %v7604, %v7713
      %v7737 = vsub.f32 %v7607, %v7713
      %v7738 = vsub.f32 %v7612, %v7713
      %v7739 = vsub.f32 %v7615, %v7713
      %v7740 = vsub.f32 %v7620, %v7713
      %v7741 = vsub.f32 %v7623, %v7713
      %v7742 = vsub.f32 %v7628, %v7713
      %v7743 = vsub.f32 %v7631, %v7713
      %v7744 = vsub.f32 %v7636, %v7713
      %v7745 = vsub.f32 %v7639, %v7713
      %v7746 = vmul.f32 %v7714, %v7714
      %v7747 = vmul.f32 %v7715, %v7715
      %v7748 = vmul.f32 %v7716, %v7716
      %v7749 = vmul.f32 %v7717, %v7717
      %v7750 = vmul.f32 %v7718, %v7718
      %v7751 = vmul.f32 %v7719, %v7719
      %v7752 = vmul.f32 %v7720, %v7720
      %v7753 = vmul.f32 %v7721, %v7721
      %v7754 = vmul.f32 %v7722, %v7722
      %v7755 = vmul.f32 %v7723, %v7723
      %v7756 = vmul.f32 %v7724, %v7724
      %v7757 = vmul.f32 %v7725, %v7725
      %v7758 = vmul.f32 %v7726, %v7726
      %v7759 = vmul.f32 %v7727, %v7727
      %v7760 = vmul.f32 %v7728, %v7728
      %v7761 = vmul.f32 %v7729, %v7729
      %v7762 = vmul.f32 %v7730, %v7730
      %v7763 = vmul.f32 %v7731, %v7731
      %v7764 = vmul.f32 %v7732, %v7732
      %v7765 = vmul.f32 %v7733, %v7733
      %v7766 = vmul.f32 %v7734, %v7734
      %v7767 = vmul.f32 %v7735, %v7735
      %v7768 = vmul.f32 %v7736, %v7736
      %v7769 = vmul.f32 %v7737, %v7737
      %v7770 = vmul.f32 %v7738, %v7738
      %v7771 = vmul.f32 %v7739, %v7739
      %v7772 = vmul.f32 %v7740, %v7740
      %v7773 = vmul.f32 %v7741, %v7741
      %v7774 = vmul.f32 %v7742, %v7742
      %v7775 = vmul.f32 %v7743, %v7743
      %v7776 = vmul.f32 %v7744, %v7744
      %v7777 = vmul.f32 %v7745, %v7745
      %v7778 = vsel %vm1034, %v7746, 0.0
      %v7779 = vsel %vm1034, %v7747, 0.0
      %v7780 = vadd.f32 %v7778, %v7779
      %v7781 = vsel %vm1034, %v7748, 0.0
      %v7782 = vadd.f32 %v7780, %v7781
      %v7783 = vsel %vm1034, %v7749, 0.0
      %v7784 = vadd.f32 %v7782, %v7783
      %v7785 = vsel %vm1034, %v7750, 0.0
      %v7786 = vadd.f32 %v7784, %v7785
      %v7787 = vsel %vm1034, %v7751, 0.0
      %v7788 = vadd.f32 %v7786, %v7787
      %v7789 = vsel %vm1034, %v7752, 0.0
      %v7790 = vadd.f32 %v7788, %v7789
      %v7791 = vsel %vm1034, %v7753, 0.0
      %v7792 = vadd.f32 %v7790, %v7791
      %v7793 = vsel %vm1034, %v7754, 0.0
      %v7794 = vadd.f32 %v7792, %v7793
      %v7795 = vsel %vm1034, %v7755, 0.0
      %v7796 = vadd.f32 %v7794, %v7795
      %v7797 = vsel %vm1034, %v7756, 0.0
      %v7798 = vadd.f32 %v7796, %v7797
      %v7799 = vsel %vm1034, %v7757, 0.0
      %v7800 = vadd.f32 %v7798, %v7799
      %v7801 = vsel %vm1034, %v7758, 0.0
      %v7802 = vadd.f32 %v7800, %v7801
      %v7803 = vsel %vm1034, %v7759, 0.0
      %v7804 = vadd.f32 %v7802, %v7803
      %v7805 = vsel %vm1034, %v7760, 0.0
      %v7806 = vadd.f32 %v7804, %v7805
      %v7807 = vsel %vm1034, %v7761, 0.0
      %v7808 = vadd.f32 %v7806, %v7807
      %v7809 = vsel %vm1034, %v7762, 0.0
      %v7810 = vadd.f32 %v7808, %v7809
      %v7811 = vsel %vm1034, %v7763, 0.0
      %v7812 = vadd.f32 %v7810, %v7811
      %v7813 = vsel %vm1034, %v7764, 0.0
      %v7814 = vadd.f32 %v7812, %v7813
      %v7815 = vsel %vm1034, %v7765, 0.0
      %v7816 = vadd.f32 %v7814, %v7815
      %v7817 = vsel %vm1034, %v7766, 0.0
      %v7818 = vadd.f32 %v7816, %v7817
      %v7819 = vsel %vm1034, %v7767, 0.0
      %v7820 = vadd.f32 %v7818, %v7819
      %v7821 = vsel %vm1034, %v7768, 0.0
      %v7822 = vadd.f32 %v7820, %v7821
      %v7823 = vsel %vm1034, %v7769, 0.0
      %v7824 = vadd.f32 %v7822, %v7823
      %v7825 = vsel %vm1034, %v7770, 0.0
      %v7826 = vadd.f32 %v7824, %v7825
      %v7827 = vsel %vm1034, %v7771, 0.0
      %v7828 = vadd.f32 %v7826, %v7827
      %v7829 = vsel %vm1034, %v7772, 0.0
      %v7830 = vadd.f32 %v7828, %v7829
      %v7831 = vsel %vm1034, %v7773, 0.0
      %v7832 = vadd.f32 %v7830, %v7831
      %v7833 = vsel %vm1034, %v7774, 0.0
      %v7834 = vadd.f32 %v7832, %v7833
      %v7835 = vsel %vm1034, %v7775, 0.0
      %v7836 = vadd.f32 %v7834, %v7835
      %v7837 = vsel %vm1034, %v7776, 0.0
      %v7838 = vadd.f32 %v7836, %v7837
      %v7839 = vsel %vm1034, %v7777, 0.0
      %v7840 = vadd.f32 %v7838, %v7839
      %v7841 = vrot.slane %v7840, 4
      %v7842 = vadd.f32 %v7840, %v7841
      %v7843 = vrot.slane %v7842, 2
      %v7844 = vadd.f32 %v7842, %v7843
      %v7845 = vrot.slane %v7844, 1
      %v7846 = vadd.f32 %v7844, %v7845
      %v7847 = vmul.f32 %v7846, %v725
      %v7848 = vadd.f32 %v7847, 1e-05
      %v7849 = vrsqrt.pop %v7848
      %v7850 = vmul.f32 %v7642, %v7849
      %v7851 = vlaneseq
      %v7852 = vshrl.u32 %v7851, 7
      %v7853 = vsub.s32 0, %v7852
      %v7854 = vrot.slane %v7850, %v7853
      %v7855 = vmul.f32 %v7714, %v7854
      %v7856 = vmul.f32 %v7715, %v7854
      %v7857 = vmul.f32 %v7716, %v7854
      %v7858 = vmul.f32 %v7717, %v7854
      %v7859 = vmul.f32 %v7718, %v7854
      %v7860 = vmul.f32 %v7719, %v7854
      %v7861 = vmul.f32 %v7720, %v7854
      %v7862 = vmul.f32 %v7721, %v7854
      %v7863 = vmul.f32 %v7722, %v7854
      %v7864 = vmul.f32 %v7723, %v7854
      %v7865 = vmul.f32 %v7724, %v7854
      %v7866 = vmul.f32 %v7725, %v7854
      %v7867 = vmul.f32 %v7726, %v7854
      %v7868 = vmul.f32 %v7727, %v7854
      %v7869 = vmul.f32 %v7728, %v7854
      %v7870 = vmul.f32 %v7729, %v7854
      %v7871 = vmul.f32 %v7730, %v7854
      %v7872 = vmul.f32 %v7731, %v7854
      %v7873 = vmul.f32 %v7732, %v7854
      %v7874 = vmul.f32 %v7733, %v7854
      %v7875 = vmul.f32 %v7734, %v7854
      %v7876 = vmul.f32 %v7735, %v7854
      %v7877 = vmul.f32 %v7736, %v7854
      %v7878 = vmul.f32 %v7737, %v7854
      %v7879 = vmul.f32 %v7738, %v7854
      %v7880 = vmul.f32 %v7739, %v7854
      %v7881 = vmul.f32 %v7740, %v7854
      %v7882 = vmul.f32 %v7741, %v7854
      %v7883 = vmul.f32 %v7742, %v7854
      %v7884 = vmul.f32 %v7743, %v7854
      %v7885 = vmul.f32 %v7744, %v7854
      %v7886 = vmul.f32 %v7745, %v7854
      %v7887 = vlaneseq
      %v7888 = vshrl.u32 %v7887, 7
      %v7889 = vsub.s32 0, %v7888
      %v7890 = vrot.slane %v7643, %v7889
      %v7891 = vadd.f32 %v7855, %v7890
      %v7892 = vadd.f32 %v7856, %v7890
      %v7893 = vadd.f32 %v7857, %v7890
      %v7894 = vadd.f32 %v7858, %v7890
      %v7895 = vadd.f32 %v7859, %v7890
      %v7896 = vadd.f32 %v7860, %v7890
      %v7897 = vadd.f32 %v7861, %v7890
      %v7898 = vadd.f32 %v7862, %v7890
      %v7899 = vadd.f32 %v7863, %v7890
      %v7900 = vadd.f32 %v7864, %v7890
      %v7901 = vadd.f32 %v7865, %v7890
      %v7902 = vadd.f32 %v7866, %v7890
      %v7903 = vadd.f32 %v7867, %v7890
      %v7904 = vadd.f32 %v7868, %v7890
      %v7905 = vadd.f32 %v7869, %v7890
      %v7906 = vadd.f32 %v7870, %v7890
      %v7907 = vadd.f32 %v7871, %v7890
      %v7908 = vadd.f32 %v7872, %v7890
      %v7909 = vadd.f32 %v7873, %v7890
      %v7910 = vadd.f32 %v7874, %v7890
      %v7911 = vadd.f32 %v7875, %v7890
      %v7912 = vadd.f32 %v7876, %v7890
      %v7913 = vadd.f32 %v7877, %v7890
      %v7914 = vadd.f32 %v7878, %v7890
      %v7915 = vadd.f32 %v7879, %v7890
      %v7916 = vadd.f32 %v7880, %v7890
      %v7917 = vadd.f32 %v7881, %v7890
      %v7918 = vadd.f32 %v7882, %v7890
      %v7919 = vadd.f32 %v7883, %v7890
      %v7920 = vadd.f32 %v7884, %v7890
      %v7921 = vadd.f32 %v7885, %v7890
      %v7922 = vadd.f32 %v7886, %v7890
      %v7923 = vadd.f32 %v7891, %v1282
      %v7924 = vadd.f32 %v7892, %v1283
      %v7925 = vadd.f32 %v7893, %v1284
      %v7926 = vadd.f32 %v7894, %v1285
      %v7927 = vadd.f32 %v7895, %v1286
      %v7928 = vadd.f32 %v7896, %v1287
      %v7929 = vadd.f32 %v7897, %v1288
      %v7930 = vadd.f32 %v7898, %v1289
      %v7931 = vadd.f32 %v7899, %v1290
      %v7932 = vadd.f32 %v7900, %v1291
      %v7933 = vadd.f32 %v7901, %v1292
      %v7934 = vadd.f32 %v7902, %v1293
      %v7935 = vadd.f32 %v7903, %v1294
      %v7936 = vadd.f32 %v7904, %v1295
      %v7937 = vadd.f32 %v7905, %v1296
      %v7938 = vadd.f32 %v7906, %v1297
      %v7939 = vadd.f32 %v7907, %v1298
      %v7940 = vadd.f32 %v7908, %v1299
      %v7941 = vadd.f32 %v7909, %v1300
      %v7942 = vadd.f32 %v7910, %v1301
      %v7943 = vadd.f32 %v7911, %v1302
      %v7944 = vadd.f32 %v7912, %v1303
      %v7945 = vadd.f32 %v7913, %v1304
      %v7946 = vadd.f32 %v7914, %v1305
      %v7947 = vadd.f32 %v7915, %v1306
      %v7948 = vadd.f32 %v7916, %v1307
      %v7949 = vadd.f32 %v7917, %v1308
      %v7950 = vadd.f32 %v7918, %v1309
      %v7951 = vadd.f32 %v7919, %v1310
      %v7952 = vadd.f32 %v7920, %v1311
      %v7953 = vadd.f32 %v7921, %v1312
      %v7954 = vadd.f32 %v7922, %v1313
      %vm7955 = vcmp.ge.f32.partialorder %v7923, 0.0
      %vm7956 = vcmp.ge.f32.partialorder %v7924, 0.0
      %vm7957 = vcmp.ge.f32.partialorder %v7925, 0.0
      %vm7958 = vcmp.ge.f32.partialorder %v7926, 0.0
      %vm7959 = vcmp.ge.f32.partialorder %v7927, 0.0
      %vm7960 = vcmp.ge.f32.partialorder %v7928, 0.0
      %vm7961 = vcmp.ge.f32.partialorder %v7929, 0.0
      %vm7962 = vcmp.ge.f32.partialorder %v7930, 0.0
      %vm7963 = vcmp.ge.f32.partialorder %v7931, 0.0
      %vm7964 = vcmp.ge.f32.partialorder %v7932, 0.0
      %vm7965 = vcmp.ge.f32.partialorder %v7933, 0.0
      %vm7966 = vcmp.ge.f32.partialorder %v7934, 0.0
      %vm7967 = vcmp.ge.f32.partialorder %v7935, 0.0
      %vm7968 = vcmp.ge.f32.partialorder %v7936, 0.0
      %vm7969 = vcmp.ge.f32.partialorder %v7937, 0.0
      %vm7970 = vcmp.ge.f32.partialorder %v7938, 0.0
      %vm7971 = vcmp.ge.f32.partialorder %v7939, 0.0
      %vm7972 = vcmp.ge.f32.partialorder %v7940, 0.0
      %vm7973 = vcmp.ge.f32.partialorder %v7941, 0.0
      %vm7974 = vcmp.ge.f32.partialorder %v7942, 0.0
      %vm7975 = vcmp.ge.f32.partialorder %v7943, 0.0
      %vm7976 = vcmp.ge.f32.partialorder %v7944, 0.0
      %vm7977 = vcmp.ge.f32.partialorder %v7945, 0.0
      %vm7978 = vcmp.ge.f32.partialorder %v7946, 0.0
      %vm7979 = vcmp.ge.f32.partialorder %v7947, 0.0
      %vm7980 = vcmp.ge.f32.partialorder %v7948, 0.0
      %vm7981 = vcmp.ge.f32.partialorder %v7949, 0.0
      %vm7982 = vcmp.ge.f32.partialorder %v7950, 0.0
      %vm7983 = vcmp.ge.f32.partialorder %v7951, 0.0
      %vm7984 = vcmp.ge.f32.partialorder %v7952, 0.0
      %vm7985 = vcmp.ge.f32.partialorder %v7953, 0.0
      %vm7986 = vcmp.ge.f32.partialorder %v7954, 0.0
      %v7987 = vmul.f32 %v7923, 0.01
      %v7988 = vmul.f32 %v7924, 0.01
      %v7989 = vmul.f32 %v7925, 0.01
      %v7990 = vmul.f32 %v7926, 0.01
      %v7991 = vmul.f32 %v7927, 0.01
      %v7992 = vmul.f32 %v7928, 0.01
      %v7993 = vmul.f32 %v7929, 0.01
      %v7994 = vmul.f32 %v7930, 0.01
      %v7995 = vmul.f32 %v7931, 0.01
      %v7996 = vmul.f32 %v7932, 0.01
      %v7997 = vmul.f32 %v7933, 0.01
      %v7998 = vmul.f32 %v7934, 0.01
      %v7999 = vmul.f32 %v7935, 0.01
      %v8000 = vmul.f32 %v7936, 0.01
      %v8001 = vmul.f32 %v7937, 0.01
      %v8002 = vmul.f32 %v7938, 0.01
      %v8003 = vmul.f32 %v7939, 0.01
      %v8004 = vmul.f32 %v7940, 0.01
      %v8005 = vmul.f32 %v7941, 0.01
      %v8006 = vmul.f32 %v7942, 0.01
      %v8007 = vmul.f32 %v7943, 0.01
      %v8008 = vmul.f32 %v7944, 0.01
      %v8009 = vmul.f32 %v7945, 0.01
      %v8010 = vmul.f32 %v7946, 0.01
      %v8011 = vmul.f32 %v7947, 0.01
      %v8012 = vmul.f32 %v7948, 0.01
      %v8013 = vmul.f32 %v7949, 0.01
      %v8014 = vmul.f32 %v7950, 0.01
      %v8015 = vmul.f32 %v7951, 0.01
      %v8016 = vmul.f32 %v7952, 0.01
      %v8017 = vmul.f32 %v7953, 0.01
      %v8018 = vmul.f32 %v7954, 0.01
      %v8019 = vsel %vm7955, %v7923, %v7987
      %v8020 = vsel %vm7956, %v7924, %v7988
      %v8021 = vsel %vm7957, %v7925, %v7989
      %v8022 = vsel %vm7958, %v7926, %v7990
      %v8023 = vsel %vm7959, %v7927, %v7991
      %v8024 = vsel %vm7960, %v7928, %v7992
      %v8025 = vsel %vm7961, %v7929, %v7993
      %v8026 = vsel %vm7962, %v7930, %v7994
      %v8027 = vsel %vm7963, %v7931, %v7995
      %v8028 = vsel %vm7964, %v7932, %v7996
      %v8029 = vsel %vm7965, %v7933, %v7997
      %v8030 = vsel %vm7966, %v7934, %v7998
      %v8031 = vsel %vm7967, %v7935, %v7999
      %v8032 = vsel %vm7968, %v7936, %v8000
      %v8033 = vsel %vm7969, %v7937, %v8001
      %v8034 = vsel %vm7970, %v7938, %v8002
      %v8035 = vsel %vm7971, %v7939, %v8003
      %v8036 = vsel %vm7972, %v7940, %v8004
      %v8037 = vsel %vm7973, %v7941, %v8005
      %v8038 = vsel %vm7974, %v7942, %v8006
      %v8039 = vsel %vm7975, %v7943, %v8007
      %v8040 = vsel %vm7976, %v7944, %v8008
      %v8041 = vsel %vm7977, %v7945, %v8009
      %v8042 = vsel %vm7978, %v7946, %v8010
      %v8043 = vsel %vm7979, %v7947, %v8011
      %v8044 = vsel %vm7980, %v7948, %v8012
      %v8045 = vsel %vm7981, %v7949, %v8013
      %v8046 = vsel %vm7982, %v7950, %v8014
      %v8047 = vsel %vm7983, %v7951, %v8015
      %v8048 = vsel %vm7984, %v7952, %v8016
      %v8049 = vsel %vm7985, %v7953, %v8017
      %v8050 = vsel %vm7986, %v7954, %v8018
      %v8051 = vpack.c.bf16 %v8020, %v8019
      %v8052 = vpack.c.bf16 %v8022, %v8021
      %v8053 = vpack.c.bf16 %v8024, %v8023
      %v8054 = vpack.c.bf16 %v8026, %v8025
      %v8055 = vpack.c.bf16 %v8028, %v8027
      %v8056 = vpack.c.bf16 %v8030, %v8029
      %v8057 = vpack.c.bf16 %v8032, %v8031
      %v8058 = vpack.c.bf16 %v8034, %v8033
      %v8059 = vpack.c.bf16 %v8036, %v8035
      %v8060 = vpack.c.bf16 %v8038, %v8037
      %v8061 = vpack.c.bf16 %v8040, %v8039
      %v8062 = vpack.c.bf16 %v8042, %v8041
      %v8063 = vpack.c.bf16 %v8044, %v8043
      %v8064 = vpack.c.bf16 %v8046, %v8045
      %v8065 = vpack.c.bf16 %v8048, %v8047
      %v8066 = vpack.c.bf16 %v8050, %v8049
      %v8083 = vunpack.c.l.b16 %v8051
      %v8084 = vunpack.c.h.b16 %v8051
      %v8085 = vunpack.c.l.b16 %v8052
      %v8086 = vunpack.c.h.b16 %v8052
      %v8087 = vunpack.c.l.b16 %v8053
      %v8088 = vunpack.c.h.b16 %v8053
      %v8089 = vunpack.c.l.b16 %v8054
      %v8090 = vunpack.c.h.b16 %v8054
      %v8091 = vunpack.c.l.b16 %v8055
      %v8092 = vunpack.c.h.b16 %v8055
      %v8093 = vunpack.c.l.b16 %v8056
      %v8094 = vunpack.c.h.b16 %v8056
      %v8095 = vunpack.c.l.b16 %v8057
      %v8096 = vunpack.c.h.b16 %v8057
      %v8097 = vunpack.c.l.b16 %v8058
      %v8098 = vunpack.c.h.b16 %v8058
      %v8099 = vunpack.c.l.b16 %v8059
      %v8100 = vunpack.c.h.b16 %v8059
      %v8101 = vunpack.c.l.b16 %v8060
      %v8102 = vunpack.c.h.b16 %v8060
      %v8103 = vunpack.c.l.b16 %v8061
      %v8104 = vunpack.c.h.b16 %v8061
      %v8105 = vunpack.c.l.b16 %v8062
      %v8106 = vunpack.c.h.b16 %v8062
      %v8107 = vunpack.c.l.b16 %v8063
      %v8108 = vunpack.c.h.b16 %v8063
      %v8109 = vunpack.c.l.b16 %v8064
      %v8110 = vunpack.c.h.b16 %v8064
      %v8111 = vunpack.c.l.b16 %v8065
      %v8112 = vunpack.c.h.b16 %v8065
      %v8113 = vunpack.c.l.b16 %v8066
      %v8114 = vunpack.c.h.b16 %v8066
      %v8115 = vpack.c.b16 %v8083, %v8083
      %v8116 = vpack.c.b16 %v8084, %v8084
      %v8117 = vpack.c.b16 %v8085, %v8085
      %v8118 = vpack.c.b16 %v8086, %v8086
      %v8119 = vpack.c.b16 %v8087, %v8087
      %v8120 = vpack.c.b16 %v8088, %v8088
      %v8121 = vpack.c.b16 %v8089, %v8089
      %v8122 = vpack.c.b16 %v8090, %v8090
      %v8123 = vpack.c.b16 %v8091, %v8091
      %v8124 = vpack.c.b16 %v8092, %v8092
      %v8125 = vpack.c.b16 %v8093, %v8093
      %v8126 = vpack.c.b16 %v8094, %v8094
      %v8127 = vpack.c.b16 %v8095, %v8095
      %v8128 = vpack.c.b16 %v8096, %v8096
      %v8129 = vpack.c.b16 %v8097, %v8097
      %v8130 = vpack.c.b16 %v8098, %v8098
      %v8131 = vpack.c.b16 %v8099, %v8099
      %v8132 = vpack.c.b16 %v8100, %v8100
      %v8133 = vpack.c.b16 %v8101, %v8101
      %v8134 = vpack.c.b16 %v8102, %v8102
      %v8135 = vpack.c.b16 %v8103, %v8103
      %v8136 = vpack.c.b16 %v8104, %v8104
      %v8137 = vpack.c.b16 %v8105, %v8105
      %v8138 = vpack.c.b16 %v8106, %v8106
      %v8139 = vpack.c.b16 %v8107, %v8107
      %v8140 = vpack.c.b16 %v8108, %v8108
      %v8141 = vpack.c.b16 %v8109, %v8109
      %v8142 = vpack.c.b16 %v8110, %v8110
      %v8143 = vpack.c.b16 %v8111, %v8111
      %v8144 = vpack.c.b16 %v8112, %v8112
      %v8145 = vpack.c.b16 %v8113, %v8113
      %v8146 = vpack.c.b16 %v8114, %v8114
      %vm8179 = vcmask 60416
      %8180 = vst.msk [vmem:[%s278] sm:$0xf] %vm8179, %v8115
      %8181 = vst.msk [vmem:[%s278 + $0x4] sm:$0xf] %vm8179, %v8116
      %8182 = vst.msk [vmem:[%s278 + $0x8] sm:$0xf] %vm8179, %v8117
      %8183 = vst.msk [vmem:[%s278 + $0xc] sm:$0xf] %vm8179, %v8118
      %8184 = vst.msk [vmem:[%s278 + $0x10] sm:$0xf] %vm8179, %v8119
      %8185 = vst.msk [vmem:[%s278 + $0x14] sm:$0xf] %vm8179, %v8120
      %8186 = vst.msk [vmem:[%s278 + $0x18] sm:$0xf] %vm8179, %v8121
      %8187 = vst.msk [vmem:[%s278 + $0x1c] sm:$0xf] %vm8179, %v8122
      %8188 = vst.msk [vmem:[%s278 + $0x20] sm:$0xf] %vm8179, %v8123
      %8189 = vst.msk [vmem:[%s278 + $0x24] sm:$0xf] %vm8179, %v8124
      %8190 = vst.msk [vmem:[%s278 + $0x28] sm:$0xf] %vm8179, %v8125
      %8191 = vst.msk [vmem:[%s278 + $0x2c] sm:$0xf] %vm8179, %v8126
      %8192 = vst.msk [vmem:[%s278 + $0x30] sm:$0xf] %vm8179, %v8127
      %8193 = vst.msk [vmem:[%s278 + $0x34] sm:$0xf] %vm8179, %v8128
      %8194 = vst.msk [vmem:[%s278 + $0x38] sm:$0xf] %vm8179, %v8129
      %8195 = vst.msk [vmem:[%s278 + $0x3c] sm:$0xf] %vm8179, %v8130
      %8196 = vst.msk [vmem:[%s278 + $0x40] sm:$0xf] %vm8179, %v8131
      %8197 = vst.msk [vmem:[%s278 + $0x44] sm:$0xf] %vm8179, %v8132
      %8198 = vst.msk [vmem:[%s278 + $0x48] sm:$0xf] %vm8179, %v8133
      %8199 = vst.msk [vmem:[%s278 + $0x4c] sm:$0xf] %vm8179, %v8134
      %8200 = vst.msk [vmem:[%s278 + $0x50] sm:$0xf] %vm8179, %v8135
      %8201 = vst.msk [vmem:[%s278 + $0x54] sm:$0xf] %vm8179, %v8136
      %8202 = vst.msk [vmem:[%s278 + $0x58] sm:$0xf] %vm8179, %v8137
      %8203 = vst.msk [vmem:[%s278 + $0x5c] sm:$0xf] %vm8179, %v8138
      %8204 = vst.msk [vmem:[%s278 + $0x60] sm:$0xf] %vm8179, %v8139
      %8205 = vst.msk [vmem:[%s278 + $0x64] sm:$0xf] %vm8179, %v8140
      %8206 = vst.msk [vmem:[%s278 + $0x68] sm:$0xf] %vm8179, %v8141
      %8207 = vst.msk [vmem:[%s278 + $0x6c] sm:$0xf] %vm8179, %v8142
      %8208 = vst.msk [vmem:[%s278 + $0x70] sm:$0xf] %vm8179, %v8143
      %8209 = vst.msk [vmem:[%s278 + $0x74] sm:$0xf] %vm8179, %v8144
      %8210 = vst.msk [vmem:[%s278 + $0x78] sm:$0xf] %vm8179, %v8145
      %8211 = vst.msk [vmem:[%s278 + $0x7c] sm:$0xf] %vm8179, %v8146
      %p8212 = scmp.lt.s32.totalorder %s18, 1
      %s8213 = scalar_select %p8212, %s18, 1
      %s8214 = smul.addr %s8213, 32
      %s8215 = smul.addr %s8214, 4
      %s8216 = scalar_lea.vmem %s7, %s8215
      // Predicated region
      $region49: #{tpu_custom_call.1} parent=47 // pred_check
        %p8217 = pneg %p188
      $region50: #{tpu_custom_call.1} parent=47 // pred_check_branch
        %8219 = sbr.rel (%p8217) target = $region52
      $region51: #{tpu_custom_call.1} parent=47 // pred_region
        _
      $region52: #{tpu_custom_call.1} parent=47 // pred_fallthru
        _
    $region48: #{tpu_custom_call.1} parent=5 // pred_fallthru
      _
    %p8220 = scmp.le.s32.totalorder 2, %s13
    // Predicated region
    $region53: #{tpu_custom_call.1} parent=5 // pred_check
      %p8221 = pneg %p8220
    $region54: #{tpu_custom_call.1} parent=5 // pred_check_branch
      %8223 = sbr.rel (%p8221) target = $region56
    $region55: #{tpu_custom_call.1} parent=5 // pred_region
      %s8224 = ssub.s32 %s13, 2
      // Predicated region
      $region57: #{tpu_custom_call.1} parent=55 // pred_check
        %p8225 = pneg %p194
      $region58: #{tpu_custom_call.1} parent=55 // pred_check_branch
        %8227 = sbr.rel (%p8225) target = $region60
      $region59: #{tpu_custom_call.1} parent=55 // pred_region
        %p8228 = scmp.lt.s32.totalorder %s19, 1
        %s8229 = scalar_select %p8228, %s19, 1
        %s8230 = smul.addr %s8229, 32
        %s8231 = smul.addr %s8230, 4
        %s8232 = scalar_lea.vmem %s7, %s8231
      $region60: #{tpu_custom_call.1} parent=55 // pred_fallthru
        _
    $region56: #{tpu_custom_call.1} parent=5 // pred_fallthru
      _
  $region6: #{tpu_custom_call.1} parent=0 // loop_footer
    %s17 = sadd.s32 1, %s13
  $region7: #{tpu_custom_call.1} parent=0 // loop_footer_branch
    %12 = sbr.rel target = $region3
  $region8: #{tpu_custom_call.1} parent=0 // loop_exit
    _

</llo_original>
